<compile_context>
chip_gen: v7x
topology: tpu7x:2x2x1
jax: 0.10.0
libtpu: 0.0.40
codegen_flags: <defaults>
</compile_context>

<pallas_src>
import functools

import jax
import jax.numpy as jnp
from jax.experimental import pallas as pl
from jax.experimental.pallas import tpu as pltpu


# ---------------------------------------------------------------------------
# Fused BasicBlock kernel
# ---------------------------------------------------------------------------
def _basic_block_kernel(x_ref, w1_ref, b1_ref, w2_ref, b2_ref, *rest,
                        H, W, Cin, Cmid, Cout, rt, has_projection, cdt):
    """Grid = (N, H // rt).  Refs:

    x_ref:   (1, H, W, Cin)   whole input sample (resident across row tiles)
    w1_ref:  (9, Cin, Cmid)   conv1 weights, BN1 scale folded, per-tap layout
    b1_ref:  (1, Cmid)        folded BN1 bias (f32)
    w2_ref:  (9, Cmid, Cout)  conv2 weights, BN2 scale folded
    b2_ref:  (1, Cout)        folded BN2 bias (f32)
    wsc/bsc: (Cin, Cout)/(1, Cout)  optional projection shortcut (+folded BN)
    o_ref:   (1, rt*W, Cout)  output row tile, natural lane-dense layout
    pad1:    (H+2, W+2, Cin)  padded input scratch (compute dtype)
    pad2:    (H+2, W+2, Cmid) padded conv1-output scratch (compute dtype)
    """
    if has_projection:
        wsc_ref, bsc_ref, o_ref, pad1_ref, pad2_ref = rest
    else:
        o_ref, pad1_ref, pad2_ref = rest
        wsc_ref = bsc_ref = None

    r = pl.program_id(1)

    def zero_border(ref):
        # Zero only the 1-pixel halo border; interior gets fully overwritten.
        R, Wp, C = ref.shape
        zrow = jnp.zeros((1, Wp, C), ref.dtype)
        zcol = jnp.zeros((R, 1, C), ref.dtype)
        ref[0:1, :, :] = zrow
        ref[R - 1:R, :, :] = zrow
        ref[:, 0:1, :] = zcol
        ref[:, Wp - 1:Wp, :] = zcol

    def conv3x3_acc(view, w_ref, bias):
        # 9 accumulating matmuls, single f32 accumulator (no im2col concat).
        acc = bias                                     # (1, C) f32, broadcasts
        for k in range(9):
            kh, kw = divmod(k, 3)
            acc = acc + jnp.dot(view(kh, kw), w_ref[k],
                                preferred_element_type=jnp.float32)
        return acc

    # ---- once per sample (first row tile): conv1 + bn1 + relu, kept in VMEM
    @pl.when(r == 0)
    def _():
        zero_border(pad1_ref)
        zero_border(pad2_ref)
        pad1_ref[1:H + 1, 1:W + 1, :] = x_ref[0].astype(cdt)

        def v1(kh, kw):
            return pad1_ref[kh:kh + H, kw:kw + W, :].reshape(H * W, Cin)

        h = conv3x3_acc(v1, w1_ref, b1_ref[...])       # (H*W, Cmid) f32
        h = jnp.maximum(h, 0.0).astype(cdt)
        pad2_ref[1:H + 1, 1:W + 1, :] = h.reshape(H, W, Cmid)

    # ---- every step: conv2 + bn2, shortcut, add, relu for rows [r*rt, r*rt+rt)
    r0 = pl.multiple_of(r * rt, rt)

    def v2(kh, kw):
        return pad2_ref[pl.ds(r0 + kh, rt), kw:kw + W, :].reshape(rt * W, Cmid)

    y = conv3x3_acc(v2, w2_ref, b2_ref[...])           # (rt*W, Cout) f32

    x_tile = x_ref[:, pl.ds(r0, rt), :, :].reshape(rt * W, Cin)
    if has_projection:
        sc = jnp.dot(x_tile.astype(cdt), wsc_ref[...],
                     preferred_element_type=jnp.float32) + bsc_ref[...]
    else:
        sc = x_tile.astype(jnp.float32)                # requires Cin == Cout

    out = jnp.maximum(y + sc, 0.0)                     # f32 epilogue
    o_ref[...] = out.reshape(1, rt * W, Cout).astype(o_ref.dtype)


# ---------------------------------------------------------------------------
# Wrapper
# ---------------------------------------------------------------------------
def basic_block_forward(x_nchw, params, stride=1, compute_dtype=jnp.bfloat16):
    # TODO(synk): stride > 1 not implemented in the Pallas kernel.
    assert stride == 1, "only stride=1 is implemented in the Pallas kernel"
    x = jnp.transpose(x_nchw, (0, 2, 3, 1))            # NCHW -> NHWC
    N, H, W, Cin = x.shape
    Cmid = params["w1"].shape[-1]
    Cout = params["w2"].shape[-1]
    cdt = compute_dtype

    rt = 8 if H % 8 == 0 else H                        # row-tile size
    R = H // rt

    # Fold BN scale into conv weights; HWIO -> (9, Cin, Cout) per-tap layout.
    w1 = (params["w1"] * params["s1"]).reshape(9, Cin, Cmid).astype(cdt)
    w2 = (params["w2"] * params["s2"]).reshape(9, Cmid, Cout).astype(cdt)
    b1 = params["b1"].reshape(1, Cmid).astype(jnp.float32)
    b2 = params["b2"].reshape(1, Cout).astype(jnp.float32)

    has_projection = params["shortcut"] is not None
    args = [x, w1, b1, w2, b2]
    in_specs = [
        pl.BlockSpec((1, H, W, Cin), lambda n, r: (n, 0, 0, 0)),
        pl.BlockSpec((9, Cin, Cmid), lambda n, r: (0, 0, 0)),
        pl.BlockSpec((1, Cmid), lambda n, r: (0, 0)),
        pl.BlockSpec((9, Cmid, Cout), lambda n, r: (0, 0, 0)),
        pl.BlockSpec((1, Cout), lambda n, r: (0, 0)),
    ]
    if has_projection:
        w_sc, s_sc, b_sc = params["shortcut"]
        args += [(w_sc * s_sc).astype(cdt),
                 b_sc.reshape(1, Cout).astype(jnp.float32)]
        in_specs += [pl.BlockSpec((Cin, Cout), lambda n, r: (0, 0)),
                     pl.BlockSpec((1, Cout), lambda n, r: (0, 0))]
    else:
        assert Cin == Cout, "identity shortcut requires in_planes == planes"

    kernel = functools.partial(
        _basic_block_kernel, H=H, W=W, Cin=Cin, Cmid=Cmid, Cout=Cout,
        rt=rt, has_projection=has_projection, cdt=cdt)

    out = pl.pallas_call(
        kernel,
        out_shape=jax.ShapeDtypeStruct((N, H * W, Cout), x.dtype),
        grid=(N, R),
        in_specs=in_specs,
        out_specs=pl.BlockSpec((1, rt * W, Cout), lambda n, r: (n, r, 0)),
        scratch_shapes=[pltpu.VMEM((H + 2, W + 2, Cin), cdt),
                        pltpu.VMEM((H + 2, W + 2, Cmid), cdt)],
        compiler_params=pltpu.CompilerParams(
            dimension_semantics=("parallel", "arbitrary"),
            vmem_limit_bytes=48 * 1024 * 1024),
    )(*args)

    out = out.reshape(N, H, W, Cout)                   # free (contiguous)
    return jnp.transpose(out, (0, 3, 1, 2))            # NHWC -> NCHW


# ---------------------------------------------------------------------------
# Parameter init (deterministic, eval-mode BN folded into scale/bias)
# ---------------------------------------------------------------------------
def _fold_bn(key, channels, eps=1e-5):
    kg, kb, km, kv = jax.random.split(key, 4)
    gamma = 1.0 + 0.1 * jax.random.normal(kg, (channels,), jnp.float32)
    beta = 0.1 * jax.random.normal(kb, (channels,), jnp.float32)
    mean = 0.1 * jax.random.normal(km, (channels,), jnp.float32)
    var = 0.5 + 0.5 * jnp.abs(jax.random.normal(kv, (channels,), jnp.float32))
    scale = gamma * jax.lax.rsqrt(var + eps)
    bias = beta - mean * scale
    return scale, bias


def init_basic_block_params(key, in_planes, planes, stride=1):
    expansion = 1
    k1, k2, k3, kb1, kb2, kb3 = jax.random.split(key, 6)
    std1 = (2.0 / (in_planes * 9)) ** 0.5
    std2 = (2.0 / (planes * 9)) ** 0.5
    params = {
        "w1": std1 * jax.random.normal(k1, (3, 3, in_planes, planes), jnp.float32),
        "w2": std2 * jax.random.normal(k2, (3, 3, planes, planes), jnp.float32),
    }
    params["s1"], params["b1"] = _fold_bn(kb1, planes)
    params["s2"], params["b2"] = _fold_bn(kb2, planes)
    if stride != 1 or in_planes != expansion * planes:
        std_sc = (2.0 / in_planes) ** 0.5
        w_sc = std_sc * jax.random.normal(
            k3, (in_planes, expansion * planes), jnp.float32)
        s_sc, b_sc = _fold_bn(kb3, expansion * planes)
        params["shortcut"] = (w_sc, s_sc, b_sc)
    else:
        params["shortcut"] = None
    return params


# ---------------------------------------------------------------------------
# Pure-JAX reference (compute_dtype emulates the kernel's operand precision)
# ---------------------------------------------------------------------------
def basic_block_reference(x_nchw, params, compute_dtype=jnp.float32):
    x = jnp.transpose(x_nchw, (0, 2, 3, 1))
    w1 = (params["w1"] * params["s1"]).astype(compute_dtype)
    w2 = (params["w2"] * params["s2"]).astype(compute_dtype)

    def conv3x3(v, w):
        return jax.lax.conv_general_dilated(
            v.astype(compute_dtype), w, window_strides=(1, 1),
            padding=((1, 1), (1, 1)),
            dimension_numbers=("NHWC", "HWIO", "NHWC"),
            preferred_element_type=jnp.float32)

    out = conv3x3(x, w1) + params["b1"]
    out = jnp.maximum(out, 0.0)
    out = conv3x3(out, w2) + params["b2"]

    if params["shortcut"] is not None:
        w_sc, s_sc, b_sc = params["shortcut"]
        wsc = (w_sc * s_sc).astype(compute_dtype)
        sc = jnp.einsum("nhwc,cd->nhwd", x.astype(compute_dtype), wsc,
                        preferred_element_type=jnp.float32) + b_sc
    else:
        sc = x.astype(jnp.float32)
    return jnp.transpose(jnp.maximum(out + sc, 0.0), (0, 3, 1, 2))


# ---------------------------------------------------------------------------
if __name__ == "__main__":
    key = jax.random.PRNGKey(0)
    kx1, kp1, kx2, kp2 = jax.random.split(key, 4)

    N, in_planes, planes, H, W = 2, 4, 8, 16, 16

    # Case 1: projection shortcut (in_planes != planes), full-f32 compute path.
    x1 = jax.random.normal(kx1, (N, in_planes, H, W), jnp.float32)
    params1 = init_basic_block_params(kp1, in_planes, planes, 1)
    y1 = jax.block_until_ready(
        basic_block_forward(x1, params1, 1, compute_dtype=jnp.float32))
    y1_ref = basic_block_reference(x1, params1, compute_dtype=jnp.float32)
    assert y1.shape == (N, planes, H, W), y1.shape
    err1 = float(jnp.max(jnp.abs(y1 - y1_ref)))
    assert err1 < 2e-4, f"projection-shortcut (f32) mismatch: {err1}"

    # Case 2: identity shortcut (in_planes == planes), full-f32 compute path.
    x2 = jax.random.normal(kx2, (N, planes, H, W), jnp.float32)
    params2 = init_basic_block_params(kp2, planes, planes, 1)
    y2 = jax.block_until_ready(
        basic_block_forward(x2, params2, 1, compute_dtype=jnp.float32))
    y2_ref = basic_block_reference(x2, params2, compute_dtype=jnp.float32)
    assert y2.shape == (N, planes, H, W), y2.shape
    err2 = float(jnp.max(jnp.abs(y2 - y2_ref)))
    assert err2 < 2e-4, f"identity-shortcut (f32) mismatch: {err2}"

    # Case 3: default bf16-operand fast path (f32 accumulation / epilogue),
    # compared against a bf16-operand-emulating reference.
    y3 = jax.block_until_ready(basic_block_forward(x1, params1, 1))
    y3_ref = basic_block_reference(x1, params1, compute_dtype=jnp.bfloat16)
    err3 = float(jnp.max(jnp.abs(y3 - y3_ref)))
    assert err3 < 1e-1, f"bf16 fast-path mismatch: {err3}"

    print("KERNEL_OK")
</pallas_src>

<mosaic_0001>
module attributes {stable_mosaic.version = 11 : i64} {
  func.func @_basic_block_kernel(%arg0: i32, %arg1: i32, %arg2: memref<1x16x16x4xf32, #tpu.memory_space<vmem>>, %arg3: memref<9x4x8xf32, #tpu.memory_space<vmem>>, %arg4: memref<1x8xf32, #tpu.memory_space<vmem>>, %arg5: memref<9x8x8xf32, #tpu.memory_space<vmem>>, %arg6: memref<1x8xf32, #tpu.memory_space<vmem>>, %arg7: memref<4x8xf32, #tpu.memory_space<vmem>>, %arg8: memref<1x8xf32, #tpu.memory_space<vmem>>, %arg9: memref<1x128x8xf32, #tpu.memory_space<vmem>>, %arg10: memref<18x18x4xf32, #tpu.memory_space<vmem>>, %arg11: memref<18x18x8xf32, #tpu.memory_space<vmem>>) attributes {dimension_semantics = [#tpu.dimension_semantics<parallel>, #tpu.dimension_semantics<arbitrary>], iteration_bounds = array<i64: 2, 2>, scalar_prefetch = 0 : i64, scratch_operands = 2 : i64, tpu.core_type = #tpu.core_type<tc>, window_params = [{transform_indices = @transform_0, window_bounds = array<i64: 1, 16, 16, 4>}, {pipeline_mode = #tpu.pipeline_mode<synchronous>, transform_indices = @transform_1, window_bounds = array<i64: 9, 4, 8>}, {pipeline_mode = #tpu.pipeline_mode<synchronous>, transform_indices = @transform_2, window_bounds = array<i64: 1, 8>}, {pipeline_mode = #tpu.pipeline_mode<synchronous>, transform_indices = @transform_3, window_bounds = array<i64: 9, 8, 8>}, {pipeline_mode = #tpu.pipeline_mode<synchronous>, transform_indices = @transform_4, window_bounds = array<i64: 1, 8>}, {pipeline_mode = #tpu.pipeline_mode<synchronous>, transform_indices = @transform_5, window_bounds = array<i64: 4, 8>}, {pipeline_mode = #tpu.pipeline_mode<synchronous>, transform_indices = @transform_6, window_bounds = array<i64: 1, 8>}, {transform_indices = @transform_7, window_bounds = array<i64: 1, 128, 8>}]} {
    %c0_i32 = arith.constant 0 : i32
    %0 = arith.cmpi eq, %arg1, %c0_i32 : i32
    %1 = arith.extui %0 : i1 to i32
    %c0_i32_0 = arith.constant 0 : i32
    %2 = arith.cmpi ne, %1, %c0_i32_0 : i32
    scf.if %2 {
      %cst_66 = arith.constant 0.000000e+00 : f32
      %92 = vector.broadcast %cst_66 : f32 to vector<1x18x4xf32>
      %cst_67 = arith.constant 0.000000e+00 : f32
      %93 = vector.broadcast %cst_67 : f32 to vector<18x1x4xf32>
      %c0_68 = arith.constant 0 : index
      %c0_69 = arith.constant 0 : index
      %c0_70 = arith.constant 0 : index
      %94 = vector.load %arg10[%c0_68, %c0_69, %c0_70] : memref<18x18x4xf32, #tpu.memory_space<vmem>>, vector<1x18x4xf32>
      tpu.vector_store %arg10[%c0_68, %c0_69, %c0_70], %92 {strides = array<i32>} : memref<18x18x4xf32, #tpu.memory_space<vmem>>, vector<1x18x4xf32>,
      %c17 = arith.constant 17 : index
      %c0_71 = arith.constant 0 : index
      %c0_72 = arith.constant 0 : index
      %95 = vector.load %arg10[%c17, %c0_71, %c0_72] : memref<18x18x4xf32, #tpu.memory_space<vmem>>, vector<1x18x4xf32>
      tpu.vector_store %arg10[%c17, %c0_71, %c0_72], %92 {strides = array<i32>} : memref<18x18x4xf32, #tpu.memory_space<vmem>>, vector<1x18x4xf32>,
      %c0_73 = arith.constant 0 : index
      %c0_74 = arith.constant 0 : index
      %c0_75 = arith.constant 0 : index
      %96 = vector.load %arg10[%c0_73, %c0_74, %c0_75] : memref<18x18x4xf32, #tpu.memory_space<vmem>>, vector<18x1x4xf32>
      tpu.vector_store %arg10[%c0_73, %c0_74, %c0_75], %93 {strides = array<i32>} : memref<18x18x4xf32, #tpu.memory_space<vmem>>, vector<18x1x4xf32>,
      %c0_76 = arith.constant 0 : index
      %c17_77 = arith.constant 17 : index
      %c0_78 = arith.constant 0 : index
      %97 = vector.load %arg10[%c0_76, %c17_77, %c0_78] : memref<18x18x4xf32, #tpu.memory_space<vmem>>, vector<18x1x4xf32>
      tpu.vector_store %arg10[%c0_76, %c17_77, %c0_78], %93 {strides = array<i32>} : memref<18x18x4xf32, #tpu.memory_space<vmem>>, vector<18x1x4xf32>,
      %cst_79 = arith.constant 0.000000e+00 : f32
      %98 = vector.broadcast %cst_79 : f32 to vector<1x18x8xf32>
      %cst_80 = arith.constant 0.000000e+00 : f32
      %99 = vector.broadcast %cst_80 : f32 to vector<18x1x8xf32>
      %c0_81 = arith.constant 0 : index
      %c0_82 = arith.constant 0 : index
      %c0_83 = arith.constant 0 : index
      %100 = vector.load %arg11[%c0_81, %c0_82, %c0_83] : memref<18x18x8xf32, #tpu.memory_space<vmem>>, vector<1x18x8xf32>
      tpu.vector_store %arg11[%c0_81, %c0_82, %c0_83], %98 {strides = array<i32>} : memref<18x18x8xf32, #tpu.memory_space<vmem>>, vector<1x18x8xf32>,
      %c17_84 = arith.constant 17 : index
      %c0_85 = arith.constant 0 : index
      %c0_86 = arith.constant 0 : index
      %101 = vector.load %arg11[%c17_84, %c0_85, %c0_86] : memref<18x18x8xf32, #tpu.memory_space<vmem>>, vector<1x18x8xf32>
      tpu.vector_store %arg11[%c17_84, %c0_85, %c0_86], %98 {strides = array<i32>} : memref<18x18x8xf32, #tpu.memory_space<vmem>>, vector<1x18x8xf32>,
      %c0_87 = arith.constant 0 : index
      %c0_88 = arith.constant 0 : index
      %c0_89 = arith.constant 0 : index
      %102 = vector.load %arg11[%c0_87, %c0_88, %c0_89] : memref<18x18x8xf32, #tpu.memory_space<vmem>>, vector<18x1x8xf32>
      tpu.vector_store %arg11[%c0_87, %c0_88, %c0_89], %99 {strides = array<i32>} : memref<18x18x8xf32, #tpu.memory_space<vmem>>, vector<18x1x8xf32>,
      %c0_90 = arith.constant 0 : index
      %c17_91 = arith.constant 17 : index
      %c0_92 = arith.constant 0 : index
      %103 = vector.load %arg11[%c0_90, %c17_91, %c0_92] : memref<18x18x8xf32, #tpu.memory_space<vmem>>, vector<18x1x8xf32>
      tpu.vector_store %arg11[%c0_90, %c17_91, %c0_92], %99 {strides = array<i32>} : memref<18x18x8xf32, #tpu.memory_space<vmem>>, vector<18x1x8xf32>,
      %c0_93 = arith.constant 0 : index
      %c0_94 = arith.constant 0 : index
      %c0_95 = arith.constant 0 : index
      %c0_96 = arith.constant 0 : index
      %104 = vector.load %arg2[%c0_93, %c0_94, %c0_95, %c0_96] : memref<1x16x16x4xf32, #tpu.memory_space<vmem>>, vector<1x16x16x4xf32>
      %105 = vector.shape_cast %104 : vector<1x16x16x4xf32> to vector<16x16x4xf32>
      %c1_97 = arith.constant 1 : index
      %c1_98 = arith.constant 1 : index
      %c0_99 = arith.constant 0 : index
      %106 = vector.load %arg10[%c1_97, %c1_98, %c0_99] : memref<18x18x4xf32, #tpu.memory_space<vmem>>, vector<16x16x4xf32>
      tpu.vector_store %arg10[%c1_97, %c1_98, %c0_99], %105 {strides = array<i32>} : memref<18x18x4xf32, #tpu.memory_space<vmem>>, vector<16x16x4xf32>,
      %c0_100 = arith.constant 0 : index
      %c0_101 = arith.constant 0 : index
      %107 = vector.load %arg4[%c0_100, %c0_101] : memref<1x8xf32, #tpu.memory_space<vmem>>, vector<1x8xf32>
      %c0_102 = arith.constant 0 : index
      %c0_103 = arith.constant 0 : index
      %c0_104 = arith.constant 0 : index
      %108 = vector.load %arg10[%c0_102, %c0_103, %c0_104] : memref<18x18x4xf32, #tpu.memory_space<vmem>>, vector<16x16x4xf32>
      %109 = vector.shape_cast %108 : vector<16x16x4xf32> to vector<256x4xf32>
      %c0_105 = arith.constant 0 : index
      %c0_106 = arith.constant 0 : index
      %c0_107 = arith.constant 0 : index
      %110 = vector.load %arg3[%c0_105, %c0_106, %c0_107] : memref<9x4x8xf32, #tpu.memory_space<vmem>>, vector<1x4x8xf32>
      %111 = vector.shape_cast %110 : vector<1x4x8xf32> to vector<4x8xf32>
      %cst_108 = arith.constant dense<0.000000e+00> : vector<256x8xf32>
      %112 = tpu.matmul %109, %111, %cst_108 {dimension_numbers = #tpu.dot_dimension_numbers<[1], [0], [0], [1], [0, 0, 1, 1], [], []>} : vector<256x4xf32>, vector<4x8xf32>, vector<256x8xf32> -> vector<256x8xf32>
      %113 = vector.broadcast %107 : vector<1x8xf32> to vector<256x8xf32>
      %114 = arith.addf %113, %112 : vector<256x8xf32>
      %c0_109 = arith.constant 0 : index
      %c1_110 = arith.constant 1 : index
      %c0_111 = arith.constant 0 : index
      %115 = vector.load %arg10[%c0_109, %c1_110, %c0_111] : memref<18x18x4xf32, #tpu.memory_space<vmem>>, vector<16x16x4xf32>
      %116 = vector.shape_cast %115 : vector<16x16x4xf32> to vector<256x4xf32>
      %c1_112 = arith.constant 1 : index
      %c0_113 = arith.constant 0 : index
      %c0_114 = arith.constant 0 : index
      %117 = vector.load %arg3[%c1_112, %c0_113, %c0_114] : memref<9x4x8xf32, #tpu.memory_space<vmem>>, vector<1x4x8xf32>
      %118 = vector.shape_cast %117 : vector<1x4x8xf32> to vector<4x8xf32>
      %cst_115 = arith.constant dense<0.000000e+00> : vector<256x8xf32>
      %119 = tpu.matmul %116, %118, %cst_115 {dimension_numbers = #tpu.dot_dimension_numbers<[1], [0], [0], [1], [0, 0, 1, 1], [], []>} : vector<256x4xf32>, vector<4x8xf32>, vector<256x8xf32> -> vector<256x8xf32>
      %120 = arith.addf %114, %119 : vector<256x8xf32>
      %c0_116 = arith.constant 0 : index
      %c2_117 = arith.constant 2 : index
      %c0_118 = arith.constant 0 : index
      %121 = vector.load %arg10[%c0_116, %c2_117, %c0_118] : memref<18x18x4xf32, #tpu.memory_space<vmem>>, vector<16x16x4xf32>
      %122 = vector.shape_cast %121 : vector<16x16x4xf32> to vector<256x4xf32>
      %c2_119 = arith.constant 2 : index
      %c0_120 = arith.constant 0 : index
      %c0_121 = arith.constant 0 : index
      %123 = vector.load %arg3[%c2_119, %c0_120, %c0_121] : memref<9x4x8xf32, #tpu.memory_space<vmem>>, vector<1x4x8xf32>
      %124 = vector.shape_cast %123 : vector<1x4x8xf32> to vector<4x8xf32>
      %cst_122 = arith.constant dense<0.000000e+00> : vector<256x8xf32>
      %125 = tpu.matmul %122, %124, %cst_122 {dimension_numbers = #tpu.dot_dimension_numbers<[1], [0], [0], [1], [0, 0, 1, 1], [], []>} : vector<256x4xf32>, vector<4x8xf32>, vector<256x8xf32> -> vector<256x8xf32>
      %126 = arith.addf %120, %125 : vector<256x8xf32>
      %c1_123 = arith.constant 1 : index
      %c0_124 = arith.constant 0 : index
      %c0_125 = arith.constant 0 : index
      %127 = vector.load %arg10[%c1_123, %c0_124, %c0_125] : memref<18x18x4xf32, #tpu.memory_space<vmem>>, vector<16x16x4xf32>
      %128 = vector.shape_cast %127 : vector<16x16x4xf32> to vector<256x4xf32>
      %c3_126 = arith.constant 3 : index
      %c0_127 = arith.constant 0 : index
      %c0_128 = arith.constant 0 : index
      %129 = vector.load %arg3[%c3_126, %c0_127, %c0_128] : memref<9x4x8xf32, #tpu.memory_space<vmem>>, vector<1x4x8xf32>
      %130 = vector.shape_cast %129 : vector<1x4x8xf32> to vector<4x8xf32>
      %cst_129 = arith.constant dense<0.000000e+00> : vector<256x8xf32>
      %131 = tpu.matmul %128, %130, %cst_129 {dimension_numbers = #tpu.dot_dimension_numbers<[1], [0], [0], [1], [0, 0, 1, 1], [], []>} : vector<256x4xf32>, vector<4x8xf32>, vector<256x8xf32> -> vector<256x8xf32>
      %132 = arith.addf %126, %131 : vector<256x8xf32>
      %c1_130 = arith.constant 1 : index
      %c1_131 = arith.constant 1 : index
      %c0_132 = arith.constant 0 : index
      %133 = vector.load %arg10[%c1_130, %c1_131, %c0_132] : memref<18x18x4xf32, #tpu.memory_space<vmem>>, vector<16x16x4xf32>
      %134 = vector.shape_cast %133 : vector<16x16x4xf32> to vector<256x4xf32>
      %c4_133 = arith.constant 4 : index
      %c0_134 = arith.constant 0 : index
      %c0_135 = arith.constant 0 : index
      %135 = vector.load %arg3[%c4_133, %c0_134, %c0_135] : memref<9x4x8xf32, #tpu.memory_space<vmem>>, vector<1x4x8xf32>
      %136 = vector.shape_cast %135 : vector<1x4x8xf32> to vector<4x8xf32>
      %cst_136 = arith.constant dense<0.000000e+00> : vector<256x8xf32>
      %137 = tpu.matmul %134, %136, %cst_136 {dimension_numbers = #tpu.dot_dimension_numbers<[1], [0], [0], [1], [0, 0, 1, 1], [], []>} : vector<256x4xf32>, vector<4x8xf32>, vector<256x8xf32> -> vector<256x8xf32>
      %138 = arith.addf %132, %137 : vector<256x8xf32>
      %c1_137 = arith.constant 1 : index
      %c2_138 = arith.constant 2 : index
      %c0_139 = arith.constant 0 : index
      %139 = vector.load %arg10[%c1_137, %c2_138, %c0_139] : memref<18x18x4xf32, #tpu.memory_space<vmem>>, vector<16x16x4xf32>
      %140 = vector.shape_cast %139 : vector<16x16x4xf32> to vector<256x4xf32>
      %c5_140 = arith.constant 5 : index
      %c0_141 = arith.constant 0 : index
      %c0_142 = arith.constant 0 : index
      %141 = vector.load %arg3[%c5_140, %c0_141, %c0_142] : memref<9x4x8xf32, #tpu.memory_space<vmem>>, vector<1x4x8xf32>
      %142 = vector.shape_cast %141 : vector<1x4x8xf32> to vector<4x8xf32>
      %cst_143 = arith.constant dense<0.000000e+00> : vector<256x8xf32>
      %143 = tpu.matmul %140, %142, %cst_143 {dimension_numbers = #tpu.dot_dimension_numbers<[1], [0], [0], [1], [0, 0, 1, 1], [], []>} : vector<256x4xf32>, vector<4x8xf32>, vector<256x8xf32> -> vector<256x8xf32>
      %144 = arith.addf %138, %143 : vector<256x8xf32>
      %c2_144 = arith.constant 2 : index
      %c0_145 = arith.constant 0 : index
      %c0_146 = arith.constant 0 : index
      %145 = vector.load %arg10[%c2_144, %c0_145, %c0_146] : memref<18x18x4xf32, #tpu.memory_space<vmem>>, vector<16x16x4xf32>
      %146 = vector.shape_cast %145 : vector<16x16x4xf32> to vector<256x4xf32>
      %c6_147 = arith.constant 6 : index
      %c0_148 = arith.constant 0 : index
      %c0_149 = arith.constant 0 : index
      %147 = vector.load %arg3[%c6_147, %c0_148, %c0_149] : memref<9x4x8xf32, #tpu.memory_space<vmem>>, vector<1x4x8xf32>
      %148 = vector.shape_cast %147 : vector<1x4x8xf32> to vector<4x8xf32>
      %cst_150 = arith.constant dense<0.000000e+00> : vector<256x8xf32>
      %149 = tpu.matmul %146, %148, %cst_150 {dimension_numbers = #tpu.dot_dimension_numbers<[1], [0], [0], [1], [0, 0, 1, 1], [], []>} : vector<256x4xf32>, vector<4x8xf32>, vector<256x8xf32> -> vector<256x8xf32>
      %150 = arith.addf %144, %149 : vector<256x8xf32>
      %c2_151 = arith.constant 2 : index
      %c1_152 = arith.constant 1 : index
      %c0_153 = arith.constant 0 : index
      %151 = vector.load %arg10[%c2_151, %c1_152, %c0_153] : memref<18x18x4xf32, #tpu.memory_space<vmem>>, vector<16x16x4xf32>
      %152 = vector.shape_cast %151 : vector<16x16x4xf32> to vector<256x4xf32>
      %c7_154 = arith.constant 7 : index
      %c0_155 = arith.constant 0 : index
      %c0_156 = arith.constant 0 : index
      %153 = vector.load %arg3[%c7_154, %c0_155, %c0_156] : memref<9x4x8xf32, #tpu.memory_space<vmem>>, vector<1x4x8xf32>
      %154 = vector.shape_cast %153 : vector<1x4x8xf32> to vector<4x8xf32>
      %cst_157 = arith.constant dense<0.000000e+00> : vector<256x8xf32>
      %155 = tpu.matmul %152, %154, %cst_157 {dimension_numbers = #tpu.dot_dimension_numbers<[1], [0], [0], [1], [0, 0, 1, 1], [], []>} : vector<256x4xf32>, vector<4x8xf32>, vector<256x8xf32> -> vector<256x8xf32>
      %156 = arith.addf %150, %155 : vector<256x8xf32>
      %c2_158 = arith.constant 2 : index
      %c2_159 = arith.constant 2 : index
      %c0_160 = arith.constant 0 : index
      %157 = vector.load %arg10[%c2_158, %c2_159, %c0_160] : memref<18x18x4xf32, #tpu.memory_space<vmem>>, vector<16x16x4xf32>
      %158 = vector.shape_cast %157 : vector<16x16x4xf32> to vector<256x4xf32>
      %c8_161 = arith.constant 8 : index
      %c0_162 = arith.constant 0 : index
      %c0_163 = arith.constant 0 : index
      %159 = vector.load %arg3[%c8_161, %c0_162, %c0_163] : memref<9x4x8xf32, #tpu.memory_space<vmem>>, vector<1x4x8xf32>
      %160 = vector.shape_cast %159 : vector<1x4x8xf32> to vector<4x8xf32>
      %cst_164 = arith.constant dense<0.000000e+00> : vector<256x8xf32>
      %161 = tpu.matmul %158, %160, %cst_164 {dimension_numbers = #tpu.dot_dimension_numbers<[1], [0], [0], [1], [0, 0, 1, 1], [], []>} : vector<256x4xf32>, vector<4x8xf32>, vector<256x8xf32> -> vector<256x8xf32>
      %162 = arith.addf %156, %161 : vector<256x8xf32>
      %cst_165 = arith.constant 0.000000e+00 : f32
      %163 = vector.broadcast %cst_165 : f32 to vector<256x8xf32>
      %164 = arith.maximumf %162, %163 : vector<256x8xf32>
      %165 = vector.shape_cast %164 : vector<256x8xf32> to vector<16x16x8xf32>
      %c1_166 = arith.constant 1 : index
      %c1_167 = arith.constant 1 : index
      %c0_168 = arith.constant 0 : index
      %166 = vector.load %arg11[%c1_166, %c1_167, %c0_168] : memref<18x18x8xf32, #tpu.memory_space<vmem>>, vector<16x16x8xf32>
      tpu.vector_store %arg11[%c1_166, %c1_167, %c0_168], %165 {strides = array<i32>} : memref<18x18x8xf32, #tpu.memory_space<vmem>>, vector<16x16x8xf32>,
    } else {
    }
    %c8_i32 = arith.constant 8 : i32
    %3 = arith.muli %arg1, %c8_i32 : i32
    %4 = tpu.assume_multiple %3, 8 : i32
    %c0 = arith.constant 0 : index
    %c0_1 = arith.constant 0 : index
    %5 = vector.load %arg6[%c0, %c0_1] : memref<1x8xf32, #tpu.memory_space<vmem>>, vector<1x8xf32>
    %c0_i32_2 = arith.constant 0 : i32
    %6 = arith.addi %4, %c0_i32_2 : i32
    %7 = arith.index_cast %6 : i32 to index
    %c0_3 = arith.constant 0 : index
    %c0_4 = arith.constant 0 : index
    %8 = vector.load %arg11[%7, %c0_3, %c0_4] : memref<18x18x8xf32, #tpu.memory_space<vmem>>, vector<8x16x8xf32>
    %9 = vector.shape_cast %8 : vector<8x16x8xf32> to vector<128x8xf32>
    %c0_5 = arith.constant 0 : index
    %c0_6 = arith.constant 0 : index
    %c0_7 = arith.constant 0 : index
    %10 = vector.load %arg5[%c0_5, %c0_6, %c0_7] : memref<9x8x8xf32, #tpu.memory_space<vmem>>, vector<1x8x8xf32>
    %11 = vector.shape_cast %10 : vector<1x8x8xf32> to vector<8x8xf32>
    %cst = arith.constant dense<0.000000e+00> : vector<128x8xf32>
    %12 = tpu.matmul %9, %11, %cst {dimension_numbers = #tpu.dot_dimension_numbers<[1], [0], [0], [1], [0, 0, 1, 1], [], []>} : vector<128x8xf32>, vector<8x8xf32>, vector<128x8xf32> -> vector<128x8xf32>
    %13 = vector.broadcast %5 : vector<1x8xf32> to vector<128x8xf32>
    %14 = arith.addf %13, %12 : vector<128x8xf32>
    %c0_i32_8 = arith.constant 0 : i32
    %15 = arith.addi %4, %c0_i32_8 : i32
    %16 = arith.index_cast %15 : i32 to index
    %c1 = arith.constant 1 : index
    %c0_9 = arith.constant 0 : index
    %17 = vector.load %arg11[%16, %c1, %c0_9] : memref<18x18x8xf32, #tpu.memory_space<vmem>>, vector<8x16x8xf32>
    %18 = vector.shape_cast %17 : vector<8x16x8xf32> to vector<128x8xf32>
    %c1_10 = arith.constant 1 : index
    %c0_11 = arith.constant 0 : index
    %c0_12 = arith.constant 0 : index
    %19 = vector.load %arg5[%c1_10, %c0_11, %c0_12] : memref<9x8x8xf32, #tpu.memory_space<vmem>>, vector<1x8x8xf32>
    %20 = vector.shape_cast %19 : vector<1x8x8xf32> to vector<8x8xf32>
    %cst_13 = arith.constant dense<0.000000e+00> : vector<128x8xf32>
    %21 = tpu.matmul %18, %20, %cst_13 {dimension_numbers = #tpu.dot_dimension_numbers<[1], [0], [0], [1], [0, 0, 1, 1], [], []>} : vector<128x8xf32>, vector<8x8xf32>, vector<128x8xf32> -> vector<128x8xf32>
    %22 = arith.addf %14, %21 : vector<128x8xf32>
    %c0_i32_14 = arith.constant 0 : i32
    %23 = arith.addi %4, %c0_i32_14 : i32
    %24 = arith.index_cast %23 : i32 to index
    %c2 = arith.constant 2 : index
    %c0_15 = arith.constant 0 : index
    %25 = vector.load %arg11[%24, %c2, %c0_15] : memref<18x18x8xf32, #tpu.memory_space<vmem>>, vector<8x16x8xf32>
    %26 = vector.shape_cast %25 : vector<8x16x8xf32> to vector<128x8xf32>
    %c2_16 = arith.constant 2 : index
    %c0_17 = arith.constant 0 : index
    %c0_18 = arith.constant 0 : index
    %27 = vector.load %arg5[%c2_16, %c0_17, %c0_18] : memref<9x8x8xf32, #tpu.memory_space<vmem>>, vector<1x8x8xf32>
    %28 = vector.shape_cast %27 : vector<1x8x8xf32> to vector<8x8xf32>
    %cst_19 = arith.constant dense<0.000000e+00> : vector<128x8xf32>
    %29 = tpu.matmul %26, %28, %cst_19 {dimension_numbers = #tpu.dot_dimension_numbers<[1], [0], [0], [1], [0, 0, 1, 1], [], []>} : vector<128x8xf32>, vector<8x8xf32>, vector<128x8xf32> -> vector<128x8xf32>
    %30 = arith.addf %22, %29 : vector<128x8xf32>
    %c1_i32 = arith.constant 1 : i32
    %31 = arith.addi %4, %c1_i32 : i32
    %32 = arith.index_cast %31 : i32 to index
    %c0_20 = arith.constant 0 : index
    %c0_21 = arith.constant 0 : index
    %33 = vector.load %arg11[%32, %c0_20, %c0_21] : memref<18x18x8xf32, #tpu.memory_space<vmem>>, vector<8x16x8xf32>
    %34 = vector.shape_cast %33 : vector<8x16x8xf32> to vector<128x8xf32>
    %c3 = arith.constant 3 : index
    %c0_22 = arith.constant 0 : index
    %c0_23 = arith.constant 0 : index
    %35 = vector.load %arg5[%c3, %c0_22, %c0_23] : memref<9x8x8xf32, #tpu.memory_space<vmem>>, vector<1x8x8xf32>
    %36 = vector.shape_cast %35 : vector<1x8x8xf32> to vector<8x8xf32>
    %cst_24 = arith.constant dense<0.000000e+00> : vector<128x8xf32>
    %37 = tpu.matmul %34, %36, %cst_24 {dimension_numbers = #tpu.dot_dimension_numbers<[1], [0], [0], [1], [0, 0, 1, 1], [], []>} : vector<128x8xf32>, vector<8x8xf32>, vector<128x8xf32> -> vector<128x8xf32>
    %38 = arith.addf %30, %37 : vector<128x8xf32>
    %c1_i32_25 = arith.constant 1 : i32
    %39 = arith.addi %4, %c1_i32_25 : i32
    %40 = arith.index_cast %39 : i32 to index
    %c1_26 = arith.constant 1 : index
    %c0_27 = arith.constant 0 : index
    %41 = vector.load %arg11[%40, %c1_26, %c0_27] : memref<18x18x8xf32, #tpu.memory_space<vmem>>, vector<8x16x8xf32>
    %42 = vector.shape_cast %41 : vector<8x16x8xf32> to vector<128x8xf32>
    %c4 = arith.constant 4 : index
    %c0_28 = arith.constant 0 : index
    %c0_29 = arith.constant 0 : index
    %43 = vector.load %arg5[%c4, %c0_28, %c0_29] : memref<9x8x8xf32, #tpu.memory_space<vmem>>, vector<1x8x8xf32>
    %44 = vector.shape_cast %43 : vector<1x8x8xf32> to vector<8x8xf32>
    %cst_30 = arith.constant dense<0.000000e+00> : vector<128x8xf32>
    %45 = tpu.matmul %42, %44, %cst_30 {dimension_numbers = #tpu.dot_dimension_numbers<[1], [0], [0], [1], [0, 0, 1, 1], [], []>} : vector<128x8xf32>, vector<8x8xf32>, vector<128x8xf32> -> vector<128x8xf32>
    %46 = arith.addf %38, %45 : vector<128x8xf32>
    %c1_i32_31 = arith.constant 1 : i32
    %47 = arith.addi %4, %c1_i32_31 : i32
    %48 = arith.index_cast %47 : i32 to index
    %c2_32 = arith.constant 2 : index
    %c0_33 = arith.constant 0 : index
    %49 = vector.load %arg11[%48, %c2_32, %c0_33] : memref<18x18x8xf32, #tpu.memory_space<vmem>>, vector<8x16x8xf32>
    %50 = vector.shape_cast %49 : vector<8x16x8xf32> to vector<128x8xf32>
    %c5 = arith.constant 5 : index
    %c0_34 = arith.constant 0 : index
    %c0_35 = arith.constant 0 : index
    %51 = vector.load %arg5[%c5, %c0_34, %c0_35] : memref<9x8x8xf32, #tpu.memory_space<vmem>>, vector<1x8x8xf32>
    %52 = vector.shape_cast %51 : vector<1x8x8xf32> to vector<8x8xf32>
    %cst_36 = arith.constant dense<0.000000e+00> : vector<128x8xf32>
    %53 = tpu.matmul %50, %52, %cst_36 {dimension_numbers = #tpu.dot_dimension_numbers<[1], [0], [0], [1], [0, 0, 1, 1], [], []>} : vector<128x8xf32>, vector<8x8xf32>, vector<128x8xf32> -> vector<128x8xf32>
    %54 = arith.addf %46, %53 : vector<128x8xf32>
    %c2_i32 = arith.constant 2 : i32
    %55 = arith.addi %4, %c2_i32 : i32
    %56 = arith.index_cast %55 : i32 to index
    %c0_37 = arith.constant 0 : index
    %c0_38 = arith.constant 0 : index
    %57 = vector.load %arg11[%56, %c0_37, %c0_38] : memref<18x18x8xf32, #tpu.memory_space<vmem>>, vector<8x16x8xf32>
    %58 = vector.shape_cast %57 : vector<8x16x8xf32> to vector<128x8xf32>
    %c6 = arith.constant 6 : index
    %c0_39 = arith.constant 0 : index
    %c0_40 = arith.constant 0 : index
    %59 = vector.load %arg5[%c6, %c0_39, %c0_40] : memref<9x8x8xf32, #tpu.memory_space<vmem>>, vector<1x8x8xf32>
    %60 = vector.shape_cast %59 : vector<1x8x8xf32> to vector<8x8xf32>
    %cst_41 = arith.constant dense<0.000000e+00> : vector<128x8xf32>
    %61 = tpu.matmul %58, %60, %cst_41 {dimension_numbers = #tpu.dot_dimension_numbers<[1], [0], [0], [1], [0, 0, 1, 1], [], []>} : vector<128x8xf32>, vector<8x8xf32>, vector<128x8xf32> -> vector<128x8xf32>
    %62 = arith.addf %54, %61 : vector<128x8xf32>
    %c2_i32_42 = arith.constant 2 : i32
    %63 = arith.addi %4, %c2_i32_42 : i32
    %64 = arith.index_cast %63 : i32 to index
    %c1_43 = arith.constant 1 : index
    %c0_44 = arith.constant 0 : index
    %65 = vector.load %arg11[%64, %c1_43, %c0_44] : memref<18x18x8xf32, #tpu.memory_space<vmem>>, vector<8x16x8xf32>
    %66 = vector.shape_cast %65 : vector<8x16x8xf32> to vector<128x8xf32>
    %c7 = arith.constant 7 : index
    %c0_45 = arith.constant 0 : index
    %c0_46 = arith.constant 0 : index
    %67 = vector.load %arg5[%c7, %c0_45, %c0_46] : memref<9x8x8xf32, #tpu.memory_space<vmem>>, vector<1x8x8xf32>
    %68 = vector.shape_cast %67 : vector<1x8x8xf32> to vector<8x8xf32>
    %cst_47 = arith.constant dense<0.000000e+00> : vector<128x8xf32>
    %69 = tpu.matmul %66, %68, %cst_47 {dimension_numbers = #tpu.dot_dimension_numbers<[1], [0], [0], [1], [0, 0, 1, 1], [], []>} : vector<128x8xf32>, vector<8x8xf32>, vector<128x8xf32> -> vector<128x8xf32>
    %70 = arith.addf %62, %69 : vector<128x8xf32>
    %c2_i32_48 = arith.constant 2 : i32
    %71 = arith.addi %4, %c2_i32_48 : i32
    %72 = arith.index_cast %71 : i32 to index
    %c2_49 = arith.constant 2 : index
    %c0_50 = arith.constant 0 : index
    %73 = vector.load %arg11[%72, %c2_49, %c0_50] : memref<18x18x8xf32, #tpu.memory_space<vmem>>, vector<8x16x8xf32>
    %74 = vector.shape_cast %73 : vector<8x16x8xf32> to vector<128x8xf32>
    %c8 = arith.constant 8 : index
    %c0_51 = arith.constant 0 : index
    %c0_52 = arith.constant 0 : index
    %75 = vector.load %arg5[%c8, %c0_51, %c0_52] : memref<9x8x8xf32, #tpu.memory_space<vmem>>, vector<1x8x8xf32>
    %76 = vector.shape_cast %75 : vector<1x8x8xf32> to vector<8x8xf32>
    %cst_53 = arith.constant dense<0.000000e+00> : vector<128x8xf32>
    %77 = tpu.matmul %74, %76, %cst_53 {dimension_numbers = #tpu.dot_dimension_numbers<[1], [0], [0], [1], [0, 0, 1, 1], [], []>} : vector<128x8xf32>, vector<8x8xf32>, vector<128x8xf32> -> vector<128x8xf32>
    %78 = arith.addf %70, %77 : vector<128x8xf32>
    %c0_54 = arith.constant 0 : index
    %79 = arith.index_cast %4 : i32 to index
    %c0_55 = arith.constant 0 : index
    %c0_56 = arith.constant 0 : index
    %80 = vector.load %arg2[%c0_54, %79, %c0_55, %c0_56] : memref<1x16x16x4xf32, #tpu.memory_space<vmem>>, vector<1x8x16x4xf32>
    %81 = vector.shape_cast %80 : vector<1x8x16x4xf32> to vector<128x4xf32>
    %c0_57 = arith.constant 0 : index
    %c0_58 = arith.constant 0 : index
    %82 = vector.load %arg7[%c0_57, %c0_58] : memref<4x8xf32, #tpu.memory_space<vmem>>, vector<4x8xf32>
    %cst_59 = arith.constant dense<0.000000e+00> : vector<128x8xf32>
    %83 = tpu.matmul %81, %82, %cst_59 {dimension_numbers = #tpu.dot_dimension_numbers<[1], [0], [0], [1], [0, 0, 1, 1], [], []>} : vector<128x4xf32>, vector<4x8xf32>, vector<128x8xf32> -> vector<128x8xf32>
    %c0_60 = arith.constant 0 : index
    %c0_61 = arith.constant 0 : index
    %84 = vector.load %arg8[%c0_60, %c0_61] : memref<1x8xf32, #tpu.memory_space<vmem>>, vector<1x8xf32>
    %85 = vector.broadcast %84 : vector<1x8xf32> to vector<128x8xf32>
    %86 = arith.addf %83, %85 : vector<128x8xf32>
    %87 = arith.addf %78, %86 : vector<128x8xf32>
    %cst_62 = arith.constant 0.000000e+00 : f32
    %88 = vector.broadcast %cst_62 : f32 to vector<128x8xf32>
    %89 = arith.maximumf %87, %88 : vector<128x8xf32>
    %90 = vector.shape_cast %89 : vector<128x8xf32> to vector<1x128x8xf32>
    %c0_63 = arith.constant 0 : index
    %c0_64 = arith.constant 0 : index
    %c0_65 = arith.constant 0 : index
    %91 = vector.load %arg9[%c0_63, %c0_64, %c0_65] : memref<1x128x8xf32, #tpu.memory_space<vmem>>, vector<1x128x8xf32>
    tpu.vector_store %arg9[%c0_63, %c0_64, %c0_65], %90 {strides = array<i32>} : memref<1x128x8xf32, #tpu.memory_space<vmem>>, vector<1x128x8xf32>,
    return
  }
  func.func @transform_0(%arg0: i32, %arg1: i32) -> (i32, i32, i32, i32) {
    %c0_i32 = arith.constant 0 : i32
    %c0_i32_0 = arith.constant 0 : i32
    %c0_i32_1 = arith.constant 0 : i32
    %c0_i32_2 = arith.constant 0 : i32
    return %arg0, %c0_i32, %c0_i32_0, %c0_i32_1 : i32, i32, i32, i32
  }
  func.func @transform_1(%arg0: i32, %arg1: i32) -> (i32, i32, i32) {
    %c0_i32 = arith.constant 0 : i32
    %c0_i32_0 = arith.constant 0 : i32
    %c0_i32_1 = arith.constant 0 : i32
    %c0_i32_2 = arith.constant 0 : i32
    return %c0_i32, %c0_i32_0, %c0_i32_1 : i32, i32, i32
  }
  func.func @transform_2(%arg0: i32, %arg1: i32) -> (i32, i32) {
    %c0_i32 = arith.constant 0 : i32
    %c0_i32_0 = arith.constant 0 : i32
    %c0_i32_1 = arith.constant 0 : i32
    return %c0_i32, %c0_i32_0 : i32, i32
  }
  func.func @transform_3(%arg0: i32, %arg1: i32) -> (i32, i32, i32) {
    %c0_i32 = arith.constant 0 : i32
    %c0_i32_0 = arith.constant 0 : i32
    %c0_i32_1 = arith.constant 0 : i32
    %c0_i32_2 = arith.constant 0 : i32
    return %c0_i32, %c0_i32_0, %c0_i32_1 : i32, i32, i32
  }
  func.func @transform_4(%arg0: i32, %arg1: i32) -> (i32, i32) {
    %c0_i32 = arith.constant 0 : i32
    %c0_i32_0 = arith.constant 0 : i32
    %c0_i32_1 = arith.constant 0 : i32
    return %c0_i32, %c0_i32_0 : i32, i32
  }
  func.func @transform_5(%arg0: i32, %arg1: i32) -> (i32, i32) {
    %c0_i32 = arith.constant 0 : i32
    %c0_i32_0 = arith.constant 0 : i32
    %c0_i32_1 = arith.constant 0 : i32
    return %c0_i32, %c0_i32_0 : i32, i32
  }
  func.func @transform_6(%arg0: i32, %arg1: i32) -> (i32, i32) {
    %c0_i32 = arith.constant 0 : i32
    %c0_i32_0 = arith.constant 0 : i32
    %c0_i32_1 = arith.constant 0 : i32
    return %c0_i32, %c0_i32_0 : i32, i32
  }
  func.func @transform_7(%arg0: i32, %arg1: i32) -> (i32, i32, i32) {
    %c0_i32 = arith.constant 0 : i32
    %c0_i32_0 = arith.constant 0 : i32
    return %arg0, %arg1, %c0_i32 : i32, i32, i32
  }
}

</mosaic_0001>

<llo_original>
// kernel: tpu_custom_call.1
$region0: #{tpu_custom_call.1}
  #allocation0 [shape = 'u32[]', space=smem, size = 0x4, offset = 0x4, fixed_abs, tag = 'smem constant byte address 0x4 - core index']
  #allocation1 [shape = 'u32[144,128]{1,0:T(1,128)}', space=vmem, size = 0x12000, scoped, tag = 'internal scratch']
  #allocation2 [shape = 'f32[18,18,4]{2,1,0:T(8,128)}', space=vmem, size = 0x36000, scoped, tag = 'scratch operand']
  #allocation3 [shape = 'f32[18,18,8]{2,1,0:T(8,128)}', space=vmem, size = 0x36000, scoped, tag = 'scratch operand']
  %s0 = inlined_call_operand.vmem [shape: f32[2,16,16,4], index: 0, kind: input, shape index: {}]
  %s1 = inlined_call_operand.vmem [shape: f32[9,4,8], index: 1, kind: input, shape index: {}]
  %s2 = inlined_call_operand.vmem [shape: f32[1,8], index: 2, kind: input, shape index: {}]
  %s3 = inlined_call_operand.vmem [shape: f32[9,8,8], index: 3, kind: input, shape index: {}]
  %s4 = inlined_call_operand.vmem [shape: f32[1,8], index: 4, kind: input, shape index: {}]
  %s5 = inlined_call_operand.vmem [shape: f32[4,8], index: 5, kind: input, shape index: {}]
  %s6 = inlined_call_operand.vmem [shape: f32[1,8], index: 6, kind: input, shape index: {}]
  %s7 = inlined_call_operand.vmem [shape: f32[2,256,8], index: 7, kind: output, shape index: {}]
  %s8 = sld [smem:[#allocation0]]
  $region65: #{tpu_custom_call.1} parent=0
    _
  %s10 = ssub.s32 1, %s8
  %s11 = scalar_select 0, %s10, %s8
  loop: start=0, step=1, limit=6
  $region2: #{tpu_custom_call.1} parent=0 // loop_pre_header
    _
  $region3: #{tpu_custom_call.1} parent=0 // loop_header
    %s13 = sphi 0, %s17
    %p14 = scmp.ge.s32.totalorder %s13, 6
    %s20 = sphi 0, %s32
    %s21 = sphi 0, %s28
    %s22 = sphi 0, %s20
    %s23 = sphi 0, %s21
    %s24 = sphi 0, %s22
    %s25 = sphi 0, %s23
    %s35 = sphi 0, %s37
    %s38 = sphi 0, %s35
    %s39 = sphi 0, %s38
    %s55 = sphi 0, %s39
    %s59 = sphi 0, %s59
    %s61 = sphi 0, %s59
    %s62 = sphi 0, %s61
    %s76 = sphi 0, %s62
    %s80 = sphi 0, %s80
    %s82 = sphi 0, %s80
    %s83 = sphi 0, %s82
    %s97 = sphi 0, %s83
    %s101 = sphi 0, %s101
    %s103 = sphi 0, %s101
    %s104 = sphi 0, %s103
    %s118 = sphi 0, %s104
    %s122 = sphi 0, %s122
    %s124 = sphi 0, %s122
    %s125 = sphi 0, %s124
    %s139 = sphi 0, %s125
    %s143 = sphi 0, %s143
    %s145 = sphi 0, %s143
    %s146 = sphi 0, %s145
    %s160 = sphi 0, %s146
    %s164 = sphi 0, %s164
    %s166 = sphi 0, %s164
    %s167 = sphi 0, %s166
    %s181 = sphi 0, %s167
    %s189 = sphi 0, %s191
    %s192 = sphi 0, %s189
    %s193 = sphi 0, %s192
    %s209 = sphi 0, %s193
  $region4: #{tpu_custom_call.1} parent=0 // loop_header_branch
    %16 = sbr.rel (%p14) target = $region8
  $region5: #{tpu_custom_call.1} parent=0 // loop_body
    %s18 = ssub.s32 %s13, 1
    %s19 = ssub.s32 %s13, 2
    %s26 = sadd.s32 1, %s21
    %p27 = scmp.ge.s32.totalorder %s26, 2
    %s28 = scalar_select %p27, 0, %s26
    %s29 = sadd.s32 1, %s20
    %s30 = scalar_select %p27, %s29, %s20
    %p31 = scmp.ge.s32.totalorder %s30, 2
    %s32 = scalar_select %p31, 0, %s30
    %s33 = ssub.s32 %s20, %s32
    %p34 = scmp.eq.s32.totalorder %s33, 0
    %s36 = sadd.s32 %s35, 1
    %s37 = scalar_select %p34, %s35, %s36
    %p40 = pneg %p34
    %p41 = scmp.eq.s32.totalorder %s13, 3
    %p42 = por %p40, %p41
    %p43 = scmp.ne.s32.totalorder %s35, %s38
    %p44 = scmp.eq.s32.totalorder %s13, 0
    %p45 = por %p43, %p44
    %p46 = scmp.ne.s32.totalorder %s35, %s38
    %p47 = scmp.eq.s32.totalorder %s18, 3
    %p48 = por %p46, %p47
    %p49 = scmp.ne.s32.totalorder %s38, %s39
    %p50 = scmp.eq.s32.totalorder %s18, 0
    %p51 = por %p49, %p50
    %p52 = scmp.ne.s32.totalorder %s38, %s39
    %p53 = scmp.eq.s32.totalorder %s19, 3
    %p54 = por %p52, %p53
    %p56 = scmp.ne.s32.totalorder %s39, %s55
    %p57 = scmp.eq.s32.totalorder %s19, 0
    %p58 = por %p56, %p57
    %s60 = sadd.s32 %s59, 1
    %p63 = scmp.eq.s32.totalorder %s13, 3
    %p64 = scmp.ne.s32.totalorder %s59, %s61
    %p65 = scmp.eq.s32.totalorder %s13, 0
    %p66 = por %p64, %p65
    %p67 = scmp.ne.s32.totalorder %s59, %s61
    %p68 = scmp.eq.s32.totalorder %s18, 3
    %p69 = por %p67, %p68
    %p70 = scmp.ne.s32.totalorder %s61, %s62
    %p71 = scmp.eq.s32.totalorder %s18, 0
    %p72 = por %p70, %p71
    %p73 = scmp.ne.s32.totalorder %s61, %s62
    %p74 = scmp.eq.s32.totalorder %s19, 3
    %p75 = por %p73, %p74
    %p77 = scmp.ne.s32.totalorder %s62, %s76
    %p78 = scmp.eq.s32.totalorder %s19, 0
    %p79 = por %p77, %p78
    %s81 = sadd.s32 %s80, 1
    %p84 = scmp.eq.s32.totalorder %s13, 3
    %p85 = scmp.ne.s32.totalorder %s80, %s82
    %p86 = scmp.eq.s32.totalorder %s13, 0
    %p87 = por %p85, %p86
    %p88 = scmp.ne.s32.totalorder %s80, %s82
    %p89 = scmp.eq.s32.totalorder %s18, 3
    %p90 = por %p88, %p89
    %p91 = scmp.ne.s32.totalorder %s82, %s83
    %p92 = scmp.eq.s32.totalorder %s18, 0
    %p93 = por %p91, %p92
    %p94 = scmp.ne.s32.totalorder %s82, %s83
    %p95 = scmp.eq.s32.totalorder %s19, 3
    %p96 = por %p94, %p95
    %p98 = scmp.ne.s32.totalorder %s83, %s97
    %p99 = scmp.eq.s32.totalorder %s19, 0
    %p100 = por %p98, %p99
    %s102 = sadd.s32 %s101, 1
    %p105 = scmp.eq.s32.totalorder %s13, 3
    %p106 = scmp.ne.s32.totalorder %s101, %s103
    %p107 = scmp.eq.s32.totalorder %s13, 0
    %p108 = por %p106, %p107
    %p109 = scmp.ne.s32.totalorder %s101, %s103
    %p110 = scmp.eq.s32.totalorder %s18, 3
    %p111 = por %p109, %p110
    %p112 = scmp.ne.s32.totalorder %s103, %s104
    %p113 = scmp.eq.s32.totalorder %s18, 0
    %p114 = por %p112, %p113
    %p115 = scmp.ne.s32.totalorder %s103, %s104
    %p116 = scmp.eq.s32.totalorder %s19, 3
    %p117 = por %p115, %p116
    %p119 = scmp.ne.s32.totalorder %s104, %s118
    %p120 = scmp.eq.s32.totalorder %s19, 0
    %p121 = por %p119, %p120
    %s123 = sadd.s32 %s122, 1
    %p126 = scmp.eq.s32.totalorder %s13, 3
    %p127 = scmp.ne.s32.totalorder %s122, %s124
    %p128 = scmp.eq.s32.totalorder %s13, 0
    %p129 = por %p127, %p128
    %p130 = scmp.ne.s32.totalorder %s122, %s124
    %p131 = scmp.eq.s32.totalorder %s18, 3
    %p132 = por %p130, %p131
    %p133 = scmp.ne.s32.totalorder %s124, %s125
    %p134 = scmp.eq.s32.totalorder %s18, 0
    %p135 = por %p133, %p134
    %p136 = scmp.ne.s32.totalorder %s124, %s125
    %p137 = scmp.eq.s32.totalorder %s19, 3
    %p138 = por %p136, %p137
    %p140 = scmp.ne.s32.totalorder %s125, %s139
    %p141 = scmp.eq.s32.totalorder %s19, 0
    %p142 = por %p140, %p141
    %s144 = sadd.s32 %s143, 1
    %p147 = scmp.eq.s32.totalorder %s13, 3
    %p148 = scmp.ne.s32.totalorder %s143, %s145
    %p149 = scmp.eq.s32.totalorder %s13, 0
    %p150 = por %p148, %p149
    %p151 = scmp.ne.s32.totalorder %s143, %s145
    %p152 = scmp.eq.s32.totalorder %s18, 3
    %p153 = por %p151, %p152
    %p154 = scmp.ne.s32.totalorder %s145, %s146
    %p155 = scmp.eq.s32.totalorder %s18, 0
    %p156 = por %p154, %p155
    %p157 = scmp.ne.s32.totalorder %s145, %s146
    %p158 = scmp.eq.s32.totalorder %s19, 3
    %p159 = por %p157, %p158
    %p161 = scmp.ne.s32.totalorder %s146, %s160
    %p162 = scmp.eq.s32.totalorder %s19, 0
    %p163 = por %p161, %p162
    %s165 = sadd.s32 %s164, 1
    %p168 = scmp.eq.s32.totalorder %s13, 3
    %p169 = scmp.ne.s32.totalorder %s164, %s166
    %p170 = scmp.eq.s32.totalorder %s13, 0
    %p171 = por %p169, %p170
    %p172 = scmp.ne.s32.totalorder %s164, %s166
    %p173 = scmp.eq.s32.totalorder %s18, 3
    %p174 = por %p172, %p173
    %p175 = scmp.ne.s32.totalorder %s166, %s167
    %p176 = scmp.eq.s32.totalorder %s18, 0
    %p177 = por %p175, %p176
    %p178 = scmp.ne.s32.totalorder %s166, %s167
    %p179 = scmp.eq.s32.totalorder %s19, 3
    %p180 = por %p178, %p179
    %p182 = scmp.ne.s32.totalorder %s167, %s181
    %p183 = scmp.eq.s32.totalorder %s19, 0
    %p184 = por %p182, %p183
    %s185 = ssub.s32 %s20, %s32
    %s186 = ssub.s32 %s21, %s28
    %s187 = sor.u32 %s185, %s186
    %p188 = scmp.eq.s32.totalorder %s187, 0
    %s190 = sadd.s32 %s189, 1
    %s191 = scalar_select %p188, %s189, %s190
    %p194 = pneg %p188
    %p195 = scmp.eq.s32.totalorder %s13, 3
    %p196 = por %p194, %p195
    %p197 = scmp.ne.s32.totalorder %s189, %s192
    %p198 = scmp.eq.s32.totalorder %s13, 0
    %p199 = por %p197, %p198
    %p200 = scmp.ne.s32.totalorder %s189, %s192
    %p201 = scmp.eq.s32.totalorder %s18, 3
    %p202 = por %p200, %p201
    %p203 = scmp.ne.s32.totalorder %s192, %s193
    %p204 = scmp.eq.s32.totalorder %s18, 0
    %p205 = por %p203, %p204
    %p206 = scmp.ne.s32.totalorder %s192, %s193
    %p207 = scmp.eq.s32.totalorder %s19, 3
    %p208 = por %p206, %p207
    %p210 = scmp.ne.s32.totalorder %s193, %s209
    %p211 = scmp.eq.s32.totalorder %s19, 0
    %p212 = por %p210, %p211
    %p213 = scmp.le.s32.totalorder 1, %s13
    %p214 = scmp.lt.s32.totalorder %s13, 5
    %p215 = pnand %p213, %p214
    %p216 = pneg %p215
    // Predicated region
    $region9: #{tpu_custom_call.1} parent=5 // pred_check
      _
    $region10: #{tpu_custom_call.1} parent=5 // pred_check_branch
      %218 = sbr.rel (%p215) target = $region12
    $region11: #{tpu_custom_call.1} parent=5 // pred_region
      %s219 = ssub.s32 %s13, 1
      // Predicated region
      $region13: #{tpu_custom_call.1} parent=11 // pred_check
        %p220 = pneg %p72
      $region14: #{tpu_custom_call.1} parent=11 // pred_check_branch
        %222 = sbr.rel (%p220) target = $region16
      $region15: #{tpu_custom_call.1} parent=11 // pred_region
        _
      $region16: #{tpu_custom_call.1} parent=11 // pred_fallthru
        _
      // Predicated region
      $region17: #{tpu_custom_call.1} parent=11 // pred_check
        %p223 = pneg %p93
      $region18: #{tpu_custom_call.1} parent=11 // pred_check_branch
        %225 = sbr.rel (%p223) target = $region20
      $region19: #{tpu_custom_call.1} parent=11 // pred_region
        _
      $region20: #{tpu_custom_call.1} parent=11 // pred_fallthru
        _
      // Predicated region
      $region21: #{tpu_custom_call.1} parent=11 // pred_check
        %p226 = pneg %p114
      $region22: #{tpu_custom_call.1} parent=11 // pred_check_branch
        %228 = sbr.rel (%p226) target = $region24
      $region23: #{tpu_custom_call.1} parent=11 // pred_region
        _
      $region24: #{tpu_custom_call.1} parent=11 // pred_fallthru
        _
      // Predicated region
      $region25: #{tpu_custom_call.1} parent=11 // pred_check
        %p229 = pneg %p135
      $region26: #{tpu_custom_call.1} parent=11 // pred_check_branch
        %231 = sbr.rel (%p229) target = $region28
      $region27: #{tpu_custom_call.1} parent=11 // pred_region
        _
      $region28: #{tpu_custom_call.1} parent=11 // pred_fallthru
        _
      // Predicated region
      $region29: #{tpu_custom_call.1} parent=11 // pred_check
        %p232 = pneg %p156
      $region30: #{tpu_custom_call.1} parent=11 // pred_check_branch
        %234 = sbr.rel (%p232) target = $region32
      $region31: #{tpu_custom_call.1} parent=11 // pred_region
        _
      $region32: #{tpu_custom_call.1} parent=11 // pred_fallthru
        _
      // Predicated region
      $region33: #{tpu_custom_call.1} parent=11 // pred_check
        %p235 = pneg %p177
      $region34: #{tpu_custom_call.1} parent=11 // pred_check_branch
        %237 = sbr.rel (%p235) target = $region36
      $region35: #{tpu_custom_call.1} parent=11 // pred_region
        _
      $region36: #{tpu_custom_call.1} parent=11 // pred_fallthru
        _
    $region12: #{tpu_custom_call.1} parent=5 // pred_fallthru
      _
    %p238 = scmp.lt.s32.totalorder %s13, 4
    // Predicated region
    $region37: #{tpu_custom_call.1} parent=5 // pred_check
      %p239 = pneg %p238
    $region38: #{tpu_custom_call.1} parent=5 // pred_check_branch
      %241 = sbr.rel (%p239) target = $region40
    $region39: #{tpu_custom_call.1} parent=5 // pred_region
      // Predicated region
      $region41: #{tpu_custom_call.1} parent=39 // pred_check
        %p242 = pneg %p45
      $region42: #{tpu_custom_call.1} parent=39 // pred_check_branch
        %244 = sbr.rel (%p242) target = $region44
      $region43: #{tpu_custom_call.1} parent=39 // pred_region
        %p245 = scmp.lt.s32.totalorder %s20, 1
        %s246 = scalar_select %p245, %s20, 1
        %s247 = smul.addr %s246, 32
        %s248 = smul.addr %s247, 8
        %s249 = scalar_lea.vmem %s0, %s248
      $region44: #{tpu_custom_call.1} parent=39 // pred_fallthru
        _
    $region40: #{tpu_custom_call.1} parent=5 // pred_fallthru
      _
    %p250 = scmp.le.s32.totalorder 1, %s13
    %p251 = scmp.lt.s32.totalorder %s13, 5
    %p252 = pnand %p250, %p251
    %p253 = pneg %p252
    // Predicated region
    $region45: #{tpu_custom_call.1} parent=5 // pred_check
      _
    $region46: #{tpu_custom_call.1} parent=5 // pred_check_branch
      %255 = sbr.rel (%p252) target = $region48
    $region47: #{tpu_custom_call.1} parent=5 // pred_region
      %s256 = ssub.s32 %s13, 1
      %p257 = scmp.lt.s32.totalorder %s22, 1
      %s258 = scalar_select %p257, %s22, 1
      %s259 = smul.addr %s258, 32
      %s260 = smul.addr %s259, 8
      %s261 = scalar_lea.vmem %s0, %s260
      %p262 = pneg %p51
      %p263 = pneg %p48
      %p264 = pneg %p72
      %p265 = pneg %p69
      %p266 = pneg %p93
      %p267 = pneg %p90
      %p268 = pneg %p114
      %p269 = pneg %p111
      %p270 = pneg %p135
      %p271 = pneg %p132
      %p272 = pneg %p156
      %p273 = pneg %p153
      %p274 = pneg %p177
      %p275 = pneg %p174
      %p276 = pneg %p205
      %p277 = pneg %p202
      %s278 = smul.u32 16, %s23
      %p279 = scmp.lt.s32.totalorder %s22, 1
      %s280 = scalar_select %p279, %s22, 1
      %p281 = scmp.lt.s32.totalorder %s278, 31
      %s282 = scalar_select %p281, %s278, 31
      %s283 = smul.addr %s280, 32
      %s284 = sadd.s32 %s282, %s283
      %s285 = smul.addr %s284, 8
      %s286 = scalar_lea.vmem %s7, %s285
      %p287 = scmp.lt.s32.totalorder %s22, 1
      %s288 = scalar_select %p287, %s22, 1
      %s289 = smul.addr %s288, 32
      %s290 = smul.addr %s289, 8
      %s291 = scalar_lea.vmem %s0, %s290
      %s292 = smul.u32 16, %s23
      %p293 = scmp.lt.s32.totalorder %s22, 1
      %s294 = scalar_select %p293, %s22, 1
      %p295 = scmp.lt.s32.totalorder %s292, 31
      %s296 = scalar_select %p295, %s292, 31
      %s297 = smul.addr %s294, 32
      %s298 = sadd.s32 %s296, %s297
      %s299 = smul.addr %s298, 8
      %s300 = scalar_lea.vmem %s7, %s299
      %s301 = smul.u32 16, %s23
      %p302 = scmp.eq.s32.totalorder %s23, 0
      // Predicated region
      $region49: #{tpu_custom_call.1} parent=47 // pred_check
        %p303 = pneg %p302
      $region50: #{tpu_custom_call.1} parent=47 // pred_check_branch
        %305 = sbr.rel (%p303) target = $region52
      $region51: #{tpu_custom_call.1} parent=47 // pred_region
        %vm306 = vcmask 31744
        %307 = vst.msk [vmem:[#allocation2] sm:$0xff] %vm306, 0.0
        %308 = vst.msk [vmem:[#allocation2 + $0x8] sm:$0xff] %vm306, 0.0
        %vm309 = vcmask 25600
        %310 = vst.msk [vmem:[#allocation2 + $0x10] sm:$0x3] %vm309, 0.0
        %s311 = scalar_lea.vmem [#allocation2], 408
        %312 = vst.msk [vmem:[%s311] sm:$0xff] %vm306, 0.0
        %313 = vst.msk [vmem:[%s311 + $0x8] sm:$0xff] %vm306, 0.0
        %314 = vst.msk [vmem:[%s311 + $0x10] sm:$0x3] %vm309, 0.0
        %vm315 = vcmask 24576
        %316 = vst.msk [vmem:[#allocation2] sm:$0x1] %vm315, 0.0
        %317 = vst.msk [vmem:[#allocation2 + $0x18] sm:$0x1] %vm315, 0.0
        %318 = vst.msk [vmem:[#allocation2 + $0x30] sm:$0x1] %vm315, 0.0
        %319 = vst.msk [vmem:[#allocation2 + $0x48] sm:$0x1] %vm315, 0.0
        %320 = vst.msk [vmem:[#allocation2 + $0x60] sm:$0x1] %vm315, 0.0
        %321 = vst.msk [vmem:[#allocation2 + $0x78] sm:$0x1] %vm315, 0.0
        %322 = vst.msk [vmem:[#allocation2 + $0x90] sm:$0x1] %vm315, 0.0
        %323 = vst.msk [vmem:[#allocation2 + $0xa8] sm:$0x1] %vm315, 0.0
        %324 = vst.msk [vmem:[#allocation2 + $0xc0] sm:$0x1] %vm315, 0.0
        %325 = vst.msk [vmem:[#allocation2 + $0xd8] sm:$0x1] %vm315, 0.0
        %326 = vst.msk [vmem:[#allocation2 + $0xf0] sm:$0x1] %vm315, 0.0
        %327 = vst.msk [vmem:[#allocation2 + $0x108] sm:$0x1] %vm315, 0.0
        %328 = vst.msk [vmem:[#allocation2 + $0x120] sm:$0x1] %vm315, 0.0
        %329 = vst.msk [vmem:[#allocation2 + $0x138] sm:$0x1] %vm315, 0.0
        %330 = vst.msk [vmem:[#allocation2 + $0x150] sm:$0x1] %vm315, 0.0
        %331 = vst.msk [vmem:[#allocation2 + $0x168] sm:$0x1] %vm315, 0.0
        %332 = vst.msk [vmem:[#allocation2 + $0x180] sm:$0x1] %vm315, 0.0
        %333 = vst.msk [vmem:[#allocation2 + $0x198] sm:$0x1] %vm315, 0.0
        %334 = vst.msk [vmem:[#allocation2 + $0x11] sm:$0x1] %vm315, 0.0
        %335 = vst.msk [vmem:[#allocation2 + $0x29] sm:$0x1] %vm315, 0.0
        %336 = vst.msk [vmem:[#allocation2 + $0x41] sm:$0x1] %vm315, 0.0
        %337 = vst.msk [vmem:[#allocation2 + $0x59] sm:$0x1] %vm315, 0.0
        %338 = vst.msk [vmem:[#allocation2 + $0x71] sm:$0x1] %vm315, 0.0
        %339 = vst.msk [vmem:[#allocation2 + $0x89] sm:$0x1] %vm315, 0.0
        %340 = vst.msk [vmem:[#allocation2 + $0xa1] sm:$0x1] %vm315, 0.0
        %341 = vst.msk [vmem:[#allocation2 + $0xb9] sm:$0x1] %vm315, 0.0
        %342 = vst.msk [vmem:[#allocation2 + $0xd1] sm:$0x1] %vm315, 0.0
        %343 = vst.msk [vmem:[#allocation2 + $0xe9] sm:$0x1] %vm315, 0.0
        %344 = vst.msk [vmem:[#allocation2 + $0x101] sm:$0x1] %vm315, 0.0
        %345 = vst.msk [vmem:[#allocation2 + $0x119] sm:$0x1] %vm315, 0.0
        %346 = vst.msk [vmem:[#allocation2 + $0x131] sm:$0x1] %vm315, 0.0
        %347 = vst.msk [vmem:[#allocation2 + $0x149] sm:$0x1] %vm315, 0.0
        %348 = vst.msk [vmem:[#allocation2 + $0x161] sm:$0x1] %vm315, 0.0
        %349 = vst.msk [vmem:[#allocation2 + $0x179] sm:$0x1] %vm315, 0.0
        %350 = vst.msk [vmem:[#allocation2 + $0x191] sm:$0x1] %vm315, 0.0
        %351 = vst.msk [vmem:[#allocation2 + $0x1a9] sm:$0x1] %vm315, 0.0
        %vm352 = vcmask 64512
        %353 = vst.msk [vmem:[#allocation3] sm:$0xff] %vm352, 0.0
        %354 = vst.msk [vmem:[#allocation3 + $0x8] sm:$0xff] %vm352, 0.0
        %vm355 = vcmask 58368
        %356 = vst.msk [vmem:[#allocation3 + $0x10] sm:$0x3] %vm355, 0.0
        %s357 = scalar_lea.vmem [#allocation3], 408
        %358 = vst.msk [vmem:[%s357] sm:$0xff] %vm352, 0.0
        %359 = vst.msk [vmem:[%s357 + $0x8] sm:$0xff] %vm352, 0.0
        %360 = vst.msk [vmem:[%s357 + $0x10] sm:$0x3] %vm355, 0.0
        %vm361 = vcmask 57344
        %362 = vst.msk [vmem:[#allocation3] sm:$0x1] %vm361, 0.0
        %363 = vst.msk [vmem:[#allocation3 + $0x18] sm:$0x1] %vm361, 0.0
        %364 = vst.msk [vmem:[#allocation3 + $0x30] sm:$0x1] %vm361, 0.0
        %365 = vst.msk [vmem:[#allocation3 + $0x48] sm:$0x1] %vm361, 0.0
        %366 = vst.msk [vmem:[#allocation3 + $0x60] sm:$0x1] %vm361, 0.0
        %367 = vst.msk [vmem:[#allocation3 + $0x78] sm:$0x1] %vm361, 0.0
        %368 = vst.msk [vmem:[#allocation3 + $0x90] sm:$0x1] %vm361, 0.0
        %369 = vst.msk [vmem:[#allocation3 + $0xa8] sm:$0x1] %vm361, 0.0
        %370 = vst.msk [vmem:[#allocation3 + $0xc0] sm:$0x1] %vm361, 0.0
        %371 = vst.msk [vmem:[#allocation3 + $0xd8] sm:$0x1] %vm361, 0.0
        %372 = vst.msk [vmem:[#allocation3 + $0xf0] sm:$0x1] %vm361, 0.0
        %373 = vst.msk [vmem:[#allocation3 + $0x108] sm:$0x1] %vm361, 0.0
        %374 = vst.msk [vmem:[#allocation3 + $0x120] sm:$0x1] %vm361, 0.0
        %375 = vst.msk [vmem:[#allocation3 + $0x138] sm:$0x1] %vm361, 0.0
        %376 = vst.msk [vmem:[#allocation3 + $0x150] sm:$0x1] %vm361, 0.0
        %377 = vst.msk [vmem:[#allocation3 + $0x168] sm:$0x1] %vm361, 0.0
        %378 = vst.msk [vmem:[#allocation3 + $0x180] sm:$0x1] %vm361, 0.0
        %379 = vst.msk [vmem:[#allocation3 + $0x198] sm:$0x1] %vm361, 0.0
        %380 = vst.msk [vmem:[#allocation3 + $0x11] sm:$0x1] %vm361, 0.0
        %381 = vst.msk [vmem:[#allocation3 + $0x29] sm:$0x1] %vm361, 0.0
        %382 = vst.msk [vmem:[#allocation3 + $0x41] sm:$0x1] %vm361, 0.0
        %383 = vst.msk [vmem:[#allocation3 + $0x59] sm:$0x1] %vm361, 0.0
        %384 = vst.msk [vmem:[#allocation3 + $0x71] sm:$0x1] %vm361, 0.0
        %385 = vst.msk [vmem:[#allocation3 + $0x89] sm:$0x1] %vm361, 0.0
        %386 = vst.msk [vmem:[#allocation3 + $0xa1] sm:$0x1] %vm361, 0.0
        %387 = vst.msk [vmem:[#allocation3 + $0xb9] sm:$0x1] %vm361, 0.0
        %388 = vst.msk [vmem:[#allocation3 + $0xd1] sm:$0x1] %vm361, 0.0
        %389 = vst.msk [vmem:[#allocation3 + $0xe9] sm:$0x1] %vm361, 0.0
        %390 = vst.msk [vmem:[#allocation3 + $0x101] sm:$0x1] %vm361, 0.0
        %391 = vst.msk [vmem:[#allocation3 + $0x119] sm:$0x1] %vm361, 0.0
        %392 = vst.msk [vmem:[#allocation3 + $0x131] sm:$0x1] %vm361, 0.0
        %393 = vst.msk [vmem:[#allocation3 + $0x149] sm:$0x1] %vm361, 0.0
        %394 = vst.msk [vmem:[#allocation3 + $0x161] sm:$0x1] %vm361, 0.0
        %395 = vst.msk [vmem:[#allocation3 + $0x179] sm:$0x1] %vm361, 0.0
        %396 = vst.msk [vmem:[#allocation3 + $0x191] sm:$0x1] %vm361, 0.0
        %397 = vst.msk [vmem:[#allocation3 + $0x1a9] sm:$0x1] %vm361, 0.0
        %v398 = vld [vmem:[%s291] sm:$0xff]
        %v399 = vld [vmem:[%s291 + $0x8] sm:$0xff]
        %v400 = vld [vmem:[%s291 + $0x10] sm:$0xff]
        %v401 = vld [vmem:[%s291 + $0x18] sm:$0xff]
        %v402 = vld [vmem:[%s291 + $0x20] sm:$0xff]
        %v403 = vld [vmem:[%s291 + $0x28] sm:$0xff]
        %v404 = vld [vmem:[%s291 + $0x30] sm:$0xff]
        %v405 = vld [vmem:[%s291 + $0x38] sm:$0xff]
        %v406 = vld [vmem:[%s291 + $0x40] sm:$0xff]
        %v407 = vld [vmem:[%s291 + $0x48] sm:$0xff]
        %v408 = vld [vmem:[%s291 + $0x50] sm:$0xff]
        %v409 = vld [vmem:[%s291 + $0x58] sm:$0xff]
        %v410 = vld [vmem:[%s291 + $0x60] sm:$0xff]
        %v411 = vld [vmem:[%s291 + $0x68] sm:$0xff]
        %v412 = vld [vmem:[%s291 + $0x70] sm:$0xff]
        %v413 = vld [vmem:[%s291 + $0x78] sm:$0xff]
        %v414 = vld [vmem:[%s291 + $0x80] sm:$0xff]
        %v415 = vld [vmem:[%s291 + $0x88] sm:$0xff]
        %v416 = vld [vmem:[%s291 + $0x90] sm:$0xff]
        %v417 = vld [vmem:[%s291 + $0x98] sm:$0xff]
        %v418 = vld [vmem:[%s291 + $0xa0] sm:$0xff]
        %v419 = vld [vmem:[%s291 + $0xa8] sm:$0xff]
        %v420 = vld [vmem:[%s291 + $0xb0] sm:$0xff]
        %v421 = vld [vmem:[%s291 + $0xb8] sm:$0xff]
        %v422 = vld [vmem:[%s291 + $0xc0] sm:$0xff]
        %v423 = vld [vmem:[%s291 + $0xc8] sm:$0xff]
        %v424 = vld [vmem:[%s291 + $0xd0] sm:$0xff]
        %v425 = vld [vmem:[%s291 + $0xd8] sm:$0xff]
        %v426 = vld [vmem:[%s291 + $0xe0] sm:$0xff]
        %v427 = vld [vmem:[%s291 + $0xe8] sm:$0xff]
        %v428 = vld [vmem:[%s291 + $0xf0] sm:$0xff]
        %v429 = vld [vmem:[%s291 + $0xf8] sm:$0xff]
        %s430 = scalar_lea.vmem [#allocation2], 24
        %431 = vst.msk [vmem:[%s430 + $0x1] sm:$0xff] %vm306, %v398
        %432 = vst.msk [vmem:[%s430 + $0x9] sm:$0xff] %vm306, %v399
        %433 = vst.msk [vmem:[%s430 + $0x19] sm:$0xff] %vm306, %v400
        %434 = vst.msk [vmem:[%s430 + $0x21] sm:$0xff] %vm306, %v401
        %435 = vst.msk [vmem:[%s430 + $0x31] sm:$0xff] %vm306, %v402
        %436 = vst.msk [vmem:[%s430 + $0x39] sm:$0xff] %vm306, %v403
        %437 = vst.msk [vmem:[%s430 + $0x49] sm:$0xff] %vm306, %v404
        %438 = vst.msk [vmem:[%s430 + $0x51] sm:$0xff] %vm306, %v405
        %439 = vst.msk [vmem:[%s430 + $0x61] sm:$0xff] %vm306, %v406
        %440 = vst.msk [vmem:[%s430 + $0x69] sm:$0xff] %vm306, %v407
        %441 = vst.msk [vmem:[%s430 + $0x79] sm:$0xff] %vm306, %v408
        %442 = vst.msk [vmem:[%s430 + $0x81] sm:$0xff] %vm306, %v409
        %443 = vst.msk [vmem:[%s430 + $0x91] sm:$0xff] %vm306, %v410
        %444 = vst.msk [vmem:[%s430 + $0x99] sm:$0xff] %vm306, %v411
        %445 = vst.msk [vmem:[%s430 + $0xa9] sm:$0xff] %vm306, %v412
        %446 = vst.msk [vmem:[%s430 + $0xb1] sm:$0xff] %vm306, %v413
        %447 = vst.msk [vmem:[%s430 + $0xc1] sm:$0xff] %vm306, %v414
        %448 = vst.msk [vmem:[%s430 + $0xc9] sm:$0xff] %vm306, %v415
        %449 = vst.msk [vmem:[%s430 + $0xd9] sm:$0xff] %vm306, %v416
        %450 = vst.msk [vmem:[%s430 + $0xe1] sm:$0xff] %vm306, %v417
        %451 = vst.msk [vmem:[%s430 + $0xf1] sm:$0xff] %vm306, %v418
        %452 = vst.msk [vmem:[%s430 + $0xf9] sm:$0xff] %vm306, %v419
        %453 = vst.msk [vmem:[%s430 + $0x109] sm:$0xff] %vm306, %v420
        %454 = vst.msk [vmem:[%s430 + $0x111] sm:$0xff] %vm306, %v421
        %455 = vst.msk [vmem:[%s430 + $0x121] sm:$0xff] %vm306, %v422
        %456 = vst.msk [vmem:[%s430 + $0x129] sm:$0xff] %vm306, %v423
        %457 = vst.msk [vmem:[%s430 + $0x139] sm:$0xff] %vm306, %v424
        %458 = vst.msk [vmem:[%s430 + $0x141] sm:$0xff] %vm306, %v425
        %459 = vst.msk [vmem:[%s430 + $0x151] sm:$0xff] %vm306, %v426
        %460 = vst.msk [vmem:[%s430 + $0x159] sm:$0xff] %vm306, %v427
        %461 = vst.msk [vmem:[%s430 + $0x169] sm:$0xff] %vm306, %v428
        %462 = vst.msk [vmem:[%s430 + $0x171] sm:$0xff] %vm306, %v429
        %v463 = vld [vmem:[%s2] sm:$0x1]
        %v464 = vld [vmem:[#allocation2] sm:$0xff]
        %v465 = vld [vmem:[#allocation2 + $0x8] sm:$0xff]
        %v466 = vld [vmem:[#allocation2 + $0x18] sm:$0xff]
        %v467 = vld [vmem:[#allocation2 + $0x20] sm:$0xff]
        %v468 = vld [vmem:[#allocation2 + $0x30] sm:$0xff]
        %v469 = vld [vmem:[#allocation2 + $0x38] sm:$0xff]
        %v470 = vld [vmem:[#allocation2 + $0x48] sm:$0xff]
        %v471 = vld [vmem:[#allocation2 + $0x50] sm:$0xff]
        %v472 = vld [vmem:[#allocation2 + $0x60] sm:$0xff]
        %v473 = vld [vmem:[#allocation2 + $0x68] sm:$0xff]
        %v474 = vld [vmem:[#allocation2 + $0x78] sm:$0xff]
        %v475 = vld [vmem:[#allocation2 + $0x80] sm:$0xff]
        %v476 = vld [vmem:[#allocation2 + $0x90] sm:$0xff]
        %v477 = vld [vmem:[#allocation2 + $0x98] sm:$0xff]
        %v478 = vld [vmem:[#allocation2 + $0xa8] sm:$0xff]
        %v479 = vld [vmem:[#allocation2 + $0xb0] sm:$0xff]
        %v480 = vld [vmem:[#allocation2 + $0xc0] sm:$0xff]
        %v481 = vld [vmem:[#allocation2 + $0xc8] sm:$0xff]
        %v482 = vld [vmem:[#allocation2 + $0xd8] sm:$0xff]
        %v483 = vld [vmem:[#allocation2 + $0xe0] sm:$0xff]
        %v484 = vld [vmem:[#allocation2 + $0xf0] sm:$0xff]
        %v485 = vld [vmem:[#allocation2 + $0xf8] sm:$0xff]
        %v486 = vld [vmem:[#allocation2 + $0x108] sm:$0xff]
        %v487 = vld [vmem:[#allocation2 + $0x110] sm:$0xff]
        %v488 = vld [vmem:[#allocation2 + $0x120] sm:$0xff]
        %v489 = vld [vmem:[#allocation2 + $0x128] sm:$0xff]
        %v490 = vld [vmem:[#allocation2 + $0x138] sm:$0xff]
        %v491 = vld [vmem:[#allocation2 + $0x140] sm:$0xff]
        %v492 = vld [vmem:[#allocation2 + $0x150] sm:$0xff]
        %v493 = vld [vmem:[#allocation2 + $0x158] sm:$0xff]
        %v494 = vld [vmem:[#allocation2 + $0x168] sm:$0xff]
        %v495 = vld [vmem:[#allocation2 + $0x170] sm:$0xff]
        %v496 = vld [vmem:[%s1] sm:$0xf]
        %v498 = vsel %vm306, %v464, 0
        %v501 = vsel %vm306, %v465, 0
        %v504 = vsel %vm306, %v466, 0
        %v507 = vsel %vm306, %v467, 0
        %v510 = vsel %vm306, %v468, 0
        %v513 = vsel %vm306, %v469, 0
        %v516 = vsel %vm306, %v470, 0
        %v519 = vsel %vm306, %v471, 0
        %v522 = vsel %vm306, %v472, 0
        %v525 = vsel %vm306, %v473, 0
        %v528 = vsel %vm306, %v474, 0
        %v531 = vsel %vm306, %v475, 0
        %v534 = vsel %vm306, %v476, 0
        %v537 = vsel %vm306, %v477, 0
        %v540 = vsel %vm306, %v478, 0
        %v543 = vsel %vm306, %v479, 0
        %v546 = vsel %vm306, %v480, 0
        %v549 = vsel %vm306, %v481, 0
        %v552 = vsel %vm306, %v482, 0
        %v555 = vsel %vm306, %v483, 0
        %v558 = vsel %vm306, %v484, 0
        %v561 = vsel %vm306, %v485, 0
        %v564 = vsel %vm306, %v486, 0
        %v567 = vsel %vm306, %v487, 0
        %v570 = vsel %vm306, %v488, 0
        %v573 = vsel %vm306, %v489, 0
        %v576 = vsel %vm306, %v490, 0
        %v579 = vsel %vm306, %v491, 0
        %v582 = vsel %vm306, %v492, 0
        %v585 = vsel %vm306, %v493, 0
        %v588 = vsel %vm306, %v494, 0
        %v591 = vsel %vm306, %v495, 0
        %vm593 = vcmask 1043456
        %v595 = vsel %vm593, %v496, 0
        %597 = vmatprep.subr.mxu0 0.0
        %598 = vmatpush1.msra.mxu0 %v595
        %599 = vmatprep.subr.mxu0 0.0
        %600 = vmatpush1.msra.mxu0 0.0
        %601 = vmatprep.subr.mxu0 0.0
        %602 = vmatpush1.msra.mxu0 0.0
        %603 = vmatprep.subr.mxu0 0.0
        %604 = vmatpush1.msra.mxu0 0.0
        %605 = vmatprep.subr.mxu0 0.0
        %606 = vmatpush1.msra.mxu0 0.0
        %607 = vmatprep.subr.mxu0 0.0
        %608 = vmatpush1.msra.mxu0 0.0
        %609 = vmatprep.subr.mxu0 0.0
        %610 = vmatpush1.msra.mxu0 0.0
        %611 = vmatprep.subr.mxu0 0.0
        %612 = vmatpush1.msra.mxu0 0.0
        %613 = vmatprep.subr.mxu0 0.0
        %614 = vmatpush1.msra.mxu0 0.0
        %615 = vmatprep.subr.mxu0 0.0
        %616 = vmatpush1.msra.mxu0 0.0
        %617 = vmatprep.subr.mxu0 0.0
        %618 = vmatpush1.msra.mxu0 0.0
        %619 = vmatprep.subr.mxu0 0.0
        %620 = vmatpush1.msra.mxu0 0.0
        %621 = vmatprep.subr.mxu0 0.0
        %622 = vmatpush1.msra.mxu0 0.0
        %623 = vmatprep.subr.mxu0 0.0
        %624 = vmatpush1.msra.mxu0 0.0
        %625 = vmatprep.subr.mxu0 0.0
        %626 = vmatpush1.msra.mxu0 0.0
        %627 = vmatprep.subr.mxu0 0.0
        %628 = vmatpush1.msra.mxu0 0.0
        %629 = vmatprep.subr.mxu0 0.0
        %630 = vmatpush1.msra.mxu0 0.0
        %631 = vmatprep.subr.mxu0 0.0
        %632 = vmatpush1.msra.mxu0 0.0
        %633 = vmatprep.subr.mxu0 0.0
        %634 = vmatpush1.msra.mxu0 0.0
        %635 = vmatprep.subr.mxu0 0.0
        %636 = vmatpush1.msra.mxu0 0.0
        %637 = vmatprep.subr.mxu0 0.0
        %638 = vmatpush1.msra.mxu0 0.0
        %639 = vmatprep.subr.mxu0 0.0
        %640 = vmatpush1.msra.mxu0 0.0
        %641 = vmatprep.subr.mxu0 0.0
        %642 = vmatpush1.msra.mxu0 0.0
        %643 = vmatprep.subr.mxu0 0.0
        %644 = vmatpush1.msra.mxu0 0.0
        %645 = vmatprep.subr.mxu0 0.0
        %646 = vmatpush1.msra.mxu0 0.0
        %647 = vmatprep.subr.mxu0 0.0
        %648 = vmatpush1.msra.mxu0 0.0
        %649 = vmatprep.subr.mxu0 0.0
        %650 = vmatpush1.msra.mxu0 0.0
        %651 = vmatprep.subr.mxu0 0.0
        %652 = vmatpush1.msra.mxu0 0.0
        %653 = vmatprep.subr.mxu0 0.0
        %654 = vmatpush1.msra.mxu0 0.0
        %655 = vmatprep.subr.mxu0 0.0
        %656 = vmatpush1.msra.mxu0 0.0
        %657 = vmatprep.subr.mxu0 0.0
        %658 = vmatpush1.msra.mxu0 0.0
        %659 = vmatprep.subr.mxu0 0.0
        %660 = vmatpush1.msra.mxu0 0.0
        %661 = vmatprep.mubr.f32.mxu0 0.0
        %662 = vmatmul.mubr.f32.gmra.mrb[0].mxu0 %v498
        %v663 = vpop.f32.mrb[0].mxu0
        %v664 = vadd.f32 0.0, %v663
        %v665 = vpop.f32.mrb[0].mxu0
        %666 = vmatprep.mubr.f32.mxu0 0.0
        %667 = vmatmul.mubr.f32.gmra.mrb[0].mxu0 %v501
        %v668 = vpop.f32.mrb[0].mxu0
        %v669 = vadd.f32 0.0, %v668
        %v670 = vpop.f32.mrb[0].mxu0
        %671 = vmatprep.mubr.f32.mxu0 0.0
        %672 = vmatmul.mubr.f32.gmra.mrb[0].mxu0 %v504
        %v673 = vpop.f32.mrb[0].mxu0
        %v674 = vadd.f32 0.0, %v673
        %v675 = vpop.f32.mrb[0].mxu0
        %676 = vmatprep.mubr.f32.mxu0 0.0
        %677 = vmatmul.mubr.f32.gmra.mrb[0].mxu0 %v507
        %v678 = vpop.f32.mrb[0].mxu0
        %v679 = vadd.f32 0.0, %v678
        %v680 = vpop.f32.mrb[0].mxu0
        %681 = vmatprep.mubr.f32.mxu0 0.0
        %682 = vmatmul.mubr.f32.gmra.mrb[0].mxu0 %v510
        %v683 = vpop.f32.mrb[0].mxu0
        %v684 = vadd.f32 0.0, %v683
        %v685 = vpop.f32.mrb[0].mxu0
        %686 = vmatprep.mubr.f32.mxu0 0.0
        %687 = vmatmul.mubr.f32.gmra.mrb[0].mxu0 %v513
        %v688 = vpop.f32.mrb[0].mxu0
        %v689 = vadd.f32 0.0, %v688
        %v690 = vpop.f32.mrb[0].mxu0
        %691 = vmatprep.mubr.f32.mxu0 0.0
        %692 = vmatmul.mubr.f32.gmra.mrb[0].mxu0 %v516
        %v693 = vpop.f32.mrb[0].mxu0
        %v694 = vadd.f32 0.0, %v693
        %v695 = vpop.f32.mrb[0].mxu0
        %696 = vmatprep.mubr.f32.mxu0 0.0
        %697 = vmatmul.mubr.f32.gmra.mrb[0].mxu0 %v519
        %v698 = vpop.f32.mrb[0].mxu0
        %v699 = vadd.f32 0.0, %v698
        %v700 = vpop.f32.mrb[0].mxu0
        %701 = vmatprep.mubr.f32.mxu0 0.0
        %702 = vmatmul.mubr.f32.gmra.mrb[0].mxu0 %v522
        %v703 = vpop.f32.mrb[0].mxu0
        %v704 = vadd.f32 0.0, %v703
        %v705 = vpop.f32.mrb[0].mxu0
        %706 = vmatprep.mubr.f32.mxu0 0.0
        %707 = vmatmul.mubr.f32.gmra.mrb[0].mxu0 %v525
        %v708 = vpop.f32.mrb[0].mxu0
        %v709 = vadd.f32 0.0, %v708
        %v710 = vpop.f32.mrb[0].mxu0
        %711 = vmatprep.mubr.f32.mxu0 0.0
        %712 = vmatmul.mubr.f32.gmra.mrb[0].mxu0 %v528
        %v713 = vpop.f32.mrb[0].mxu0
        %v714 = vadd.f32 0.0, %v713
        %v715 = vpop.f32.mrb[0].mxu0
        %716 = vmatprep.mubr.f32.mxu0 0.0
        %717 = vmatmul.mubr.f32.gmra.mrb[0].mxu0 %v531
        %v718 = vpop.f32.mrb[0].mxu0
        %v719 = vadd.f32 0.0, %v718
        %v720 = vpop.f32.mrb[0].mxu0
        %721 = vmatprep.mubr.f32.mxu0 0.0
        %722 = vmatmul.mubr.f32.gmra.mrb[0].mxu0 %v534
        %v723 = vpop.f32.mrb[0].mxu0
        %v724 = vadd.f32 0.0, %v723
        %v725 = vpop.f32.mrb[0].mxu0
        %726 = vmatprep.mubr.f32.mxu0 0.0
        %727 = vmatmul.mubr.f32.gmra.mrb[0].mxu0 %v537
        %v728 = vpop.f32.mrb[0].mxu0
        %v729 = vadd.f32 0.0, %v728
        %v730 = vpop.f32.mrb[0].mxu0
        %731 = vmatprep.mubr.f32.mxu0 0.0
        %732 = vmatmul.mubr.f32.gmra.mrb[0].mxu0 %v540
        %v733 = vpop.f32.mrb[0].mxu0
        %v734 = vadd.f32 0.0, %v733
        %v735 = vpop.f32.mrb[0].mxu0
        %736 = vmatprep.mubr.f32.mxu0 0.0
        %737 = vmatmul.mubr.f32.gmra.mrb[0].mxu0 %v543
        %v738 = vpop.f32.mrb[0].mxu0
        %v739 = vadd.f32 0.0, %v738
        %v740 = vpop.f32.mrb[0].mxu0
        %741 = vmatprep.mubr.f32.mxu0 0.0
        %742 = vmatmul.mubr.f32.gmra.mrb[0].mxu0 %v546
        %v743 = vpop.f32.mrb[0].mxu0
        %v744 = vadd.f32 0.0, %v743
        %v745 = vpop.f32.mrb[0].mxu0
        %746 = vmatprep.mubr.f32.mxu0 0.0
        %747 = vmatmul.mubr.f32.gmra.mrb[0].mxu0 %v549
        %v748 = vpop.f32.mrb[0].mxu0
        %v749 = vadd.f32 0.0, %v748
        %v750 = vpop.f32.mrb[0].mxu0
        %751 = vmatprep.mubr.f32.mxu0 0.0
        %752 = vmatmul.mubr.f32.gmra.mrb[0].mxu0 %v552
        %v753 = vpop.f32.mrb[0].mxu0
        %v754 = vadd.f32 0.0, %v753
        %v755 = vpop.f32.mrb[0].mxu0
        %756 = vmatprep.mubr.f32.mxu0 0.0
        %757 = vmatmul.mubr.f32.gmra.mrb[0].mxu0 %v555
        %v758 = vpop.f32.mrb[0].mxu0
        %v759 = vadd.f32 0.0, %v758
        %v760 = vpop.f32.mrb[0].mxu0
        %761 = vmatprep.mubr.f32.mxu0 0.0
        %762 = vmatmul.mubr.f32.gmra.mrb[0].mxu0 %v558
        %v763 = vpop.f32.mrb[0].mxu0
        %v764 = vadd.f32 0.0, %v763
        %v765 = vpop.f32.mrb[0].mxu0
        %766 = vmatprep.mubr.f32.mxu0 0.0
        %767 = vmatmul.mubr.f32.gmra.mrb[0].mxu0 %v561
        %v768 = vpop.f32.mrb[0].mxu0
        %v769 = vadd.f32 0.0, %v768
        %v770 = vpop.f32.mrb[0].mxu0
        %771 = vmatprep.mubr.f32.mxu0 0.0
        %772 = vmatmul.mubr.f32.gmra.mrb[0].mxu0 %v564
        %v773 = vpop.f32.mrb[0].mxu0
        %v774 = vadd.f32 0.0, %v773
        %v775 = vpop.f32.mrb[0].mxu0
        %776 = vmatprep.mubr.f32.mxu0 0.0
        %777 = vmatmul.mubr.f32.gmra.mrb[0].mxu0 %v567
        %v778 = vpop.f32.mrb[0].mxu0
        %v779 = vadd.f32 0.0, %v778
        %v780 = vpop.f32.mrb[0].mxu0
        %781 = vmatprep.mubr.f32.mxu0 0.0
        %782 = vmatmul.mubr.f32.gmra.mrb[0].mxu0 %v570
        %v783 = vpop.f32.mrb[0].mxu0
        %v784 = vadd.f32 0.0, %v783
        %v785 = vpop.f32.mrb[0].mxu0
        %786 = vmatprep.mubr.f32.mxu0 0.0
        %787 = vmatmul.mubr.f32.gmra.mrb[0].mxu0 %v573
        %v788 = vpop.f32.mrb[0].mxu0
        %v789 = vadd.f32 0.0, %v788
        %v790 = vpop.f32.mrb[0].mxu0
        %791 = vmatprep.mubr.f32.mxu0 0.0
        %792 = vmatmul.mubr.f32.gmra.mrb[0].mxu0 %v576
        %v793 = vpop.f32.mrb[0].mxu0
        %v794 = vadd.f32 0.0, %v793
        %v795 = vpop.f32.mrb[0].mxu0
        %796 = vmatprep.mubr.f32.mxu0 0.0
        %797 = vmatmul.mubr.f32.gmra.mrb[0].mxu0 %v579
        %v798 = vpop.f32.mrb[0].mxu0
        %v799 = vadd.f32 0.0, %v798
        %v800 = vpop.f32.mrb[0].mxu0
        %801 = vmatprep.mubr.f32.mxu0 0.0
        %802 = vmatmul.mubr.f32.gmra.mrb[0].mxu0 %v582
        %v803 = vpop.f32.mrb[0].mxu0
        %v804 = vadd.f32 0.0, %v803
        %v805 = vpop.f32.mrb[0].mxu0
        %806 = vmatprep.mubr.f32.mxu0 0.0
        %807 = vmatmul.mubr.f32.gmra.mrb[0].mxu0 %v585
        %v808 = vpop.f32.mrb[0].mxu0
        %v809 = vadd.f32 0.0, %v808
        %v810 = vpop.f32.mrb[0].mxu0
        %811 = vmatprep.mubr.f32.mxu0 0.0
        %812 = vmatmul.mubr.f32.gmra.mrb[0].mxu0 %v588
        %v813 = vpop.f32.mrb[0].mxu0
        %v814 = vadd.f32 0.0, %v813
        %v815 = vpop.f32.mrb[0].mxu0
        %816 = vmatprep.mubr.f32.mxu0 0.0
        %817 = vmatmul.mubr.f32.gmra.mrb[0].mxu0 %v591
        %v818 = vpop.f32.mrb[0].mxu0
        %v819 = vadd.f32 0.0, %v818
        %v820 = vpop.f32.mrb[0].mxu0
        %821 = vdwg.mxu0
        %v823 = vlaneseq
        %v824 = vshrl.u32 %v823, 7
        %v825 = vsub.s32 0, %v824
        %v826 = vrot.slane %v463, %v825
        %v828 = vadd.f32 %v826, %v664
        %v829 = vadd.f32 %v826, %v669
        %v830 = vadd.f32 %v826, %v674
        %v831 = vadd.f32 %v826, %v679
        %v832 = vadd.f32 %v826, %v684
        %v833 = vadd.f32 %v826, %v689
        %v834 = vadd.f32 %v826, %v694
        %v835 = vadd.f32 %v826, %v699
        %v836 = vadd.f32 %v826, %v704
        %v837 = vadd.f32 %v826, %v709
        %v838 = vadd.f32 %v826, %v714
        %v839 = vadd.f32 %v826, %v719
        %v840 = vadd.f32 %v826, %v724
        %v841 = vadd.f32 %v826, %v729
        %v842 = vadd.f32 %v826, %v734
        %v843 = vadd.f32 %v826, %v739
        %v844 = vadd.f32 %v826, %v744
        %v845 = vadd.f32 %v826, %v749
        %v846 = vadd.f32 %v826, %v754
        %v847 = vadd.f32 %v826, %v759
        %v848 = vadd.f32 %v826, %v764
        %v849 = vadd.f32 %v826, %v769
        %v850 = vadd.f32 %v826, %v774
        %v851 = vadd.f32 %v826, %v779
        %v852 = vadd.f32 %v826, %v784
        %v853 = vadd.f32 %v826, %v789
        %v854 = vadd.f32 %v826, %v794
        %v855 = vadd.f32 %v826, %v799
        %v856 = vadd.f32 %v826, %v804
        %v857 = vadd.f32 %v826, %v809
        %v858 = vadd.f32 %v826, %v814
        %v859 = vadd.f32 %v826, %v819
        %v860 = vld [vmem:[#allocation2 + $0x1] sm:$0xff]
        %v861 = vld [vmem:[#allocation2 + $0x9] sm:$0xff]
        %v862 = vld [vmem:[#allocation2 + $0x19] sm:$0xff]
        %v863 = vld [vmem:[#allocation2 + $0x21] sm:$0xff]
        %v864 = vld [vmem:[#allocation2 + $0x31] sm:$0xff]
        %v865 = vld [vmem:[#allocation2 + $0x39] sm:$0xff]
        %v866 = vld [vmem:[#allocation2 + $0x49] sm:$0xff]
        %v867 = vld [vmem:[#allocation2 + $0x51] sm:$0xff]
        %v868 = vld [vmem:[#allocation2 + $0x61] sm:$0xff]
        %v869 = vld [vmem:[#allocation2 + $0x69] sm:$0xff]
        %v870 = vld [vmem:[#allocation2 + $0x79] sm:$0xff]
        %v871 = vld [vmem:[#allocation2 + $0x81] sm:$0xff]
        %v872 = vld [vmem:[#allocation2 + $0x91] sm:$0xff]
        %v873 = vld [vmem:[#allocation2 + $0x99] sm:$0xff]
        %v874 = vld [vmem:[#allocation2 + $0xa9] sm:$0xff]
        %v875 = vld [vmem:[#allocation2 + $0xb1] sm:$0xff]
        %v876 = vld [vmem:[#allocation2 + $0xc1] sm:$0xff]
        %v877 = vld [vmem:[#allocation2 + $0xc9] sm:$0xff]
        %v878 = vld [vmem:[#allocation2 + $0xd9] sm:$0xff]
        %v879 = vld [vmem:[#allocation2 + $0xe1] sm:$0xff]
        %v880 = vld [vmem:[#allocation2 + $0xf1] sm:$0xff]
        %v881 = vld [vmem:[#allocation2 + $0xf9] sm:$0xff]
        %v882 = vld [vmem:[#allocation2 + $0x109] sm:$0xff]
        %v883 = vld [vmem:[#allocation2 + $0x111] sm:$0xff]
        %v884 = vld [vmem:[#allocation2 + $0x121] sm:$0xff]
        %v885 = vld [vmem:[#allocation2 + $0x129] sm:$0xff]
        %v886 = vld [vmem:[#allocation2 + $0x139] sm:$0xff]
        %v887 = vld [vmem:[#allocation2 + $0x141] sm:$0xff]
        %v888 = vld [vmem:[#allocation2 + $0x151] sm:$0xff]
        %v889 = vld [vmem:[#allocation2 + $0x159] sm:$0xff]
        %v890 = vld [vmem:[#allocation2 + $0x169] sm:$0xff]
        %v891 = vld [vmem:[#allocation2 + $0x171] sm:$0xff]
        %s892 = scalar_lea.vmem %s1, 4
        %v893 = vld [vmem:[%s892] sm:$0xf]
        %v895 = vsel %vm306, %v860, 0
        %v898 = vsel %vm306, %v861, 0
        %v901 = vsel %vm306, %v862, 0
        %v904 = vsel %vm306, %v863, 0
        %v907 = vsel %vm306, %v864, 0
        %v910 = vsel %vm306, %v865, 0
        %v913 = vsel %vm306, %v866, 0
        %v916 = vsel %vm306, %v867, 0
        %v919 = vsel %vm306, %v868, 0
        %v922 = vsel %vm306, %v869, 0
        %v925 = vsel %vm306, %v870, 0
        %v928 = vsel %vm306, %v871, 0
        %v931 = vsel %vm306, %v872, 0
        %v934 = vsel %vm306, %v873, 0
        %v937 = vsel %vm306, %v874, 0
        %v940 = vsel %vm306, %v875, 0
        %v943 = vsel %vm306, %v876, 0
        %v946 = vsel %vm306, %v877, 0
        %v949 = vsel %vm306, %v878, 0
        %v952 = vsel %vm306, %v879, 0
        %v955 = vsel %vm306, %v880, 0
        %v958 = vsel %vm306, %v881, 0
        %v961 = vsel %vm306, %v882, 0
        %v964 = vsel %vm306, %v883, 0
        %v967 = vsel %vm306, %v884, 0
        %v970 = vsel %vm306, %v885, 0
        %v973 = vsel %vm306, %v886, 0
        %v976 = vsel %vm306, %v887, 0
        %v979 = vsel %vm306, %v888, 0
        %v982 = vsel %vm306, %v889, 0
        %v985 = vsel %vm306, %v890, 0
        %v988 = vsel %vm306, %v891, 0
        %v991 = vsel %vm593, %v893, 0
        %993 = vmatprep.subr.mxu0 0.0
        %994 = vmatpush1.msra.mxu0 %v991
        %995 = vmatprep.subr.mxu0 0.0
        %996 = vmatpush1.msra.mxu0 0.0
        %997 = vmatprep.subr.mxu0 0.0
        %998 = vmatpush1.msra.mxu0 0.0
        %999 = vmatprep.subr.mxu0 0.0
        %1000 = vmatpush1.msra.mxu0 0.0
        %1001 = vmatprep.subr.mxu0 0.0
        %1002 = vmatpush1.msra.mxu0 0.0
        %1003 = vmatprep.subr.mxu0 0.0
        %1004 = vmatpush1.msra.mxu0 0.0
        %1005 = vmatprep.subr.mxu0 0.0
        %1006 = vmatpush1.msra.mxu0 0.0
        %1007 = vmatprep.subr.mxu0 0.0
        %1008 = vmatpush1.msra.mxu0 0.0
        %1009 = vmatprep.subr.mxu0 0.0
        %1010 = vmatpush1.msra.mxu0 0.0
        %1011 = vmatprep.subr.mxu0 0.0
        %1012 = vmatpush1.msra.mxu0 0.0
        %1013 = vmatprep.subr.mxu0 0.0
        %1014 = vmatpush1.msra.mxu0 0.0
        %1015 = vmatprep.subr.mxu0 0.0
        %1016 = vmatpush1.msra.mxu0 0.0
        %1017 = vmatprep.subr.mxu0 0.0
        %1018 = vmatpush1.msra.mxu0 0.0
        %1019 = vmatprep.subr.mxu0 0.0
        %1020 = vmatpush1.msra.mxu0 0.0
        %1021 = vmatprep.subr.mxu0 0.0
        %1022 = vmatpush1.msra.mxu0 0.0
        %1023 = vmatprep.subr.mxu0 0.0
        %1024 = vmatpush1.msra.mxu0 0.0
        %1025 = vmatprep.subr.mxu0 0.0
        %1026 = vmatpush1.msra.mxu0 0.0
        %1027 = vmatprep.subr.mxu0 0.0
        %1028 = vmatpush1.msra.mxu0 0.0
        %1029 = vmatprep.subr.mxu0 0.0
        %1030 = vmatpush1.msra.mxu0 0.0
        %1031 = vmatprep.subr.mxu0 0.0
        %1032 = vmatpush1.msra.mxu0 0.0
        %1033 = vmatprep.subr.mxu0 0.0
        %1034 = vmatpush1.msra.mxu0 0.0
        %1035 = vmatprep.subr.mxu0 0.0
        %1036 = vmatpush1.msra.mxu0 0.0
        %1037 = vmatprep.subr.mxu0 0.0
        %1038 = vmatpush1.msra.mxu0 0.0
        %1039 = vmatprep.subr.mxu0 0.0
        %1040 = vmatpush1.msra.mxu0 0.0
        %1041 = vmatprep.subr.mxu0 0.0
        %1042 = vmatpush1.msra.mxu0 0.0
        %1043 = vmatprep.subr.mxu0 0.0
        %1044 = vmatpush1.msra.mxu0 0.0
        %1045 = vmatprep.subr.mxu0 0.0
        %1046 = vmatpush1.msra.mxu0 0.0
        %1047 = vmatprep.subr.mxu0 0.0
        %1048 = vmatpush1.msra.mxu0 0.0
        %1049 = vmatprep.subr.mxu0 0.0
        %1050 = vmatpush1.msra.mxu0 0.0
        %1051 = vmatprep.subr.mxu0 0.0
        %1052 = vmatpush1.msra.mxu0 0.0
        %1053 = vmatprep.subr.mxu0 0.0
        %1054 = vmatpush1.msra.mxu0 0.0
        %1055 = vmatprep.subr.mxu0 0.0
        %1056 = vmatpush1.msra.mxu0 0.0
        %1057 = vmatprep.mubr.f32.mxu0 0.0
        %1058 = vmatmul.mubr.f32.gmra.mrb[0].mxu0 %v895
        %v1059 = vpop.f32.mrb[0].mxu0
        %v1060 = vadd.f32 0.0, %v1059
        %v1061 = vpop.f32.mrb[0].mxu0
        %1062 = vmatprep.mubr.f32.mxu0 0.0
        %1063 = vmatmul.mubr.f32.gmra.mrb[0].mxu0 %v898
        %v1064 = vpop.f32.mrb[0].mxu0
        %v1065 = vadd.f32 0.0, %v1064
        %v1066 = vpop.f32.mrb[0].mxu0
        %1067 = vmatprep.mubr.f32.mxu0 0.0
        %1068 = vmatmul.mubr.f32.gmra.mrb[0].mxu0 %v901
        %v1069 = vpop.f32.mrb[0].mxu0
        %v1070 = vadd.f32 0.0, %v1069
        %v1071 = vpop.f32.mrb[0].mxu0
        %1072 = vmatprep.mubr.f32.mxu0 0.0
        %1073 = vmatmul.mubr.f32.gmra.mrb[0].mxu0 %v904
        %v1074 = vpop.f32.mrb[0].mxu0
        %v1075 = vadd.f32 0.0, %v1074
        %v1076 = vpop.f32.mrb[0].mxu0
        %1077 = vmatprep.mubr.f32.mxu0 0.0
        %1078 = vmatmul.mubr.f32.gmra.mrb[0].mxu0 %v907
        %v1079 = vpop.f32.mrb[0].mxu0
        %v1080 = vadd.f32 0.0, %v1079
        %v1081 = vpop.f32.mrb[0].mxu0
        %1082 = vmatprep.mubr.f32.mxu0 0.0
        %1083 = vmatmul.mubr.f32.gmra.mrb[0].mxu0 %v910
        %v1084 = vpop.f32.mrb[0].mxu0
        %v1085 = vadd.f32 0.0, %v1084
        %v1086 = vpop.f32.mrb[0].mxu0
        %1087 = vmatprep.mubr.f32.mxu0 0.0
        %1088 = vmatmul.mubr.f32.gmra.mrb[0].mxu0 %v913
        %v1089 = vpop.f32.mrb[0].mxu0
        %v1090 = vadd.f32 0.0, %v1089
        %v1091 = vpop.f32.mrb[0].mxu0
        %1092 = vmatprep.mubr.f32.mxu0 0.0
        %1093 = vmatmul.mubr.f32.gmra.mrb[0].mxu0 %v916
        %v1094 = vpop.f32.mrb[0].mxu0
        %v1095 = vadd.f32 0.0, %v1094
        %v1096 = vpop.f32.mrb[0].mxu0
        %1097 = vmatprep.mubr.f32.mxu0 0.0
        %1098 = vmatmul.mubr.f32.gmra.mrb[0].mxu0 %v919
        %v1099 = vpop.f32.mrb[0].mxu0
        %v1100 = vadd.f32 0.0, %v1099
        %v1101 = vpop.f32.mrb[0].mxu0
        %1102 = vmatprep.mubr.f32.mxu0 0.0
        %1103 = vmatmul.mubr.f32.gmra.mrb[0].mxu0 %v922
        %v1104 = vpop.f32.mrb[0].mxu0
        %v1105 = vadd.f32 0.0, %v1104
        %v1106 = vpop.f32.mrb[0].mxu0
        %1107 = vmatprep.mubr.f32.mxu0 0.0
        %1108 = vmatmul.mubr.f32.gmra.mrb[0].mxu0 %v925
        %v1109 = vpop.f32.mrb[0].mxu0
        %v1110 = vadd.f32 0.0, %v1109
        %v1111 = vpop.f32.mrb[0].mxu0
        %1112 = vmatprep.mubr.f32.mxu0 0.0
        %1113 = vmatmul.mubr.f32.gmra.mrb[0].mxu0 %v928
        %v1114 = vpop.f32.mrb[0].mxu0
        %v1115 = vadd.f32 0.0, %v1114
        %v1116 = vpop.f32.mrb[0].mxu0
        %1117 = vmatprep.mubr.f32.mxu0 0.0
        %1118 = vmatmul.mubr.f32.gmra.mrb[0].mxu0 %v931
        %v1119 = vpop.f32.mrb[0].mxu0
        %v1120 = vadd.f32 0.0, %v1119
        %v1121 = vpop.f32.mrb[0].mxu0
        %1122 = vmatprep.mubr.f32.mxu0 0.0
        %1123 = vmatmul.mubr.f32.gmra.mrb[0].mxu0 %v934
        %v1124 = vpop.f32.mrb[0].mxu0
        %v1125 = vadd.f32 0.0, %v1124
        %v1126 = vpop.f32.mrb[0].mxu0
        %1127 = vmatprep.mubr.f32.mxu0 0.0
        %1128 = vmatmul.mubr.f32.gmra.mrb[0].mxu0 %v937
        %v1129 = vpop.f32.mrb[0].mxu0
        %v1130 = vadd.f32 0.0, %v1129
        %v1131 = vpop.f32.mrb[0].mxu0
        %1132 = vmatprep.mubr.f32.mxu0 0.0
        %1133 = vmatmul.mubr.f32.gmra.mrb[0].mxu0 %v940
        %v1134 = vpop.f32.mrb[0].mxu0
        %v1135 = vadd.f32 0.0, %v1134
        %v1136 = vpop.f32.mrb[0].mxu0
        %1137 = vmatprep.mubr.f32.mxu0 0.0
        %1138 = vmatmul.mubr.f32.gmra.mrb[0].mxu0 %v943
        %v1139 = vpop.f32.mrb[0].mxu0
        %v1140 = vadd.f32 0.0, %v1139
        %v1141 = vpop.f32.mrb[0].mxu0
        %1142 = vmatprep.mubr.f32.mxu0 0.0
        %1143 = vmatmul.mubr.f32.gmra.mrb[0].mxu0 %v946
        %v1144 = vpop.f32.mrb[0].mxu0
        %v1145 = vadd.f32 0.0, %v1144
        %v1146 = vpop.f32.mrb[0].mxu0
        %1147 = vmatprep.mubr.f32.mxu0 0.0
        %1148 = vmatmul.mubr.f32.gmra.mrb[0].mxu0 %v949
        %v1149 = vpop.f32.mrb[0].mxu0
        %v1150 = vadd.f32 0.0, %v1149
        %v1151 = vpop.f32.mrb[0].mxu0
        %1152 = vmatprep.mubr.f32.mxu0 0.0
        %1153 = vmatmul.mubr.f32.gmra.mrb[0].mxu0 %v952
        %v1154 = vpop.f32.mrb[0].mxu0
        %v1155 = vadd.f32 0.0, %v1154
        %v1156 = vpop.f32.mrb[0].mxu0
        %1157 = vmatprep.mubr.f32.mxu0 0.0
        %1158 = vmatmul.mubr.f32.gmra.mrb[0].mxu0 %v955
        %v1159 = vpop.f32.mrb[0].mxu0
        %v1160 = vadd.f32 0.0, %v1159
        %v1161 = vpop.f32.mrb[0].mxu0
        %1162 = vmatprep.mubr.f32.mxu0 0.0
        %1163 = vmatmul.mubr.f32.gmra.mrb[0].mxu0 %v958
        %v1164 = vpop.f32.mrb[0].mxu0
        %v1165 = vadd.f32 0.0, %v1164
        %v1166 = vpop.f32.mrb[0].mxu0
        %1167 = vmatprep.mubr.f32.mxu0 0.0
        %1168 = vmatmul.mubr.f32.gmra.mrb[0].mxu0 %v961
        %v1169 = vpop.f32.mrb[0].mxu0
        %v1170 = vadd.f32 0.0, %v1169
        %v1171 = vpop.f32.mrb[0].mxu0
        %1172 = vmatprep.mubr.f32.mxu0 0.0
        %1173 = vmatmul.mubr.f32.gmra.mrb[0].mxu0 %v964
        %v1174 = vpop.f32.mrb[0].mxu0
        %v1175 = vadd.f32 0.0, %v1174
        %v1176 = vpop.f32.mrb[0].mxu0
        %1177 = vmatprep.mubr.f32.mxu0 0.0
        %1178 = vmatmul.mubr.f32.gmra.mrb[0].mxu0 %v967
        %v1179 = vpop.f32.mrb[0].mxu0
        %v1180 = vadd.f32 0.0, %v1179
        %v1181 = vpop.f32.mrb[0].mxu0
        %1182 = vmatprep.mubr.f32.mxu0 0.0
        %1183 = vmatmul.mubr.f32.gmra.mrb[0].mxu0 %v970
        %v1184 = vpop.f32.mrb[0].mxu0
        %v1185 = vadd.f32 0.0, %v1184
        %v1186 = vpop.f32.mrb[0].mxu0
        %1187 = vmatprep.mubr.f32.mxu0 0.0
        %1188 = vmatmul.mubr.f32.gmra.mrb[0].mxu0 %v973
        %v1189 = vpop.f32.mrb[0].mxu0
        %v1190 = vadd.f32 0.0, %v1189
        %v1191 = vpop.f32.mrb[0].mxu0
        %1192 = vmatprep.mubr.f32.mxu0 0.0
        %1193 = vmatmul.mubr.f32.gmra.mrb[0].mxu0 %v976
        %v1194 = vpop.f32.mrb[0].mxu0
        %v1195 = vadd.f32 0.0, %v1194
        %v1196 = vpop.f32.mrb[0].mxu0
        %1197 = vmatprep.mubr.f32.mxu0 0.0
        %1198 = vmatmul.mubr.f32.gmra.mrb[0].mxu0 %v979
        %v1199 = vpop.f32.mrb[0].mxu0
        %v1200 = vadd.f32 0.0, %v1199
        %v1201 = vpop.f32.mrb[0].mxu0
        %1202 = vmatprep.mubr.f32.mxu0 0.0
        %1203 = vmatmul.mubr.f32.gmra.mrb[0].mxu0 %v982
        %v1204 = vpop.f32.mrb[0].mxu0
        %v1205 = vadd.f32 0.0, %v1204
        %v1206 = vpop.f32.mrb[0].mxu0
        %1207 = vmatprep.mubr.f32.mxu0 0.0
        %1208 = vmatmul.mubr.f32.gmra.mrb[0].mxu0 %v985
        %v1209 = vpop.f32.mrb[0].mxu0
        %v1210 = vadd.f32 0.0, %v1209
        %v1211 = vpop.f32.mrb[0].mxu0
        %1212 = vmatprep.mubr.f32.mxu0 0.0
        %1213 = vmatmul.mubr.f32.gmra.mrb[0].mxu0 %v988
        %v1214 = vpop.f32.mrb[0].mxu0
        %v1215 = vadd.f32 0.0, %v1214
        %v1216 = vpop.f32.mrb[0].mxu0
        %1217 = vdwg.mxu0
        %v1218 = vadd.f32 %v828, %v1060
        %v1219 = vadd.f32 %v829, %v1065
        %v1220 = vadd.f32 %v830, %v1070
        %v1221 = vadd.f32 %v831, %v1075
        %v1222 = vadd.f32 %v832, %v1080
        %v1223 = vadd.f32 %v833, %v1085
        %v1224 = vadd.f32 %v834, %v1090
        %v1225 = vadd.f32 %v835, %v1095
        %v1226 = vadd.f32 %v836, %v1100
        %v1227 = vadd.f32 %v837, %v1105
        %v1228 = vadd.f32 %v838, %v1110
        %v1229 = vadd.f32 %v839, %v1115
        %v1230 = vadd.f32 %v840, %v1120
        %v1231 = vadd.f32 %v841, %v1125
        %v1232 = vadd.f32 %v842, %v1130
        %v1233 = vadd.f32 %v843, %v1135
        %v1234 = vadd.f32 %v844, %v1140
        %v1235 = vadd.f32 %v845, %v1145
        %v1236 = vadd.f32 %v846, %v1150
        %v1237 = vadd.f32 %v847, %v1155
        %v1238 = vadd.f32 %v848, %v1160
        %v1239 = vadd.f32 %v849, %v1165
        %v1240 = vadd.f32 %v850, %v1170
        %v1241 = vadd.f32 %v851, %v1175
        %v1242 = vadd.f32 %v852, %v1180
        %v1243 = vadd.f32 %v853, %v1185
        %v1244 = vadd.f32 %v854, %v1190
        %v1245 = vadd.f32 %v855, %v1195
        %v1246 = vadd.f32 %v856, %v1200
        %v1247 = vadd.f32 %v857, %v1205
        %v1248 = vadd.f32 %v858, %v1210
        %v1249 = vadd.f32 %v859, %v1215
        %v1250 = vld [vmem:[#allocation2 + $0x2] sm:$0xff]
        %v1251 = vld [vmem:[#allocation2 + $0xa] sm:$0xff]
        %v1252 = vld [vmem:[#allocation2 + $0x1a] sm:$0xff]
        %v1253 = vld [vmem:[#allocation2 + $0x22] sm:$0xff]
        %v1254 = vld [vmem:[#allocation2 + $0x32] sm:$0xff]
        %v1255 = vld [vmem:[#allocation2 + $0x3a] sm:$0xff]
        %v1256 = vld [vmem:[#allocation2 + $0x4a] sm:$0xff]
        %v1257 = vld [vmem:[#allocation2 + $0x52] sm:$0xff]
        %v1258 = vld [vmem:[#allocation2 + $0x62] sm:$0xff]
        %v1259 = vld [vmem:[#allocation2 + $0x6a] sm:$0xff]
        %v1260 = vld [vmem:[#allocation2 + $0x7a] sm:$0xff]
        %v1261 = vld [vmem:[#allocation2 + $0x82] sm:$0xff]
        %v1262 = vld [vmem:[#allocation2 + $0x92] sm:$0xff]
        %v1263 = vld [vmem:[#allocation2 + $0x9a] sm:$0xff]
        %v1264 = vld [vmem:[#allocation2 + $0xaa] sm:$0xff]
        %v1265 = vld [vmem:[#allocation2 + $0xb2] sm:$0xff]
        %v1266 = vld [vmem:[#allocation2 + $0xc2] sm:$0xff]
        %v1267 = vld [vmem:[#allocation2 + $0xca] sm:$0xff]
        %v1268 = vld [vmem:[#allocation2 + $0xda] sm:$0xff]
        %v1269 = vld [vmem:[#allocation2 + $0xe2] sm:$0xff]
        %v1270 = vld [vmem:[#allocation2 + $0xf2] sm:$0xff]
        %v1271 = vld [vmem:[#allocation2 + $0xfa] sm:$0xff]
        %v1272 = vld [vmem:[#allocation2 + $0x10a] sm:$0xff]
        %v1273 = vld [vmem:[#allocation2 + $0x112] sm:$0xff]
        %v1274 = vld [vmem:[#allocation2 + $0x122] sm:$0xff]
        %v1275 = vld [vmem:[#allocation2 + $0x12a] sm:$0xff]
        %v1276 = vld [vmem:[#allocation2 + $0x13a] sm:$0xff]
        %v1277 = vld [vmem:[#allocation2 + $0x142] sm:$0xff]
        %v1278 = vld [vmem:[#allocation2 + $0x152] sm:$0xff]
        %v1279 = vld [vmem:[#allocation2 + $0x15a] sm:$0xff]
        %v1280 = vld [vmem:[#allocation2 + $0x16a] sm:$0xff]
        %v1281 = vld [vmem:[#allocation2 + $0x172] sm:$0xff]
        %s1282 = scalar_lea.vmem %s1, 8
        %v1283 = vld [vmem:[%s1282] sm:$0xf]
        %v1285 = vsel %vm306, %v1250, 0
        %v1288 = vsel %vm306, %v1251, 0
        %v1291 = vsel %vm306, %v1252, 0
        %v1294 = vsel %vm306, %v1253, 0
        %v1297 = vsel %vm306, %v1254, 0
        %v1300 = vsel %vm306, %v1255, 0
        %v1303 = vsel %vm306, %v1256, 0
        %v1306 = vsel %vm306, %v1257, 0
        %v1309 = vsel %vm306, %v1258, 0
        %v1312 = vsel %vm306, %v1259, 0
        %v1315 = vsel %vm306, %v1260, 0
        %v1318 = vsel %vm306, %v1261, 0
        %v1321 = vsel %vm306, %v1262, 0
        %v1324 = vsel %vm306, %v1263, 0
        %v1327 = vsel %vm306, %v1264, 0
        %v1330 = vsel %vm306, %v1265, 0
        %v1333 = vsel %vm306, %v1266, 0
        %v1336 = vsel %vm306, %v1267, 0
        %v1339 = vsel %vm306, %v1268, 0
        %v1342 = vsel %vm306, %v1269, 0
        %v1345 = vsel %vm306, %v1270, 0
        %v1348 = vsel %vm306, %v1271, 0
        %v1351 = vsel %vm306, %v1272, 0
        %v1354 = vsel %vm306, %v1273, 0
        %v1357 = vsel %vm306, %v1274, 0
        %v1360 = vsel %vm306, %v1275, 0
        %v1363 = vsel %vm306, %v1276, 0
        %v1366 = vsel %vm306, %v1277, 0
        %v1369 = vsel %vm306, %v1278, 0
        %v1372 = vsel %vm306, %v1279, 0
        %v1375 = vsel %vm306, %v1280, 0
        %v1378 = vsel %vm306, %v1281, 0
        %v1381 = vsel %vm593, %v1283, 0
        %1383 = vmatprep.subr.mxu0 0.0
        %1384 = vmatpush1.msra.mxu0 %v1381
        %1385 = vmatprep.subr.mxu0 0.0
        %1386 = vmatpush1.msra.mxu0 0.0
        %1387 = vmatprep.subr.mxu0 0.0
        %1388 = vmatpush1.msra.mxu0 0.0
        %1389 = vmatprep.subr.mxu0 0.0
        %1390 = vmatpush1.msra.mxu0 0.0
        %1391 = vmatprep.subr.mxu0 0.0
        %1392 = vmatpush1.msra.mxu0 0.0
        %1393 = vmatprep.subr.mxu0 0.0
        %1394 = vmatpush1.msra.mxu0 0.0
        %1395 = vmatprep.subr.mxu0 0.0
        %1396 = vmatpush1.msra.mxu0 0.0
        %1397 = vmatprep.subr.mxu0 0.0
        %1398 = vmatpush1.msra.mxu0 0.0
        %1399 = vmatprep.subr.mxu0 0.0
        %1400 = vmatpush1.msra.mxu0 0.0
        %1401 = vmatprep.subr.mxu0 0.0
        %1402 = vmatpush1.msra.mxu0 0.0
        %1403 = vmatprep.subr.mxu0 0.0
        %1404 = vmatpush1.msra.mxu0 0.0
        %1405 = vmatprep.subr.mxu0 0.0
        %1406 = vmatpush1.msra.mxu0 0.0
        %1407 = vmatprep.subr.mxu0 0.0
        %1408 = vmatpush1.msra.mxu0 0.0
        %1409 = vmatprep.subr.mxu0 0.0
        %1410 = vmatpush1.msra.mxu0 0.0
        %1411 = vmatprep.subr.mxu0 0.0
        %1412 = vmatpush1.msra.mxu0 0.0
        %1413 = vmatprep.subr.mxu0 0.0
        %1414 = vmatpush1.msra.mxu0 0.0
        %1415 = vmatprep.subr.mxu0 0.0
        %1416 = vmatpush1.msra.mxu0 0.0
        %1417 = vmatprep.subr.mxu0 0.0
        %1418 = vmatpush1.msra.mxu0 0.0
        %1419 = vmatprep.subr.mxu0 0.0
        %1420 = vmatpush1.msra.mxu0 0.0
        %1421 = vmatprep.subr.mxu0 0.0
        %1422 = vmatpush1.msra.mxu0 0.0
        %1423 = vmatprep.subr.mxu0 0.0
        %1424 = vmatpush1.msra.mxu0 0.0
        %1425 = vmatprep.subr.mxu0 0.0
        %1426 = vmatpush1.msra.mxu0 0.0
        %1427 = vmatprep.subr.mxu0 0.0
        %1428 = vmatpush1.msra.mxu0 0.0
        %1429 = vmatprep.subr.mxu0 0.0
        %1430 = vmatpush1.msra.mxu0 0.0
        %1431 = vmatprep.subr.mxu0 0.0
        %1432 = vmatpush1.msra.mxu0 0.0
        %1433 = vmatprep.subr.mxu0 0.0
        %1434 = vmatpush1.msra.mxu0 0.0
        %1435 = vmatprep.subr.mxu0 0.0
        %1436 = vmatpush1.msra.mxu0 0.0
        %1437 = vmatprep.subr.mxu0 0.0
        %1438 = vmatpush1.msra.mxu0 0.0
        %1439 = vmatprep.subr.mxu0 0.0
        %1440 = vmatpush1.msra.mxu0 0.0
        %1441 = vmatprep.subr.mxu0 0.0
        %1442 = vmatpush1.msra.mxu0 0.0
        %1443 = vmatprep.subr.mxu0 0.0
        %1444 = vmatpush1.msra.mxu0 0.0
        %1445 = vmatprep.subr.mxu0 0.0
        %1446 = vmatpush1.msra.mxu0 0.0
        %1447 = vmatprep.mubr.f32.mxu0 0.0
        %1448 = vmatmul.mubr.f32.gmra.mrb[0].mxu0 %v1285
        %v1449 = vpop.f32.mrb[0].mxu0
        %v1450 = vadd.f32 0.0, %v1449
        %v1451 = vpop.f32.mrb[0].mxu0
        %1452 = vmatprep.mubr.f32.mxu0 0.0
        %1453 = vmatmul.mubr.f32.gmra.mrb[0].mxu0 %v1288
        %v1454 = vpop.f32.mrb[0].mxu0
        %v1455 = vadd.f32 0.0, %v1454
        %v1456 = vpop.f32.mrb[0].mxu0
        %1457 = vmatprep.mubr.f32.mxu0 0.0
        %1458 = vmatmul.mubr.f32.gmra.mrb[0].mxu0 %v1291
        %v1459 = vpop.f32.mrb[0].mxu0
        %v1460 = vadd.f32 0.0, %v1459
        %v1461 = vpop.f32.mrb[0].mxu0
        %1462 = vmatprep.mubr.f32.mxu0 0.0
        %1463 = vmatmul.mubr.f32.gmra.mrb[0].mxu0 %v1294
        %v1464 = vpop.f32.mrb[0].mxu0
        %v1465 = vadd.f32 0.0, %v1464
        %v1466 = vpop.f32.mrb[0].mxu0
        %1467 = vmatprep.mubr.f32.mxu0 0.0
        %1468 = vmatmul.mubr.f32.gmra.mrb[0].mxu0 %v1297
        %v1469 = vpop.f32.mrb[0].mxu0
        %v1470 = vadd.f32 0.0, %v1469
        %v1471 = vpop.f32.mrb[0].mxu0
        %1472 = vmatprep.mubr.f32.mxu0 0.0
        %1473 = vmatmul.mubr.f32.gmra.mrb[0].mxu0 %v1300
        %v1474 = vpop.f32.mrb[0].mxu0
        %v1475 = vadd.f32 0.0, %v1474
        %v1476 = vpop.f32.mrb[0].mxu0
        %1477 = vmatprep.mubr.f32.mxu0 0.0
        %1478 = vmatmul.mubr.f32.gmra.mrb[0].mxu0 %v1303
        %v1479 = vpop.f32.mrb[0].mxu0
        %v1480 = vadd.f32 0.0, %v1479
        %v1481 = vpop.f32.mrb[0].mxu0
        %1482 = vmatprep.mubr.f32.mxu0 0.0
        %1483 = vmatmul.mubr.f32.gmra.mrb[0].mxu0 %v1306
        %v1484 = vpop.f32.mrb[0].mxu0
        %v1485 = vadd.f32 0.0, %v1484
        %v1486 = vpop.f32.mrb[0].mxu0
        %1487 = vmatprep.mubr.f32.mxu0 0.0
        %1488 = vmatmul.mubr.f32.gmra.mrb[0].mxu0 %v1309
        %v1489 = vpop.f32.mrb[0].mxu0
        %v1490 = vadd.f32 0.0, %v1489
        %v1491 = vpop.f32.mrb[0].mxu0
        %1492 = vmatprep.mubr.f32.mxu0 0.0
        %1493 = vmatmul.mubr.f32.gmra.mrb[0].mxu0 %v1312
        %v1494 = vpop.f32.mrb[0].mxu0
        %v1495 = vadd.f32 0.0, %v1494
        %v1496 = vpop.f32.mrb[0].mxu0
        %1497 = vmatprep.mubr.f32.mxu0 0.0
        %1498 = vmatmul.mubr.f32.gmra.mrb[0].mxu0 %v1315
        %v1499 = vpop.f32.mrb[0].mxu0
        %v1500 = vadd.f32 0.0, %v1499
        %v1501 = vpop.f32.mrb[0].mxu0
        %1502 = vmatprep.mubr.f32.mxu0 0.0
        %1503 = vmatmul.mubr.f32.gmra.mrb[0].mxu0 %v1318
        %v1504 = vpop.f32.mrb[0].mxu0
        %v1505 = vadd.f32 0.0, %v1504
        %v1506 = vpop.f32.mrb[0].mxu0
        %1507 = vmatprep.mubr.f32.mxu0 0.0
        %1508 = vmatmul.mubr.f32.gmra.mrb[0].mxu0 %v1321
        %v1509 = vpop.f32.mrb[0].mxu0
        %v1510 = vadd.f32 0.0, %v1509
        %v1511 = vpop.f32.mrb[0].mxu0
        %1512 = vmatprep.mubr.f32.mxu0 0.0
        %1513 = vmatmul.mubr.f32.gmra.mrb[0].mxu0 %v1324
        %v1514 = vpop.f32.mrb[0].mxu0
        %v1515 = vadd.f32 0.0, %v1514
        %v1516 = vpop.f32.mrb[0].mxu0
        %1517 = vmatprep.mubr.f32.mxu0 0.0
        %1518 = vmatmul.mubr.f32.gmra.mrb[0].mxu0 %v1327
        %v1519 = vpop.f32.mrb[0].mxu0
        %v1520 = vadd.f32 0.0, %v1519
        %v1521 = vpop.f32.mrb[0].mxu0
        %1522 = vmatprep.mubr.f32.mxu0 0.0
        %1523 = vmatmul.mubr.f32.gmra.mrb[0].mxu0 %v1330
        %v1524 = vpop.f32.mrb[0].mxu0
        %v1525 = vadd.f32 0.0, %v1524
        %v1526 = vpop.f32.mrb[0].mxu0
        %1527 = vmatprep.mubr.f32.mxu0 0.0
        %1528 = vmatmul.mubr.f32.gmra.mrb[0].mxu0 %v1333
        %v1529 = vpop.f32.mrb[0].mxu0
        %v1530 = vadd.f32 0.0, %v1529
        %v1531 = vpop.f32.mrb[0].mxu0
        %1532 = vmatprep.mubr.f32.mxu0 0.0
        %1533 = vmatmul.mubr.f32.gmra.mrb[0].mxu0 %v1336
        %v1534 = vpop.f32.mrb[0].mxu0
        %v1535 = vadd.f32 0.0, %v1534
        %v1536 = vpop.f32.mrb[0].mxu0
        %1537 = vmatprep.mubr.f32.mxu0 0.0
        %1538 = vmatmul.mubr.f32.gmra.mrb[0].mxu0 %v1339
        %v1539 = vpop.f32.mrb[0].mxu0
        %v1540 = vadd.f32 0.0, %v1539
        %v1541 = vpop.f32.mrb[0].mxu0
        %1542 = vmatprep.mubr.f32.mxu0 0.0
        %1543 = vmatmul.mubr.f32.gmra.mrb[0].mxu0 %v1342
        %v1544 = vpop.f32.mrb[0].mxu0
        %v1545 = vadd.f32 0.0, %v1544
        %v1546 = vpop.f32.mrb[0].mxu0
        %1547 = vmatprep.mubr.f32.mxu0 0.0
        %1548 = vmatmul.mubr.f32.gmra.mrb[0].mxu0 %v1345
        %v1549 = vpop.f32.mrb[0].mxu0
        %v1550 = vadd.f32 0.0, %v1549
        %v1551 = vpop.f32.mrb[0].mxu0
        %1552 = vmatprep.mubr.f32.mxu0 0.0
        %1553 = vmatmul.mubr.f32.gmra.mrb[0].mxu0 %v1348
        %v1554 = vpop.f32.mrb[0].mxu0
        %v1555 = vadd.f32 0.0, %v1554
        %v1556 = vpop.f32.mrb[0].mxu0
        %1557 = vmatprep.mubr.f32.mxu0 0.0
        %1558 = vmatmul.mubr.f32.gmra.mrb[0].mxu0 %v1351
        %v1559 = vpop.f32.mrb[0].mxu0
        %v1560 = vadd.f32 0.0, %v1559
        %v1561 = vpop.f32.mrb[0].mxu0
        %1562 = vmatprep.mubr.f32.mxu0 0.0
        %1563 = vmatmul.mubr.f32.gmra.mrb[0].mxu0 %v1354
        %v1564 = vpop.f32.mrb[0].mxu0
        %v1565 = vadd.f32 0.0, %v1564
        %v1566 = vpop.f32.mrb[0].mxu0
        %1567 = vmatprep.mubr.f32.mxu0 0.0
        %1568 = vmatmul.mubr.f32.gmra.mrb[0].mxu0 %v1357
        %v1569 = vpop.f32.mrb[0].mxu0
        %v1570 = vadd.f32 0.0, %v1569
        %v1571 = vpop.f32.mrb[0].mxu0
        %1572 = vmatprep.mubr.f32.mxu0 0.0
        %1573 = vmatmul.mubr.f32.gmra.mrb[0].mxu0 %v1360
        %v1574 = vpop.f32.mrb[0].mxu0
        %v1575 = vadd.f32 0.0, %v1574
        %v1576 = vpop.f32.mrb[0].mxu0
        %1577 = vmatprep.mubr.f32.mxu0 0.0
        %1578 = vmatmul.mubr.f32.gmra.mrb[0].mxu0 %v1363
        %v1579 = vpop.f32.mrb[0].mxu0
        %v1580 = vadd.f32 0.0, %v1579
        %v1581 = vpop.f32.mrb[0].mxu0
        %1582 = vmatprep.mubr.f32.mxu0 0.0
        %1583 = vmatmul.mubr.f32.gmra.mrb[0].mxu0 %v1366
        %v1584 = vpop.f32.mrb[0].mxu0
        %v1585 = vadd.f32 0.0, %v1584
        %v1586 = vpop.f32.mrb[0].mxu0
        %1587 = vmatprep.mubr.f32.mxu0 0.0
        %1588 = vmatmul.mubr.f32.gmra.mrb[0].mxu0 %v1369
        %v1589 = vpop.f32.mrb[0].mxu0
        %v1590 = vadd.f32 0.0, %v1589
        %v1591 = vpop.f32.mrb[0].mxu0
        %1592 = vmatprep.mubr.f32.mxu0 0.0
        %1593 = vmatmul.mubr.f32.gmra.mrb[0].mxu0 %v1372
        %v1594 = vpop.f32.mrb[0].mxu0
        %v1595 = vadd.f32 0.0, %v1594
        %v1596 = vpop.f32.mrb[0].mxu0
        %1597 = vmatprep.mubr.f32.mxu0 0.0
        %1598 = vmatmul.mubr.f32.gmra.mrb[0].mxu0 %v1375
        %v1599 = vpop.f32.mrb[0].mxu0
        %v1600 = vadd.f32 0.0, %v1599
        %v1601 = vpop.f32.mrb[0].mxu0
        %1602 = vmatprep.mubr.f32.mxu0 0.0
        %1603 = vmatmul.mubr.f32.gmra.mrb[0].mxu0 %v1378
        %v1604 = vpop.f32.mrb[0].mxu0
        %v1605 = vadd.f32 0.0, %v1604
        %v1606 = vpop.f32.mrb[0].mxu0
        %1607 = vdwg.mxu0
        %v1608 = vadd.f32 %v1218, %v1450
        %v1609 = vadd.f32 %v1219, %v1455
        %v1610 = vadd.f32 %v1220, %v1460
        %v1611 = vadd.f32 %v1221, %v1465
        %v1612 = vadd.f32 %v1222, %v1470
        %v1613 = vadd.f32 %v1223, %v1475
        %v1614 = vadd.f32 %v1224, %v1480
        %v1615 = vadd.f32 %v1225, %v1485
        %v1616 = vadd.f32 %v1226, %v1490
        %v1617 = vadd.f32 %v1227, %v1495
        %v1618 = vadd.f32 %v1228, %v1500
        %v1619 = vadd.f32 %v1229, %v1505
        %v1620 = vadd.f32 %v1230, %v1510
        %v1621 = vadd.f32 %v1231, %v1515
        %v1622 = vadd.f32 %v1232, %v1520
        %v1623 = vadd.f32 %v1233, %v1525
        %v1624 = vadd.f32 %v1234, %v1530
        %v1625 = vadd.f32 %v1235, %v1535
        %v1626 = vadd.f32 %v1236, %v1540
        %v1627 = vadd.f32 %v1237, %v1545
        %v1628 = vadd.f32 %v1238, %v1550
        %v1629 = vadd.f32 %v1239, %v1555
        %v1630 = vadd.f32 %v1240, %v1560
        %v1631 = vadd.f32 %v1241, %v1565
        %v1632 = vadd.f32 %v1242, %v1570
        %v1633 = vadd.f32 %v1243, %v1575
        %v1634 = vadd.f32 %v1244, %v1580
        %v1635 = vadd.f32 %v1245, %v1585
        %v1636 = vadd.f32 %v1246, %v1590
        %v1637 = vadd.f32 %v1247, %v1595
        %v1638 = vadd.f32 %v1248, %v1600
        %v1639 = vadd.f32 %v1249, %v1605
        %v1640 = vld [vmem:[%s430] sm:$0xff]
        %v1641 = vld [vmem:[%s430 + $0x8] sm:$0xff]
        %v1642 = vld [vmem:[%s430 + $0x18] sm:$0xff]
        %v1643 = vld [vmem:[%s430 + $0x20] sm:$0xff]
        %v1644 = vld [vmem:[%s430 + $0x30] sm:$0xff]
        %v1645 = vld [vmem:[%s430 + $0x38] sm:$0xff]
        %v1646 = vld [vmem:[%s430 + $0x48] sm:$0xff]
        %v1647 = vld [vmem:[%s430 + $0x50] sm:$0xff]
        %v1648 = vld [vmem:[%s430 + $0x60] sm:$0xff]
        %v1649 = vld [vmem:[%s430 + $0x68] sm:$0xff]
        %v1650 = vld [vmem:[%s430 + $0x78] sm:$0xff]
        %v1651 = vld [vmem:[%s430 + $0x80] sm:$0xff]
        %v1652 = vld [vmem:[%s430 + $0x90] sm:$0xff]
        %v1653 = vld [vmem:[%s430 + $0x98] sm:$0xff]
        %v1654 = vld [vmem:[%s430 + $0xa8] sm:$0xff]
        %v1655 = vld [vmem:[%s430 + $0xb0] sm:$0xff]
        %v1656 = vld [vmem:[%s430 + $0xc0] sm:$0xff]
        %v1657 = vld [vmem:[%s430 + $0xc8] sm:$0xff]
        %v1658 = vld [vmem:[%s430 + $0xd8] sm:$0xff]
        %v1659 = vld [vmem:[%s430 + $0xe0] sm:$0xff]
        %v1660 = vld [vmem:[%s430 + $0xf0] sm:$0xff]
        %v1661 = vld [vmem:[%s430 + $0xf8] sm:$0xff]
        %v1662 = vld [vmem:[%s430 + $0x108] sm:$0xff]
        %v1663 = vld [vmem:[%s430 + $0x110] sm:$0xff]
        %v1664 = vld [vmem:[%s430 + $0x120] sm:$0xff]
        %v1665 = vld [vmem:[%s430 + $0x128] sm:$0xff]
        %v1666 = vld [vmem:[%s430 + $0x138] sm:$0xff]
        %v1667 = vld [vmem:[%s430 + $0x140] sm:$0xff]
        %v1668 = vld [vmem:[%s430 + $0x150] sm:$0xff]
        %v1669 = vld [vmem:[%s430 + $0x158] sm:$0xff]
        %v1670 = vld [vmem:[%s430 + $0x168] sm:$0xff]
        %v1671 = vld [vmem:[%s430 + $0x170] sm:$0xff]
        %s1672 = scalar_lea.vmem %s1, 12
        %v1673 = vld [vmem:[%s1672] sm:$0xf]
        %v1675 = vsel %vm306, %v1640, 0
        %v1678 = vsel %vm306, %v1641, 0
        %v1681 = vsel %vm306, %v1642, 0
        %v1684 = vsel %vm306, %v1643, 0
        %v1687 = vsel %vm306, %v1644, 0
        %v1690 = vsel %vm306, %v1645, 0
        %v1693 = vsel %vm306, %v1646, 0
        %v1696 = vsel %vm306, %v1647, 0
        %v1699 = vsel %vm306, %v1648, 0
        %v1702 = vsel %vm306, %v1649, 0
        %v1705 = vsel %vm306, %v1650, 0
        %v1708 = vsel %vm306, %v1651, 0
        %v1711 = vsel %vm306, %v1652, 0
        %v1714 = vsel %vm306, %v1653, 0
        %v1717 = vsel %vm306, %v1654, 0
        %v1720 = vsel %vm306, %v1655, 0
        %v1723 = vsel %vm306, %v1656, 0
        %v1726 = vsel %vm306, %v1657, 0
        %v1729 = vsel %vm306, %v1658, 0
        %v1732 = vsel %vm306, %v1659, 0
        %v1735 = vsel %vm306, %v1660, 0
        %v1738 = vsel %vm306, %v1661, 0
        %v1741 = vsel %vm306, %v1662, 0
        %v1744 = vsel %vm306, %v1663, 0
        %v1747 = vsel %vm306, %v1664, 0
        %v1750 = vsel %vm306, %v1665, 0
        %v1753 = vsel %vm306, %v1666, 0
        %v1756 = vsel %vm306, %v1667, 0
        %v1759 = vsel %vm306, %v1668, 0
        %v1762 = vsel %vm306, %v1669, 0
        %v1765 = vsel %vm306, %v1670, 0
        %v1768 = vsel %vm306, %v1671, 0
        %v1771 = vsel %vm593, %v1673, 0
        %1773 = vmatprep.subr.mxu0 0.0
        %1774 = vmatpush1.msra.mxu0 %v1771
        %1775 = vmatprep.subr.mxu0 0.0
        %1776 = vmatpush1.msra.mxu0 0.0
        %1777 = vmatprep.subr.mxu0 0.0
        %1778 = vmatpush1.msra.mxu0 0.0
        %1779 = vmatprep.subr.mxu0 0.0
        %1780 = vmatpush1.msra.mxu0 0.0
        %1781 = vmatprep.subr.mxu0 0.0
        %1782 = vmatpush1.msra.mxu0 0.0
        %1783 = vmatprep.subr.mxu0 0.0
        %1784 = vmatpush1.msra.mxu0 0.0
        %1785 = vmatprep.subr.mxu0 0.0
        %1786 = vmatpush1.msra.mxu0 0.0
        %1787 = vmatprep.subr.mxu0 0.0
        %1788 = vmatpush1.msra.mxu0 0.0
        %1789 = vmatprep.subr.mxu0 0.0
        %1790 = vmatpush1.msra.mxu0 0.0
        %1791 = vmatprep.subr.mxu0 0.0
        %1792 = vmatpush1.msra.mxu0 0.0
        %1793 = vmatprep.subr.mxu0 0.0
        %1794 = vmatpush1.msra.mxu0 0.0
        %1795 = vmatprep.subr.mxu0 0.0
        %1796 = vmatpush1.msra.mxu0 0.0
        %1797 = vmatprep.subr.mxu0 0.0
        %1798 = vmatpush1.msra.mxu0 0.0
        %1799 = vmatprep.subr.mxu0 0.0
        %1800 = vmatpush1.msra.mxu0 0.0
        %1801 = vmatprep.subr.mxu0 0.0
        %1802 = vmatpush1.msra.mxu0 0.0
        %1803 = vmatprep.subr.mxu0 0.0
        %1804 = vmatpush1.msra.mxu0 0.0
        %1805 = vmatprep.subr.mxu0 0.0
        %1806 = vmatpush1.msra.mxu0 0.0
        %1807 = vmatprep.subr.mxu0 0.0
        %1808 = vmatpush1.msra.mxu0 0.0
        %1809 = vmatprep.subr.mxu0 0.0
        %1810 = vmatpush1.msra.mxu0 0.0
        %1811 = vmatprep.subr.mxu0 0.0
        %1812 = vmatpush1.msra.mxu0 0.0
        %1813 = vmatprep.subr.mxu0 0.0
        %1814 = vmatpush1.msra.mxu0 0.0
        %1815 = vmatprep.subr.mxu0 0.0
        %1816 = vmatpush1.msra.mxu0 0.0
        %1817 = vmatprep.subr.mxu0 0.0
        %1818 = vmatpush1.msra.mxu0 0.0
        %1819 = vmatprep.subr.mxu0 0.0
        %1820 = vmatpush1.msra.mxu0 0.0
        %1821 = vmatprep.subr.mxu0 0.0
        %1822 = vmatpush1.msra.mxu0 0.0
        %1823 = vmatprep.subr.mxu0 0.0
        %1824 = vmatpush1.msra.mxu0 0.0
        %1825 = vmatprep.subr.mxu0 0.0
        %1826 = vmatpush1.msra.mxu0 0.0
        %1827 = vmatprep.subr.mxu0 0.0
        %1828 = vmatpush1.msra.mxu0 0.0
        %1829 = vmatprep.subr.mxu0 0.0
        %1830 = vmatpush1.msra.mxu0 0.0
        %1831 = vmatprep.subr.mxu0 0.0
        %1832 = vmatpush1.msra.mxu0 0.0
        %1833 = vmatprep.subr.mxu0 0.0
        %1834 = vmatpush1.msra.mxu0 0.0
        %1835 = vmatprep.subr.mxu0 0.0
        %1836 = vmatpush1.msra.mxu0 0.0
        %1837 = vmatprep.mubr.f32.mxu0 0.0
        %1838 = vmatmul.mubr.f32.gmra.mrb[0].mxu0 %v1675
        %v1839 = vpop.f32.mrb[0].mxu0
        %v1840 = vadd.f32 0.0, %v1839
        %v1841 = vpop.f32.mrb[0].mxu0
        %1842 = vmatprep.mubr.f32.mxu0 0.0
        %1843 = vmatmul.mubr.f32.gmra.mrb[0].mxu0 %v1678
        %v1844 = vpop.f32.mrb[0].mxu0
        %v1845 = vadd.f32 0.0, %v1844
        %v1846 = vpop.f32.mrb[0].mxu0
        %1847 = vmatprep.mubr.f32.mxu0 0.0
        %1848 = vmatmul.mubr.f32.gmra.mrb[0].mxu0 %v1681
        %v1849 = vpop.f32.mrb[0].mxu0
        %v1850 = vadd.f32 0.0, %v1849
        %v1851 = vpop.f32.mrb[0].mxu0
        %1852 = vmatprep.mubr.f32.mxu0 0.0
        %1853 = vmatmul.mubr.f32.gmra.mrb[0].mxu0 %v1684
        %v1854 = vpop.f32.mrb[0].mxu0
        %v1855 = vadd.f32 0.0, %v1854
        %v1856 = vpop.f32.mrb[0].mxu0
        %1857 = vmatprep.mubr.f32.mxu0 0.0
        %1858 = vmatmul.mubr.f32.gmra.mrb[0].mxu0 %v1687
        %v1859 = vpop.f32.mrb[0].mxu0
        %v1860 = vadd.f32 0.0, %v1859
        %v1861 = vpop.f32.mrb[0].mxu0
        %1862 = vmatprep.mubr.f32.mxu0 0.0
        %1863 = vmatmul.mubr.f32.gmra.mrb[0].mxu0 %v1690
        %v1864 = vpop.f32.mrb[0].mxu0
        %v1865 = vadd.f32 0.0, %v1864
        %v1866 = vpop.f32.mrb[0].mxu0
        %1867 = vmatprep.mubr.f32.mxu0 0.0
        %1868 = vmatmul.mubr.f32.gmra.mrb[0].mxu0 %v1693
        %v1869 = vpop.f32.mrb[0].mxu0
        %v1870 = vadd.f32 0.0, %v1869
        %v1871 = vpop.f32.mrb[0].mxu0
        %1872 = vmatprep.mubr.f32.mxu0 0.0
        %1873 = vmatmul.mubr.f32.gmra.mrb[0].mxu0 %v1696
        %v1874 = vpop.f32.mrb[0].mxu0
        %v1875 = vadd.f32 0.0, %v1874
        %v1876 = vpop.f32.mrb[0].mxu0
        %1877 = vmatprep.mubr.f32.mxu0 0.0
        %1878 = vmatmul.mubr.f32.gmra.mrb[0].mxu0 %v1699
        %v1879 = vpop.f32.mrb[0].mxu0
        %v1880 = vadd.f32 0.0, %v1879
        %v1881 = vpop.f32.mrb[0].mxu0
        %1882 = vmatprep.mubr.f32.mxu0 0.0
        %1883 = vmatmul.mubr.f32.gmra.mrb[0].mxu0 %v1702
        %v1884 = vpop.f32.mrb[0].mxu0
        %v1885 = vadd.f32 0.0, %v1884
        %v1886 = vpop.f32.mrb[0].mxu0
        %1887 = vmatprep.mubr.f32.mxu0 0.0
        %1888 = vmatmul.mubr.f32.gmra.mrb[0].mxu0 %v1705
        %v1889 = vpop.f32.mrb[0].mxu0
        %v1890 = vadd.f32 0.0, %v1889
        %v1891 = vpop.f32.mrb[0].mxu0
        %1892 = vmatprep.mubr.f32.mxu0 0.0
        %1893 = vmatmul.mubr.f32.gmra.mrb[0].mxu0 %v1708
        %v1894 = vpop.f32.mrb[0].mxu0
        %v1895 = vadd.f32 0.0, %v1894
        %v1896 = vpop.f32.mrb[0].mxu0
        %1897 = vmatprep.mubr.f32.mxu0 0.0
        %1898 = vmatmul.mubr.f32.gmra.mrb[0].mxu0 %v1711
        %v1899 = vpop.f32.mrb[0].mxu0
        %v1900 = vadd.f32 0.0, %v1899
        %v1901 = vpop.f32.mrb[0].mxu0
        %1902 = vmatprep.mubr.f32.mxu0 0.0
        %1903 = vmatmul.mubr.f32.gmra.mrb[0].mxu0 %v1714
        %v1904 = vpop.f32.mrb[0].mxu0
        %v1905 = vadd.f32 0.0, %v1904
        %v1906 = vpop.f32.mrb[0].mxu0
        %1907 = vmatprep.mubr.f32.mxu0 0.0
        %1908 = vmatmul.mubr.f32.gmra.mrb[0].mxu0 %v1717
        %v1909 = vpop.f32.mrb[0].mxu0
        %v1910 = vadd.f32 0.0, %v1909
        %v1911 = vpop.f32.mrb[0].mxu0
        %1912 = vmatprep.mubr.f32.mxu0 0.0
        %1913 = vmatmul.mubr.f32.gmra.mrb[0].mxu0 %v1720
        %v1914 = vpop.f32.mrb[0].mxu0
        %v1915 = vadd.f32 0.0, %v1914
        %v1916 = vpop.f32.mrb[0].mxu0
        %1917 = vmatprep.mubr.f32.mxu0 0.0
        %1918 = vmatmul.mubr.f32.gmra.mrb[0].mxu0 %v1723
        %v1919 = vpop.f32.mrb[0].mxu0
        %v1920 = vadd.f32 0.0, %v1919
        %v1921 = vpop.f32.mrb[0].mxu0
        %1922 = vmatprep.mubr.f32.mxu0 0.0
        %1923 = vmatmul.mubr.f32.gmra.mrb[0].mxu0 %v1726
        %v1924 = vpop.f32.mrb[0].mxu0
        %v1925 = vadd.f32 0.0, %v1924
        %v1926 = vpop.f32.mrb[0].mxu0
        %1927 = vmatprep.mubr.f32.mxu0 0.0
        %1928 = vmatmul.mubr.f32.gmra.mrb[0].mxu0 %v1729
        %v1929 = vpop.f32.mrb[0].mxu0
        %v1930 = vadd.f32 0.0, %v1929
        %v1931 = vpop.f32.mrb[0].mxu0
        %1932 = vmatprep.mubr.f32.mxu0 0.0
        %1933 = vmatmul.mubr.f32.gmra.mrb[0].mxu0 %v1732
        %v1934 = vpop.f32.mrb[0].mxu0
        %v1935 = vadd.f32 0.0, %v1934
        %v1936 = vpop.f32.mrb[0].mxu0
        %1937 = vmatprep.mubr.f32.mxu0 0.0
        %1938 = vmatmul.mubr.f32.gmra.mrb[0].mxu0 %v1735
        %v1939 = vpop.f32.mrb[0].mxu0
        %v1940 = vadd.f32 0.0, %v1939
        %v1941 = vpop.f32.mrb[0].mxu0
        %1942 = vmatprep.mubr.f32.mxu0 0.0
        %1943 = vmatmul.mubr.f32.gmra.mrb[0].mxu0 %v1738
        %v1944 = vpop.f32.mrb[0].mxu0
        %v1945 = vadd.f32 0.0, %v1944
        %v1946 = vpop.f32.mrb[0].mxu0
        %1947 = vmatprep.mubr.f32.mxu0 0.0
        %1948 = vmatmul.mubr.f32.gmra.mrb[0].mxu0 %v1741
        %v1949 = vpop.f32.mrb[0].mxu0
        %v1950 = vadd.f32 0.0, %v1949
        %v1951 = vpop.f32.mrb[0].mxu0
        %1952 = vmatprep.mubr.f32.mxu0 0.0
        %1953 = vmatmul.mubr.f32.gmra.mrb[0].mxu0 %v1744
        %v1954 = vpop.f32.mrb[0].mxu0
        %v1955 = vadd.f32 0.0, %v1954
        %v1956 = vpop.f32.mrb[0].mxu0
        %1957 = vmatprep.mubr.f32.mxu0 0.0
        %1958 = vmatmul.mubr.f32.gmra.mrb[0].mxu0 %v1747
        %v1959 = vpop.f32.mrb[0].mxu0
        %v1960 = vadd.f32 0.0, %v1959
        %v1961 = vpop.f32.mrb[0].mxu0
        %1962 = vmatprep.mubr.f32.mxu0 0.0
        %1963 = vmatmul.mubr.f32.gmra.mrb[0].mxu0 %v1750
        %v1964 = vpop.f32.mrb[0].mxu0
        %v1965 = vadd.f32 0.0, %v1964
        %v1966 = vpop.f32.mrb[0].mxu0
        %1967 = vmatprep.mubr.f32.mxu0 0.0
        %1968 = vmatmul.mubr.f32.gmra.mrb[0].mxu0 %v1753
        %v1969 = vpop.f32.mrb[0].mxu0
        %v1970 = vadd.f32 0.0, %v1969
        %v1971 = vpop.f32.mrb[0].mxu0
        %1972 = vmatprep.mubr.f32.mxu0 0.0
        %1973 = vmatmul.mubr.f32.gmra.mrb[0].mxu0 %v1756
        %v1974 = vpop.f32.mrb[0].mxu0
        %v1975 = vadd.f32 0.0, %v1974
        %v1976 = vpop.f32.mrb[0].mxu0
        %1977 = vmatprep.mubr.f32.mxu0 0.0
        %1978 = vmatmul.mubr.f32.gmra.mrb[0].mxu0 %v1759
        %v1979 = vpop.f32.mrb[0].mxu0
        %v1980 = vadd.f32 0.0, %v1979
        %v1981 = vpop.f32.mrb[0].mxu0
        %1982 = vmatprep.mubr.f32.mxu0 0.0
        %1983 = vmatmul.mubr.f32.gmra.mrb[0].mxu0 %v1762
        %v1984 = vpop.f32.mrb[0].mxu0
        %v1985 = vadd.f32 0.0, %v1984
        %v1986 = vpop.f32.mrb[0].mxu0
        %1987 = vmatprep.mubr.f32.mxu0 0.0
        %1988 = vmatmul.mubr.f32.gmra.mrb[0].mxu0 %v1765
        %v1989 = vpop.f32.mrb[0].mxu0
        %v1990 = vadd.f32 0.0, %v1989
        %v1991 = vpop.f32.mrb[0].mxu0
        %1992 = vmatprep.mubr.f32.mxu0 0.0
        %1993 = vmatmul.mubr.f32.gmra.mrb[0].mxu0 %v1768
        %v1994 = vpop.f32.mrb[0].mxu0
        %v1995 = vadd.f32 0.0, %v1994
        %v1996 = vpop.f32.mrb[0].mxu0
        %1997 = vdwg.mxu0
        %v1998 = vadd.f32 %v1608, %v1840
        %v1999 = vadd.f32 %v1609, %v1845
        %v2000 = vadd.f32 %v1610, %v1850
        %v2001 = vadd.f32 %v1611, %v1855
        %v2002 = vadd.f32 %v1612, %v1860
        %v2003 = vadd.f32 %v1613, %v1865
        %v2004 = vadd.f32 %v1614, %v1870
        %v2005 = vadd.f32 %v1615, %v1875
        %v2006 = vadd.f32 %v1616, %v1880
        %v2007 = vadd.f32 %v1617, %v1885
        %v2008 = vadd.f32 %v1618, %v1890
        %v2009 = vadd.f32 %v1619, %v1895
        %v2010 = vadd.f32 %v1620, %v1900
        %v2011 = vadd.f32 %v1621, %v1905
        %v2012 = vadd.f32 %v1622, %v1910
        %v2013 = vadd.f32 %v1623, %v1915
        %v2014 = vadd.f32 %v1624, %v1920
        %v2015 = vadd.f32 %v1625, %v1925
        %v2016 = vadd.f32 %v1626, %v1930
        %v2017 = vadd.f32 %v1627, %v1935
        %v2018 = vadd.f32 %v1628, %v1940
        %v2019 = vadd.f32 %v1629, %v1945
        %v2020 = vadd.f32 %v1630, %v1950
        %v2021 = vadd.f32 %v1631, %v1955
        %v2022 = vadd.f32 %v1632, %v1960
        %v2023 = vadd.f32 %v1633, %v1965
        %v2024 = vadd.f32 %v1634, %v1970
        %v2025 = vadd.f32 %v1635, %v1975
        %v2026 = vadd.f32 %v1636, %v1980
        %v2027 = vadd.f32 %v1637, %v1985
        %v2028 = vadd.f32 %v1638, %v1990
        %v2029 = vadd.f32 %v1639, %v1995
        %v2030 = vld [vmem:[%s430 + $0x1] sm:$0xff]
        %v2031 = vld [vmem:[%s430 + $0x9] sm:$0xff]
        %v2032 = vld [vmem:[%s430 + $0x19] sm:$0xff]
        %v2033 = vld [vmem:[%s430 + $0x21] sm:$0xff]
        %v2034 = vld [vmem:[%s430 + $0x31] sm:$0xff]
        %v2035 = vld [vmem:[%s430 + $0x39] sm:$0xff]
        %v2036 = vld [vmem:[%s430 + $0x49] sm:$0xff]
        %v2037 = vld [vmem:[%s430 + $0x51] sm:$0xff]
        %v2038 = vld [vmem:[%s430 + $0x61] sm:$0xff]
        %v2039 = vld [vmem:[%s430 + $0x69] sm:$0xff]
        %v2040 = vld [vmem:[%s430 + $0x79] sm:$0xff]
        %v2041 = vld [vmem:[%s430 + $0x81] sm:$0xff]
        %v2042 = vld [vmem:[%s430 + $0x91] sm:$0xff]
        %v2043 = vld [vmem:[%s430 + $0x99] sm:$0xff]
        %v2044 = vld [vmem:[%s430 + $0xa9] sm:$0xff]
        %v2045 = vld [vmem:[%s430 + $0xb1] sm:$0xff]
        %v2046 = vld [vmem:[%s430 + $0xc1] sm:$0xff]
        %v2047 = vld [vmem:[%s430 + $0xc9] sm:$0xff]
        %v2048 = vld [vmem:[%s430 + $0xd9] sm:$0xff]
        %v2049 = vld [vmem:[%s430 + $0xe1] sm:$0xff]
        %v2050 = vld [vmem:[%s430 + $0xf1] sm:$0xff]
        %v2051 = vld [vmem:[%s430 + $0xf9] sm:$0xff]
        %v2052 = vld [vmem:[%s430 + $0x109] sm:$0xff]
        %v2053 = vld [vmem:[%s430 + $0x111] sm:$0xff]
        %v2054 = vld [vmem:[%s430 + $0x121] sm:$0xff]
        %v2055 = vld [vmem:[%s430 + $0x129] sm:$0xff]
        %v2056 = vld [vmem:[%s430 + $0x139] sm:$0xff]
        %v2057 = vld [vmem:[%s430 + $0x141] sm:$0xff]
        %v2058 = vld [vmem:[%s430 + $0x151] sm:$0xff]
        %v2059 = vld [vmem:[%s430 + $0x159] sm:$0xff]
        %v2060 = vld [vmem:[%s430 + $0x169] sm:$0xff]
        %v2061 = vld [vmem:[%s430 + $0x171] sm:$0xff]
        %s2062 = scalar_lea.vmem %s1, 16
        %v2063 = vld [vmem:[%s2062] sm:$0xf]
        %v2065 = vsel %vm306, %v2030, 0
        %v2068 = vsel %vm306, %v2031, 0
        %v2071 = vsel %vm306, %v2032, 0
        %v2074 = vsel %vm306, %v2033, 0
        %v2077 = vsel %vm306, %v2034, 0
        %v2080 = vsel %vm306, %v2035, 0
        %v2083 = vsel %vm306, %v2036, 0
        %v2086 = vsel %vm306, %v2037, 0
        %v2089 = vsel %vm306, %v2038, 0
        %v2092 = vsel %vm306, %v2039, 0
        %v2095 = vsel %vm306, %v2040, 0
        %v2098 = vsel %vm306, %v2041, 0
        %v2101 = vsel %vm306, %v2042, 0
        %v2104 = vsel %vm306, %v2043, 0
        %v2107 = vsel %vm306, %v2044, 0
        %v2110 = vsel %vm306, %v2045, 0
        %v2113 = vsel %vm306, %v2046, 0
        %v2116 = vsel %vm306, %v2047, 0
        %v2119 = vsel %vm306, %v2048, 0
        %v2122 = vsel %vm306, %v2049, 0
        %v2125 = vsel %vm306, %v2050, 0
        %v2128 = vsel %vm306, %v2051, 0
        %v2131 = vsel %vm306, %v2052, 0
        %v2134 = vsel %vm306, %v2053, 0
        %v2137 = vsel %vm306, %v2054, 0
        %v2140 = vsel %vm306, %v2055, 0
        %v2143 = vsel %vm306, %v2056, 0
        %v2146 = vsel %vm306, %v2057, 0
        %v2149 = vsel %vm306, %v2058, 0
        %v2152 = vsel %vm306, %v2059, 0
        %v2155 = vsel %vm306, %v2060, 0
        %v2158 = vsel %vm306, %v2061, 0
        %v2161 = vsel %vm593, %v2063, 0
        %2163 = vmatprep.subr.mxu0 0.0
        %2164 = vmatpush1.msra.mxu0 %v2161
        %2165 = vmatprep.subr.mxu0 0.0
        %2166 = vmatpush1.msra.mxu0 0.0
        %2167 = vmatprep.subr.mxu0 0.0
        %2168 = vmatpush1.msra.mxu0 0.0
        %2169 = vmatprep.subr.mxu0 0.0
        %2170 = vmatpush1.msra.mxu0 0.0
        %2171 = vmatprep.subr.mxu0 0.0
        %2172 = vmatpush1.msra.mxu0 0.0
        %2173 = vmatprep.subr.mxu0 0.0
        %2174 = vmatpush1.msra.mxu0 0.0
        %2175 = vmatprep.subr.mxu0 0.0
        %2176 = vmatpush1.msra.mxu0 0.0
        %2177 = vmatprep.subr.mxu0 0.0
        %2178 = vmatpush1.msra.mxu0 0.0
        %2179 = vmatprep.subr.mxu0 0.0
        %2180 = vmatpush1.msra.mxu0 0.0
        %2181 = vmatprep.subr.mxu0 0.0
        %2182 = vmatpush1.msra.mxu0 0.0
        %2183 = vmatprep.subr.mxu0 0.0
        %2184 = vmatpush1.msra.mxu0 0.0
        %2185 = vmatprep.subr.mxu0 0.0
        %2186 = vmatpush1.msra.mxu0 0.0
        %2187 = vmatprep.subr.mxu0 0.0
        %2188 = vmatpush1.msra.mxu0 0.0
        %2189 = vmatprep.subr.mxu0 0.0
        %2190 = vmatpush1.msra.mxu0 0.0
        %2191 = vmatprep.subr.mxu0 0.0
        %2192 = vmatpush1.msra.mxu0 0.0
        %2193 = vmatprep.subr.mxu0 0.0
        %2194 = vmatpush1.msra.mxu0 0.0
        %2195 = vmatprep.subr.mxu0 0.0
        %2196 = vmatpush1.msra.mxu0 0.0
        %2197 = vmatprep.subr.mxu0 0.0
        %2198 = vmatpush1.msra.mxu0 0.0
        %2199 = vmatprep.subr.mxu0 0.0
        %2200 = vmatpush1.msra.mxu0 0.0
        %2201 = vmatprep.subr.mxu0 0.0
        %2202 = vmatpush1.msra.mxu0 0.0
        %2203 = vmatprep.subr.mxu0 0.0
        %2204 = vmatpush1.msra.mxu0 0.0
        %2205 = vmatprep.subr.mxu0 0.0
        %2206 = vmatpush1.msra.mxu0 0.0
        %2207 = vmatprep.subr.mxu0 0.0
        %2208 = vmatpush1.msra.mxu0 0.0
        %2209 = vmatprep.subr.mxu0 0.0
        %2210 = vmatpush1.msra.mxu0 0.0
        %2211 = vmatprep.subr.mxu0 0.0
        %2212 = vmatpush1.msra.mxu0 0.0
        %2213 = vmatprep.subr.mxu0 0.0
        %2214 = vmatpush1.msra.mxu0 0.0
        %2215 = vmatprep.subr.mxu0 0.0
        %2216 = vmatpush1.msra.mxu0 0.0
        %2217 = vmatprep.subr.mxu0 0.0
        %2218 = vmatpush1.msra.mxu0 0.0
        %2219 = vmatprep.subr.mxu0 0.0
        %2220 = vmatpush1.msra.mxu0 0.0
        %2221 = vmatprep.subr.mxu0 0.0
        %2222 = vmatpush1.msra.mxu0 0.0
        %2223 = vmatprep.subr.mxu0 0.0
        %2224 = vmatpush1.msra.mxu0 0.0
        %2225 = vmatprep.subr.mxu0 0.0
        %2226 = vmatpush1.msra.mxu0 0.0
        %2227 = vmatprep.mubr.f32.mxu0 0.0
        %2228 = vmatmul.mubr.f32.gmra.mrb[0].mxu0 %v2065
        %v2229 = vpop.f32.mrb[0].mxu0
        %v2230 = vadd.f32 0.0, %v2229
        %v2231 = vpop.f32.mrb[0].mxu0
        %2232 = vmatprep.mubr.f32.mxu0 0.0
        %2233 = vmatmul.mubr.f32.gmra.mrb[0].mxu0 %v2068
        %v2234 = vpop.f32.mrb[0].mxu0
        %v2235 = vadd.f32 0.0, %v2234
        %v2236 = vpop.f32.mrb[0].mxu0
        %2237 = vmatprep.mubr.f32.mxu0 0.0
        %2238 = vmatmul.mubr.f32.gmra.mrb[0].mxu0 %v2071
        %v2239 = vpop.f32.mrb[0].mxu0
        %v2240 = vadd.f32 0.0, %v2239
        %v2241 = vpop.f32.mrb[0].mxu0
        %2242 = vmatprep.mubr.f32.mxu0 0.0
        %2243 = vmatmul.mubr.f32.gmra.mrb[0].mxu0 %v2074
        %v2244 = vpop.f32.mrb[0].mxu0
        %v2245 = vadd.f32 0.0, %v2244
        %v2246 = vpop.f32.mrb[0].mxu0
        %2247 = vmatprep.mubr.f32.mxu0 0.0
        %2248 = vmatmul.mubr.f32.gmra.mrb[0].mxu0 %v2077
        %v2249 = vpop.f32.mrb[0].mxu0
        %v2250 = vadd.f32 0.0, %v2249
        %v2251 = vpop.f32.mrb[0].mxu0
        %2252 = vmatprep.mubr.f32.mxu0 0.0
        %2253 = vmatmul.mubr.f32.gmra.mrb[0].mxu0 %v2080
        %v2254 = vpop.f32.mrb[0].mxu0
        %v2255 = vadd.f32 0.0, %v2254
        %v2256 = vpop.f32.mrb[0].mxu0
        %2257 = vmatprep.mubr.f32.mxu0 0.0
        %2258 = vmatmul.mubr.f32.gmra.mrb[0].mxu0 %v2083
        %v2259 = vpop.f32.mrb[0].mxu0
        %v2260 = vadd.f32 0.0, %v2259
        %v2261 = vpop.f32.mrb[0].mxu0
        %2262 = vmatprep.mubr.f32.mxu0 0.0
        %2263 = vmatmul.mubr.f32.gmra.mrb[0].mxu0 %v2086
        %v2264 = vpop.f32.mrb[0].mxu0
        %v2265 = vadd.f32 0.0, %v2264
        %v2266 = vpop.f32.mrb[0].mxu0
        %2267 = vmatprep.mubr.f32.mxu0 0.0
        %2268 = vmatmul.mubr.f32.gmra.mrb[0].mxu0 %v2089
        %v2269 = vpop.f32.mrb[0].mxu0
        %v2270 = vadd.f32 0.0, %v2269
        %v2271 = vpop.f32.mrb[0].mxu0
        %2272 = vmatprep.mubr.f32.mxu0 0.0
        %2273 = vmatmul.mubr.f32.gmra.mrb[0].mxu0 %v2092
        %v2274 = vpop.f32.mrb[0].mxu0
        %v2275 = vadd.f32 0.0, %v2274
        %v2276 = vpop.f32.mrb[0].mxu0
        %2277 = vmatprep.mubr.f32.mxu0 0.0
        %2278 = vmatmul.mubr.f32.gmra.mrb[0].mxu0 %v2095
        %v2279 = vpop.f32.mrb[0].mxu0
        %v2280 = vadd.f32 0.0, %v2279
        %v2281 = vpop.f32.mrb[0].mxu0
        %2282 = vmatprep.mubr.f32.mxu0 0.0
        %2283 = vmatmul.mubr.f32.gmra.mrb[0].mxu0 %v2098
        %v2284 = vpop.f32.mrb[0].mxu0
        %v2285 = vadd.f32 0.0, %v2284
        %v2286 = vpop.f32.mrb[0].mxu0
        %2287 = vmatprep.mubr.f32.mxu0 0.0
        %2288 = vmatmul.mubr.f32.gmra.mrb[0].mxu0 %v2101
        %v2289 = vpop.f32.mrb[0].mxu0
        %v2290 = vadd.f32 0.0, %v2289
        %v2291 = vpop.f32.mrb[0].mxu0
        %2292 = vmatprep.mubr.f32.mxu0 0.0
        %2293 = vmatmul.mubr.f32.gmra.mrb[0].mxu0 %v2104
        %v2294 = vpop.f32.mrb[0].mxu0
        %v2295 = vadd.f32 0.0, %v2294
        %v2296 = vpop.f32.mrb[0].mxu0
        %2297 = vmatprep.mubr.f32.mxu0 0.0
        %2298 = vmatmul.mubr.f32.gmra.mrb[0].mxu0 %v2107
        %v2299 = vpop.f32.mrb[0].mxu0
        %v2300 = vadd.f32 0.0, %v2299
        %v2301 = vpop.f32.mrb[0].mxu0
        %2302 = vmatprep.mubr.f32.mxu0 0.0
        %2303 = vmatmul.mubr.f32.gmra.mrb[0].mxu0 %v2110
        %v2304 = vpop.f32.mrb[0].mxu0
        %v2305 = vadd.f32 0.0, %v2304
        %v2306 = vpop.f32.mrb[0].mxu0
        %2307 = vmatprep.mubr.f32.mxu0 0.0
        %2308 = vmatmul.mubr.f32.gmra.mrb[0].mxu0 %v2113
        %v2309 = vpop.f32.mrb[0].mxu0
        %v2310 = vadd.f32 0.0, %v2309
        %v2311 = vpop.f32.mrb[0].mxu0
        %2312 = vmatprep.mubr.f32.mxu0 0.0
        %2313 = vmatmul.mubr.f32.gmra.mrb[0].mxu0 %v2116
        %v2314 = vpop.f32.mrb[0].mxu0
        %v2315 = vadd.f32 0.0, %v2314
        %v2316 = vpop.f32.mrb[0].mxu0
        %2317 = vmatprep.mubr.f32.mxu0 0.0
        %2318 = vmatmul.mubr.f32.gmra.mrb[0].mxu0 %v2119
        %v2319 = vpop.f32.mrb[0].mxu0
        %v2320 = vadd.f32 0.0, %v2319
        %v2321 = vpop.f32.mrb[0].mxu0
        %2322 = vmatprep.mubr.f32.mxu0 0.0
        %2323 = vmatmul.mubr.f32.gmra.mrb[0].mxu0 %v2122
        %v2324 = vpop.f32.mrb[0].mxu0
        %v2325 = vadd.f32 0.0, %v2324
        %v2326 = vpop.f32.mrb[0].mxu0
        %2327 = vmatprep.mubr.f32.mxu0 0.0
        %2328 = vmatmul.mubr.f32.gmra.mrb[0].mxu0 %v2125
        %v2329 = vpop.f32.mrb[0].mxu0
        %v2330 = vadd.f32 0.0, %v2329
        %v2331 = vpop.f32.mrb[0].mxu0
        %2332 = vmatprep.mubr.f32.mxu0 0.0
        %2333 = vmatmul.mubr.f32.gmra.mrb[0].mxu0 %v2128
        %v2334 = vpop.f32.mrb[0].mxu0
        %v2335 = vadd.f32 0.0, %v2334
        %v2336 = vpop.f32.mrb[0].mxu0
        %2337 = vmatprep.mubr.f32.mxu0 0.0
        %2338 = vmatmul.mubr.f32.gmra.mrb[0].mxu0 %v2131
        %v2339 = vpop.f32.mrb[0].mxu0
        %v2340 = vadd.f32 0.0, %v2339
        %v2341 = vpop.f32.mrb[0].mxu0
        %2342 = vmatprep.mubr.f32.mxu0 0.0
        %2343 = vmatmul.mubr.f32.gmra.mrb[0].mxu0 %v2134
        %v2344 = vpop.f32.mrb[0].mxu0
        %v2345 = vadd.f32 0.0, %v2344
        %v2346 = vpop.f32.mrb[0].mxu0
        %2347 = vmatprep.mubr.f32.mxu0 0.0
        %2348 = vmatmul.mubr.f32.gmra.mrb[0].mxu0 %v2137
        %v2349 = vpop.f32.mrb[0].mxu0
        %v2350 = vadd.f32 0.0, %v2349
        %v2351 = vpop.f32.mrb[0].mxu0
        %2352 = vmatprep.mubr.f32.mxu0 0.0
        %2353 = vmatmul.mubr.f32.gmra.mrb[0].mxu0 %v2140
        %v2354 = vpop.f32.mrb[0].mxu0
        %v2355 = vadd.f32 0.0, %v2354
        %v2356 = vpop.f32.mrb[0].mxu0
        %2357 = vmatprep.mubr.f32.mxu0 0.0
        %2358 = vmatmul.mubr.f32.gmra.mrb[0].mxu0 %v2143
        %v2359 = vpop.f32.mrb[0].mxu0
        %v2360 = vadd.f32 0.0, %v2359
        %v2361 = vpop.f32.mrb[0].mxu0
        %2362 = vmatprep.mubr.f32.mxu0 0.0
        %2363 = vmatmul.mubr.f32.gmra.mrb[0].mxu0 %v2146
        %v2364 = vpop.f32.mrb[0].mxu0
        %v2365 = vadd.f32 0.0, %v2364
        %v2366 = vpop.f32.mrb[0].mxu0
        %2367 = vmatprep.mubr.f32.mxu0 0.0
        %2368 = vmatmul.mubr.f32.gmra.mrb[0].mxu0 %v2149
        %v2369 = vpop.f32.mrb[0].mxu0
        %v2370 = vadd.f32 0.0, %v2369
        %v2371 = vpop.f32.mrb[0].mxu0
        %2372 = vmatprep.mubr.f32.mxu0 0.0
        %2373 = vmatmul.mubr.f32.gmra.mrb[0].mxu0 %v2152
        %v2374 = vpop.f32.mrb[0].mxu0
        %v2375 = vadd.f32 0.0, %v2374
        %v2376 = vpop.f32.mrb[0].mxu0
        %2377 = vmatprep.mubr.f32.mxu0 0.0
        %2378 = vmatmul.mubr.f32.gmra.mrb[0].mxu0 %v2155
        %v2379 = vpop.f32.mrb[0].mxu0
        %v2380 = vadd.f32 0.0, %v2379
        %v2381 = vpop.f32.mrb[0].mxu0
        %2382 = vmatprep.mubr.f32.mxu0 0.0
        %2383 = vmatmul.mubr.f32.gmra.mrb[0].mxu0 %v2158
        %v2384 = vpop.f32.mrb[0].mxu0
        %v2385 = vadd.f32 0.0, %v2384
        %v2386 = vpop.f32.mrb[0].mxu0
        %2387 = vdwg.mxu0
        %v2388 = vadd.f32 %v1998, %v2230
        %v2389 = vadd.f32 %v1999, %v2235
        %v2390 = vadd.f32 %v2000, %v2240
        %v2391 = vadd.f32 %v2001, %v2245
        %v2392 = vadd.f32 %v2002, %v2250
        %v2393 = vadd.f32 %v2003, %v2255
        %v2394 = vadd.f32 %v2004, %v2260
        %v2395 = vadd.f32 %v2005, %v2265
        %v2396 = vadd.f32 %v2006, %v2270
        %v2397 = vadd.f32 %v2007, %v2275
        %v2398 = vadd.f32 %v2008, %v2280
        %v2399 = vadd.f32 %v2009, %v2285
        %v2400 = vadd.f32 %v2010, %v2290
        %v2401 = vadd.f32 %v2011, %v2295
        %v2402 = vadd.f32 %v2012, %v2300
        %v2403 = vadd.f32 %v2013, %v2305
        %v2404 = vadd.f32 %v2014, %v2310
        %v2405 = vadd.f32 %v2015, %v2315
        %v2406 = vadd.f32 %v2016, %v2320
        %v2407 = vadd.f32 %v2017, %v2325
        %v2408 = vadd.f32 %v2018, %v2330
        %v2409 = vadd.f32 %v2019, %v2335
        %v2410 = vadd.f32 %v2020, %v2340
        %v2411 = vadd.f32 %v2021, %v2345
        %v2412 = vadd.f32 %v2022, %v2350
        %v2413 = vadd.f32 %v2023, %v2355
        %v2414 = vadd.f32 %v2024, %v2360
        %v2415 = vadd.f32 %v2025, %v2365
        %v2416 = vadd.f32 %v2026, %v2370
        %v2417 = vadd.f32 %v2027, %v2375
        %v2418 = vadd.f32 %v2028, %v2380
        %v2419 = vadd.f32 %v2029, %v2385
        %v2420 = vld [vmem:[%s430 + $0x2] sm:$0xff]
        %v2421 = vld [vmem:[%s430 + $0xa] sm:$0xff]
        %v2422 = vld [vmem:[%s430 + $0x1a] sm:$0xff]
        %v2423 = vld [vmem:[%s430 + $0x22] sm:$0xff]
        %v2424 = vld [vmem:[%s430 + $0x32] sm:$0xff]
        %v2425 = vld [vmem:[%s430 + $0x3a] sm:$0xff]
        %v2426 = vld [vmem:[%s430 + $0x4a] sm:$0xff]
        %v2427 = vld [vmem:[%s430 + $0x52] sm:$0xff]
        %v2428 = vld [vmem:[%s430 + $0x62] sm:$0xff]
        %v2429 = vld [vmem:[%s430 + $0x6a] sm:$0xff]
        %v2430 = vld [vmem:[%s430 + $0x7a] sm:$0xff]
        %v2431 = vld [vmem:[%s430 + $0x82] sm:$0xff]
        %v2432 = vld [vmem:[%s430 + $0x92] sm:$0xff]
        %v2433 = vld [vmem:[%s430 + $0x9a] sm:$0xff]
        %v2434 = vld [vmem:[%s430 + $0xaa] sm:$0xff]
        %v2435 = vld [vmem:[%s430 + $0xb2] sm:$0xff]
        %v2436 = vld [vmem:[%s430 + $0xc2] sm:$0xff]
        %v2437 = vld [vmem:[%s430 + $0xca] sm:$0xff]
        %v2438 = vld [vmem:[%s430 + $0xda] sm:$0xff]
        %v2439 = vld [vmem:[%s430 + $0xe2] sm:$0xff]
        %v2440 = vld [vmem:[%s430 + $0xf2] sm:$0xff]
        %v2441 = vld [vmem:[%s430 + $0xfa] sm:$0xff]
        %v2442 = vld [vmem:[%s430 + $0x10a] sm:$0xff]
        %v2443 = vld [vmem:[%s430 + $0x112] sm:$0xff]
        %v2444 = vld [vmem:[%s430 + $0x122] sm:$0xff]
        %v2445 = vld [vmem:[%s430 + $0x12a] sm:$0xff]
        %v2446 = vld [vmem:[%s430 + $0x13a] sm:$0xff]
        %v2447 = vld [vmem:[%s430 + $0x142] sm:$0xff]
        %v2448 = vld [vmem:[%s430 + $0x152] sm:$0xff]
        %v2449 = vld [vmem:[%s430 + $0x15a] sm:$0xff]
        %v2450 = vld [vmem:[%s430 + $0x16a] sm:$0xff]
        %v2451 = vld [vmem:[%s430 + $0x172] sm:$0xff]
        %s2452 = scalar_lea.vmem %s1, 20
        %v2453 = vld [vmem:[%s2452] sm:$0xf]
        %v2455 = vsel %vm306, %v2420, 0
        %v2458 = vsel %vm306, %v2421, 0
        %v2461 = vsel %vm306, %v2422, 0
        %v2464 = vsel %vm306, %v2423, 0
        %v2467 = vsel %vm306, %v2424, 0
        %v2470 = vsel %vm306, %v2425, 0
        %v2473 = vsel %vm306, %v2426, 0
        %v2476 = vsel %vm306, %v2427, 0
        %v2479 = vsel %vm306, %v2428, 0
        %v2482 = vsel %vm306, %v2429, 0
        %v2485 = vsel %vm306, %v2430, 0
        %v2488 = vsel %vm306, %v2431, 0
        %v2491 = vsel %vm306, %v2432, 0
        %v2494 = vsel %vm306, %v2433, 0
        %v2497 = vsel %vm306, %v2434, 0
        %v2500 = vsel %vm306, %v2435, 0
        %v2503 = vsel %vm306, %v2436, 0
        %v2506 = vsel %vm306, %v2437, 0
        %v2509 = vsel %vm306, %v2438, 0
        %v2512 = vsel %vm306, %v2439, 0
        %v2515 = vsel %vm306, %v2440, 0
        %v2518 = vsel %vm306, %v2441, 0
        %v2521 = vsel %vm306, %v2442, 0
        %v2524 = vsel %vm306, %v2443, 0
        %v2527 = vsel %vm306, %v2444, 0
        %v2530 = vsel %vm306, %v2445, 0
        %v2533 = vsel %vm306, %v2446, 0
        %v2536 = vsel %vm306, %v2447, 0
        %v2539 = vsel %vm306, %v2448, 0
        %v2542 = vsel %vm306, %v2449, 0
        %v2545 = vsel %vm306, %v2450, 0
        %v2548 = vsel %vm306, %v2451, 0
        %v2551 = vsel %vm593, %v2453, 0
        %2553 = vmatprep.subr.mxu0 0.0
        %2554 = vmatpush1.msra.mxu0 %v2551
        %2555 = vmatprep.subr.mxu0 0.0
        %2556 = vmatpush1.msra.mxu0 0.0
        %2557 = vmatprep.subr.mxu0 0.0
        %2558 = vmatpush1.msra.mxu0 0.0
        %2559 = vmatprep.subr.mxu0 0.0
        %2560 = vmatpush1.msra.mxu0 0.0
        %2561 = vmatprep.subr.mxu0 0.0
        %2562 = vmatpush1.msra.mxu0 0.0
        %2563 = vmatprep.subr.mxu0 0.0
        %2564 = vmatpush1.msra.mxu0 0.0
        %2565 = vmatprep.subr.mxu0 0.0
        %2566 = vmatpush1.msra.mxu0 0.0
        %2567 = vmatprep.subr.mxu0 0.0
        %2568 = vmatpush1.msra.mxu0 0.0
        %2569 = vmatprep.subr.mxu0 0.0
        %2570 = vmatpush1.msra.mxu0 0.0
        %2571 = vmatprep.subr.mxu0 0.0
        %2572 = vmatpush1.msra.mxu0 0.0
        %2573 = vmatprep.subr.mxu0 0.0
        %2574 = vmatpush1.msra.mxu0 0.0
        %2575 = vmatprep.subr.mxu0 0.0
        %2576 = vmatpush1.msra.mxu0 0.0
        %2577 = vmatprep.subr.mxu0 0.0
        %2578 = vmatpush1.msra.mxu0 0.0
        %2579 = vmatprep.subr.mxu0 0.0
        %2580 = vmatpush1.msra.mxu0 0.0
        %2581 = vmatprep.subr.mxu0 0.0
        %2582 = vmatpush1.msra.mxu0 0.0
        %2583 = vmatprep.subr.mxu0 0.0
        %2584 = vmatpush1.msra.mxu0 0.0
        %2585 = vmatprep.subr.mxu0 0.0
        %2586 = vmatpush1.msra.mxu0 0.0
        %2587 = vmatprep.subr.mxu0 0.0
        %2588 = vmatpush1.msra.mxu0 0.0
        %2589 = vmatprep.subr.mxu0 0.0
        %2590 = vmatpush1.msra.mxu0 0.0
        %2591 = vmatprep.subr.mxu0 0.0
        %2592 = vmatpush1.msra.mxu0 0.0
        %2593 = vmatprep.subr.mxu0 0.0
        %2594 = vmatpush1.msra.mxu0 0.0
        %2595 = vmatprep.subr.mxu0 0.0
        %2596 = vmatpush1.msra.mxu0 0.0
        %2597 = vmatprep.subr.mxu0 0.0
        %2598 = vmatpush1.msra.mxu0 0.0
        %2599 = vmatprep.subr.mxu0 0.0
        %2600 = vmatpush1.msra.mxu0 0.0
        %2601 = vmatprep.subr.mxu0 0.0
        %2602 = vmatpush1.msra.mxu0 0.0
        %2603 = vmatprep.subr.mxu0 0.0
        %2604 = vmatpush1.msra.mxu0 0.0
        %2605 = vmatprep.subr.mxu0 0.0
        %2606 = vmatpush1.msra.mxu0 0.0
        %2607 = vmatprep.subr.mxu0 0.0
        %2608 = vmatpush1.msra.mxu0 0.0
        %2609 = vmatprep.subr.mxu0 0.0
        %2610 = vmatpush1.msra.mxu0 0.0
        %2611 = vmatprep.subr.mxu0 0.0
        %2612 = vmatpush1.msra.mxu0 0.0
        %2613 = vmatprep.subr.mxu0 0.0
        %2614 = vmatpush1.msra.mxu0 0.0
        %2615 = vmatprep.subr.mxu0 0.0
        %2616 = vmatpush1.msra.mxu0 0.0
        %2617 = vmatprep.mubr.f32.mxu0 0.0
        %2618 = vmatmul.mubr.f32.gmra.mrb[0].mxu0 %v2455
        %v2619 = vpop.f32.mrb[0].mxu0
        %v2620 = vadd.f32 0.0, %v2619
        %v2621 = vpop.f32.mrb[0].mxu0
        %2622 = vmatprep.mubr.f32.mxu0 0.0
        %2623 = vmatmul.mubr.f32.gmra.mrb[0].mxu0 %v2458
        %v2624 = vpop.f32.mrb[0].mxu0
        %v2625 = vadd.f32 0.0, %v2624
        %v2626 = vpop.f32.mrb[0].mxu0
        %2627 = vmatprep.mubr.f32.mxu0 0.0
        %2628 = vmatmul.mubr.f32.gmra.mrb[0].mxu0 %v2461
        %v2629 = vpop.f32.mrb[0].mxu0
        %v2630 = vadd.f32 0.0, %v2629
        %v2631 = vpop.f32.mrb[0].mxu0
        %2632 = vmatprep.mubr.f32.mxu0 0.0
        %2633 = vmatmul.mubr.f32.gmra.mrb[0].mxu0 %v2464
        %v2634 = vpop.f32.mrb[0].mxu0
        %v2635 = vadd.f32 0.0, %v2634
        %v2636 = vpop.f32.mrb[0].mxu0
        %2637 = vmatprep.mubr.f32.mxu0 0.0
        %2638 = vmatmul.mubr.f32.gmra.mrb[0].mxu0 %v2467
        %v2639 = vpop.f32.mrb[0].mxu0
        %v2640 = vadd.f32 0.0, %v2639
        %v2641 = vpop.f32.mrb[0].mxu0
        %2642 = vmatprep.mubr.f32.mxu0 0.0
        %2643 = vmatmul.mubr.f32.gmra.mrb[0].mxu0 %v2470
        %v2644 = vpop.f32.mrb[0].mxu0
        %v2645 = vadd.f32 0.0, %v2644
        %v2646 = vpop.f32.mrb[0].mxu0
        %2647 = vmatprep.mubr.f32.mxu0 0.0
        %2648 = vmatmul.mubr.f32.gmra.mrb[0].mxu0 %v2473
        %v2649 = vpop.f32.mrb[0].mxu0
        %v2650 = vadd.f32 0.0, %v2649
        %v2651 = vpop.f32.mrb[0].mxu0
        %2652 = vmatprep.mubr.f32.mxu0 0.0
        %2653 = vmatmul.mubr.f32.gmra.mrb[0].mxu0 %v2476
        %v2654 = vpop.f32.mrb[0].mxu0
        %v2655 = vadd.f32 0.0, %v2654
        %v2656 = vpop.f32.mrb[0].mxu0
        %2657 = vmatprep.mubr.f32.mxu0 0.0
        %2658 = vmatmul.mubr.f32.gmra.mrb[0].mxu0 %v2479
        %v2659 = vpop.f32.mrb[0].mxu0
        %v2660 = vadd.f32 0.0, %v2659
        %v2661 = vpop.f32.mrb[0].mxu0
        %2662 = vmatprep.mubr.f32.mxu0 0.0
        %2663 = vmatmul.mubr.f32.gmra.mrb[0].mxu0 %v2482
        %v2664 = vpop.f32.mrb[0].mxu0
        %v2665 = vadd.f32 0.0, %v2664
        %v2666 = vpop.f32.mrb[0].mxu0
        %2667 = vmatprep.mubr.f32.mxu0 0.0
        %2668 = vmatmul.mubr.f32.gmra.mrb[0].mxu0 %v2485
        %v2669 = vpop.f32.mrb[0].mxu0
        %v2670 = vadd.f32 0.0, %v2669
        %v2671 = vpop.f32.mrb[0].mxu0
        %2672 = vmatprep.mubr.f32.mxu0 0.0
        %2673 = vmatmul.mubr.f32.gmra.mrb[0].mxu0 %v2488
        %v2674 = vpop.f32.mrb[0].mxu0
        %v2675 = vadd.f32 0.0, %v2674
        %v2676 = vpop.f32.mrb[0].mxu0
        %2677 = vmatprep.mubr.f32.mxu0 0.0
        %2678 = vmatmul.mubr.f32.gmra.mrb[0].mxu0 %v2491
        %v2679 = vpop.f32.mrb[0].mxu0
        %v2680 = vadd.f32 0.0, %v2679
        %v2681 = vpop.f32.mrb[0].mxu0
        %2682 = vmatprep.mubr.f32.mxu0 0.0
        %2683 = vmatmul.mubr.f32.gmra.mrb[0].mxu0 %v2494
        %v2684 = vpop.f32.mrb[0].mxu0
        %v2685 = vadd.f32 0.0, %v2684
        %v2686 = vpop.f32.mrb[0].mxu0
        %2687 = vmatprep.mubr.f32.mxu0 0.0
        %2688 = vmatmul.mubr.f32.gmra.mrb[0].mxu0 %v2497
        %v2689 = vpop.f32.mrb[0].mxu0
        %v2690 = vadd.f32 0.0, %v2689
        %v2691 = vpop.f32.mrb[0].mxu0
        %2692 = vmatprep.mubr.f32.mxu0 0.0
        %2693 = vmatmul.mubr.f32.gmra.mrb[0].mxu0 %v2500
        %v2694 = vpop.f32.mrb[0].mxu0
        %v2695 = vadd.f32 0.0, %v2694
        %v2696 = vpop.f32.mrb[0].mxu0
        %2697 = vmatprep.mubr.f32.mxu0 0.0
        %2698 = vmatmul.mubr.f32.gmra.mrb[0].mxu0 %v2503
        %v2699 = vpop.f32.mrb[0].mxu0
        %v2700 = vadd.f32 0.0, %v2699
        %v2701 = vpop.f32.mrb[0].mxu0
        %2702 = vmatprep.mubr.f32.mxu0 0.0
        %2703 = vmatmul.mubr.f32.gmra.mrb[0].mxu0 %v2506
        %v2704 = vpop.f32.mrb[0].mxu0
        %v2705 = vadd.f32 0.0, %v2704
        %v2706 = vpop.f32.mrb[0].mxu0
        %2707 = vmatprep.mubr.f32.mxu0 0.0
        %2708 = vmatmul.mubr.f32.gmra.mrb[0].mxu0 %v2509
        %v2709 = vpop.f32.mrb[0].mxu0
        %v2710 = vadd.f32 0.0, %v2709
        %v2711 = vpop.f32.mrb[0].mxu0
        %2712 = vmatprep.mubr.f32.mxu0 0.0
        %2713 = vmatmul.mubr.f32.gmra.mrb[0].mxu0 %v2512
        %v2714 = vpop.f32.mrb[0].mxu0
        %v2715 = vadd.f32 0.0, %v2714
        %v2716 = vpop.f32.mrb[0].mxu0
        %2717 = vmatprep.mubr.f32.mxu0 0.0
        %2718 = vmatmul.mubr.f32.gmra.mrb[0].mxu0 %v2515
        %v2719 = vpop.f32.mrb[0].mxu0
        %v2720 = vadd.f32 0.0, %v2719
        %v2721 = vpop.f32.mrb[0].mxu0
        %2722 = vmatprep.mubr.f32.mxu0 0.0
        %2723 = vmatmul.mubr.f32.gmra.mrb[0].mxu0 %v2518
        %v2724 = vpop.f32.mrb[0].mxu0
        %v2725 = vadd.f32 0.0, %v2724
        %v2726 = vpop.f32.mrb[0].mxu0
        %2727 = vmatprep.mubr.f32.mxu0 0.0
        %2728 = vmatmul.mubr.f32.gmra.mrb[0].mxu0 %v2521
        %v2729 = vpop.f32.mrb[0].mxu0
        %v2730 = vadd.f32 0.0, %v2729
        %v2731 = vpop.f32.mrb[0].mxu0
        %2732 = vmatprep.mubr.f32.mxu0 0.0
        %2733 = vmatmul.mubr.f32.gmra.mrb[0].mxu0 %v2524
        %v2734 = vpop.f32.mrb[0].mxu0
        %v2735 = vadd.f32 0.0, %v2734
        %v2736 = vpop.f32.mrb[0].mxu0
        %2737 = vmatprep.mubr.f32.mxu0 0.0
        %2738 = vmatmul.mubr.f32.gmra.mrb[0].mxu0 %v2527
        %v2739 = vpop.f32.mrb[0].mxu0
        %v2740 = vadd.f32 0.0, %v2739
        %v2741 = vpop.f32.mrb[0].mxu0
        %2742 = vmatprep.mubr.f32.mxu0 0.0
        %2743 = vmatmul.mubr.f32.gmra.mrb[0].mxu0 %v2530
        %v2744 = vpop.f32.mrb[0].mxu0
        %v2745 = vadd.f32 0.0, %v2744
        %v2746 = vpop.f32.mrb[0].mxu0
        %2747 = vmatprep.mubr.f32.mxu0 0.0
        %2748 = vmatmul.mubr.f32.gmra.mrb[0].mxu0 %v2533
        %v2749 = vpop.f32.mrb[0].mxu0
        %v2750 = vadd.f32 0.0, %v2749
        %v2751 = vpop.f32.mrb[0].mxu0
        %2752 = vmatprep.mubr.f32.mxu0 0.0
        %2753 = vmatmul.mubr.f32.gmra.mrb[0].mxu0 %v2536
        %v2754 = vpop.f32.mrb[0].mxu0
        %v2755 = vadd.f32 0.0, %v2754
        %v2756 = vpop.f32.mrb[0].mxu0
        %2757 = vmatprep.mubr.f32.mxu0 0.0
        %2758 = vmatmul.mubr.f32.gmra.mrb[0].mxu0 %v2539
        %v2759 = vpop.f32.mrb[0].mxu0
        %v2760 = vadd.f32 0.0, %v2759
        %v2761 = vpop.f32.mrb[0].mxu0
        %2762 = vmatprep.mubr.f32.mxu0 0.0
        %2763 = vmatmul.mubr.f32.gmra.mrb[0].mxu0 %v2542
        %v2764 = vpop.f32.mrb[0].mxu0
        %v2765 = vadd.f32 0.0, %v2764
        %v2766 = vpop.f32.mrb[0].mxu0
        %2767 = vmatprep.mubr.f32.mxu0 0.0
        %2768 = vmatmul.mubr.f32.gmra.mrb[0].mxu0 %v2545
        %v2769 = vpop.f32.mrb[0].mxu0
        %v2770 = vadd.f32 0.0, %v2769
        %v2771 = vpop.f32.mrb[0].mxu0
        %2772 = vmatprep.mubr.f32.mxu0 0.0
        %2773 = vmatmul.mubr.f32.gmra.mrb[0].mxu0 %v2548
        %v2774 = vpop.f32.mrb[0].mxu0
        %v2775 = vadd.f32 0.0, %v2774
        %v2776 = vpop.f32.mrb[0].mxu0
        %2777 = vdwg.mxu0
        %v2778 = vadd.f32 %v2388, %v2620
        %v2779 = vadd.f32 %v2389, %v2625
        %v2780 = vadd.f32 %v2390, %v2630
        %v2781 = vadd.f32 %v2391, %v2635
        %v2782 = vadd.f32 %v2392, %v2640
        %v2783 = vadd.f32 %v2393, %v2645
        %v2784 = vadd.f32 %v2394, %v2650
        %v2785 = vadd.f32 %v2395, %v2655
        %v2786 = vadd.f32 %v2396, %v2660
        %v2787 = vadd.f32 %v2397, %v2665
        %v2788 = vadd.f32 %v2398, %v2670
        %v2789 = vadd.f32 %v2399, %v2675
        %v2790 = vadd.f32 %v2400, %v2680
        %v2791 = vadd.f32 %v2401, %v2685
        %v2792 = vadd.f32 %v2402, %v2690
        %v2793 = vadd.f32 %v2403, %v2695
        %v2794 = vadd.f32 %v2404, %v2700
        %v2795 = vadd.f32 %v2405, %v2705
        %v2796 = vadd.f32 %v2406, %v2710
        %v2797 = vadd.f32 %v2407, %v2715
        %v2798 = vadd.f32 %v2408, %v2720
        %v2799 = vadd.f32 %v2409, %v2725
        %v2800 = vadd.f32 %v2410, %v2730
        %v2801 = vadd.f32 %v2411, %v2735
        %v2802 = vadd.f32 %v2412, %v2740
        %v2803 = vadd.f32 %v2413, %v2745
        %v2804 = vadd.f32 %v2414, %v2750
        %v2805 = vadd.f32 %v2415, %v2755
        %v2806 = vadd.f32 %v2416, %v2760
        %v2807 = vadd.f32 %v2417, %v2765
        %v2808 = vadd.f32 %v2418, %v2770
        %v2809 = vadd.f32 %v2419, %v2775
        %s2810 = scalar_lea.vmem [#allocation2], 48
        %v2811 = vld [vmem:[%s2810] sm:$0xff]
        %v2812 = vld [vmem:[%s2810 + $0x8] sm:$0xff]
        %v2813 = vld [vmem:[%s2810 + $0x18] sm:$0xff]
        %v2814 = vld [vmem:[%s2810 + $0x20] sm:$0xff]
        %v2815 = vld [vmem:[%s2810 + $0x30] sm:$0xff]
        %v2816 = vld [vmem:[%s2810 + $0x38] sm:$0xff]
        %v2817 = vld [vmem:[%s2810 + $0x48] sm:$0xff]
        %v2818 = vld [vmem:[%s2810 + $0x50] sm:$0xff]
        %v2819 = vld [vmem:[%s2810 + $0x60] sm:$0xff]
        %v2820 = vld [vmem:[%s2810 + $0x68] sm:$0xff]
        %v2821 = vld [vmem:[%s2810 + $0x78] sm:$0xff]
        %v2822 = vld [vmem:[%s2810 + $0x80] sm:$0xff]
        %v2823 = vld [vmem:[%s2810 + $0x90] sm:$0xff]
        %v2824 = vld [vmem:[%s2810 + $0x98] sm:$0xff]
        %v2825 = vld [vmem:[%s2810 + $0xa8] sm:$0xff]
        %v2826 = vld [vmem:[%s2810 + $0xb0] sm:$0xff]
        %v2827 = vld [vmem:[%s2810 + $0xc0] sm:$0xff]
        %v2828 = vld [vmem:[%s2810 + $0xc8] sm:$0xff]
        %v2829 = vld [vmem:[%s2810 + $0xd8] sm:$0xff]
        %v2830 = vld [vmem:[%s2810 + $0xe0] sm:$0xff]
        %v2831 = vld [vmem:[%s2810 + $0xf0] sm:$0xff]
        %v2832 = vld [vmem:[%s2810 + $0xf8] sm:$0xff]
        %v2833 = vld [vmem:[%s2810 + $0x108] sm:$0xff]
        %v2834 = vld [vmem:[%s2810 + $0x110] sm:$0xff]
        %v2835 = vld [vmem:[%s2810 + $0x120] sm:$0xff]
        %v2836 = vld [vmem:[%s2810 + $0x128] sm:$0xff]
        %v2837 = vld [vmem:[%s2810 + $0x138] sm:$0xff]
        %v2838 = vld [vmem:[%s2810 + $0x140] sm:$0xff]
        %v2839 = vld [vmem:[%s2810 + $0x150] sm:$0xff]
        %v2840 = vld [vmem:[%s2810 + $0x158] sm:$0xff]
        %v2841 = vld [vmem:[%s2810 + $0x168] sm:$0xff]
        %v2842 = vld [vmem:[%s2810 + $0x170] sm:$0xff]
        %s2843 = scalar_lea.vmem %s1, 24
        %v2844 = vld [vmem:[%s2843] sm:$0xf]
        %v2846 = vsel %vm306, %v2811, 0
        %v2849 = vsel %vm306, %v2812, 0
        %v2852 = vsel %vm306, %v2813, 0
        %v2855 = vsel %vm306, %v2814, 0
        %v2858 = vsel %vm306, %v2815, 0
        %v2861 = vsel %vm306, %v2816, 0
        %v2864 = vsel %vm306, %v2817, 0
        %v2867 = vsel %vm306, %v2818, 0
        %v2870 = vsel %vm306, %v2819, 0
        %v2873 = vsel %vm306, %v2820, 0
        %v2876 = vsel %vm306, %v2821, 0
        %v2879 = vsel %vm306, %v2822, 0
        %v2882 = vsel %vm306, %v2823, 0
        %v2885 = vsel %vm306, %v2824, 0
        %v2888 = vsel %vm306, %v2825, 0
        %v2891 = vsel %vm306, %v2826, 0
        %v2894 = vsel %vm306, %v2827, 0
        %v2897 = vsel %vm306, %v2828, 0
        %v2900 = vsel %vm306, %v2829, 0
        %v2903 = vsel %vm306, %v2830, 0
        %v2906 = vsel %vm306, %v2831, 0
        %v2909 = vsel %vm306, %v2832, 0
        %v2912 = vsel %vm306, %v2833, 0
        %v2915 = vsel %vm306, %v2834, 0
        %v2918 = vsel %vm306, %v2835, 0
        %v2921 = vsel %vm306, %v2836, 0
        %v2924 = vsel %vm306, %v2837, 0
        %v2927 = vsel %vm306, %v2838, 0
        %v2930 = vsel %vm306, %v2839, 0
        %v2933 = vsel %vm306, %v2840, 0
        %v2936 = vsel %vm306, %v2841, 0
        %v2939 = vsel %vm306, %v2842, 0
        %v2942 = vsel %vm593, %v2844, 0
        %2944 = vmatprep.subr.mxu0 0.0
        %2945 = vmatpush1.msra.mxu0 %v2942
        %2946 = vmatprep.subr.mxu0 0.0
        %2947 = vmatpush1.msra.mxu0 0.0
        %2948 = vmatprep.subr.mxu0 0.0
        %2949 = vmatpush1.msra.mxu0 0.0
        %2950 = vmatprep.subr.mxu0 0.0
        %2951 = vmatpush1.msra.mxu0 0.0
        %2952 = vmatprep.subr.mxu0 0.0
        %2953 = vmatpush1.msra.mxu0 0.0
        %2954 = vmatprep.subr.mxu0 0.0
        %2955 = vmatpush1.msra.mxu0 0.0
        %2956 = vmatprep.subr.mxu0 0.0
        %2957 = vmatpush1.msra.mxu0 0.0
        %2958 = vmatprep.subr.mxu0 0.0
        %2959 = vmatpush1.msra.mxu0 0.0
        %2960 = vmatprep.subr.mxu0 0.0
        %2961 = vmatpush1.msra.mxu0 0.0
        %2962 = vmatprep.subr.mxu0 0.0
        %2963 = vmatpush1.msra.mxu0 0.0
        %2964 = vmatprep.subr.mxu0 0.0
        %2965 = vmatpush1.msra.mxu0 0.0
        %2966 = vmatprep.subr.mxu0 0.0
        %2967 = vmatpush1.msra.mxu0 0.0
        %2968 = vmatprep.subr.mxu0 0.0
        %2969 = vmatpush1.msra.mxu0 0.0
        %2970 = vmatprep.subr.mxu0 0.0
        %2971 = vmatpush1.msra.mxu0 0.0
        %2972 = vmatprep.subr.mxu0 0.0
        %2973 = vmatpush1.msra.mxu0 0.0
        %2974 = vmatprep.subr.mxu0 0.0
        %2975 = vmatpush1.msra.mxu0 0.0
        %2976 = vmatprep.subr.mxu0 0.0
        %2977 = vmatpush1.msra.mxu0 0.0
        %2978 = vmatprep.subr.mxu0 0.0
        %2979 = vmatpush1.msra.mxu0 0.0
        %2980 = vmatprep.subr.mxu0 0.0
        %2981 = vmatpush1.msra.mxu0 0.0
        %2982 = vmatprep.subr.mxu0 0.0
        %2983 = vmatpush1.msra.mxu0 0.0
        %2984 = vmatprep.subr.mxu0 0.0
        %2985 = vmatpush1.msra.mxu0 0.0
        %2986 = vmatprep.subr.mxu0 0.0
        %2987 = vmatpush1.msra.mxu0 0.0
        %2988 = vmatprep.subr.mxu0 0.0
        %2989 = vmatpush1.msra.mxu0 0.0
        %2990 = vmatprep.subr.mxu0 0.0
        %2991 = vmatpush1.msra.mxu0 0.0
        %2992 = vmatprep.subr.mxu0 0.0
        %2993 = vmatpush1.msra.mxu0 0.0
        %2994 = vmatprep.subr.mxu0 0.0
        %2995 = vmatpush1.msra.mxu0 0.0
        %2996 = vmatprep.subr.mxu0 0.0
        %2997 = vmatpush1.msra.mxu0 0.0
        %2998 = vmatprep.subr.mxu0 0.0
        %2999 = vmatpush1.msra.mxu0 0.0
        %3000 = vmatprep.subr.mxu0 0.0
        %3001 = vmatpush1.msra.mxu0 0.0
        %3002 = vmatprep.subr.mxu0 0.0
        %3003 = vmatpush1.msra.mxu0 0.0
        %3004 = vmatprep.subr.mxu0 0.0
        %3005 = vmatpush1.msra.mxu0 0.0
        %3006 = vmatprep.subr.mxu0 0.0
        %3007 = vmatpush1.msra.mxu0 0.0
        %3008 = vmatprep.mubr.f32.mxu0 0.0
        %3009 = vmatmul.mubr.f32.gmra.mrb[0].mxu0 %v2846
        %v3010 = vpop.f32.mrb[0].mxu0
        %v3011 = vadd.f32 0.0, %v3010
        %v3012 = vpop.f32.mrb[0].mxu0
        %3013 = vmatprep.mubr.f32.mxu0 0.0
        %3014 = vmatmul.mubr.f32.gmra.mrb[0].mxu0 %v2849
        %v3015 = vpop.f32.mrb[0].mxu0
        %v3016 = vadd.f32 0.0, %v3015
        %v3017 = vpop.f32.mrb[0].mxu0
        %3018 = vmatprep.mubr.f32.mxu0 0.0
        %3019 = vmatmul.mubr.f32.gmra.mrb[0].mxu0 %v2852
        %v3020 = vpop.f32.mrb[0].mxu0
        %v3021 = vadd.f32 0.0, %v3020
        %v3022 = vpop.f32.mrb[0].mxu0
        %3023 = vmatprep.mubr.f32.mxu0 0.0
        %3024 = vmatmul.mubr.f32.gmra.mrb[0].mxu0 %v2855
        %v3025 = vpop.f32.mrb[0].mxu0
        %v3026 = vadd.f32 0.0, %v3025
        %v3027 = vpop.f32.mrb[0].mxu0
        %3028 = vmatprep.mubr.f32.mxu0 0.0
        %3029 = vmatmul.mubr.f32.gmra.mrb[0].mxu0 %v2858
        %v3030 = vpop.f32.mrb[0].mxu0
        %v3031 = vadd.f32 0.0, %v3030
        %v3032 = vpop.f32.mrb[0].mxu0
        %3033 = vmatprep.mubr.f32.mxu0 0.0
        %3034 = vmatmul.mubr.f32.gmra.mrb[0].mxu0 %v2861
        %v3035 = vpop.f32.mrb[0].mxu0
        %v3036 = vadd.f32 0.0, %v3035
        %v3037 = vpop.f32.mrb[0].mxu0
        %3038 = vmatprep.mubr.f32.mxu0 0.0
        %3039 = vmatmul.mubr.f32.gmra.mrb[0].mxu0 %v2864
        %v3040 = vpop.f32.mrb[0].mxu0
        %v3041 = vadd.f32 0.0, %v3040
        %v3042 = vpop.f32.mrb[0].mxu0
        %3043 = vmatprep.mubr.f32.mxu0 0.0
        %3044 = vmatmul.mubr.f32.gmra.mrb[0].mxu0 %v2867
        %v3045 = vpop.f32.mrb[0].mxu0
        %v3046 = vadd.f32 0.0, %v3045
        %v3047 = vpop.f32.mrb[0].mxu0
        %3048 = vmatprep.mubr.f32.mxu0 0.0
        %3049 = vmatmul.mubr.f32.gmra.mrb[0].mxu0 %v2870
        %v3050 = vpop.f32.mrb[0].mxu0
        %v3051 = vadd.f32 0.0, %v3050
        %v3052 = vpop.f32.mrb[0].mxu0
        %3053 = vmatprep.mubr.f32.mxu0 0.0
        %3054 = vmatmul.mubr.f32.gmra.mrb[0].mxu0 %v2873
        %v3055 = vpop.f32.mrb[0].mxu0
        %v3056 = vadd.f32 0.0, %v3055
        %v3057 = vpop.f32.mrb[0].mxu0
        %3058 = vmatprep.mubr.f32.mxu0 0.0
        %3059 = vmatmul.mubr.f32.gmra.mrb[0].mxu0 %v2876
        %v3060 = vpop.f32.mrb[0].mxu0
        %v3061 = vadd.f32 0.0, %v3060
        %v3062 = vpop.f32.mrb[0].mxu0
        %3063 = vmatprep.mubr.f32.mxu0 0.0
        %3064 = vmatmul.mubr.f32.gmra.mrb[0].mxu0 %v2879
        %v3065 = vpop.f32.mrb[0].mxu0
        %v3066 = vadd.f32 0.0, %v3065
        %v3067 = vpop.f32.mrb[0].mxu0
        %3068 = vmatprep.mubr.f32.mxu0 0.0
        %3069 = vmatmul.mubr.f32.gmra.mrb[0].mxu0 %v2882
        %v3070 = vpop.f32.mrb[0].mxu0
        %v3071 = vadd.f32 0.0, %v3070
        %v3072 = vpop.f32.mrb[0].mxu0
        %3073 = vmatprep.mubr.f32.mxu0 0.0
        %3074 = vmatmul.mubr.f32.gmra.mrb[0].mxu0 %v2885
        %v3075 = vpop.f32.mrb[0].mxu0
        %v3076 = vadd.f32 0.0, %v3075
        %v3077 = vpop.f32.mrb[0].mxu0
        %3078 = vmatprep.mubr.f32.mxu0 0.0
        %3079 = vmatmul.mubr.f32.gmra.mrb[0].mxu0 %v2888
        %v3080 = vpop.f32.mrb[0].mxu0
        %v3081 = vadd.f32 0.0, %v3080
        %v3082 = vpop.f32.mrb[0].mxu0
        %3083 = vmatprep.mubr.f32.mxu0 0.0
        %3084 = vmatmul.mubr.f32.gmra.mrb[0].mxu0 %v2891
        %v3085 = vpop.f32.mrb[0].mxu0
        %v3086 = vadd.f32 0.0, %v3085
        %v3087 = vpop.f32.mrb[0].mxu0
        %3088 = vmatprep.mubr.f32.mxu0 0.0
        %3089 = vmatmul.mubr.f32.gmra.mrb[0].mxu0 %v2894
        %v3090 = vpop.f32.mrb[0].mxu0
        %v3091 = vadd.f32 0.0, %v3090
        %v3092 = vpop.f32.mrb[0].mxu0
        %3093 = vmatprep.mubr.f32.mxu0 0.0
        %3094 = vmatmul.mubr.f32.gmra.mrb[0].mxu0 %v2897
        %v3095 = vpop.f32.mrb[0].mxu0
        %v3096 = vadd.f32 0.0, %v3095
        %v3097 = vpop.f32.mrb[0].mxu0
        %3098 = vmatprep.mubr.f32.mxu0 0.0
        %3099 = vmatmul.mubr.f32.gmra.mrb[0].mxu0 %v2900
        %v3100 = vpop.f32.mrb[0].mxu0
        %v3101 = vadd.f32 0.0, %v3100
        %v3102 = vpop.f32.mrb[0].mxu0
        %3103 = vmatprep.mubr.f32.mxu0 0.0
        %3104 = vmatmul.mubr.f32.gmra.mrb[0].mxu0 %v2903
        %v3105 = vpop.f32.mrb[0].mxu0
        %v3106 = vadd.f32 0.0, %v3105
        %v3107 = vpop.f32.mrb[0].mxu0
        %3108 = vmatprep.mubr.f32.mxu0 0.0
        %3109 = vmatmul.mubr.f32.gmra.mrb[0].mxu0 %v2906
        %v3110 = vpop.f32.mrb[0].mxu0
        %v3111 = vadd.f32 0.0, %v3110
        %v3112 = vpop.f32.mrb[0].mxu0
        %3113 = vmatprep.mubr.f32.mxu0 0.0
        %3114 = vmatmul.mubr.f32.gmra.mrb[0].mxu0 %v2909
        %v3115 = vpop.f32.mrb[0].mxu0
        %v3116 = vadd.f32 0.0, %v3115
        %v3117 = vpop.f32.mrb[0].mxu0
        %3118 = vmatprep.mubr.f32.mxu0 0.0
        %3119 = vmatmul.mubr.f32.gmra.mrb[0].mxu0 %v2912
        %v3120 = vpop.f32.mrb[0].mxu0
        %v3121 = vadd.f32 0.0, %v3120
        %v3122 = vpop.f32.mrb[0].mxu0
        %3123 = vmatprep.mubr.f32.mxu0 0.0
        %3124 = vmatmul.mubr.f32.gmra.mrb[0].mxu0 %v2915
        %v3125 = vpop.f32.mrb[0].mxu0
        %v3126 = vadd.f32 0.0, %v3125
        %v3127 = vpop.f32.mrb[0].mxu0
        %3128 = vmatprep.mubr.f32.mxu0 0.0
        %3129 = vmatmul.mubr.f32.gmra.mrb[0].mxu0 %v2918
        %v3130 = vpop.f32.mrb[0].mxu0
        %v3131 = vadd.f32 0.0, %v3130
        %v3132 = vpop.f32.mrb[0].mxu0
        %3133 = vmatprep.mubr.f32.mxu0 0.0
        %3134 = vmatmul.mubr.f32.gmra.mrb[0].mxu0 %v2921
        %v3135 = vpop.f32.mrb[0].mxu0
        %v3136 = vadd.f32 0.0, %v3135
        %v3137 = vpop.f32.mrb[0].mxu0
        %3138 = vmatprep.mubr.f32.mxu0 0.0
        %3139 = vmatmul.mubr.f32.gmra.mrb[0].mxu0 %v2924
        %v3140 = vpop.f32.mrb[0].mxu0
        %v3141 = vadd.f32 0.0, %v3140
        %v3142 = vpop.f32.mrb[0].mxu0
        %3143 = vmatprep.mubr.f32.mxu0 0.0
        %3144 = vmatmul.mubr.f32.gmra.mrb[0].mxu0 %v2927
        %v3145 = vpop.f32.mrb[0].mxu0
        %v3146 = vadd.f32 0.0, %v3145
        %v3147 = vpop.f32.mrb[0].mxu0
        %3148 = vmatprep.mubr.f32.mxu0 0.0
        %3149 = vmatmul.mubr.f32.gmra.mrb[0].mxu0 %v2930
        %v3150 = vpop.f32.mrb[0].mxu0
        %v3151 = vadd.f32 0.0, %v3150
        %v3152 = vpop.f32.mrb[0].mxu0
        %3153 = vmatprep.mubr.f32.mxu0 0.0
        %3154 = vmatmul.mubr.f32.gmra.mrb[0].mxu0 %v2933
        %v3155 = vpop.f32.mrb[0].mxu0
        %v3156 = vadd.f32 0.0, %v3155
        %v3157 = vpop.f32.mrb[0].mxu0
        %3158 = vmatprep.mubr.f32.mxu0 0.0
        %3159 = vmatmul.mubr.f32.gmra.mrb[0].mxu0 %v2936
        %v3160 = vpop.f32.mrb[0].mxu0
        %v3161 = vadd.f32 0.0, %v3160
        %v3162 = vpop.f32.mrb[0].mxu0
        %3163 = vmatprep.mubr.f32.mxu0 0.0
        %3164 = vmatmul.mubr.f32.gmra.mrb[0].mxu0 %v2939
        %v3165 = vpop.f32.mrb[0].mxu0
        %v3166 = vadd.f32 0.0, %v3165
        %v3167 = vpop.f32.mrb[0].mxu0
        %3168 = vdwg.mxu0
        %v3169 = vadd.f32 %v2778, %v3011
        %v3170 = vadd.f32 %v2779, %v3016
        %v3171 = vadd.f32 %v2780, %v3021
        %v3172 = vadd.f32 %v2781, %v3026
        %v3173 = vadd.f32 %v2782, %v3031
        %v3174 = vadd.f32 %v2783, %v3036
        %v3175 = vadd.f32 %v2784, %v3041
        %v3176 = vadd.f32 %v2785, %v3046
        %v3177 = vadd.f32 %v2786, %v3051
        %v3178 = vadd.f32 %v2787, %v3056
        %v3179 = vadd.f32 %v2788, %v3061
        %v3180 = vadd.f32 %v2789, %v3066
        %v3181 = vadd.f32 %v2790, %v3071
        %v3182 = vadd.f32 %v2791, %v3076
        %v3183 = vadd.f32 %v2792, %v3081
        %v3184 = vadd.f32 %v2793, %v3086
        %v3185 = vadd.f32 %v2794, %v3091
        %v3186 = vadd.f32 %v2795, %v3096
        %v3187 = vadd.f32 %v2796, %v3101
        %v3188 = vadd.f32 %v2797, %v3106
        %v3189 = vadd.f32 %v2798, %v3111
        %v3190 = vadd.f32 %v2799, %v3116
        %v3191 = vadd.f32 %v2800, %v3121
        %v3192 = vadd.f32 %v2801, %v3126
        %v3193 = vadd.f32 %v2802, %v3131
        %v3194 = vadd.f32 %v2803, %v3136
        %v3195 = vadd.f32 %v2804, %v3141
        %v3196 = vadd.f32 %v2805, %v3146
        %v3197 = vadd.f32 %v2806, %v3151
        %v3198 = vadd.f32 %v2807, %v3156
        %v3199 = vadd.f32 %v2808, %v3161
        %v3200 = vadd.f32 %v2809, %v3166
        %v3201 = vld [vmem:[%s2810 + $0x1] sm:$0xff]
        %v3202 = vld [vmem:[%s2810 + $0x9] sm:$0xff]
        %v3203 = vld [vmem:[%s2810 + $0x19] sm:$0xff]
        %v3204 = vld [vmem:[%s2810 + $0x21] sm:$0xff]
        %v3205 = vld [vmem:[%s2810 + $0x31] sm:$0xff]
        %v3206 = vld [vmem:[%s2810 + $0x39] sm:$0xff]
        %v3207 = vld [vmem:[%s2810 + $0x49] sm:$0xff]
        %v3208 = vld [vmem:[%s2810 + $0x51] sm:$0xff]
        %v3209 = vld [vmem:[%s2810 + $0x61] sm:$0xff]
        %v3210 = vld [vmem:[%s2810 + $0x69] sm:$0xff]
        %v3211 = vld [vmem:[%s2810 + $0x79] sm:$0xff]
        %v3212 = vld [vmem:[%s2810 + $0x81] sm:$0xff]
        %v3213 = vld [vmem:[%s2810 + $0x91] sm:$0xff]
        %v3214 = vld [vmem:[%s2810 + $0x99] sm:$0xff]
        %v3215 = vld [vmem:[%s2810 + $0xa9] sm:$0xff]
        %v3216 = vld [vmem:[%s2810 + $0xb1] sm:$0xff]
        %v3217 = vld [vmem:[%s2810 + $0xc1] sm:$0xff]
        %v3218 = vld [vmem:[%s2810 + $0xc9] sm:$0xff]
        %v3219 = vld [vmem:[%s2810 + $0xd9] sm:$0xff]
        %v3220 = vld [vmem:[%s2810 + $0xe1] sm:$0xff]
        %v3221 = vld [vmem:[%s2810 + $0xf1] sm:$0xff]
        %v3222 = vld [vmem:[%s2810 + $0xf9] sm:$0xff]
        %v3223 = vld [vmem:[%s2810 + $0x109] sm:$0xff]
        %v3224 = vld [vmem:[%s2810 + $0x111] sm:$0xff]
        %v3225 = vld [vmem:[%s2810 + $0x121] sm:$0xff]
        %v3226 = vld [vmem:[%s2810 + $0x129] sm:$0xff]
        %v3227 = vld [vmem:[%s2810 + $0x139] sm:$0xff]
        %v3228 = vld [vmem:[%s2810 + $0x141] sm:$0xff]
        %v3229 = vld [vmem:[%s2810 + $0x151] sm:$0xff]
        %v3230 = vld [vmem:[%s2810 + $0x159] sm:$0xff]
        %v3231 = vld [vmem:[%s2810 + $0x169] sm:$0xff]
        %v3232 = vld [vmem:[%s2810 + $0x171] sm:$0xff]
        %s3233 = scalar_lea.vmem %s1, 28
        %v3234 = vld [vmem:[%s3233] sm:$0xf]
        %v3236 = vsel %vm306, %v3201, 0
        %v3239 = vsel %vm306, %v3202, 0
        %v3242 = vsel %vm306, %v3203, 0
        %v3245 = vsel %vm306, %v3204, 0
        %v3248 = vsel %vm306, %v3205, 0
        %v3251 = vsel %vm306, %v3206, 0
        %v3254 = vsel %vm306, %v3207, 0
        %v3257 = vsel %vm306, %v3208, 0
        %v3260 = vsel %vm306, %v3209, 0
        %v3263 = vsel %vm306, %v3210, 0
        %v3266 = vsel %vm306, %v3211, 0
        %v3269 = vsel %vm306, %v3212, 0
        %v3272 = vsel %vm306, %v3213, 0
        %v3275 = vsel %vm306, %v3214, 0
        %v3278 = vsel %vm306, %v3215, 0
        %v3281 = vsel %vm306, %v3216, 0
        %v3284 = vsel %vm306, %v3217, 0
        %v3287 = vsel %vm306, %v3218, 0
        %v3290 = vsel %vm306, %v3219, 0
        %v3293 = vsel %vm306, %v3220, 0
        %v3296 = vsel %vm306, %v3221, 0
        %v3299 = vsel %vm306, %v3222, 0
        %v3302 = vsel %vm306, %v3223, 0
        %v3305 = vsel %vm306, %v3224, 0
        %v3308 = vsel %vm306, %v3225, 0
        %v3311 = vsel %vm306, %v3226, 0
        %v3314 = vsel %vm306, %v3227, 0
        %v3317 = vsel %vm306, %v3228, 0
        %v3320 = vsel %vm306, %v3229, 0
        %v3323 = vsel %vm306, %v3230, 0
        %v3326 = vsel %vm306, %v3231, 0
        %v3329 = vsel %vm306, %v3232, 0
        %v3332 = vsel %vm593, %v3234, 0
        %3334 = vmatprep.subr.mxu0 0.0
        %3335 = vmatpush1.msra.mxu0 %v3332
        %3336 = vmatprep.subr.mxu0 0.0
        %3337 = vmatpush1.msra.mxu0 0.0
        %3338 = vmatprep.subr.mxu0 0.0
        %3339 = vmatpush1.msra.mxu0 0.0
        %3340 = vmatprep.subr.mxu0 0.0
        %3341 = vmatpush1.msra.mxu0 0.0
        %3342 = vmatprep.subr.mxu0 0.0
        %3343 = vmatpush1.msra.mxu0 0.0
        %3344 = vmatprep.subr.mxu0 0.0
        %3345 = vmatpush1.msra.mxu0 0.0
        %3346 = vmatprep.subr.mxu0 0.0
        %3347 = vmatpush1.msra.mxu0 0.0
        %3348 = vmatprep.subr.mxu0 0.0
        %3349 = vmatpush1.msra.mxu0 0.0
        %3350 = vmatprep.subr.mxu0 0.0
        %3351 = vmatpush1.msra.mxu0 0.0
        %3352 = vmatprep.subr.mxu0 0.0
        %3353 = vmatpush1.msra.mxu0 0.0
        %3354 = vmatprep.subr.mxu0 0.0
        %3355 = vmatpush1.msra.mxu0 0.0
        %3356 = vmatprep.subr.mxu0 0.0
        %3357 = vmatpush1.msra.mxu0 0.0
        %3358 = vmatprep.subr.mxu0 0.0
        %3359 = vmatpush1.msra.mxu0 0.0
        %3360 = vmatprep.subr.mxu0 0.0
        %3361 = vmatpush1.msra.mxu0 0.0
        %3362 = vmatprep.subr.mxu0 0.0
        %3363 = vmatpush1.msra.mxu0 0.0
        %3364 = vmatprep.subr.mxu0 0.0
        %3365 = vmatpush1.msra.mxu0 0.0
        %3366 = vmatprep.subr.mxu0 0.0
        %3367 = vmatpush1.msra.mxu0 0.0
        %3368 = vmatprep.subr.mxu0 0.0
        %3369 = vmatpush1.msra.mxu0 0.0
        %3370 = vmatprep.subr.mxu0 0.0
        %3371 = vmatpush1.msra.mxu0 0.0
        %3372 = vmatprep.subr.mxu0 0.0
        %3373 = vmatpush1.msra.mxu0 0.0
        %3374 = vmatprep.subr.mxu0 0.0
        %3375 = vmatpush1.msra.mxu0 0.0
        %3376 = vmatprep.subr.mxu0 0.0
        %3377 = vmatpush1.msra.mxu0 0.0
        %3378 = vmatprep.subr.mxu0 0.0
        %3379 = vmatpush1.msra.mxu0 0.0
        %3380 = vmatprep.subr.mxu0 0.0
        %3381 = vmatpush1.msra.mxu0 0.0
        %3382 = vmatprep.subr.mxu0 0.0
        %3383 = vmatpush1.msra.mxu0 0.0
        %3384 = vmatprep.subr.mxu0 0.0
        %3385 = vmatpush1.msra.mxu0 0.0
        %3386 = vmatprep.subr.mxu0 0.0
        %3387 = vmatpush1.msra.mxu0 0.0
        %3388 = vmatprep.subr.mxu0 0.0
        %3389 = vmatpush1.msra.mxu0 0.0
        %3390 = vmatprep.subr.mxu0 0.0
        %3391 = vmatpush1.msra.mxu0 0.0
        %3392 = vmatprep.subr.mxu0 0.0
        %3393 = vmatpush1.msra.mxu0 0.0
        %3394 = vmatprep.subr.mxu0 0.0
        %3395 = vmatpush1.msra.mxu0 0.0
        %3396 = vmatprep.subr.mxu0 0.0
        %3397 = vmatpush1.msra.mxu0 0.0
        %3398 = vmatprep.mubr.f32.mxu0 0.0
        %3399 = vmatmul.mubr.f32.gmra.mrb[0].mxu0 %v3236
        %v3400 = vpop.f32.mrb[0].mxu0
        %v3401 = vadd.f32 0.0, %v3400
        %v3402 = vpop.f32.mrb[0].mxu0
        %3403 = vmatprep.mubr.f32.mxu0 0.0
        %3404 = vmatmul.mubr.f32.gmra.mrb[0].mxu0 %v3239
        %v3405 = vpop.f32.mrb[0].mxu0
        %v3406 = vadd.f32 0.0, %v3405
        %v3407 = vpop.f32.mrb[0].mxu0
        %3408 = vmatprep.mubr.f32.mxu0 0.0
        %3409 = vmatmul.mubr.f32.gmra.mrb[0].mxu0 %v3242
        %v3410 = vpop.f32.mrb[0].mxu0
        %v3411 = vadd.f32 0.0, %v3410
        %v3412 = vpop.f32.mrb[0].mxu0
        %3413 = vmatprep.mubr.f32.mxu0 0.0
        %3414 = vmatmul.mubr.f32.gmra.mrb[0].mxu0 %v3245
        %v3415 = vpop.f32.mrb[0].mxu0
        %v3416 = vadd.f32 0.0, %v3415
        %v3417 = vpop.f32.mrb[0].mxu0
        %3418 = vmatprep.mubr.f32.mxu0 0.0
        %3419 = vmatmul.mubr.f32.gmra.mrb[0].mxu0 %v3248
        %v3420 = vpop.f32.mrb[0].mxu0
        %v3421 = vadd.f32 0.0, %v3420
        %v3422 = vpop.f32.mrb[0].mxu0
        %3423 = vmatprep.mubr.f32.mxu0 0.0
        %3424 = vmatmul.mubr.f32.gmra.mrb[0].mxu0 %v3251
        %v3425 = vpop.f32.mrb[0].mxu0
        %v3426 = vadd.f32 0.0, %v3425
        %v3427 = vpop.f32.mrb[0].mxu0
        %3428 = vmatprep.mubr.f32.mxu0 0.0
        %3429 = vmatmul.mubr.f32.gmra.mrb[0].mxu0 %v3254
        %v3430 = vpop.f32.mrb[0].mxu0
        %v3431 = vadd.f32 0.0, %v3430
        %v3432 = vpop.f32.mrb[0].mxu0
        %3433 = vmatprep.mubr.f32.mxu0 0.0
        %3434 = vmatmul.mubr.f32.gmra.mrb[0].mxu0 %v3257
        %v3435 = vpop.f32.mrb[0].mxu0
        %v3436 = vadd.f32 0.0, %v3435
        %v3437 = vpop.f32.mrb[0].mxu0
        %3438 = vmatprep.mubr.f32.mxu0 0.0
        %3439 = vmatmul.mubr.f32.gmra.mrb[0].mxu0 %v3260
        %v3440 = vpop.f32.mrb[0].mxu0
        %v3441 = vadd.f32 0.0, %v3440
        %v3442 = vpop.f32.mrb[0].mxu0
        %3443 = vmatprep.mubr.f32.mxu0 0.0
        %3444 = vmatmul.mubr.f32.gmra.mrb[0].mxu0 %v3263
        %v3445 = vpop.f32.mrb[0].mxu0
        %v3446 = vadd.f32 0.0, %v3445
        %v3447 = vpop.f32.mrb[0].mxu0
        %3448 = vmatprep.mubr.f32.mxu0 0.0
        %3449 = vmatmul.mubr.f32.gmra.mrb[0].mxu0 %v3266
        %v3450 = vpop.f32.mrb[0].mxu0
        %v3451 = vadd.f32 0.0, %v3450
        %v3452 = vpop.f32.mrb[0].mxu0
        %3453 = vmatprep.mubr.f32.mxu0 0.0
        %3454 = vmatmul.mubr.f32.gmra.mrb[0].mxu0 %v3269
        %v3455 = vpop.f32.mrb[0].mxu0
        %v3456 = vadd.f32 0.0, %v3455
        %v3457 = vpop.f32.mrb[0].mxu0
        %3458 = vmatprep.mubr.f32.mxu0 0.0
        %3459 = vmatmul.mubr.f32.gmra.mrb[0].mxu0 %v3272
        %v3460 = vpop.f32.mrb[0].mxu0
        %v3461 = vadd.f32 0.0, %v3460
        %v3462 = vpop.f32.mrb[0].mxu0
        %3463 = vmatprep.mubr.f32.mxu0 0.0
        %3464 = vmatmul.mubr.f32.gmra.mrb[0].mxu0 %v3275
        %v3465 = vpop.f32.mrb[0].mxu0
        %v3466 = vadd.f32 0.0, %v3465
        %v3467 = vpop.f32.mrb[0].mxu0
        %3468 = vmatprep.mubr.f32.mxu0 0.0
        %3469 = vmatmul.mubr.f32.gmra.mrb[0].mxu0 %v3278
        %v3470 = vpop.f32.mrb[0].mxu0
        %v3471 = vadd.f32 0.0, %v3470
        %v3472 = vpop.f32.mrb[0].mxu0
        %3473 = vmatprep.mubr.f32.mxu0 0.0
        %3474 = vmatmul.mubr.f32.gmra.mrb[0].mxu0 %v3281
        %v3475 = vpop.f32.mrb[0].mxu0
        %v3476 = vadd.f32 0.0, %v3475
        %v3477 = vpop.f32.mrb[0].mxu0
        %3478 = vmatprep.mubr.f32.mxu0 0.0
        %3479 = vmatmul.mubr.f32.gmra.mrb[0].mxu0 %v3284
        %v3480 = vpop.f32.mrb[0].mxu0
        %v3481 = vadd.f32 0.0, %v3480
        %v3482 = vpop.f32.mrb[0].mxu0
        %3483 = vmatprep.mubr.f32.mxu0 0.0
        %3484 = vmatmul.mubr.f32.gmra.mrb[0].mxu0 %v3287
        %v3485 = vpop.f32.mrb[0].mxu0
        %v3486 = vadd.f32 0.0, %v3485
        %v3487 = vpop.f32.mrb[0].mxu0
        %3488 = vmatprep.mubr.f32.mxu0 0.0
        %3489 = vmatmul.mubr.f32.gmra.mrb[0].mxu0 %v3290
        %v3490 = vpop.f32.mrb[0].mxu0
        %v3491 = vadd.f32 0.0, %v3490
        %v3492 = vpop.f32.mrb[0].mxu0
        %3493 = vmatprep.mubr.f32.mxu0 0.0
        %3494 = vmatmul.mubr.f32.gmra.mrb[0].mxu0 %v3293
        %v3495 = vpop.f32.mrb[0].mxu0
        %v3496 = vadd.f32 0.0, %v3495
        %v3497 = vpop.f32.mrb[0].mxu0
        %3498 = vmatprep.mubr.f32.mxu0 0.0
        %3499 = vmatmul.mubr.f32.gmra.mrb[0].mxu0 %v3296
        %v3500 = vpop.f32.mrb[0].mxu0
        %v3501 = vadd.f32 0.0, %v3500
        %v3502 = vpop.f32.mrb[0].mxu0
        %3503 = vmatprep.mubr.f32.mxu0 0.0
        %3504 = vmatmul.mubr.f32.gmra.mrb[0].mxu0 %v3299
        %v3505 = vpop.f32.mrb[0].mxu0
        %v3506 = vadd.f32 0.0, %v3505
        %v3507 = vpop.f32.mrb[0].mxu0
        %3508 = vmatprep.mubr.f32.mxu0 0.0
        %3509 = vmatmul.mubr.f32.gmra.mrb[0].mxu0 %v3302
        %v3510 = vpop.f32.mrb[0].mxu0
        %v3511 = vadd.f32 0.0, %v3510
        %v3512 = vpop.f32.mrb[0].mxu0
        %3513 = vmatprep.mubr.f32.mxu0 0.0
        %3514 = vmatmul.mubr.f32.gmra.mrb[0].mxu0 %v3305
        %v3515 = vpop.f32.mrb[0].mxu0
        %v3516 = vadd.f32 0.0, %v3515
        %v3517 = vpop.f32.mrb[0].mxu0
        %3518 = vmatprep.mubr.f32.mxu0 0.0
        %3519 = vmatmul.mubr.f32.gmra.mrb[0].mxu0 %v3308
        %v3520 = vpop.f32.mrb[0].mxu0
        %v3521 = vadd.f32 0.0, %v3520
        %v3522 = vpop.f32.mrb[0].mxu0
        %3523 = vmatprep.mubr.f32.mxu0 0.0
        %3524 = vmatmul.mubr.f32.gmra.mrb[0].mxu0 %v3311
        %v3525 = vpop.f32.mrb[0].mxu0
        %v3526 = vadd.f32 0.0, %v3525
        %v3527 = vpop.f32.mrb[0].mxu0
        %3528 = vmatprep.mubr.f32.mxu0 0.0
        %3529 = vmatmul.mubr.f32.gmra.mrb[0].mxu0 %v3314
        %v3530 = vpop.f32.mrb[0].mxu0
        %v3531 = vadd.f32 0.0, %v3530
        %v3532 = vpop.f32.mrb[0].mxu0
        %3533 = vmatprep.mubr.f32.mxu0 0.0
        %3534 = vmatmul.mubr.f32.gmra.mrb[0].mxu0 %v3317
        %v3535 = vpop.f32.mrb[0].mxu0
        %v3536 = vadd.f32 0.0, %v3535
        %v3537 = vpop.f32.mrb[0].mxu0
        %3538 = vmatprep.mubr.f32.mxu0 0.0
        %3539 = vmatmul.mubr.f32.gmra.mrb[0].mxu0 %v3320
        %v3540 = vpop.f32.mrb[0].mxu0
        %v3541 = vadd.f32 0.0, %v3540
        %v3542 = vpop.f32.mrb[0].mxu0
        %3543 = vmatprep.mubr.f32.mxu0 0.0
        %3544 = vmatmul.mubr.f32.gmra.mrb[0].mxu0 %v3323
        %v3545 = vpop.f32.mrb[0].mxu0
        %v3546 = vadd.f32 0.0, %v3545
        %v3547 = vpop.f32.mrb[0].mxu0
        %3548 = vmatprep.mubr.f32.mxu0 0.0
        %3549 = vmatmul.mubr.f32.gmra.mrb[0].mxu0 %v3326
        %v3550 = vpop.f32.mrb[0].mxu0
        %v3551 = vadd.f32 0.0, %v3550
        %v3552 = vpop.f32.mrb[0].mxu0
        %3553 = vmatprep.mubr.f32.mxu0 0.0
        %3554 = vmatmul.mubr.f32.gmra.mrb[0].mxu0 %v3329
        %v3555 = vpop.f32.mrb[0].mxu0
        %v3556 = vadd.f32 0.0, %v3555
        %v3557 = vpop.f32.mrb[0].mxu0
        %3558 = vdwg.mxu0
        %v3559 = vadd.f32 %v3169, %v3401
        %v3560 = vadd.f32 %v3170, %v3406
        %v3561 = vadd.f32 %v3171, %v3411
        %v3562 = vadd.f32 %v3172, %v3416
        %v3563 = vadd.f32 %v3173, %v3421
        %v3564 = vadd.f32 %v3174, %v3426
        %v3565 = vadd.f32 %v3175, %v3431
        %v3566 = vadd.f32 %v3176, %v3436
        %v3567 = vadd.f32 %v3177, %v3441
        %v3568 = vadd.f32 %v3178, %v3446
        %v3569 = vadd.f32 %v3179, %v3451
        %v3570 = vadd.f32 %v3180, %v3456
        %v3571 = vadd.f32 %v3181, %v3461
        %v3572 = vadd.f32 %v3182, %v3466
        %v3573 = vadd.f32 %v3183, %v3471
        %v3574 = vadd.f32 %v3184, %v3476
        %v3575 = vadd.f32 %v3185, %v3481
        %v3576 = vadd.f32 %v3186, %v3486
        %v3577 = vadd.f32 %v3187, %v3491
        %v3578 = vadd.f32 %v3188, %v3496
        %v3579 = vadd.f32 %v3189, %v3501
        %v3580 = vadd.f32 %v3190, %v3506
        %v3581 = vadd.f32 %v3191, %v3511
        %v3582 = vadd.f32 %v3192, %v3516
        %v3583 = vadd.f32 %v3193, %v3521
        %v3584 = vadd.f32 %v3194, %v3526
        %v3585 = vadd.f32 %v3195, %v3531
        %v3586 = vadd.f32 %v3196, %v3536
        %v3587 = vadd.f32 %v3197, %v3541
        %v3588 = vadd.f32 %v3198, %v3546
        %v3589 = vadd.f32 %v3199, %v3551
        %v3590 = vadd.f32 %v3200, %v3556
        %v3591 = vld [vmem:[%s2810 + $0x2] sm:$0xff]
        %v3592 = vld [vmem:[%s2810 + $0xa] sm:$0xff]
        %v3593 = vld [vmem:[%s2810 + $0x1a] sm:$0xff]
        %v3594 = vld [vmem:[%s2810 + $0x22] sm:$0xff]
        %v3595 = vld [vmem:[%s2810 + $0x32] sm:$0xff]
        %v3596 = vld [vmem:[%s2810 + $0x3a] sm:$0xff]
        %v3597 = vld [vmem:[%s2810 + $0x4a] sm:$0xff]
        %v3598 = vld [vmem:[%s2810 + $0x52] sm:$0xff]
        %v3599 = vld [vmem:[%s2810 + $0x62] sm:$0xff]
        %v3600 = vld [vmem:[%s2810 + $0x6a] sm:$0xff]
        %v3601 = vld [vmem:[%s2810 + $0x7a] sm:$0xff]
        %v3602 = vld [vmem:[%s2810 + $0x82] sm:$0xff]
        %v3603 = vld [vmem:[%s2810 + $0x92] sm:$0xff]
        %v3604 = vld [vmem:[%s2810 + $0x9a] sm:$0xff]
        %v3605 = vld [vmem:[%s2810 + $0xaa] sm:$0xff]
        %v3606 = vld [vmem:[%s2810 + $0xb2] sm:$0xff]
        %v3607 = vld [vmem:[%s2810 + $0xc2] sm:$0xff]
        %v3608 = vld [vmem:[%s2810 + $0xca] sm:$0xff]
        %v3609 = vld [vmem:[%s2810 + $0xda] sm:$0xff]
        %v3610 = vld [vmem:[%s2810 + $0xe2] sm:$0xff]
        %v3611 = vld [vmem:[%s2810 + $0xf2] sm:$0xff]
        %v3612 = vld [vmem:[%s2810 + $0xfa] sm:$0xff]
        %v3613 = vld [vmem:[%s2810 + $0x10a] sm:$0xff]
        %v3614 = vld [vmem:[%s2810 + $0x112] sm:$0xff]
        %v3615 = vld [vmem:[%s2810 + $0x122] sm:$0xff]
        %v3616 = vld [vmem:[%s2810 + $0x12a] sm:$0xff]
        %v3617 = vld [vmem:[%s2810 + $0x13a] sm:$0xff]
        %v3618 = vld [vmem:[%s2810 + $0x142] sm:$0xff]
        %v3619 = vld [vmem:[%s2810 + $0x152] sm:$0xff]
        %v3620 = vld [vmem:[%s2810 + $0x15a] sm:$0xff]
        %v3621 = vld [vmem:[%s2810 + $0x16a] sm:$0xff]
        %v3622 = vld [vmem:[%s2810 + $0x172] sm:$0xff]
        %s3623 = scalar_lea.vmem %s1, 32
        %v3624 = vld [vmem:[%s3623] sm:$0xf]
        %v3626 = vsel %vm306, %v3591, 0
        %v3629 = vsel %vm306, %v3592, 0
        %v3632 = vsel %vm306, %v3593, 0
        %v3635 = vsel %vm306, %v3594, 0
        %v3638 = vsel %vm306, %v3595, 0
        %v3641 = vsel %vm306, %v3596, 0
        %v3644 = vsel %vm306, %v3597, 0
        %v3647 = vsel %vm306, %v3598, 0
        %v3650 = vsel %vm306, %v3599, 0
        %v3653 = vsel %vm306, %v3600, 0
        %v3656 = vsel %vm306, %v3601, 0
        %v3659 = vsel %vm306, %v3602, 0
        %v3662 = vsel %vm306, %v3603, 0
        %v3665 = vsel %vm306, %v3604, 0
        %v3668 = vsel %vm306, %v3605, 0
        %v3671 = vsel %vm306, %v3606, 0
        %v3674 = vsel %vm306, %v3607, 0
        %v3677 = vsel %vm306, %v3608, 0
        %v3680 = vsel %vm306, %v3609, 0
        %v3683 = vsel %vm306, %v3610, 0
        %v3686 = vsel %vm306, %v3611, 0
        %v3689 = vsel %vm306, %v3612, 0
        %v3692 = vsel %vm306, %v3613, 0
        %v3695 = vsel %vm306, %v3614, 0
        %v3698 = vsel %vm306, %v3615, 0
        %v3701 = vsel %vm306, %v3616, 0
        %v3704 = vsel %vm306, %v3617, 0
        %v3707 = vsel %vm306, %v3618, 0
        %v3710 = vsel %vm306, %v3619, 0
        %v3713 = vsel %vm306, %v3620, 0
        %v3716 = vsel %vm306, %v3621, 0
        %v3719 = vsel %vm306, %v3622, 0
        %v3722 = vsel %vm593, %v3624, 0
        %3724 = vmatprep.subr.mxu0 0.0
        %3725 = vmatpush1.msra.mxu0 %v3722
        %3726 = vmatprep.subr.mxu0 0.0
        %3727 = vmatpush1.msra.mxu0 0.0
        %3728 = vmatprep.subr.mxu0 0.0
        %3729 = vmatpush1.msra.mxu0 0.0
        %3730 = vmatprep.subr.mxu0 0.0
        %3731 = vmatpush1.msra.mxu0 0.0
        %3732 = vmatprep.subr.mxu0 0.0
        %3733 = vmatpush1.msra.mxu0 0.0
        %3734 = vmatprep.subr.mxu0 0.0
        %3735 = vmatpush1.msra.mxu0 0.0
        %3736 = vmatprep.subr.mxu0 0.0
        %3737 = vmatpush1.msra.mxu0 0.0
        %3738 = vmatprep.subr.mxu0 0.0
        %3739 = vmatpush1.msra.mxu0 0.0
        %3740 = vmatprep.subr.mxu0 0.0
        %3741 = vmatpush1.msra.mxu0 0.0
        %3742 = vmatprep.subr.mxu0 0.0
        %3743 = vmatpush1.msra.mxu0 0.0
        %3744 = vmatprep.subr.mxu0 0.0
        %3745 = vmatpush1.msra.mxu0 0.0
        %3746 = vmatprep.subr.mxu0 0.0
        %3747 = vmatpush1.msra.mxu0 0.0
        %3748 = vmatprep.subr.mxu0 0.0
        %3749 = vmatpush1.msra.mxu0 0.0
        %3750 = vmatprep.subr.mxu0 0.0
        %3751 = vmatpush1.msra.mxu0 0.0
        %3752 = vmatprep.subr.mxu0 0.0
        %3753 = vmatpush1.msra.mxu0 0.0
        %3754 = vmatprep.subr.mxu0 0.0
        %3755 = vmatpush1.msra.mxu0 0.0
        %3756 = vmatprep.subr.mxu0 0.0
        %3757 = vmatpush1.msra.mxu0 0.0
        %3758 = vmatprep.subr.mxu0 0.0
        %3759 = vmatpush1.msra.mxu0 0.0
        %3760 = vmatprep.subr.mxu0 0.0
        %3761 = vmatpush1.msra.mxu0 0.0
        %3762 = vmatprep.subr.mxu0 0.0
        %3763 = vmatpush1.msra.mxu0 0.0
        %3764 = vmatprep.subr.mxu0 0.0
        %3765 = vmatpush1.msra.mxu0 0.0
        %3766 = vmatprep.subr.mxu0 0.0
        %3767 = vmatpush1.msra.mxu0 0.0
        %3768 = vmatprep.subr.mxu0 0.0
        %3769 = vmatpush1.msra.mxu0 0.0
        %3770 = vmatprep.subr.mxu0 0.0
        %3771 = vmatpush1.msra.mxu0 0.0
        %3772 = vmatprep.subr.mxu0 0.0
        %3773 = vmatpush1.msra.mxu0 0.0
        %3774 = vmatprep.subr.mxu0 0.0
        %3775 = vmatpush1.msra.mxu0 0.0
        %3776 = vmatprep.subr.mxu0 0.0
        %3777 = vmatpush1.msra.mxu0 0.0
        %3778 = vmatprep.subr.mxu0 0.0
        %3779 = vmatpush1.msra.mxu0 0.0
        %3780 = vmatprep.subr.mxu0 0.0
        %3781 = vmatpush1.msra.mxu0 0.0
        %3782 = vmatprep.subr.mxu0 0.0
        %3783 = vmatpush1.msra.mxu0 0.0
        %3784 = vmatprep.subr.mxu0 0.0
        %3785 = vmatpush1.msra.mxu0 0.0
        %3786 = vmatprep.subr.mxu0 0.0
        %3787 = vmatpush1.msra.mxu0 0.0
        %3788 = vmatprep.mubr.f32.mxu0 0.0
        %3789 = vmatmul.mubr.f32.gmra.mrb[0].mxu0 %v3626
        %v3790 = vpop.f32.mrb[0].mxu0
        %v3791 = vadd.f32 0.0, %v3790
        %v3792 = vpop.f32.mrb[0].mxu0
        %3793 = vmatprep.mubr.f32.mxu0 0.0
        %3794 = vmatmul.mubr.f32.gmra.mrb[0].mxu0 %v3629
        %v3795 = vpop.f32.mrb[0].mxu0
        %v3796 = vadd.f32 0.0, %v3795
        %v3797 = vpop.f32.mrb[0].mxu0
        %3798 = vmatprep.mubr.f32.mxu0 0.0
        %3799 = vmatmul.mubr.f32.gmra.mrb[0].mxu0 %v3632
        %v3800 = vpop.f32.mrb[0].mxu0
        %v3801 = vadd.f32 0.0, %v3800
        %v3802 = vpop.f32.mrb[0].mxu0
        %3803 = vmatprep.mubr.f32.mxu0 0.0
        %3804 = vmatmul.mubr.f32.gmra.mrb[0].mxu0 %v3635
        %v3805 = vpop.f32.mrb[0].mxu0
        %v3806 = vadd.f32 0.0, %v3805
        %v3807 = vpop.f32.mrb[0].mxu0
        %3808 = vmatprep.mubr.f32.mxu0 0.0
        %3809 = vmatmul.mubr.f32.gmra.mrb[0].mxu0 %v3638
        %v3810 = vpop.f32.mrb[0].mxu0
        %v3811 = vadd.f32 0.0, %v3810
        %v3812 = vpop.f32.mrb[0].mxu0
        %3813 = vmatprep.mubr.f32.mxu0 0.0
        %3814 = vmatmul.mubr.f32.gmra.mrb[0].mxu0 %v3641
        %v3815 = vpop.f32.mrb[0].mxu0
        %v3816 = vadd.f32 0.0, %v3815
        %v3817 = vpop.f32.mrb[0].mxu0
        %3818 = vmatprep.mubr.f32.mxu0 0.0
        %3819 = vmatmul.mubr.f32.gmra.mrb[0].mxu0 %v3644
        %v3820 = vpop.f32.mrb[0].mxu0
        %v3821 = vadd.f32 0.0, %v3820
        %v3822 = vpop.f32.mrb[0].mxu0
        %3823 = vmatprep.mubr.f32.mxu0 0.0
        %3824 = vmatmul.mubr.f32.gmra.mrb[0].mxu0 %v3647
        %v3825 = vpop.f32.mrb[0].mxu0
        %v3826 = vadd.f32 0.0, %v3825
        %v3827 = vpop.f32.mrb[0].mxu0
        %3828 = vmatprep.mubr.f32.mxu0 0.0
        %3829 = vmatmul.mubr.f32.gmra.mrb[0].mxu0 %v3650
        %v3830 = vpop.f32.mrb[0].mxu0
        %v3831 = vadd.f32 0.0, %v3830
        %v3832 = vpop.f32.mrb[0].mxu0
        %3833 = vmatprep.mubr.f32.mxu0 0.0
        %3834 = vmatmul.mubr.f32.gmra.mrb[0].mxu0 %v3653
        %v3835 = vpop.f32.mrb[0].mxu0
        %v3836 = vadd.f32 0.0, %v3835
        %v3837 = vpop.f32.mrb[0].mxu0
        %3838 = vmatprep.mubr.f32.mxu0 0.0
        %3839 = vmatmul.mubr.f32.gmra.mrb[0].mxu0 %v3656
        %v3840 = vpop.f32.mrb[0].mxu0
        %v3841 = vadd.f32 0.0, %v3840
        %v3842 = vpop.f32.mrb[0].mxu0
        %3843 = vmatprep.mubr.f32.mxu0 0.0
        %3844 = vmatmul.mubr.f32.gmra.mrb[0].mxu0 %v3659
        %v3845 = vpop.f32.mrb[0].mxu0
        %v3846 = vadd.f32 0.0, %v3845
        %v3847 = vpop.f32.mrb[0].mxu0
        %3848 = vmatprep.mubr.f32.mxu0 0.0
        %3849 = vmatmul.mubr.f32.gmra.mrb[0].mxu0 %v3662
        %v3850 = vpop.f32.mrb[0].mxu0
        %v3851 = vadd.f32 0.0, %v3850
        %v3852 = vpop.f32.mrb[0].mxu0
        %3853 = vmatprep.mubr.f32.mxu0 0.0
        %3854 = vmatmul.mubr.f32.gmra.mrb[0].mxu0 %v3665
        %v3855 = vpop.f32.mrb[0].mxu0
        %v3856 = vadd.f32 0.0, %v3855
        %v3857 = vpop.f32.mrb[0].mxu0
        %3858 = vmatprep.mubr.f32.mxu0 0.0
        %3859 = vmatmul.mubr.f32.gmra.mrb[0].mxu0 %v3668
        %v3860 = vpop.f32.mrb[0].mxu0
        %v3861 = vadd.f32 0.0, %v3860
        %v3862 = vpop.f32.mrb[0].mxu0
        %3863 = vmatprep.mubr.f32.mxu0 0.0
        %3864 = vmatmul.mubr.f32.gmra.mrb[0].mxu0 %v3671
        %v3865 = vpop.f32.mrb[0].mxu0
        %v3866 = vadd.f32 0.0, %v3865
        %v3867 = vpop.f32.mrb[0].mxu0
        %3868 = vmatprep.mubr.f32.mxu0 0.0
        %3869 = vmatmul.mubr.f32.gmra.mrb[0].mxu0 %v3674
        %v3870 = vpop.f32.mrb[0].mxu0
        %v3871 = vadd.f32 0.0, %v3870
        %v3872 = vpop.f32.mrb[0].mxu0
        %3873 = vmatprep.mubr.f32.mxu0 0.0
        %3874 = vmatmul.mubr.f32.gmra.mrb[0].mxu0 %v3677
        %v3875 = vpop.f32.mrb[0].mxu0
        %v3876 = vadd.f32 0.0, %v3875
        %v3877 = vpop.f32.mrb[0].mxu0
        %3878 = vmatprep.mubr.f32.mxu0 0.0
        %3879 = vmatmul.mubr.f32.gmra.mrb[0].mxu0 %v3680
        %v3880 = vpop.f32.mrb[0].mxu0
        %v3881 = vadd.f32 0.0, %v3880
        %v3882 = vpop.f32.mrb[0].mxu0
        %3883 = vmatprep.mubr.f32.mxu0 0.0
        %3884 = vmatmul.mubr.f32.gmra.mrb[0].mxu0 %v3683
        %v3885 = vpop.f32.mrb[0].mxu0
        %v3886 = vadd.f32 0.0, %v3885
        %v3887 = vpop.f32.mrb[0].mxu0
        %3888 = vmatprep.mubr.f32.mxu0 0.0
        %3889 = vmatmul.mubr.f32.gmra.mrb[0].mxu0 %v3686
        %v3890 = vpop.f32.mrb[0].mxu0
        %v3891 = vadd.f32 0.0, %v3890
        %v3892 = vpop.f32.mrb[0].mxu0
        %3893 = vmatprep.mubr.f32.mxu0 0.0
        %3894 = vmatmul.mubr.f32.gmra.mrb[0].mxu0 %v3689
        %v3895 = vpop.f32.mrb[0].mxu0
        %v3896 = vadd.f32 0.0, %v3895
        %v3897 = vpop.f32.mrb[0].mxu0
        %3898 = vmatprep.mubr.f32.mxu0 0.0
        %3899 = vmatmul.mubr.f32.gmra.mrb[0].mxu0 %v3692
        %v3900 = vpop.f32.mrb[0].mxu0
        %v3901 = vadd.f32 0.0, %v3900
        %v3902 = vpop.f32.mrb[0].mxu0
        %3903 = vmatprep.mubr.f32.mxu0 0.0
        %3904 = vmatmul.mubr.f32.gmra.mrb[0].mxu0 %v3695
        %v3905 = vpop.f32.mrb[0].mxu0
        %v3906 = vadd.f32 0.0, %v3905
        %v3907 = vpop.f32.mrb[0].mxu0
        %3908 = vmatprep.mubr.f32.mxu0 0.0
        %3909 = vmatmul.mubr.f32.gmra.mrb[0].mxu0 %v3698
        %v3910 = vpop.f32.mrb[0].mxu0
        %v3911 = vadd.f32 0.0, %v3910
        %v3912 = vpop.f32.mrb[0].mxu0
        %3913 = vmatprep.mubr.f32.mxu0 0.0
        %3914 = vmatmul.mubr.f32.gmra.mrb[0].mxu0 %v3701
        %v3915 = vpop.f32.mrb[0].mxu0
        %v3916 = vadd.f32 0.0, %v3915
        %v3917 = vpop.f32.mrb[0].mxu0
        %3918 = vmatprep.mubr.f32.mxu0 0.0
        %3919 = vmatmul.mubr.f32.gmra.mrb[0].mxu0 %v3704
        %v3920 = vpop.f32.mrb[0].mxu0
        %v3921 = vadd.f32 0.0, %v3920
        %v3922 = vpop.f32.mrb[0].mxu0
        %3923 = vmatprep.mubr.f32.mxu0 0.0
        %3924 = vmatmul.mubr.f32.gmra.mrb[0].mxu0 %v3707
        %v3925 = vpop.f32.mrb[0].mxu0
        %v3926 = vadd.f32 0.0, %v3925
        %v3927 = vpop.f32.mrb[0].mxu0
        %3928 = vmatprep.mubr.f32.mxu0 0.0
        %3929 = vmatmul.mubr.f32.gmra.mrb[0].mxu0 %v3710
        %v3930 = vpop.f32.mrb[0].mxu0
        %v3931 = vadd.f32 0.0, %v3930
        %v3932 = vpop.f32.mrb[0].mxu0
        %3933 = vmatprep.mubr.f32.mxu0 0.0
        %3934 = vmatmul.mubr.f32.gmra.mrb[0].mxu0 %v3713
        %v3935 = vpop.f32.mrb[0].mxu0
        %v3936 = vadd.f32 0.0, %v3935
        %v3937 = vpop.f32.mrb[0].mxu0
        %3938 = vmatprep.mubr.f32.mxu0 0.0
        %3939 = vmatmul.mubr.f32.gmra.mrb[0].mxu0 %v3716
        %v3940 = vpop.f32.mrb[0].mxu0
        %v3941 = vadd.f32 0.0, %v3940
        %v3942 = vpop.f32.mrb[0].mxu0
        %3943 = vmatprep.mubr.f32.mxu0 0.0
        %3944 = vmatmul.mubr.f32.gmra.mrb[0].mxu0 %v3719
        %v3945 = vpop.f32.mrb[0].mxu0
        %v3946 = vadd.f32 0.0, %v3945
        %v3947 = vpop.f32.mrb[0].mxu0
        %3948 = vdwg.mxu0
        %v3949 = vadd.f32 %v3559, %v3791
        %v3950 = vadd.f32 %v3560, %v3796
        %v3951 = vadd.f32 %v3561, %v3801
        %v3952 = vadd.f32 %v3562, %v3806
        %v3953 = vadd.f32 %v3563, %v3811
        %v3954 = vadd.f32 %v3564, %v3816
        %v3955 = vadd.f32 %v3565, %v3821
        %v3956 = vadd.f32 %v3566, %v3826
        %v3957 = vadd.f32 %v3567, %v3831
        %v3958 = vadd.f32 %v3568, %v3836
        %v3959 = vadd.f32 %v3569, %v3841
        %v3960 = vadd.f32 %v3570, %v3846
        %v3961 = vadd.f32 %v3571, %v3851
        %v3962 = vadd.f32 %v3572, %v3856
        %v3963 = vadd.f32 %v3573, %v3861
        %v3964 = vadd.f32 %v3574, %v3866
        %v3965 = vadd.f32 %v3575, %v3871
        %v3966 = vadd.f32 %v3576, %v3876
        %v3967 = vadd.f32 %v3577, %v3881
        %v3968 = vadd.f32 %v3578, %v3886
        %v3969 = vadd.f32 %v3579, %v3891
        %v3970 = vadd.f32 %v3580, %v3896
        %v3971 = vadd.f32 %v3581, %v3901
        %v3972 = vadd.f32 %v3582, %v3906
        %v3973 = vadd.f32 %v3583, %v3911
        %v3974 = vadd.f32 %v3584, %v3916
        %v3975 = vadd.f32 %v3585, %v3921
        %v3976 = vadd.f32 %v3586, %v3926
        %v3977 = vadd.f32 %v3587, %v3931
        %v3978 = vadd.f32 %v3588, %v3936
        %v3979 = vadd.f32 %v3589, %v3941
        %v3980 = vadd.f32 %v3590, %v3946
        %v3981 = vmax.f32 %v3949, 0.0
        %v3982 = vmax.f32 %v3950, 0.0
        %v3983 = vmax.f32 %v3951, 0.0
        %v3984 = vmax.f32 %v3952, 0.0
        %v3985 = vmax.f32 %v3953, 0.0
        %v3986 = vmax.f32 %v3954, 0.0
        %v3987 = vmax.f32 %v3955, 0.0
        %v3988 = vmax.f32 %v3956, 0.0
        %v3989 = vmax.f32 %v3957, 0.0
        %v3990 = vmax.f32 %v3958, 0.0
        %v3991 = vmax.f32 %v3959, 0.0
        %v3992 = vmax.f32 %v3960, 0.0
        %v3993 = vmax.f32 %v3961, 0.0
        %v3994 = vmax.f32 %v3962, 0.0
        %v3995 = vmax.f32 %v3963, 0.0
        %v3996 = vmax.f32 %v3964, 0.0
        %v3997 = vmax.f32 %v3965, 0.0
        %v3998 = vmax.f32 %v3966, 0.0
        %v3999 = vmax.f32 %v3967, 0.0
        %v4000 = vmax.f32 %v3968, 0.0
        %v4001 = vmax.f32 %v3969, 0.0
        %v4002 = vmax.f32 %v3970, 0.0
        %v4003 = vmax.f32 %v3971, 0.0
        %v4004 = vmax.f32 %v3972, 0.0
        %v4005 = vmax.f32 %v3973, 0.0
        %v4006 = vmax.f32 %v3974, 0.0
        %v4007 = vmax.f32 %v3975, 0.0
        %v4008 = vmax.f32 %v3976, 0.0
        %v4009 = vmax.f32 %v3977, 0.0
        %v4010 = vmax.f32 %v3978, 0.0
        %v4011 = vmax.f32 %v3979, 0.0
        %v4012 = vmax.f32 %v3980, 0.0
        %s4013 = scalar_lea.vmem [#allocation3], 24
        %4014 = vst.msk [vmem:[%s4013 + $0x1] sm:$0xff] %vm352, %v3981
        %4015 = vst.msk [vmem:[%s4013 + $0x9] sm:$0xff] %vm352, %v3982
        %4016 = vst.msk [vmem:[%s4013 + $0x19] sm:$0xff] %vm352, %v3983
        %4017 = vst.msk [vmem:[%s4013 + $0x21] sm:$0xff] %vm352, %v3984
        %4018 = vst.msk [vmem:[%s4013 + $0x31] sm:$0xff] %vm352, %v3985
        %4019 = vst.msk [vmem:[%s4013 + $0x39] sm:$0xff] %vm352, %v3986
        %4020 = vst.msk [vmem:[%s4013 + $0x49] sm:$0xff] %vm352, %v3987
        %4021 = vst.msk [vmem:[%s4013 + $0x51] sm:$0xff] %vm352, %v3988
        %4022 = vst.msk [vmem:[%s4013 + $0x61] sm:$0xff] %vm352, %v3989
        %4023 = vst.msk [vmem:[%s4013 + $0x69] sm:$0xff] %vm352, %v3990
        %4024 = vst.msk [vmem:[%s4013 + $0x79] sm:$0xff] %vm352, %v3991
        %4025 = vst.msk [vmem:[%s4013 + $0x81] sm:$0xff] %vm352, %v3992
        %4026 = vst.msk [vmem:[%s4013 + $0x91] sm:$0xff] %vm352, %v3993
        %4027 = vst.msk [vmem:[%s4013 + $0x99] sm:$0xff] %vm352, %v3994
        %4028 = vst.msk [vmem:[%s4013 + $0xa9] sm:$0xff] %vm352, %v3995
        %4029 = vst.msk [vmem:[%s4013 + $0xb1] sm:$0xff] %vm352, %v3996
        %4030 = vst.msk [vmem:[%s4013 + $0xc1] sm:$0xff] %vm352, %v3997
        %4031 = vst.msk [vmem:[%s4013 + $0xc9] sm:$0xff] %vm352, %v3998
        %4032 = vst.msk [vmem:[%s4013 + $0xd9] sm:$0xff] %vm352, %v3999
        %4033 = vst.msk [vmem:[%s4013 + $0xe1] sm:$0xff] %vm352, %v4000
        %4034 = vst.msk [vmem:[%s4013 + $0xf1] sm:$0xff] %vm352, %v4001
        %4035 = vst.msk [vmem:[%s4013 + $0xf9] sm:$0xff] %vm352, %v4002
        %4036 = vst.msk [vmem:[%s4013 + $0x109] sm:$0xff] %vm352, %v4003
        %4037 = vst.msk [vmem:[%s4013 + $0x111] sm:$0xff] %vm352, %v4004
        %4038 = vst.msk [vmem:[%s4013 + $0x121] sm:$0xff] %vm352, %v4005
        %4039 = vst.msk [vmem:[%s4013 + $0x129] sm:$0xff] %vm352, %v4006
        %4040 = vst.msk [vmem:[%s4013 + $0x139] sm:$0xff] %vm352, %v4007
        %4041 = vst.msk [vmem:[%s4013 + $0x141] sm:$0xff] %vm352, %v4008
        %4042 = vst.msk [vmem:[%s4013 + $0x151] sm:$0xff] %vm352, %v4009
        %4043 = vst.msk [vmem:[%s4013 + $0x159] sm:$0xff] %vm352, %v4010
        %4044 = vst.msk [vmem:[%s4013 + $0x169] sm:$0xff] %vm352, %v4011
        %4045 = vst.msk [vmem:[%s4013 + $0x171] sm:$0xff] %vm352, %v4012
      $region52: #{tpu_custom_call.1} parent=47 // pred_fallthru
        _
      %s4046 = smul.u32 %s23, 8
      %v4047 = vld [vmem:[%s4] sm:$0x1]
      %s4048 = smul.u32 %s4046, 24
      %s4049 = scalar_lea.vmem [#allocation3], %s4048
      %v4050 = vld [vmem:[%s4049] sm:$0xff]
      %v4051 = vld [vmem:[%s4049 + $0x8] sm:$0xff]
      %v4052 = vld [vmem:[%s4049 + $0x18] sm:$0xff]
      %v4053 = vld [vmem:[%s4049 + $0x20] sm:$0xff]
      %v4054 = vld [vmem:[%s4049 + $0x30] sm:$0xff]
      %v4055 = vld [vmem:[%s4049 + $0x38] sm:$0xff]
      %v4056 = vld [vmem:[%s4049 + $0x48] sm:$0xff]
      %v4057 = vld [vmem:[%s4049 + $0x50] sm:$0xff]
      %v4058 = vld [vmem:[%s4049 + $0x60] sm:$0xff]
      %v4059 = vld [vmem:[%s4049 + $0x68] sm:$0xff]
      %v4060 = vld [vmem:[%s4049 + $0x78] sm:$0xff]
      %v4061 = vld [vmem:[%s4049 + $0x80] sm:$0xff]
      %v4062 = vld [vmem:[%s4049 + $0x90] sm:$0xff]
      %v4063 = vld [vmem:[%s4049 + $0x98] sm:$0xff]
      %v4064 = vld [vmem:[%s4049 + $0xa8] sm:$0xff]
      %v4065 = vld [vmem:[%s4049 + $0xb0] sm:$0xff]
      %v4066 = vld [vmem:[%s3] sm:$0xff]
      %vm4067 = vcmask 64512
      %v4069 = vsel %vm4067, %v4050, 0
      %v4072 = vsel %vm4067, %v4051, 0
      %v4075 = vsel %vm4067, %v4052, 0
      %v4078 = vsel %vm4067, %v4053, 0
      %v4081 = vsel %vm4067, %v4054, 0
      %v4084 = vsel %vm4067, %v4055, 0
      %v4087 = vsel %vm4067, %v4056, 0
      %v4090 = vsel %vm4067, %v4057, 0
      %v4093 = vsel %vm4067, %v4058, 0
      %v4096 = vsel %vm4067, %v4059, 0
      %v4099 = vsel %vm4067, %v4060, 0
      %v4102 = vsel %vm4067, %v4061, 0
      %v4105 = vsel %vm4067, %v4062, 0
      %v4108 = vsel %vm4067, %v4063, 0
      %v4111 = vsel %vm4067, %v4064, 0
      %v4114 = vsel %vm4067, %v4065, 0
      %4116 = vmatprep.subr.mxu0 0.0
      %4117 = vmatpush1.msra.mxu0 %v4066
      %4118 = vmatprep.subr.mxu0 0.0
      %4119 = vmatpush1.msra.mxu0 0.0
      %4120 = vmatprep.subr.mxu0 0.0
      %4121 = vmatpush1.msra.mxu0 0.0
      %4122 = vmatprep.subr.mxu0 0.0
      %4123 = vmatpush1.msra.mxu0 0.0
      %4124 = vmatprep.subr.mxu0 0.0
      %4125 = vmatpush1.msra.mxu0 0.0
      %4126 = vmatprep.subr.mxu0 0.0
      %4127 = vmatpush1.msra.mxu0 0.0
      %4128 = vmatprep.subr.mxu0 0.0
      %4129 = vmatpush1.msra.mxu0 0.0
      %4130 = vmatprep.subr.mxu0 0.0
      %4131 = vmatpush1.msra.mxu0 0.0
      %4132 = vmatprep.subr.mxu0 0.0
      %4133 = vmatpush1.msra.mxu0 0.0
      %4134 = vmatprep.subr.mxu0 0.0
      %4135 = vmatpush1.msra.mxu0 0.0
      %4136 = vmatprep.subr.mxu0 0.0
      %4137 = vmatpush1.msra.mxu0 0.0
      %4138 = vmatprep.subr.mxu0 0.0
      %4139 = vmatpush1.msra.mxu0 0.0
      %4140 = vmatprep.subr.mxu0 0.0
      %4141 = vmatpush1.msra.mxu0 0.0
      %4142 = vmatprep.subr.mxu0 0.0
      %4143 = vmatpush1.msra.mxu0 0.0
      %4144 = vmatprep.subr.mxu0 0.0
      %4145 = vmatpush1.msra.mxu0 0.0
      %4146 = vmatprep.subr.mxu0 0.0
      %4147 = vmatpush1.msra.mxu0 0.0
      %4148 = vmatprep.subr.mxu0 0.0
      %4149 = vmatpush1.msra.mxu0 0.0
      %4150 = vmatprep.subr.mxu0 0.0
      %4151 = vmatpush1.msra.mxu0 0.0
      %4152 = vmatprep.subr.mxu0 0.0
      %4153 = vmatpush1.msra.mxu0 0.0
      %4154 = vmatprep.subr.mxu0 0.0
      %4155 = vmatpush1.msra.mxu0 0.0
      %4156 = vmatprep.subr.mxu0 0.0
      %4157 = vmatpush1.msra.mxu0 0.0
      %4158 = vmatprep.subr.mxu0 0.0
      %4159 = vmatpush1.msra.mxu0 0.0
      %4160 = vmatprep.subr.mxu0 0.0
      %4161 = vmatpush1.msra.mxu0 0.0
      %4162 = vmatprep.subr.mxu0 0.0
      %4163 = vmatpush1.msra.mxu0 0.0
      %4164 = vmatprep.subr.mxu0 0.0
      %4165 = vmatpush1.msra.mxu0 0.0
      %4166 = vmatprep.subr.mxu0 0.0
      %4167 = vmatpush1.msra.mxu0 0.0
      %4168 = vmatprep.subr.mxu0 0.0
      %4169 = vmatpush1.msra.mxu0 0.0
      %4170 = vmatprep.subr.mxu0 0.0
      %4171 = vmatpush1.msra.mxu0 0.0
      %4172 = vmatprep.subr.mxu0 0.0
      %4173 = vmatpush1.msra.mxu0 0.0
      %4174 = vmatprep.subr.mxu0 0.0
      %4175 = vmatpush1.msra.mxu0 0.0
      %4176 = vmatprep.subr.mxu0 0.0
      %4177 = vmatpush1.msra.mxu0 0.0
      %4178 = vmatprep.subr.mxu0 0.0
      %4179 = vmatpush1.msra.mxu0 0.0
      %4180 = vmatprep.mubr.f32.mxu0 0.0
      %4181 = vmatmul.mubr.f32.gmra.mrb[0].mxu0 %v4069
      %v4182 = vpop.f32.mrb[0].mxu0
      %v4183 = vadd.f32 0.0, %v4182
      %v4184 = vpop.f32.mrb[0].mxu0
      %4185 = vmatprep.mubr.f32.mxu0 0.0
      %4186 = vmatmul.mubr.f32.gmra.mrb[0].mxu0 %v4072
      %v4187 = vpop.f32.mrb[0].mxu0
      %v4188 = vadd.f32 0.0, %v4187
      %v4189 = vpop.f32.mrb[0].mxu0
      %4190 = vmatprep.mubr.f32.mxu0 0.0
      %4191 = vmatmul.mubr.f32.gmra.mrb[0].mxu0 %v4075
      %v4192 = vpop.f32.mrb[0].mxu0
      %v4193 = vadd.f32 0.0, %v4192
      %v4194 = vpop.f32.mrb[0].mxu0
      %4195 = vmatprep.mubr.f32.mxu0 0.0
      %4196 = vmatmul.mubr.f32.gmra.mrb[0].mxu0 %v4078
      %v4197 = vpop.f32.mrb[0].mxu0
      %v4198 = vadd.f32 0.0, %v4197
      %v4199 = vpop.f32.mrb[0].mxu0
      %4200 = vmatprep.mubr.f32.mxu0 0.0
      %4201 = vmatmul.mubr.f32.gmra.mrb[0].mxu0 %v4081
      %v4202 = vpop.f32.mrb[0].mxu0
      %v4203 = vadd.f32 0.0, %v4202
      %v4204 = vpop.f32.mrb[0].mxu0
      %4205 = vmatprep.mubr.f32.mxu0 0.0
      %4206 = vmatmul.mubr.f32.gmra.mrb[0].mxu0 %v4084
      %v4207 = vpop.f32.mrb[0].mxu0
      %v4208 = vadd.f32 0.0, %v4207
      %v4209 = vpop.f32.mrb[0].mxu0
      %4210 = vmatprep.mubr.f32.mxu0 0.0
      %4211 = vmatmul.mubr.f32.gmra.mrb[0].mxu0 %v4087
      %v4212 = vpop.f32.mrb[0].mxu0
      %v4213 = vadd.f32 0.0, %v4212
      %v4214 = vpop.f32.mrb[0].mxu0
      %4215 = vmatprep.mubr.f32.mxu0 0.0
      %4216 = vmatmul.mubr.f32.gmra.mrb[0].mxu0 %v4090
      %v4217 = vpop.f32.mrb[0].mxu0
      %v4218 = vadd.f32 0.0, %v4217
      %v4219 = vpop.f32.mrb[0].mxu0
      %4220 = vmatprep.mubr.f32.mxu0 0.0
      %4221 = vmatmul.mubr.f32.gmra.mrb[0].mxu0 %v4093
      %v4222 = vpop.f32.mrb[0].mxu0
      %v4223 = vadd.f32 0.0, %v4222
      %v4224 = vpop.f32.mrb[0].mxu0
      %4225 = vmatprep.mubr.f32.mxu0 0.0
      %4226 = vmatmul.mubr.f32.gmra.mrb[0].mxu0 %v4096
      %v4227 = vpop.f32.mrb[0].mxu0
      %v4228 = vadd.f32 0.0, %v4227
      %v4229 = vpop.f32.mrb[0].mxu0
      %4230 = vmatprep.mubr.f32.mxu0 0.0
      %4231 = vmatmul.mubr.f32.gmra.mrb[0].mxu0 %v4099
      %v4232 = vpop.f32.mrb[0].mxu0
      %v4233 = vadd.f32 0.0, %v4232
      %v4234 = vpop.f32.mrb[0].mxu0
      %4235 = vmatprep.mubr.f32.mxu0 0.0
      %4236 = vmatmul.mubr.f32.gmra.mrb[0].mxu0 %v4102
      %v4237 = vpop.f32.mrb[0].mxu0
      %v4238 = vadd.f32 0.0, %v4237
      %v4239 = vpop.f32.mrb[0].mxu0
      %4240 = vmatprep.mubr.f32.mxu0 0.0
      %4241 = vmatmul.mubr.f32.gmra.mrb[0].mxu0 %v4105
      %v4242 = vpop.f32.mrb[0].mxu0
      %v4243 = vadd.f32 0.0, %v4242
      %v4244 = vpop.f32.mrb[0].mxu0
      %4245 = vmatprep.mubr.f32.mxu0 0.0
      %4246 = vmatmul.mubr.f32.gmra.mrb[0].mxu0 %v4108
      %v4247 = vpop.f32.mrb[0].mxu0
      %v4248 = vadd.f32 0.0, %v4247
      %v4249 = vpop.f32.mrb[0].mxu0
      %4250 = vmatprep.mubr.f32.mxu0 0.0
      %4251 = vmatmul.mubr.f32.gmra.mrb[0].mxu0 %v4111
      %v4252 = vpop.f32.mrb[0].mxu0
      %v4253 = vadd.f32 0.0, %v4252
      %v4254 = vpop.f32.mrb[0].mxu0
      %4255 = vmatprep.mubr.f32.mxu0 0.0
      %4256 = vmatmul.mubr.f32.gmra.mrb[0].mxu0 %v4114
      %v4257 = vpop.f32.mrb[0].mxu0
      %v4258 = vadd.f32 0.0, %v4257
      %v4259 = vpop.f32.mrb[0].mxu0
      %4260 = vdwg.mxu0
      %v4262 = vlaneseq
      %v4263 = vshrl.u32 %v4262, 7
      %v4264 = vsub.s32 0, %v4263
      %v4265 = vrot.slane %v4047, %v4264
      %v4267 = vadd.f32 %v4265, %v4183
      %v4268 = vadd.f32 %v4265, %v4188
      %v4269 = vadd.f32 %v4265, %v4193
      %v4270 = vadd.f32 %v4265, %v4198
      %v4271 = vadd.f32 %v4265, %v4203
      %v4272 = vadd.f32 %v4265, %v4208
      %v4273 = vadd.f32 %v4265, %v4213
      %v4274 = vadd.f32 %v4265, %v4218
      %v4275 = vadd.f32 %v4265, %v4223
      %v4276 = vadd.f32 %v4265, %v4228
      %v4277 = vadd.f32 %v4265, %v4233
      %v4278 = vadd.f32 %v4265, %v4238
      %v4279 = vadd.f32 %v4265, %v4243
      %v4280 = vadd.f32 %v4265, %v4248
      %v4281 = vadd.f32 %v4265, %v4253
      %v4282 = vadd.f32 %v4265, %v4258
      %v4283 = vld [vmem:[%s4049 + $0x1] sm:$0xff]
      %v4284 = vld [vmem:[%s4049 + $0x9] sm:$0xff]
      %v4285 = vld [vmem:[%s4049 + $0x19] sm:$0xff]
      %v4286 = vld [vmem:[%s4049 + $0x21] sm:$0xff]
      %v4287 = vld [vmem:[%s4049 + $0x31] sm:$0xff]
      %v4288 = vld [vmem:[%s4049 + $0x39] sm:$0xff]
      %v4289 = vld [vmem:[%s4049 + $0x49] sm:$0xff]
      %v4290 = vld [vmem:[%s4049 + $0x51] sm:$0xff]
      %v4291 = vld [vmem:[%s4049 + $0x61] sm:$0xff]
      %v4292 = vld [vmem:[%s4049 + $0x69] sm:$0xff]
      %v4293 = vld [vmem:[%s4049 + $0x79] sm:$0xff]
      %v4294 = vld [vmem:[%s4049 + $0x81] sm:$0xff]
      %v4295 = vld [vmem:[%s4049 + $0x91] sm:$0xff]
      %v4296 = vld [vmem:[%s4049 + $0x99] sm:$0xff]
      %v4297 = vld [vmem:[%s4049 + $0xa9] sm:$0xff]
      %v4298 = vld [vmem:[%s4049 + $0xb1] sm:$0xff]
      %s4299 = scalar_lea.vmem %s3, 8
      %v4300 = vld [vmem:[%s4299] sm:$0xff]
      %v4302 = vsel %vm4067, %v4283, 0
      %v4305 = vsel %vm4067, %v4284, 0
      %v4308 = vsel %vm4067, %v4285, 0
      %v4311 = vsel %vm4067, %v4286, 0
      %v4314 = vsel %vm4067, %v4287, 0
      %v4317 = vsel %vm4067, %v4288, 0
      %v4320 = vsel %vm4067, %v4289, 0
      %v4323 = vsel %vm4067, %v4290, 0
      %v4326 = vsel %vm4067, %v4291, 0
      %v4329 = vsel %vm4067, %v4292, 0
      %v4332 = vsel %vm4067, %v4293, 0
      %v4335 = vsel %vm4067, %v4294, 0
      %v4338 = vsel %vm4067, %v4295, 0
      %v4341 = vsel %vm4067, %v4296, 0
      %v4344 = vsel %vm4067, %v4297, 0
      %v4347 = vsel %vm4067, %v4298, 0
      %4349 = vmatprep.subr.mxu0 0.0
      %4350 = vmatpush1.msra.mxu0 %v4300
      %4351 = vmatprep.subr.mxu0 0.0
      %4352 = vmatpush1.msra.mxu0 0.0
      %4353 = vmatprep.subr.mxu0 0.0
      %4354 = vmatpush1.msra.mxu0 0.0
      %4355 = vmatprep.subr.mxu0 0.0
      %4356 = vmatpush1.msra.mxu0 0.0
      %4357 = vmatprep.subr.mxu0 0.0
      %4358 = vmatpush1.msra.mxu0 0.0
      %4359 = vmatprep.subr.mxu0 0.0
      %4360 = vmatpush1.msra.mxu0 0.0
      %4361 = vmatprep.subr.mxu0 0.0
      %4362 = vmatpush1.msra.mxu0 0.0
      %4363 = vmatprep.subr.mxu0 0.0
      %4364 = vmatpush1.msra.mxu0 0.0
      %4365 = vmatprep.subr.mxu0 0.0
      %4366 = vmatpush1.msra.mxu0 0.0
      %4367 = vmatprep.subr.mxu0 0.0
      %4368 = vmatpush1.msra.mxu0 0.0
      %4369 = vmatprep.subr.mxu0 0.0
      %4370 = vmatpush1.msra.mxu0 0.0
      %4371 = vmatprep.subr.mxu0 0.0
      %4372 = vmatpush1.msra.mxu0 0.0
      %4373 = vmatprep.subr.mxu0 0.0
      %4374 = vmatpush1.msra.mxu0 0.0
      %4375 = vmatprep.subr.mxu0 0.0
      %4376 = vmatpush1.msra.mxu0 0.0
      %4377 = vmatprep.subr.mxu0 0.0
      %4378 = vmatpush1.msra.mxu0 0.0
      %4379 = vmatprep.subr.mxu0 0.0
      %4380 = vmatpush1.msra.mxu0 0.0
      %4381 = vmatprep.subr.mxu0 0.0
      %4382 = vmatpush1.msra.mxu0 0.0
      %4383 = vmatprep.subr.mxu0 0.0
      %4384 = vmatpush1.msra.mxu0 0.0
      %4385 = vmatprep.subr.mxu0 0.0
      %4386 = vmatpush1.msra.mxu0 0.0
      %4387 = vmatprep.subr.mxu0 0.0
      %4388 = vmatpush1.msra.mxu0 0.0
      %4389 = vmatprep.subr.mxu0 0.0
      %4390 = vmatpush1.msra.mxu0 0.0
      %4391 = vmatprep.subr.mxu0 0.0
      %4392 = vmatpush1.msra.mxu0 0.0
      %4393 = vmatprep.subr.mxu0 0.0
      %4394 = vmatpush1.msra.mxu0 0.0
      %4395 = vmatprep.subr.mxu0 0.0
      %4396 = vmatpush1.msra.mxu0 0.0
      %4397 = vmatprep.subr.mxu0 0.0
      %4398 = vmatpush1.msra.mxu0 0.0
      %4399 = vmatprep.subr.mxu0 0.0
      %4400 = vmatpush1.msra.mxu0 0.0
      %4401 = vmatprep.subr.mxu0 0.0
      %4402 = vmatpush1.msra.mxu0 0.0
      %4403 = vmatprep.subr.mxu0 0.0
      %4404 = vmatpush1.msra.mxu0 0.0
      %4405 = vmatprep.subr.mxu0 0.0
      %4406 = vmatpush1.msra.mxu0 0.0
      %4407 = vmatprep.subr.mxu0 0.0
      %4408 = vmatpush1.msra.mxu0 0.0
      %4409 = vmatprep.subr.mxu0 0.0
      %4410 = vmatpush1.msra.mxu0 0.0
      %4411 = vmatprep.subr.mxu0 0.0
      %4412 = vmatpush1.msra.mxu0 0.0
      %4413 = vmatprep.mubr.f32.mxu0 0.0
      %4414 = vmatmul.mubr.f32.gmra.mrb[0].mxu0 %v4302
      %v4415 = vpop.f32.mrb[0].mxu0
      %v4416 = vadd.f32 0.0, %v4415
      %v4417 = vpop.f32.mrb[0].mxu0
      %4418 = vmatprep.mubr.f32.mxu0 0.0
      %4419 = vmatmul.mubr.f32.gmra.mrb[0].mxu0 %v4305
      %v4420 = vpop.f32.mrb[0].mxu0
      %v4421 = vadd.f32 0.0, %v4420
      %v4422 = vpop.f32.mrb[0].mxu0
      %4423 = vmatprep.mubr.f32.mxu0 0.0
      %4424 = vmatmul.mubr.f32.gmra.mrb[0].mxu0 %v4308
      %v4425 = vpop.f32.mrb[0].mxu0
      %v4426 = vadd.f32 0.0, %v4425
      %v4427 = vpop.f32.mrb[0].mxu0
      %4428 = vmatprep.mubr.f32.mxu0 0.0
      %4429 = vmatmul.mubr.f32.gmra.mrb[0].mxu0 %v4311
      %v4430 = vpop.f32.mrb[0].mxu0
      %v4431 = vadd.f32 0.0, %v4430
      %v4432 = vpop.f32.mrb[0].mxu0
      %4433 = vmatprep.mubr.f32.mxu0 0.0
      %4434 = vmatmul.mubr.f32.gmra.mrb[0].mxu0 %v4314
      %v4435 = vpop.f32.mrb[0].mxu0
      %v4436 = vadd.f32 0.0, %v4435
      %v4437 = vpop.f32.mrb[0].mxu0
      %4438 = vmatprep.mubr.f32.mxu0 0.0
      %4439 = vmatmul.mubr.f32.gmra.mrb[0].mxu0 %v4317
      %v4440 = vpop.f32.mrb[0].mxu0
      %v4441 = vadd.f32 0.0, %v4440
      %v4442 = vpop.f32.mrb[0].mxu0
      %4443 = vmatprep.mubr.f32.mxu0 0.0
      %4444 = vmatmul.mubr.f32.gmra.mrb[0].mxu0 %v4320
      %v4445 = vpop.f32.mrb[0].mxu0
      %v4446 = vadd.f32 0.0, %v4445
      %v4447 = vpop.f32.mrb[0].mxu0
      %4448 = vmatprep.mubr.f32.mxu0 0.0
      %4449 = vmatmul.mubr.f32.gmra.mrb[0].mxu0 %v4323
      %v4450 = vpop.f32.mrb[0].mxu0
      %v4451 = vadd.f32 0.0, %v4450
      %v4452 = vpop.f32.mrb[0].mxu0
      %4453 = vmatprep.mubr.f32.mxu0 0.0
      %4454 = vmatmul.mubr.f32.gmra.mrb[0].mxu0 %v4326
      %v4455 = vpop.f32.mrb[0].mxu0
      %v4456 = vadd.f32 0.0, %v4455
      %v4457 = vpop.f32.mrb[0].mxu0
      %4458 = vmatprep.mubr.f32.mxu0 0.0
      %4459 = vmatmul.mubr.f32.gmra.mrb[0].mxu0 %v4329
      %v4460 = vpop.f32.mrb[0].mxu0
      %v4461 = vadd.f32 0.0, %v4460
      %v4462 = vpop.f32.mrb[0].mxu0
      %4463 = vmatprep.mubr.f32.mxu0 0.0
      %4464 = vmatmul.mubr.f32.gmra.mrb[0].mxu0 %v4332
      %v4465 = vpop.f32.mrb[0].mxu0
      %v4466 = vadd.f32 0.0, %v4465
      %v4467 = vpop.f32.mrb[0].mxu0
      %4468 = vmatprep.mubr.f32.mxu0 0.0
      %4469 = vmatmul.mubr.f32.gmra.mrb[0].mxu0 %v4335
      %v4470 = vpop.f32.mrb[0].mxu0
      %v4471 = vadd.f32 0.0, %v4470
      %v4472 = vpop.f32.mrb[0].mxu0
      %4473 = vmatprep.mubr.f32.mxu0 0.0
      %4474 = vmatmul.mubr.f32.gmra.mrb[0].mxu0 %v4338
      %v4475 = vpop.f32.mrb[0].mxu0
      %v4476 = vadd.f32 0.0, %v4475
      %v4477 = vpop.f32.mrb[0].mxu0
      %4478 = vmatprep.mubr.f32.mxu0 0.0
      %4479 = vmatmul.mubr.f32.gmra.mrb[0].mxu0 %v4341
      %v4480 = vpop.f32.mrb[0].mxu0
      %v4481 = vadd.f32 0.0, %v4480
      %v4482 = vpop.f32.mrb[0].mxu0
      %4483 = vmatprep.mubr.f32.mxu0 0.0
      %4484 = vmatmul.mubr.f32.gmra.mrb[0].mxu0 %v4344
      %v4485 = vpop.f32.mrb[0].mxu0
      %v4486 = vadd.f32 0.0, %v4485
      %v4487 = vpop.f32.mrb[0].mxu0
      %4488 = vmatprep.mubr.f32.mxu0 0.0
      %4489 = vmatmul.mubr.f32.gmra.mrb[0].mxu0 %v4347
      %v4490 = vpop.f32.mrb[0].mxu0
      %v4491 = vadd.f32 0.0, %v4490
      %v4492 = vpop.f32.mrb[0].mxu0
      %4493 = vdwg.mxu0
      %v4494 = vadd.f32 %v4267, %v4416
      %v4495 = vadd.f32 %v4268, %v4421
      %v4496 = vadd.f32 %v4269, %v4426
      %v4497 = vadd.f32 %v4270, %v4431
      %v4498 = vadd.f32 %v4271, %v4436
      %v4499 = vadd.f32 %v4272, %v4441
      %v4500 = vadd.f32 %v4273, %v4446
      %v4501 = vadd.f32 %v4274, %v4451
      %v4502 = vadd.f32 %v4275, %v4456
      %v4503 = vadd.f32 %v4276, %v4461
      %v4504 = vadd.f32 %v4277, %v4466
      %v4505 = vadd.f32 %v4278, %v4471
      %v4506 = vadd.f32 %v4279, %v4476
      %v4507 = vadd.f32 %v4280, %v4481
      %v4508 = vadd.f32 %v4281, %v4486
      %v4509 = vadd.f32 %v4282, %v4491
      %v4510 = vld [vmem:[%s4049 + $0x2] sm:$0xff]
      %v4511 = vld [vmem:[%s4049 + $0xa] sm:$0xff]
      %v4512 = vld [vmem:[%s4049 + $0x1a] sm:$0xff]
      %v4513 = vld [vmem:[%s4049 + $0x22] sm:$0xff]
      %v4514 = vld [vmem:[%s4049 + $0x32] sm:$0xff]
      %v4515 = vld [vmem:[%s4049 + $0x3a] sm:$0xff]
      %v4516 = vld [vmem:[%s4049 + $0x4a] sm:$0xff]
      %v4517 = vld [vmem:[%s4049 + $0x52] sm:$0xff]
      %v4518 = vld [vmem:[%s4049 + $0x62] sm:$0xff]
      %v4519 = vld [vmem:[%s4049 + $0x6a] sm:$0xff]
      %v4520 = vld [vmem:[%s4049 + $0x7a] sm:$0xff]
      %v4521 = vld [vmem:[%s4049 + $0x82] sm:$0xff]
      %v4522 = vld [vmem:[%s4049 + $0x92] sm:$0xff]
      %v4523 = vld [vmem:[%s4049 + $0x9a] sm:$0xff]
      %v4524 = vld [vmem:[%s4049 + $0xaa] sm:$0xff]
      %v4525 = vld [vmem:[%s4049 + $0xb2] sm:$0xff]
      %s4526 = scalar_lea.vmem %s3, 16
      %v4527 = vld [vmem:[%s4526] sm:$0xff]
      %v4529 = vsel %vm4067, %v4510, 0
      %v4532 = vsel %vm4067, %v4511, 0
      %v4535 = vsel %vm4067, %v4512, 0
      %v4538 = vsel %vm4067, %v4513, 0
      %v4541 = vsel %vm4067, %v4514, 0
      %v4544 = vsel %vm4067, %v4515, 0
      %v4547 = vsel %vm4067, %v4516, 0
      %v4550 = vsel %vm4067, %v4517, 0
      %v4553 = vsel %vm4067, %v4518, 0
      %v4556 = vsel %vm4067, %v4519, 0
      %v4559 = vsel %vm4067, %v4520, 0
      %v4562 = vsel %vm4067, %v4521, 0
      %v4565 = vsel %vm4067, %v4522, 0
      %v4568 = vsel %vm4067, %v4523, 0
      %v4571 = vsel %vm4067, %v4524, 0
      %v4574 = vsel %vm4067, %v4525, 0
      %4576 = vmatprep.subr.mxu0 0.0
      %4577 = vmatpush1.msra.mxu0 %v4527
      %4578 = vmatprep.subr.mxu0 0.0
      %4579 = vmatpush1.msra.mxu0 0.0
      %4580 = vmatprep.subr.mxu0 0.0
      %4581 = vmatpush1.msra.mxu0 0.0
      %4582 = vmatprep.subr.mxu0 0.0
      %4583 = vmatpush1.msra.mxu0 0.0
      %4584 = vmatprep.subr.mxu0 0.0
      %4585 = vmatpush1.msra.mxu0 0.0
      %4586 = vmatprep.subr.mxu0 0.0
      %4587 = vmatpush1.msra.mxu0 0.0
      %4588 = vmatprep.subr.mxu0 0.0
      %4589 = vmatpush1.msra.mxu0 0.0
      %4590 = vmatprep.subr.mxu0 0.0
      %4591 = vmatpush1.msra.mxu0 0.0
      %4592 = vmatprep.subr.mxu0 0.0
      %4593 = vmatpush1.msra.mxu0 0.0
      %4594 = vmatprep.subr.mxu0 0.0
      %4595 = vmatpush1.msra.mxu0 0.0
      %4596 = vmatprep.subr.mxu0 0.0
      %4597 = vmatpush1.msra.mxu0 0.0
      %4598 = vmatprep.subr.mxu0 0.0
      %4599 = vmatpush1.msra.mxu0 0.0
      %4600 = vmatprep.subr.mxu0 0.0
      %4601 = vmatpush1.msra.mxu0 0.0
      %4602 = vmatprep.subr.mxu0 0.0
      %4603 = vmatpush1.msra.mxu0 0.0
      %4604 = vmatprep.subr.mxu0 0.0
      %4605 = vmatpush1.msra.mxu0 0.0
      %4606 = vmatprep.subr.mxu0 0.0
      %4607 = vmatpush1.msra.mxu0 0.0
      %4608 = vmatprep.subr.mxu0 0.0
      %4609 = vmatpush1.msra.mxu0 0.0
      %4610 = vmatprep.subr.mxu0 0.0
      %4611 = vmatpush1.msra.mxu0 0.0
      %4612 = vmatprep.subr.mxu0 0.0
      %4613 = vmatpush1.msra.mxu0 0.0
      %4614 = vmatprep.subr.mxu0 0.0
      %4615 = vmatpush1.msra.mxu0 0.0
      %4616 = vmatprep.subr.mxu0 0.0
      %4617 = vmatpush1.msra.mxu0 0.0
      %4618 = vmatprep.subr.mxu0 0.0
      %4619 = vmatpush1.msra.mxu0 0.0
      %4620 = vmatprep.subr.mxu0 0.0
      %4621 = vmatpush1.msra.mxu0 0.0
      %4622 = vmatprep.subr.mxu0 0.0
      %4623 = vmatpush1.msra.mxu0 0.0
      %4624 = vmatprep.subr.mxu0 0.0
      %4625 = vmatpush1.msra.mxu0 0.0
      %4626 = vmatprep.subr.mxu0 0.0
      %4627 = vmatpush1.msra.mxu0 0.0
      %4628 = vmatprep.subr.mxu0 0.0
      %4629 = vmatpush1.msra.mxu0 0.0
      %4630 = vmatprep.subr.mxu0 0.0
      %4631 = vmatpush1.msra.mxu0 0.0
      %4632 = vmatprep.subr.mxu0 0.0
      %4633 = vmatpush1.msra.mxu0 0.0
      %4634 = vmatprep.subr.mxu0 0.0
      %4635 = vmatpush1.msra.mxu0 0.0
      %4636 = vmatprep.subr.mxu0 0.0
      %4637 = vmatpush1.msra.mxu0 0.0
      %4638 = vmatprep.subr.mxu0 0.0
      %4639 = vmatpush1.msra.mxu0 0.0
      %4640 = vmatprep.mubr.f32.mxu0 0.0
      %4641 = vmatmul.mubr.f32.gmra.mrb[0].mxu0 %v4529
      %v4642 = vpop.f32.mrb[0].mxu0
      %v4643 = vadd.f32 0.0, %v4642
      %v4644 = vpop.f32.mrb[0].mxu0
      %4645 = vmatprep.mubr.f32.mxu0 0.0
      %4646 = vmatmul.mubr.f32.gmra.mrb[0].mxu0 %v4532
      %v4647 = vpop.f32.mrb[0].mxu0
      %v4648 = vadd.f32 0.0, %v4647
      %v4649 = vpop.f32.mrb[0].mxu0
      %4650 = vmatprep.mubr.f32.mxu0 0.0
      %4651 = vmatmul.mubr.f32.gmra.mrb[0].mxu0 %v4535
      %v4652 = vpop.f32.mrb[0].mxu0
      %v4653 = vadd.f32 0.0, %v4652
      %v4654 = vpop.f32.mrb[0].mxu0
      %4655 = vmatprep.mubr.f32.mxu0 0.0
      %4656 = vmatmul.mubr.f32.gmra.mrb[0].mxu0 %v4538
      %v4657 = vpop.f32.mrb[0].mxu0
      %v4658 = vadd.f32 0.0, %v4657
      %v4659 = vpop.f32.mrb[0].mxu0
      %4660 = vmatprep.mubr.f32.mxu0 0.0
      %4661 = vmatmul.mubr.f32.gmra.mrb[0].mxu0 %v4541
      %v4662 = vpop.f32.mrb[0].mxu0
      %v4663 = vadd.f32 0.0, %v4662
      %v4664 = vpop.f32.mrb[0].mxu0
      %4665 = vmatprep.mubr.f32.mxu0 0.0
      %4666 = vmatmul.mubr.f32.gmra.mrb[0].mxu0 %v4544
      %v4667 = vpop.f32.mrb[0].mxu0
      %v4668 = vadd.f32 0.0, %v4667
      %v4669 = vpop.f32.mrb[0].mxu0
      %4670 = vmatprep.mubr.f32.mxu0 0.0
      %4671 = vmatmul.mubr.f32.gmra.mrb[0].mxu0 %v4547
      %v4672 = vpop.f32.mrb[0].mxu0
      %v4673 = vadd.f32 0.0, %v4672
      %v4674 = vpop.f32.mrb[0].mxu0
      %4675 = vmatprep.mubr.f32.mxu0 0.0
      %4676 = vmatmul.mubr.f32.gmra.mrb[0].mxu0 %v4550
      %v4677 = vpop.f32.mrb[0].mxu0
      %v4678 = vadd.f32 0.0, %v4677
      %v4679 = vpop.f32.mrb[0].mxu0
      %4680 = vmatprep.mubr.f32.mxu0 0.0
      %4681 = vmatmul.mubr.f32.gmra.mrb[0].mxu0 %v4553
      %v4682 = vpop.f32.mrb[0].mxu0
      %v4683 = vadd.f32 0.0, %v4682
      %v4684 = vpop.f32.mrb[0].mxu0
      %4685 = vmatprep.mubr.f32.mxu0 0.0
      %4686 = vmatmul.mubr.f32.gmra.mrb[0].mxu0 %v4556
      %v4687 = vpop.f32.mrb[0].mxu0
      %v4688 = vadd.f32 0.0, %v4687
      %v4689 = vpop.f32.mrb[0].mxu0
      %4690 = vmatprep.mubr.f32.mxu0 0.0
      %4691 = vmatmul.mubr.f32.gmra.mrb[0].mxu0 %v4559
      %v4692 = vpop.f32.mrb[0].mxu0
      %v4693 = vadd.f32 0.0, %v4692
      %v4694 = vpop.f32.mrb[0].mxu0
      %4695 = vmatprep.mubr.f32.mxu0 0.0
      %4696 = vmatmul.mubr.f32.gmra.mrb[0].mxu0 %v4562
      %v4697 = vpop.f32.mrb[0].mxu0
      %v4698 = vadd.f32 0.0, %v4697
      %v4699 = vpop.f32.mrb[0].mxu0
      %4700 = vmatprep.mubr.f32.mxu0 0.0
      %4701 = vmatmul.mubr.f32.gmra.mrb[0].mxu0 %v4565
      %v4702 = vpop.f32.mrb[0].mxu0
      %v4703 = vadd.f32 0.0, %v4702
      %v4704 = vpop.f32.mrb[0].mxu0
      %4705 = vmatprep.mubr.f32.mxu0 0.0
      %4706 = vmatmul.mubr.f32.gmra.mrb[0].mxu0 %v4568
      %v4707 = vpop.f32.mrb[0].mxu0
      %v4708 = vadd.f32 0.0, %v4707
      %v4709 = vpop.f32.mrb[0].mxu0
      %4710 = vmatprep.mubr.f32.mxu0 0.0
      %4711 = vmatmul.mubr.f32.gmra.mrb[0].mxu0 %v4571
      %v4712 = vpop.f32.mrb[0].mxu0
      %v4713 = vadd.f32 0.0, %v4712
      %v4714 = vpop.f32.mrb[0].mxu0
      %4715 = vmatprep.mubr.f32.mxu0 0.0
      %4716 = vmatmul.mubr.f32.gmra.mrb[0].mxu0 %v4574
      %v4717 = vpop.f32.mrb[0].mxu0
      %v4718 = vadd.f32 0.0, %v4717
      %v4719 = vpop.f32.mrb[0].mxu0
      %4720 = vdwg.mxu0
      %v4721 = vadd.f32 %v4494, %v4643
      %v4722 = vadd.f32 %v4495, %v4648
      %v4723 = vadd.f32 %v4496, %v4653
      %v4724 = vadd.f32 %v4497, %v4658
      %v4725 = vadd.f32 %v4498, %v4663
      %v4726 = vadd.f32 %v4499, %v4668
      %v4727 = vadd.f32 %v4500, %v4673
      %v4728 = vadd.f32 %v4501, %v4678
      %v4729 = vadd.f32 %v4502, %v4683
      %v4730 = vadd.f32 %v4503, %v4688
      %v4731 = vadd.f32 %v4504, %v4693
      %v4732 = vadd.f32 %v4505, %v4698
      %v4733 = vadd.f32 %v4506, %v4703
      %v4734 = vadd.f32 %v4507, %v4708
      %v4735 = vadd.f32 %v4508, %v4713
      %v4736 = vadd.f32 %v4509, %v4718
      %s4737 = sadd.s32 %s4046, 1
      %s4738 = smul.u32 %s4737, 24
      %s4739 = scalar_lea.vmem [#allocation3], %s4738
      %v4740 = vld [vmem:[%s4739] sm:$0xff]
      %v4741 = vld [vmem:[%s4739 + $0x8] sm:$0xff]
      %v4742 = vld [vmem:[%s4739 + $0x18] sm:$0xff]
      %v4743 = vld [vmem:[%s4739 + $0x20] sm:$0xff]
      %v4744 = vld [vmem:[%s4739 + $0x30] sm:$0xff]
      %v4745 = vld [vmem:[%s4739 + $0x38] sm:$0xff]
      %v4746 = vld [vmem:[%s4739 + $0x48] sm:$0xff]
      %v4747 = vld [vmem:[%s4739 + $0x50] sm:$0xff]
      %v4748 = vld [vmem:[%s4739 + $0x60] sm:$0xff]
      %v4749 = vld [vmem:[%s4739 + $0x68] sm:$0xff]
      %v4750 = vld [vmem:[%s4739 + $0x78] sm:$0xff]
      %v4751 = vld [vmem:[%s4739 + $0x80] sm:$0xff]
      %v4752 = vld [vmem:[%s4739 + $0x90] sm:$0xff]
      %v4753 = vld [vmem:[%s4739 + $0x98] sm:$0xff]
      %v4754 = vld [vmem:[%s4739 + $0xa8] sm:$0xff]
      %v4755 = vld [vmem:[%s4739 + $0xb0] sm:$0xff]
      %s4756 = scalar_lea.vmem %s3, 24
      %v4757 = vld [vmem:[%s4756] sm:$0xff]
      %v4759 = vsel %vm4067, %v4740, 0
      %v4762 = vsel %vm4067, %v4741, 0
      %v4765 = vsel %vm4067, %v4742, 0
      %v4768 = vsel %vm4067, %v4743, 0
      %v4771 = vsel %vm4067, %v4744, 0
      %v4774 = vsel %vm4067, %v4745, 0
      %v4777 = vsel %vm4067, %v4746, 0
      %v4780 = vsel %vm4067, %v4747, 0
      %v4783 = vsel %vm4067, %v4748, 0
      %v4786 = vsel %vm4067, %v4749, 0
      %v4789 = vsel %vm4067, %v4750, 0
      %v4792 = vsel %vm4067, %v4751, 0
      %v4795 = vsel %vm4067, %v4752, 0
      %v4798 = vsel %vm4067, %v4753, 0
      %v4801 = vsel %vm4067, %v4754, 0
      %v4804 = vsel %vm4067, %v4755, 0
      %4806 = vmatprep.subr.mxu0 0.0
      %4807 = vmatpush1.msra.mxu0 %v4757
      %4808 = vmatprep.subr.mxu0 0.0
      %4809 = vmatpush1.msra.mxu0 0.0
      %4810 = vmatprep.subr.mxu0 0.0
      %4811 = vmatpush1.msra.mxu0 0.0
      %4812 = vmatprep.subr.mxu0 0.0
      %4813 = vmatpush1.msra.mxu0 0.0
      %4814 = vmatprep.subr.mxu0 0.0
      %4815 = vmatpush1.msra.mxu0 0.0
      %4816 = vmatprep.subr.mxu0 0.0
      %4817 = vmatpush1.msra.mxu0 0.0
      %4818 = vmatprep.subr.mxu0 0.0
      %4819 = vmatpush1.msra.mxu0 0.0
      %4820 = vmatprep.subr.mxu0 0.0
      %4821 = vmatpush1.msra.mxu0 0.0
      %4822 = vmatprep.subr.mxu0 0.0
      %4823 = vmatpush1.msra.mxu0 0.0
      %4824 = vmatprep.subr.mxu0 0.0
      %4825 = vmatpush1.msra.mxu0 0.0
      %4826 = vmatprep.subr.mxu0 0.0
      %4827 = vmatpush1.msra.mxu0 0.0
      %4828 = vmatprep.subr.mxu0 0.0
      %4829 = vmatpush1.msra.mxu0 0.0
      %4830 = vmatprep.subr.mxu0 0.0
      %4831 = vmatpush1.msra.mxu0 0.0
      %4832 = vmatprep.subr.mxu0 0.0
      %4833 = vmatpush1.msra.mxu0 0.0
      %4834 = vmatprep.subr.mxu0 0.0
      %4835 = vmatpush1.msra.mxu0 0.0
      %4836 = vmatprep.subr.mxu0 0.0
      %4837 = vmatpush1.msra.mxu0 0.0
      %4838 = vmatprep.subr.mxu0 0.0
      %4839 = vmatpush1.msra.mxu0 0.0
      %4840 = vmatprep.subr.mxu0 0.0
      %4841 = vmatpush1.msra.mxu0 0.0
      %4842 = vmatprep.subr.mxu0 0.0
      %4843 = vmatpush1.msra.mxu0 0.0
      %4844 = vmatprep.subr.mxu0 0.0
      %4845 = vmatpush1.msra.mxu0 0.0
      %4846 = vmatprep.subr.mxu0 0.0
      %4847 = vmatpush1.msra.mxu0 0.0
      %4848 = vmatprep.subr.mxu0 0.0
      %4849 = vmatpush1.msra.mxu0 0.0
      %4850 = vmatprep.subr.mxu0 0.0
      %4851 = vmatpush1.msra.mxu0 0.0
      %4852 = vmatprep.subr.mxu0 0.0
      %4853 = vmatpush1.msra.mxu0 0.0
      %4854 = vmatprep.subr.mxu0 0.0
      %4855 = vmatpush1.msra.mxu0 0.0
      %4856 = vmatprep.subr.mxu0 0.0
      %4857 = vmatpush1.msra.mxu0 0.0
      %4858 = vmatprep.subr.mxu0 0.0
      %4859 = vmatpush1.msra.mxu0 0.0
      %4860 = vmatprep.subr.mxu0 0.0
      %4861 = vmatpush1.msra.mxu0 0.0
      %4862 = vmatprep.subr.mxu0 0.0
      %4863 = vmatpush1.msra.mxu0 0.0
      %4864 = vmatprep.subr.mxu0 0.0
      %4865 = vmatpush1.msra.mxu0 0.0
      %4866 = vmatprep.subr.mxu0 0.0
      %4867 = vmatpush1.msra.mxu0 0.0
      %4868 = vmatprep.subr.mxu0 0.0
      %4869 = vmatpush1.msra.mxu0 0.0
      %4870 = vmatprep.mubr.f32.mxu0 0.0
      %4871 = vmatmul.mubr.f32.gmra.mrb[0].mxu0 %v4759
      %v4872 = vpop.f32.mrb[0].mxu0
      %v4873 = vadd.f32 0.0, %v4872
      %v4874 = vpop.f32.mrb[0].mxu0
      %4875 = vmatprep.mubr.f32.mxu0 0.0
      %4876 = vmatmul.mubr.f32.gmra.mrb[0].mxu0 %v4762
      %v4877 = vpop.f32.mrb[0].mxu0
      %v4878 = vadd.f32 0.0, %v4877
      %v4879 = vpop.f32.mrb[0].mxu0
      %4880 = vmatprep.mubr.f32.mxu0 0.0
      %4881 = vmatmul.mubr.f32.gmra.mrb[0].mxu0 %v4765
      %v4882 = vpop.f32.mrb[0].mxu0
      %v4883 = vadd.f32 0.0, %v4882
      %v4884 = vpop.f32.mrb[0].mxu0
      %4885 = vmatprep.mubr.f32.mxu0 0.0
      %4886 = vmatmul.mubr.f32.gmra.mrb[0].mxu0 %v4768
      %v4887 = vpop.f32.mrb[0].mxu0
      %v4888 = vadd.f32 0.0, %v4887
      %v4889 = vpop.f32.mrb[0].mxu0
      %4890 = vmatprep.mubr.f32.mxu0 0.0
      %4891 = vmatmul.mubr.f32.gmra.mrb[0].mxu0 %v4771
      %v4892 = vpop.f32.mrb[0].mxu0
      %v4893 = vadd.f32 0.0, %v4892
      %v4894 = vpop.f32.mrb[0].mxu0
      %4895 = vmatprep.mubr.f32.mxu0 0.0
      %4896 = vmatmul.mubr.f32.gmra.mrb[0].mxu0 %v4774
      %v4897 = vpop.f32.mrb[0].mxu0
      %v4898 = vadd.f32 0.0, %v4897
      %v4899 = vpop.f32.mrb[0].mxu0
      %4900 = vmatprep.mubr.f32.mxu0 0.0
      %4901 = vmatmul.mubr.f32.gmra.mrb[0].mxu0 %v4777
      %v4902 = vpop.f32.mrb[0].mxu0
      %v4903 = vadd.f32 0.0, %v4902
      %v4904 = vpop.f32.mrb[0].mxu0
      %4905 = vmatprep.mubr.f32.mxu0 0.0
      %4906 = vmatmul.mubr.f32.gmra.mrb[0].mxu0 %v4780
      %v4907 = vpop.f32.mrb[0].mxu0
      %v4908 = vadd.f32 0.0, %v4907
      %v4909 = vpop.f32.mrb[0].mxu0
      %4910 = vmatprep.mubr.f32.mxu0 0.0
      %4911 = vmatmul.mubr.f32.gmra.mrb[0].mxu0 %v4783
      %v4912 = vpop.f32.mrb[0].mxu0
      %v4913 = vadd.f32 0.0, %v4912
      %v4914 = vpop.f32.mrb[0].mxu0
      %4915 = vmatprep.mubr.f32.mxu0 0.0
      %4916 = vmatmul.mubr.f32.gmra.mrb[0].mxu0 %v4786
      %v4917 = vpop.f32.mrb[0].mxu0
      %v4918 = vadd.f32 0.0, %v4917
      %v4919 = vpop.f32.mrb[0].mxu0
      %4920 = vmatprep.mubr.f32.mxu0 0.0
      %4921 = vmatmul.mubr.f32.gmra.mrb[0].mxu0 %v4789
      %v4922 = vpop.f32.mrb[0].mxu0
      %v4923 = vadd.f32 0.0, %v4922
      %v4924 = vpop.f32.mrb[0].mxu0
      %4925 = vmatprep.mubr.f32.mxu0 0.0
      %4926 = vmatmul.mubr.f32.gmra.mrb[0].mxu0 %v4792
      %v4927 = vpop.f32.mrb[0].mxu0
      %v4928 = vadd.f32 0.0, %v4927
      %v4929 = vpop.f32.mrb[0].mxu0
      %4930 = vmatprep.mubr.f32.mxu0 0.0
      %4931 = vmatmul.mubr.f32.gmra.mrb[0].mxu0 %v4795
      %v4932 = vpop.f32.mrb[0].mxu0
      %v4933 = vadd.f32 0.0, %v4932
      %v4934 = vpop.f32.mrb[0].mxu0
      %4935 = vmatprep.mubr.f32.mxu0 0.0
      %4936 = vmatmul.mubr.f32.gmra.mrb[0].mxu0 %v4798
      %v4937 = vpop.f32.mrb[0].mxu0
      %v4938 = vadd.f32 0.0, %v4937
      %v4939 = vpop.f32.mrb[0].mxu0
      %4940 = vmatprep.mubr.f32.mxu0 0.0
      %4941 = vmatmul.mubr.f32.gmra.mrb[0].mxu0 %v4801
      %v4942 = vpop.f32.mrb[0].mxu0
      %v4943 = vadd.f32 0.0, %v4942
      %v4944 = vpop.f32.mrb[0].mxu0
      %4945 = vmatprep.mubr.f32.mxu0 0.0
      %4946 = vmatmul.mubr.f32.gmra.mrb[0].mxu0 %v4804
      %v4947 = vpop.f32.mrb[0].mxu0
      %v4948 = vadd.f32 0.0, %v4947
      %v4949 = vpop.f32.mrb[0].mxu0
      %4950 = vdwg.mxu0
      %v4951 = vadd.f32 %v4721, %v4873
      %v4952 = vadd.f32 %v4722, %v4878
      %v4953 = vadd.f32 %v4723, %v4883
      %v4954 = vadd.f32 %v4724, %v4888
      %v4955 = vadd.f32 %v4725, %v4893
      %v4956 = vadd.f32 %v4726, %v4898
      %v4957 = vadd.f32 %v4727, %v4903
      %v4958 = vadd.f32 %v4728, %v4908
      %v4959 = vadd.f32 %v4729, %v4913
      %v4960 = vadd.f32 %v4730, %v4918
      %v4961 = vadd.f32 %v4731, %v4923
      %v4962 = vadd.f32 %v4732, %v4928
      %v4963 = vadd.f32 %v4733, %v4933
      %v4964 = vadd.f32 %v4734, %v4938
      %v4965 = vadd.f32 %v4735, %v4943
      %v4966 = vadd.f32 %v4736, %v4948
      %v4967 = vld [vmem:[%s4739 + $0x1] sm:$0xff]
      %v4968 = vld [vmem:[%s4739 + $0x9] sm:$0xff]
      %v4969 = vld [vmem:[%s4739 + $0x19] sm:$0xff]
      %v4970 = vld [vmem:[%s4739 + $0x21] sm:$0xff]
      %v4971 = vld [vmem:[%s4739 + $0x31] sm:$0xff]
      %v4972 = vld [vmem:[%s4739 + $0x39] sm:$0xff]
      %v4973 = vld [vmem:[%s4739 + $0x49] sm:$0xff]
      %v4974 = vld [vmem:[%s4739 + $0x51] sm:$0xff]
      %v4975 = vld [vmem:[%s4739 + $0x61] sm:$0xff]
      %v4976 = vld [vmem:[%s4739 + $0x69] sm:$0xff]
      %v4977 = vld [vmem:[%s4739 + $0x79] sm:$0xff]
      %v4978 = vld [vmem:[%s4739 + $0x81] sm:$0xff]
      %v4979 = vld [vmem:[%s4739 + $0x91] sm:$0xff]
      %v4980 = vld [vmem:[%s4739 + $0x99] sm:$0xff]
      %v4981 = vld [vmem:[%s4739 + $0xa9] sm:$0xff]
      %v4982 = vld [vmem:[%s4739 + $0xb1] sm:$0xff]
      %s4983 = scalar_lea.vmem %s3, 32
      %v4984 = vld [vmem:[%s4983] sm:$0xff]
      %v4986 = vsel %vm4067, %v4967, 0
      %v4989 = vsel %vm4067, %v4968, 0
      %v4992 = vsel %vm4067, %v4969, 0
      %v4995 = vsel %vm4067, %v4970, 0
      %v4998 = vsel %vm4067, %v4971, 0
      %v5001 = vsel %vm4067, %v4972, 0
      %v5004 = vsel %vm4067, %v4973, 0
      %v5007 = vsel %vm4067, %v4974, 0
      %v5010 = vsel %vm4067, %v4975, 0
      %v5013 = vsel %vm4067, %v4976, 0
      %v5016 = vsel %vm4067, %v4977, 0
      %v5019 = vsel %vm4067, %v4978, 0
      %v5022 = vsel %vm4067, %v4979, 0
      %v5025 = vsel %vm4067, %v4980, 0
      %v5028 = vsel %vm4067, %v4981, 0
      %v5031 = vsel %vm4067, %v4982, 0
      %5033 = vmatprep.subr.mxu0 0.0
      %5034 = vmatpush1.msra.mxu0 %v4984
      %5035 = vmatprep.subr.mxu0 0.0
      %5036 = vmatpush1.msra.mxu0 0.0
      %5037 = vmatprep.subr.mxu0 0.0
      %5038 = vmatpush1.msra.mxu0 0.0
      %5039 = vmatprep.subr.mxu0 0.0
      %5040 = vmatpush1.msra.mxu0 0.0
      %5041 = vmatprep.subr.mxu0 0.0
      %5042 = vmatpush1.msra.mxu0 0.0
      %5043 = vmatprep.subr.mxu0 0.0
      %5044 = vmatpush1.msra.mxu0 0.0
      %5045 = vmatprep.subr.mxu0 0.0
      %5046 = vmatpush1.msra.mxu0 0.0
      %5047 = vmatprep.subr.mxu0 0.0
      %5048 = vmatpush1.msra.mxu0 0.0
      %5049 = vmatprep.subr.mxu0 0.0
      %5050 = vmatpush1.msra.mxu0 0.0
      %5051 = vmatprep.subr.mxu0 0.0
      %5052 = vmatpush1.msra.mxu0 0.0
      %5053 = vmatprep.subr.mxu0 0.0
      %5054 = vmatpush1.msra.mxu0 0.0
      %5055 = vmatprep.subr.mxu0 0.0
      %5056 = vmatpush1.msra.mxu0 0.0
      %5057 = vmatprep.subr.mxu0 0.0
      %5058 = vmatpush1.msra.mxu0 0.0
      %5059 = vmatprep.subr.mxu0 0.0
      %5060 = vmatpush1.msra.mxu0 0.0
      %5061 = vmatprep.subr.mxu0 0.0
      %5062 = vmatpush1.msra.mxu0 0.0
      %5063 = vmatprep.subr.mxu0 0.0
      %5064 = vmatpush1.msra.mxu0 0.0
      %5065 = vmatprep.subr.mxu0 0.0
      %5066 = vmatpush1.msra.mxu0 0.0
      %5067 = vmatprep.subr.mxu0 0.0
      %5068 = vmatpush1.msra.mxu0 0.0
      %5069 = vmatprep.subr.mxu0 0.0
      %5070 = vmatpush1.msra.mxu0 0.0
      %5071 = vmatprep.subr.mxu0 0.0
      %5072 = vmatpush1.msra.mxu0 0.0
      %5073 = vmatprep.subr.mxu0 0.0
      %5074 = vmatpush1.msra.mxu0 0.0
      %5075 = vmatprep.subr.mxu0 0.0
      %5076 = vmatpush1.msra.mxu0 0.0
      %5077 = vmatprep.subr.mxu0 0.0
      %5078 = vmatpush1.msra.mxu0 0.0
      %5079 = vmatprep.subr.mxu0 0.0
      %5080 = vmatpush1.msra.mxu0 0.0
      %5081 = vmatprep.subr.mxu0 0.0
      %5082 = vmatpush1.msra.mxu0 0.0
      %5083 = vmatprep.subr.mxu0 0.0
      %5084 = vmatpush1.msra.mxu0 0.0
      %5085 = vmatprep.subr.mxu0 0.0
      %5086 = vmatpush1.msra.mxu0 0.0
      %5087 = vmatprep.subr.mxu0 0.0
      %5088 = vmatpush1.msra.mxu0 0.0
      %5089 = vmatprep.subr.mxu0 0.0
      %5090 = vmatpush1.msra.mxu0 0.0
      %5091 = vmatprep.subr.mxu0 0.0
      %5092 = vmatpush1.msra.mxu0 0.0
      %5093 = vmatprep.subr.mxu0 0.0
      %5094 = vmatpush1.msra.mxu0 0.0
      %5095 = vmatprep.subr.mxu0 0.0
      %5096 = vmatpush1.msra.mxu0 0.0
      %5097 = vmatprep.mubr.f32.mxu0 0.0
      %5098 = vmatmul.mubr.f32.gmra.mrb[0].mxu0 %v4986
      %v5099 = vpop.f32.mrb[0].mxu0
      %v5100 = vadd.f32 0.0, %v5099
      %v5101 = vpop.f32.mrb[0].mxu0
      %5102 = vmatprep.mubr.f32.mxu0 0.0
      %5103 = vmatmul.mubr.f32.gmra.mrb[0].mxu0 %v4989
      %v5104 = vpop.f32.mrb[0].mxu0
      %v5105 = vadd.f32 0.0, %v5104
      %v5106 = vpop.f32.mrb[0].mxu0
      %5107 = vmatprep.mubr.f32.mxu0 0.0
      %5108 = vmatmul.mubr.f32.gmra.mrb[0].mxu0 %v4992
      %v5109 = vpop.f32.mrb[0].mxu0
      %v5110 = vadd.f32 0.0, %v5109
      %v5111 = vpop.f32.mrb[0].mxu0
      %5112 = vmatprep.mubr.f32.mxu0 0.0
      %5113 = vmatmul.mubr.f32.gmra.mrb[0].mxu0 %v4995
      %v5114 = vpop.f32.mrb[0].mxu0
      %v5115 = vadd.f32 0.0, %v5114
      %v5116 = vpop.f32.mrb[0].mxu0
      %5117 = vmatprep.mubr.f32.mxu0 0.0
      %5118 = vmatmul.mubr.f32.gmra.mrb[0].mxu0 %v4998
      %v5119 = vpop.f32.mrb[0].mxu0
      %v5120 = vadd.f32 0.0, %v5119
      %v5121 = vpop.f32.mrb[0].mxu0
      %5122 = vmatprep.mubr.f32.mxu0 0.0
      %5123 = vmatmul.mubr.f32.gmra.mrb[0].mxu0 %v5001
      %v5124 = vpop.f32.mrb[0].mxu0
      %v5125 = vadd.f32 0.0, %v5124
      %v5126 = vpop.f32.mrb[0].mxu0
      %5127 = vmatprep.mubr.f32.mxu0 0.0
      %5128 = vmatmul.mubr.f32.gmra.mrb[0].mxu0 %v5004
      %v5129 = vpop.f32.mrb[0].mxu0
      %v5130 = vadd.f32 0.0, %v5129
      %v5131 = vpop.f32.mrb[0].mxu0
      %5132 = vmatprep.mubr.f32.mxu0 0.0
      %5133 = vmatmul.mubr.f32.gmra.mrb[0].mxu0 %v5007
      %v5134 = vpop.f32.mrb[0].mxu0
      %v5135 = vadd.f32 0.0, %v5134
      %v5136 = vpop.f32.mrb[0].mxu0
      %5137 = vmatprep.mubr.f32.mxu0 0.0
      %5138 = vmatmul.mubr.f32.gmra.mrb[0].mxu0 %v5010
      %v5139 = vpop.f32.mrb[0].mxu0
      %v5140 = vadd.f32 0.0, %v5139
      %v5141 = vpop.f32.mrb[0].mxu0
      %5142 = vmatprep.mubr.f32.mxu0 0.0
      %5143 = vmatmul.mubr.f32.gmra.mrb[0].mxu0 %v5013
      %v5144 = vpop.f32.mrb[0].mxu0
      %v5145 = vadd.f32 0.0, %v5144
      %v5146 = vpop.f32.mrb[0].mxu0
      %5147 = vmatprep.mubr.f32.mxu0 0.0
      %5148 = vmatmul.mubr.f32.gmra.mrb[0].mxu0 %v5016
      %v5149 = vpop.f32.mrb[0].mxu0
      %v5150 = vadd.f32 0.0, %v5149
      %v5151 = vpop.f32.mrb[0].mxu0
      %5152 = vmatprep.mubr.f32.mxu0 0.0
      %5153 = vmatmul.mubr.f32.gmra.mrb[0].mxu0 %v5019
      %v5154 = vpop.f32.mrb[0].mxu0
      %v5155 = vadd.f32 0.0, %v5154
      %v5156 = vpop.f32.mrb[0].mxu0
      %5157 = vmatprep.mubr.f32.mxu0 0.0
      %5158 = vmatmul.mubr.f32.gmra.mrb[0].mxu0 %v5022
      %v5159 = vpop.f32.mrb[0].mxu0
      %v5160 = vadd.f32 0.0, %v5159
      %v5161 = vpop.f32.mrb[0].mxu0
      %5162 = vmatprep.mubr.f32.mxu0 0.0
      %5163 = vmatmul.mubr.f32.gmra.mrb[0].mxu0 %v5025
      %v5164 = vpop.f32.mrb[0].mxu0
      %v5165 = vadd.f32 0.0, %v5164
      %v5166 = vpop.f32.mrb[0].mxu0
      %5167 = vmatprep.mubr.f32.mxu0 0.0
      %5168 = vmatmul.mubr.f32.gmra.mrb[0].mxu0 %v5028
      %v5169 = vpop.f32.mrb[0].mxu0
      %v5170 = vadd.f32 0.0, %v5169
      %v5171 = vpop.f32.mrb[0].mxu0
      %5172 = vmatprep.mubr.f32.mxu0 0.0
      %5173 = vmatmul.mubr.f32.gmra.mrb[0].mxu0 %v5031
      %v5174 = vpop.f32.mrb[0].mxu0
      %v5175 = vadd.f32 0.0, %v5174
      %v5176 = vpop.f32.mrb[0].mxu0
      %5177 = vdwg.mxu0
      %v5178 = vadd.f32 %v4951, %v5100
      %v5179 = vadd.f32 %v4952, %v5105
      %v5180 = vadd.f32 %v4953, %v5110
      %v5181 = vadd.f32 %v4954, %v5115
      %v5182 = vadd.f32 %v4955, %v5120
      %v5183 = vadd.f32 %v4956, %v5125
      %v5184 = vadd.f32 %v4957, %v5130
      %v5185 = vadd.f32 %v4958, %v5135
      %v5186 = vadd.f32 %v4959, %v5140
      %v5187 = vadd.f32 %v4960, %v5145
      %v5188 = vadd.f32 %v4961, %v5150
      %v5189 = vadd.f32 %v4962, %v5155
      %v5190 = vadd.f32 %v4963, %v5160
      %v5191 = vadd.f32 %v4964, %v5165
      %v5192 = vadd.f32 %v4965, %v5170
      %v5193 = vadd.f32 %v4966, %v5175
      %v5194 = vld [vmem:[%s4739 + $0x2] sm:$0xff]
      %v5195 = vld [vmem:[%s4739 + $0xa] sm:$0xff]
      %v5196 = vld [vmem:[%s4739 + $0x1a] sm:$0xff]
      %v5197 = vld [vmem:[%s4739 + $0x22] sm:$0xff]
      %v5198 = vld [vmem:[%s4739 + $0x32] sm:$0xff]
      %v5199 = vld [vmem:[%s4739 + $0x3a] sm:$0xff]
      %v5200 = vld [vmem:[%s4739 + $0x4a] sm:$0xff]
      %v5201 = vld [vmem:[%s4739 + $0x52] sm:$0xff]
      %v5202 = vld [vmem:[%s4739 + $0x62] sm:$0xff]
      %v5203 = vld [vmem:[%s4739 + $0x6a] sm:$0xff]
      %v5204 = vld [vmem:[%s4739 + $0x7a] sm:$0xff]
      %v5205 = vld [vmem:[%s4739 + $0x82] sm:$0xff]
      %v5206 = vld [vmem:[%s4739 + $0x92] sm:$0xff]
      %v5207 = vld [vmem:[%s4739 + $0x9a] sm:$0xff]
      %v5208 = vld [vmem:[%s4739 + $0xaa] sm:$0xff]
      %v5209 = vld [vmem:[%s4739 + $0xb2] sm:$0xff]
      %s5210 = scalar_lea.vmem %s3, 40
      %v5211 = vld [vmem:[%s5210] sm:$0xff]
      %v5213 = vsel %vm4067, %v5194, 0
      %v5216 = vsel %vm4067, %v5195, 0
      %v5219 = vsel %vm4067, %v5196, 0
      %v5222 = vsel %vm4067, %v5197, 0
      %v5225 = vsel %vm4067, %v5198, 0
      %v5228 = vsel %vm4067, %v5199, 0
      %v5231 = vsel %vm4067, %v5200, 0
      %v5234 = vsel %vm4067, %v5201, 0
      %v5237 = vsel %vm4067, %v5202, 0
      %v5240 = vsel %vm4067, %v5203, 0
      %v5243 = vsel %vm4067, %v5204, 0
      %v5246 = vsel %vm4067, %v5205, 0
      %v5249 = vsel %vm4067, %v5206, 0
      %v5252 = vsel %vm4067, %v5207, 0
      %v5255 = vsel %vm4067, %v5208, 0
      %v5258 = vsel %vm4067, %v5209, 0
      %5260 = vmatprep.subr.mxu0 0.0
      %5261 = vmatpush1.msra.mxu0 %v5211
      %5262 = vmatprep.subr.mxu0 0.0
      %5263 = vmatpush1.msra.mxu0 0.0
      %5264 = vmatprep.subr.mxu0 0.0
      %5265 = vmatpush1.msra.mxu0 0.0
      %5266 = vmatprep.subr.mxu0 0.0
      %5267 = vmatpush1.msra.mxu0 0.0
      %5268 = vmatprep.subr.mxu0 0.0
      %5269 = vmatpush1.msra.mxu0 0.0
      %5270 = vmatprep.subr.mxu0 0.0
      %5271 = vmatpush1.msra.mxu0 0.0
      %5272 = vmatprep.subr.mxu0 0.0
      %5273 = vmatpush1.msra.mxu0 0.0
      %5274 = vmatprep.subr.mxu0 0.0
      %5275 = vmatpush1.msra.mxu0 0.0
      %5276 = vmatprep.subr.mxu0 0.0
      %5277 = vmatpush1.msra.mxu0 0.0
      %5278 = vmatprep.subr.mxu0 0.0
      %5279 = vmatpush1.msra.mxu0 0.0
      %5280 = vmatprep.subr.mxu0 0.0
      %5281 = vmatpush1.msra.mxu0 0.0
      %5282 = vmatprep.subr.mxu0 0.0
      %5283 = vmatpush1.msra.mxu0 0.0
      %5284 = vmatprep.subr.mxu0 0.0
      %5285 = vmatpush1.msra.mxu0 0.0
      %5286 = vmatprep.subr.mxu0 0.0
      %5287 = vmatpush1.msra.mxu0 0.0
      %5288 = vmatprep.subr.mxu0 0.0
      %5289 = vmatpush1.msra.mxu0 0.0
      %5290 = vmatprep.subr.mxu0 0.0
      %5291 = vmatpush1.msra.mxu0 0.0
      %5292 = vmatprep.subr.mxu0 0.0
      %5293 = vmatpush1.msra.mxu0 0.0
      %5294 = vmatprep.subr.mxu0 0.0
      %5295 = vmatpush1.msra.mxu0 0.0
      %5296 = vmatprep.subr.mxu0 0.0
      %5297 = vmatpush1.msra.mxu0 0.0
      %5298 = vmatprep.subr.mxu0 0.0
      %5299 = vmatpush1.msra.mxu0 0.0
      %5300 = vmatprep.subr.mxu0 0.0
      %5301 = vmatpush1.msra.mxu0 0.0
      %5302 = vmatprep.subr.mxu0 0.0
      %5303 = vmatpush1.msra.mxu0 0.0
      %5304 = vmatprep.subr.mxu0 0.0
      %5305 = vmatpush1.msra.mxu0 0.0
      %5306 = vmatprep.subr.mxu0 0.0
      %5307 = vmatpush1.msra.mxu0 0.0
      %5308 = vmatprep.subr.mxu0 0.0
      %5309 = vmatpush1.msra.mxu0 0.0
      %5310 = vmatprep.subr.mxu0 0.0
      %5311 = vmatpush1.msra.mxu0 0.0
      %5312 = vmatprep.subr.mxu0 0.0
      %5313 = vmatpush1.msra.mxu0 0.0
      %5314 = vmatprep.subr.mxu0 0.0
      %5315 = vmatpush1.msra.mxu0 0.0
      %5316 = vmatprep.subr.mxu0 0.0
      %5317 = vmatpush1.msra.mxu0 0.0
      %5318 = vmatprep.subr.mxu0 0.0
      %5319 = vmatpush1.msra.mxu0 0.0
      %5320 = vmatprep.subr.mxu0 0.0
      %5321 = vmatpush1.msra.mxu0 0.0
      %5322 = vmatprep.subr.mxu0 0.0
      %5323 = vmatpush1.msra.mxu0 0.0
      %5324 = vmatprep.mubr.f32.mxu0 0.0
      %5325 = vmatmul.mubr.f32.gmra.mrb[0].mxu0 %v5213
      %v5326 = vpop.f32.mrb[0].mxu0
      %v5327 = vadd.f32 0.0, %v5326
      %v5328 = vpop.f32.mrb[0].mxu0
      %5329 = vmatprep.mubr.f32.mxu0 0.0
      %5330 = vmatmul.mubr.f32.gmra.mrb[0].mxu0 %v5216
      %v5331 = vpop.f32.mrb[0].mxu0
      %v5332 = vadd.f32 0.0, %v5331
      %v5333 = vpop.f32.mrb[0].mxu0
      %5334 = vmatprep.mubr.f32.mxu0 0.0
      %5335 = vmatmul.mubr.f32.gmra.mrb[0].mxu0 %v5219
      %v5336 = vpop.f32.mrb[0].mxu0
      %v5337 = vadd.f32 0.0, %v5336
      %v5338 = vpop.f32.mrb[0].mxu0
      %5339 = vmatprep.mubr.f32.mxu0 0.0
      %5340 = vmatmul.mubr.f32.gmra.mrb[0].mxu0 %v5222
      %v5341 = vpop.f32.mrb[0].mxu0
      %v5342 = vadd.f32 0.0, %v5341
      %v5343 = vpop.f32.mrb[0].mxu0
      %5344 = vmatprep.mubr.f32.mxu0 0.0
      %5345 = vmatmul.mubr.f32.gmra.mrb[0].mxu0 %v5225
      %v5346 = vpop.f32.mrb[0].mxu0
      %v5347 = vadd.f32 0.0, %v5346
      %v5348 = vpop.f32.mrb[0].mxu0
      %5349 = vmatprep.mubr.f32.mxu0 0.0
      %5350 = vmatmul.mubr.f32.gmra.mrb[0].mxu0 %v5228
      %v5351 = vpop.f32.mrb[0].mxu0
      %v5352 = vadd.f32 0.0, %v5351
      %v5353 = vpop.f32.mrb[0].mxu0
      %5354 = vmatprep.mubr.f32.mxu0 0.0
      %5355 = vmatmul.mubr.f32.gmra.mrb[0].mxu0 %v5231
      %v5356 = vpop.f32.mrb[0].mxu0
      %v5357 = vadd.f32 0.0, %v5356
      %v5358 = vpop.f32.mrb[0].mxu0
      %5359 = vmatprep.mubr.f32.mxu0 0.0
      %5360 = vmatmul.mubr.f32.gmra.mrb[0].mxu0 %v5234
      %v5361 = vpop.f32.mrb[0].mxu0
      %v5362 = vadd.f32 0.0, %v5361
      %v5363 = vpop.f32.mrb[0].mxu0
      %5364 = vmatprep.mubr.f32.mxu0 0.0
      %5365 = vmatmul.mubr.f32.gmra.mrb[0].mxu0 %v5237
      %v5366 = vpop.f32.mrb[0].mxu0
      %v5367 = vadd.f32 0.0, %v5366
      %v5368 = vpop.f32.mrb[0].mxu0
      %5369 = vmatprep.mubr.f32.mxu0 0.0
      %5370 = vmatmul.mubr.f32.gmra.mrb[0].mxu0 %v5240
      %v5371 = vpop.f32.mrb[0].mxu0
      %v5372 = vadd.f32 0.0, %v5371
      %v5373 = vpop.f32.mrb[0].mxu0
      %5374 = vmatprep.mubr.f32.mxu0 0.0
      %5375 = vmatmul.mubr.f32.gmra.mrb[0].mxu0 %v5243
      %v5376 = vpop.f32.mrb[0].mxu0
      %v5377 = vadd.f32 0.0, %v5376
      %v5378 = vpop.f32.mrb[0].mxu0
      %5379 = vmatprep.mubr.f32.mxu0 0.0
      %5380 = vmatmul.mubr.f32.gmra.mrb[0].mxu0 %v5246
      %v5381 = vpop.f32.mrb[0].mxu0
      %v5382 = vadd.f32 0.0, %v5381
      %v5383 = vpop.f32.mrb[0].mxu0
      %5384 = vmatprep.mubr.f32.mxu0 0.0
      %5385 = vmatmul.mubr.f32.gmra.mrb[0].mxu0 %v5249
      %v5386 = vpop.f32.mrb[0].mxu0
      %v5387 = vadd.f32 0.0, %v5386
      %v5388 = vpop.f32.mrb[0].mxu0
      %5389 = vmatprep.mubr.f32.mxu0 0.0
      %5390 = vmatmul.mubr.f32.gmra.mrb[0].mxu0 %v5252
      %v5391 = vpop.f32.mrb[0].mxu0
      %v5392 = vadd.f32 0.0, %v5391
      %v5393 = vpop.f32.mrb[0].mxu0
      %5394 = vmatprep.mubr.f32.mxu0 0.0
      %5395 = vmatmul.mubr.f32.gmra.mrb[0].mxu0 %v5255
      %v5396 = vpop.f32.mrb[0].mxu0
      %v5397 = vadd.f32 0.0, %v5396
      %v5398 = vpop.f32.mrb[0].mxu0
      %5399 = vmatprep.mubr.f32.mxu0 0.0
      %5400 = vmatmul.mubr.f32.gmra.mrb[0].mxu0 %v5258
      %v5401 = vpop.f32.mrb[0].mxu0
      %v5402 = vadd.f32 0.0, %v5401
      %v5403 = vpop.f32.mrb[0].mxu0
      %5404 = vdwg.mxu0
      %v5405 = vadd.f32 %v5178, %v5327
      %v5406 = vadd.f32 %v5179, %v5332
      %v5407 = vadd.f32 %v5180, %v5337
      %v5408 = vadd.f32 %v5181, %v5342
      %v5409 = vadd.f32 %v5182, %v5347
      %v5410 = vadd.f32 %v5183, %v5352
      %v5411 = vadd.f32 %v5184, %v5357
      %v5412 = vadd.f32 %v5185, %v5362
      %v5413 = vadd.f32 %v5186, %v5367
      %v5414 = vadd.f32 %v5187, %v5372
      %v5415 = vadd.f32 %v5188, %v5377
      %v5416 = vadd.f32 %v5189, %v5382
      %v5417 = vadd.f32 %v5190, %v5387
      %v5418 = vadd.f32 %v5191, %v5392
      %v5419 = vadd.f32 %v5192, %v5397
      %v5420 = vadd.f32 %v5193, %v5402
      %s5421 = sadd.s32 %s4046, 2
      %s5422 = smul.u32 %s5421, 24
      %s5423 = scalar_lea.vmem [#allocation3], %s5422
      %v5424 = vld [vmem:[%s5423] sm:$0xff]
      %v5425 = vld [vmem:[%s5423 + $0x8] sm:$0xff]
      %v5426 = vld [vmem:[%s5423 + $0x18] sm:$0xff]
      %v5427 = vld [vmem:[%s5423 + $0x20] sm:$0xff]
      %v5428 = vld [vmem:[%s5423 + $0x30] sm:$0xff]
      %v5429 = vld [vmem:[%s5423 + $0x38] sm:$0xff]
      %v5430 = vld [vmem:[%s5423 + $0x48] sm:$0xff]
      %v5431 = vld [vmem:[%s5423 + $0x50] sm:$0xff]
      %v5432 = vld [vmem:[%s5423 + $0x60] sm:$0xff]
      %v5433 = vld [vmem:[%s5423 + $0x68] sm:$0xff]
      %v5434 = vld [vmem:[%s5423 + $0x78] sm:$0xff]
      %v5435 = vld [vmem:[%s5423 + $0x80] sm:$0xff]
      %v5436 = vld [vmem:[%s5423 + $0x90] sm:$0xff]
      %v5437 = vld [vmem:[%s5423 + $0x98] sm:$0xff]
      %v5438 = vld [vmem:[%s5423 + $0xa8] sm:$0xff]
      %v5439 = vld [vmem:[%s5423 + $0xb0] sm:$0xff]
      %s5440 = scalar_lea.vmem %s3, 48
      %v5441 = vld [vmem:[%s5440] sm:$0xff]
      %v5443 = vsel %vm4067, %v5424, 0
      %v5446 = vsel %vm4067, %v5425, 0
      %v5449 = vsel %vm4067, %v5426, 0
      %v5452 = vsel %vm4067, %v5427, 0
      %v5455 = vsel %vm4067, %v5428, 0
      %v5458 = vsel %vm4067, %v5429, 0
      %v5461 = vsel %vm4067, %v5430, 0
      %v5464 = vsel %vm4067, %v5431, 0
      %v5467 = vsel %vm4067, %v5432, 0
      %v5470 = vsel %vm4067, %v5433, 0
      %v5473 = vsel %vm4067, %v5434, 0
      %v5476 = vsel %vm4067, %v5435, 0
      %v5479 = vsel %vm4067, %v5436, 0
      %v5482 = vsel %vm4067, %v5437, 0
      %v5485 = vsel %vm4067, %v5438, 0
      %v5488 = vsel %vm4067, %v5439, 0
      %5490 = vmatprep.subr.mxu0 0.0
      %5491 = vmatpush1.msra.mxu0 %v5441
      %5492 = vmatprep.subr.mxu0 0.0
      %5493 = vmatpush1.msra.mxu0 0.0
      %5494 = vmatprep.subr.mxu0 0.0
      %5495 = vmatpush1.msra.mxu0 0.0
      %5496 = vmatprep.subr.mxu0 0.0
      %5497 = vmatpush1.msra.mxu0 0.0
      %5498 = vmatprep.subr.mxu0 0.0
      %5499 = vmatpush1.msra.mxu0 0.0
      %5500 = vmatprep.subr.mxu0 0.0
      %5501 = vmatpush1.msra.mxu0 0.0
      %5502 = vmatprep.subr.mxu0 0.0
      %5503 = vmatpush1.msra.mxu0 0.0
      %5504 = vmatprep.subr.mxu0 0.0
      %5505 = vmatpush1.msra.mxu0 0.0
      %5506 = vmatprep.subr.mxu0 0.0
      %5507 = vmatpush1.msra.mxu0 0.0
      %5508 = vmatprep.subr.mxu0 0.0
      %5509 = vmatpush1.msra.mxu0 0.0
      %5510 = vmatprep.subr.mxu0 0.0
      %5511 = vmatpush1.msra.mxu0 0.0
      %5512 = vmatprep.subr.mxu0 0.0
      %5513 = vmatpush1.msra.mxu0 0.0
      %5514 = vmatprep.subr.mxu0 0.0
      %5515 = vmatpush1.msra.mxu0 0.0
      %5516 = vmatprep.subr.mxu0 0.0
      %5517 = vmatpush1.msra.mxu0 0.0
      %5518 = vmatprep.subr.mxu0 0.0
      %5519 = vmatpush1.msra.mxu0 0.0
      %5520 = vmatprep.subr.mxu0 0.0
      %5521 = vmatpush1.msra.mxu0 0.0
      %5522 = vmatprep.subr.mxu0 0.0
      %5523 = vmatpush1.msra.mxu0 0.0
      %5524 = vmatprep.subr.mxu0 0.0
      %5525 = vmatpush1.msra.mxu0 0.0
      %5526 = vmatprep.subr.mxu0 0.0
      %5527 = vmatpush1.msra.mxu0 0.0
      %5528 = vmatprep.subr.mxu0 0.0
      %5529 = vmatpush1.msra.mxu0 0.0
      %5530 = vmatprep.subr.mxu0 0.0
      %5531 = vmatpush1.msra.mxu0 0.0
      %5532 = vmatprep.subr.mxu0 0.0
      %5533 = vmatpush1.msra.mxu0 0.0
      %5534 = vmatprep.subr.mxu0 0.0
      %5535 = vmatpush1.msra.mxu0 0.0
      %5536 = vmatprep.subr.mxu0 0.0
      %5537 = vmatpush1.msra.mxu0 0.0
      %5538 = vmatprep.subr.mxu0 0.0
      %5539 = vmatpush1.msra.mxu0 0.0
      %5540 = vmatprep.subr.mxu0 0.0
      %5541 = vmatpush1.msra.mxu0 0.0
      %5542 = vmatprep.subr.mxu0 0.0
      %5543 = vmatpush1.msra.mxu0 0.0
      %5544 = vmatprep.subr.mxu0 0.0
      %5545 = vmatpush1.msra.mxu0 0.0
      %5546 = vmatprep.subr.mxu0 0.0
      %5547 = vmatpush1.msra.mxu0 0.0
      %5548 = vmatprep.subr.mxu0 0.0
      %5549 = vmatpush1.msra.mxu0 0.0
      %5550 = vmatprep.subr.mxu0 0.0
      %5551 = vmatpush1.msra.mxu0 0.0
      %5552 = vmatprep.subr.mxu0 0.0
      %5553 = vmatpush1.msra.mxu0 0.0
      %5554 = vmatprep.mubr.f32.mxu0 0.0
      %5555 = vmatmul.mubr.f32.gmra.mrb[0].mxu0 %v5443
      %v5556 = vpop.f32.mrb[0].mxu0
      %v5557 = vadd.f32 0.0, %v5556
      %v5558 = vpop.f32.mrb[0].mxu0
      %5559 = vmatprep.mubr.f32.mxu0 0.0
      %5560 = vmatmul.mubr.f32.gmra.mrb[0].mxu0 %v5446
      %v5561 = vpop.f32.mrb[0].mxu0
      %v5562 = vadd.f32 0.0, %v5561
      %v5563 = vpop.f32.mrb[0].mxu0
      %5564 = vmatprep.mubr.f32.mxu0 0.0
      %5565 = vmatmul.mubr.f32.gmra.mrb[0].mxu0 %v5449
      %v5566 = vpop.f32.mrb[0].mxu0
      %v5567 = vadd.f32 0.0, %v5566
      %v5568 = vpop.f32.mrb[0].mxu0
      %5569 = vmatprep.mubr.f32.mxu0 0.0
      %5570 = vmatmul.mubr.f32.gmra.mrb[0].mxu0 %v5452
      %v5571 = vpop.f32.mrb[0].mxu0
      %v5572 = vadd.f32 0.0, %v5571
      %v5573 = vpop.f32.mrb[0].mxu0
      %5574 = vmatprep.mubr.f32.mxu0 0.0
      %5575 = vmatmul.mubr.f32.gmra.mrb[0].mxu0 %v5455
      %v5576 = vpop.f32.mrb[0].mxu0
      %v5577 = vadd.f32 0.0, %v5576
      %v5578 = vpop.f32.mrb[0].mxu0
      %5579 = vmatprep.mubr.f32.mxu0 0.0
      %5580 = vmatmul.mubr.f32.gmra.mrb[0].mxu0 %v5458
      %v5581 = vpop.f32.mrb[0].mxu0
      %v5582 = vadd.f32 0.0, %v5581
      %v5583 = vpop.f32.mrb[0].mxu0
      %5584 = vmatprep.mubr.f32.mxu0 0.0
      %5585 = vmatmul.mubr.f32.gmra.mrb[0].mxu0 %v5461
      %v5586 = vpop.f32.mrb[0].mxu0
      %v5587 = vadd.f32 0.0, %v5586
      %v5588 = vpop.f32.mrb[0].mxu0
      %5589 = vmatprep.mubr.f32.mxu0 0.0
      %5590 = vmatmul.mubr.f32.gmra.mrb[0].mxu0 %v5464
      %v5591 = vpop.f32.mrb[0].mxu0
      %v5592 = vadd.f32 0.0, %v5591
      %v5593 = vpop.f32.mrb[0].mxu0
      %5594 = vmatprep.mubr.f32.mxu0 0.0
      %5595 = vmatmul.mubr.f32.gmra.mrb[0].mxu0 %v5467
      %v5596 = vpop.f32.mrb[0].mxu0
      %v5597 = vadd.f32 0.0, %v5596
      %v5598 = vpop.f32.mrb[0].mxu0
      %5599 = vmatprep.mubr.f32.mxu0 0.0
      %5600 = vmatmul.mubr.f32.gmra.mrb[0].mxu0 %v5470
      %v5601 = vpop.f32.mrb[0].mxu0
      %v5602 = vadd.f32 0.0, %v5601
      %v5603 = vpop.f32.mrb[0].mxu0
      %5604 = vmatprep.mubr.f32.mxu0 0.0
      %5605 = vmatmul.mubr.f32.gmra.mrb[0].mxu0 %v5473
      %v5606 = vpop.f32.mrb[0].mxu0
      %v5607 = vadd.f32 0.0, %v5606
      %v5608 = vpop.f32.mrb[0].mxu0
      %5609 = vmatprep.mubr.f32.mxu0 0.0
      %5610 = vmatmul.mubr.f32.gmra.mrb[0].mxu0 %v5476
      %v5611 = vpop.f32.mrb[0].mxu0
      %v5612 = vadd.f32 0.0, %v5611
      %v5613 = vpop.f32.mrb[0].mxu0
      %5614 = vmatprep.mubr.f32.mxu0 0.0
      %5615 = vmatmul.mubr.f32.gmra.mrb[0].mxu0 %v5479
      %v5616 = vpop.f32.mrb[0].mxu0
      %v5617 = vadd.f32 0.0, %v5616
      %v5618 = vpop.f32.mrb[0].mxu0
      %5619 = vmatprep.mubr.f32.mxu0 0.0
      %5620 = vmatmul.mubr.f32.gmra.mrb[0].mxu0 %v5482
      %v5621 = vpop.f32.mrb[0].mxu0
      %v5622 = vadd.f32 0.0, %v5621
      %v5623 = vpop.f32.mrb[0].mxu0
      %5624 = vmatprep.mubr.f32.mxu0 0.0
      %5625 = vmatmul.mubr.f32.gmra.mrb[0].mxu0 %v5485
      %v5626 = vpop.f32.mrb[0].mxu0
      %v5627 = vadd.f32 0.0, %v5626
      %v5628 = vpop.f32.mrb[0].mxu0
      %5629 = vmatprep.mubr.f32.mxu0 0.0
      %5630 = vmatmul.mubr.f32.gmra.mrb[0].mxu0 %v5488
      %v5631 = vpop.f32.mrb[0].mxu0
      %v5632 = vadd.f32 0.0, %v5631
      %v5633 = vpop.f32.mrb[0].mxu0
      %5634 = vdwg.mxu0
      %v5635 = vadd.f32 %v5405, %v5557
      %v5636 = vadd.f32 %v5406, %v5562
      %v5637 = vadd.f32 %v5407, %v5567
      %v5638 = vadd.f32 %v5408, %v5572
      %v5639 = vadd.f32 %v5409, %v5577
      %v5640 = vadd.f32 %v5410, %v5582
      %v5641 = vadd.f32 %v5411, %v5587
      %v5642 = vadd.f32 %v5412, %v5592
      %v5643 = vadd.f32 %v5413, %v5597
      %v5644 = vadd.f32 %v5414, %v5602
      %v5645 = vadd.f32 %v5415, %v5607
      %v5646 = vadd.f32 %v5416, %v5612
      %v5647 = vadd.f32 %v5417, %v5617
      %v5648 = vadd.f32 %v5418, %v5622
      %v5649 = vadd.f32 %v5419, %v5627
      %v5650 = vadd.f32 %v5420, %v5632
      %v5651 = vld [vmem:[%s5423 + $0x1] sm:$0xff]
      %v5652 = vld [vmem:[%s5423 + $0x9] sm:$0xff]
      %v5653 = vld [vmem:[%s5423 + $0x19] sm:$0xff]
      %v5654 = vld [vmem:[%s5423 + $0x21] sm:$0xff]
      %v5655 = vld [vmem:[%s5423 + $0x31] sm:$0xff]
      %v5656 = vld [vmem:[%s5423 + $0x39] sm:$0xff]
      %v5657 = vld [vmem:[%s5423 + $0x49] sm:$0xff]
      %v5658 = vld [vmem:[%s5423 + $0x51] sm:$0xff]
      %v5659 = vld [vmem:[%s5423 + $0x61] sm:$0xff]
      %v5660 = vld [vmem:[%s5423 + $0x69] sm:$0xff]
      %v5661 = vld [vmem:[%s5423 + $0x79] sm:$0xff]
      %v5662 = vld [vmem:[%s5423 + $0x81] sm:$0xff]
      %v5663 = vld [vmem:[%s5423 + $0x91] sm:$0xff]
      %v5664 = vld [vmem:[%s5423 + $0x99] sm:$0xff]
      %v5665 = vld [vmem:[%s5423 + $0xa9] sm:$0xff]
      %v5666 = vld [vmem:[%s5423 + $0xb1] sm:$0xff]
      %s5667 = scalar_lea.vmem %s3, 56
      %v5668 = vld [vmem:[%s5667] sm:$0xff]
      %v5670 = vsel %vm4067, %v5651, 0
      %v5673 = vsel %vm4067, %v5652, 0
      %v5676 = vsel %vm4067, %v5653, 0
      %v5679 = vsel %vm4067, %v5654, 0
      %v5682 = vsel %vm4067, %v5655, 0
      %v5685 = vsel %vm4067, %v5656, 0
      %v5688 = vsel %vm4067, %v5657, 0
      %v5691 = vsel %vm4067, %v5658, 0
      %v5694 = vsel %vm4067, %v5659, 0
      %v5697 = vsel %vm4067, %v5660, 0
      %v5700 = vsel %vm4067, %v5661, 0
      %v5703 = vsel %vm4067, %v5662, 0
      %v5706 = vsel %vm4067, %v5663, 0
      %v5709 = vsel %vm4067, %v5664, 0
      %v5712 = vsel %vm4067, %v5665, 0
      %v5715 = vsel %vm4067, %v5666, 0
      %5717 = vmatprep.subr.mxu0 0.0
      %5718 = vmatpush1.msra.mxu0 %v5668
      %5719 = vmatprep.subr.mxu0 0.0
      %5720 = vmatpush1.msra.mxu0 0.0
      %5721 = vmatprep.subr.mxu0 0.0
      %5722 = vmatpush1.msra.mxu0 0.0
      %5723 = vmatprep.subr.mxu0 0.0
      %5724 = vmatpush1.msra.mxu0 0.0
      %5725 = vmatprep.subr.mxu0 0.0
      %5726 = vmatpush1.msra.mxu0 0.0
      %5727 = vmatprep.subr.mxu0 0.0
      %5728 = vmatpush1.msra.mxu0 0.0
      %5729 = vmatprep.subr.mxu0 0.0
      %5730 = vmatpush1.msra.mxu0 0.0
      %5731 = vmatprep.subr.mxu0 0.0
      %5732 = vmatpush1.msra.mxu0 0.0
      %5733 = vmatprep.subr.mxu0 0.0
      %5734 = vmatpush1.msra.mxu0 0.0
      %5735 = vmatprep.subr.mxu0 0.0
      %5736 = vmatpush1.msra.mxu0 0.0
      %5737 = vmatprep.subr.mxu0 0.0
      %5738 = vmatpush1.msra.mxu0 0.0
      %5739 = vmatprep.subr.mxu0 0.0
      %5740 = vmatpush1.msra.mxu0 0.0
      %5741 = vmatprep.subr.mxu0 0.0
      %5742 = vmatpush1.msra.mxu0 0.0
      %5743 = vmatprep.subr.mxu0 0.0
      %5744 = vmatpush1.msra.mxu0 0.0
      %5745 = vmatprep.subr.mxu0 0.0
      %5746 = vmatpush1.msra.mxu0 0.0
      %5747 = vmatprep.subr.mxu0 0.0
      %5748 = vmatpush1.msra.mxu0 0.0
      %5749 = vmatprep.subr.mxu0 0.0
      %5750 = vmatpush1.msra.mxu0 0.0
      %5751 = vmatprep.subr.mxu0 0.0
      %5752 = vmatpush1.msra.mxu0 0.0
      %5753 = vmatprep.subr.mxu0 0.0
      %5754 = vmatpush1.msra.mxu0 0.0
      %5755 = vmatprep.subr.mxu0 0.0
      %5756 = vmatpush1.msra.mxu0 0.0
      %5757 = vmatprep.subr.mxu0 0.0
      %5758 = vmatpush1.msra.mxu0 0.0
      %5759 = vmatprep.subr.mxu0 0.0
      %5760 = vmatpush1.msra.mxu0 0.0
      %5761 = vmatprep.subr.mxu0 0.0
      %5762 = vmatpush1.msra.mxu0 0.0
      %5763 = vmatprep.subr.mxu0 0.0
      %5764 = vmatpush1.msra.mxu0 0.0
      %5765 = vmatprep.subr.mxu0 0.0
      %5766 = vmatpush1.msra.mxu0 0.0
      %5767 = vmatprep.subr.mxu0 0.0
      %5768 = vmatpush1.msra.mxu0 0.0
      %5769 = vmatprep.subr.mxu0 0.0
      %5770 = vmatpush1.msra.mxu0 0.0
      %5771 = vmatprep.subr.mxu0 0.0
      %5772 = vmatpush1.msra.mxu0 0.0
      %5773 = vmatprep.subr.mxu0 0.0
      %5774 = vmatpush1.msra.mxu0 0.0
      %5775 = vmatprep.subr.mxu0 0.0
      %5776 = vmatpush1.msra.mxu0 0.0
      %5777 = vmatprep.subr.mxu0 0.0
      %5778 = vmatpush1.msra.mxu0 0.0
      %5779 = vmatprep.subr.mxu0 0.0
      %5780 = vmatpush1.msra.mxu0 0.0
      %5781 = vmatprep.mubr.f32.mxu0 0.0
      %5782 = vmatmul.mubr.f32.gmra.mrb[0].mxu0 %v5670
      %v5783 = vpop.f32.mrb[0].mxu0
      %v5784 = vadd.f32 0.0, %v5783
      %v5785 = vpop.f32.mrb[0].mxu0
      %5786 = vmatprep.mubr.f32.mxu0 0.0
      %5787 = vmatmul.mubr.f32.gmra.mrb[0].mxu0 %v5673
      %v5788 = vpop.f32.mrb[0].mxu0
      %v5789 = vadd.f32 0.0, %v5788
      %v5790 = vpop.f32.mrb[0].mxu0
      %5791 = vmatprep.mubr.f32.mxu0 0.0
      %5792 = vmatmul.mubr.f32.gmra.mrb[0].mxu0 %v5676
      %v5793 = vpop.f32.mrb[0].mxu0
      %v5794 = vadd.f32 0.0, %v5793
      %v5795 = vpop.f32.mrb[0].mxu0
      %5796 = vmatprep.mubr.f32.mxu0 0.0
      %5797 = vmatmul.mubr.f32.gmra.mrb[0].mxu0 %v5679
      %v5798 = vpop.f32.mrb[0].mxu0
      %v5799 = vadd.f32 0.0, %v5798
      %v5800 = vpop.f32.mrb[0].mxu0
      %5801 = vmatprep.mubr.f32.mxu0 0.0
      %5802 = vmatmul.mubr.f32.gmra.mrb[0].mxu0 %v5682
      %v5803 = vpop.f32.mrb[0].mxu0
      %v5804 = vadd.f32 0.0, %v5803
      %v5805 = vpop.f32.mrb[0].mxu0
      %5806 = vmatprep.mubr.f32.mxu0 0.0
      %5807 = vmatmul.mubr.f32.gmra.mrb[0].mxu0 %v5685
      %v5808 = vpop.f32.mrb[0].mxu0
      %v5809 = vadd.f32 0.0, %v5808
      %v5810 = vpop.f32.mrb[0].mxu0
      %5811 = vmatprep.mubr.f32.mxu0 0.0
      %5812 = vmatmul.mubr.f32.gmra.mrb[0].mxu0 %v5688
      %v5813 = vpop.f32.mrb[0].mxu0
      %v5814 = vadd.f32 0.0, %v5813
      %v5815 = vpop.f32.mrb[0].mxu0
      %5816 = vmatprep.mubr.f32.mxu0 0.0
      %5817 = vmatmul.mubr.f32.gmra.mrb[0].mxu0 %v5691
      %v5818 = vpop.f32.mrb[0].mxu0
      %v5819 = vadd.f32 0.0, %v5818
      %v5820 = vpop.f32.mrb[0].mxu0
      %5821 = vmatprep.mubr.f32.mxu0 0.0
      %5822 = vmatmul.mubr.f32.gmra.mrb[0].mxu0 %v5694
      %v5823 = vpop.f32.mrb[0].mxu0
      %v5824 = vadd.f32 0.0, %v5823
      %v5825 = vpop.f32.mrb[0].mxu0
      %5826 = vmatprep.mubr.f32.mxu0 0.0
      %5827 = vmatmul.mubr.f32.gmra.mrb[0].mxu0 %v5697
      %v5828 = vpop.f32.mrb[0].mxu0
      %v5829 = vadd.f32 0.0, %v5828
      %v5830 = vpop.f32.mrb[0].mxu0
      %5831 = vmatprep.mubr.f32.mxu0 0.0
      %5832 = vmatmul.mubr.f32.gmra.mrb[0].mxu0 %v5700
      %v5833 = vpop.f32.mrb[0].mxu0
      %v5834 = vadd.f32 0.0, %v5833
      %v5835 = vpop.f32.mrb[0].mxu0
      %5836 = vmatprep.mubr.f32.mxu0 0.0
      %5837 = vmatmul.mubr.f32.gmra.mrb[0].mxu0 %v5703
      %v5838 = vpop.f32.mrb[0].mxu0
      %v5839 = vadd.f32 0.0, %v5838
      %v5840 = vpop.f32.mrb[0].mxu0
      %5841 = vmatprep.mubr.f32.mxu0 0.0
      %5842 = vmatmul.mubr.f32.gmra.mrb[0].mxu0 %v5706
      %v5843 = vpop.f32.mrb[0].mxu0
      %v5844 = vadd.f32 0.0, %v5843
      %v5845 = vpop.f32.mrb[0].mxu0
      %5846 = vmatprep.mubr.f32.mxu0 0.0
      %5847 = vmatmul.mubr.f32.gmra.mrb[0].mxu0 %v5709
      %v5848 = vpop.f32.mrb[0].mxu0
      %v5849 = vadd.f32 0.0, %v5848
      %v5850 = vpop.f32.mrb[0].mxu0
      %5851 = vmatprep.mubr.f32.mxu0 0.0
      %5852 = vmatmul.mubr.f32.gmra.mrb[0].mxu0 %v5712
      %v5853 = vpop.f32.mrb[0].mxu0
      %v5854 = vadd.f32 0.0, %v5853
      %v5855 = vpop.f32.mrb[0].mxu0
      %5856 = vmatprep.mubr.f32.mxu0 0.0
      %5857 = vmatmul.mubr.f32.gmra.mrb[0].mxu0 %v5715
      %v5858 = vpop.f32.mrb[0].mxu0
      %v5859 = vadd.f32 0.0, %v5858
      %v5860 = vpop.f32.mrb[0].mxu0
      %5861 = vdwg.mxu0
      %v5862 = vadd.f32 %v5635, %v5784
      %v5863 = vadd.f32 %v5636, %v5789
      %v5864 = vadd.f32 %v5637, %v5794
      %v5865 = vadd.f32 %v5638, %v5799
      %v5866 = vadd.f32 %v5639, %v5804
      %v5867 = vadd.f32 %v5640, %v5809
      %v5868 = vadd.f32 %v5641, %v5814
      %v5869 = vadd.f32 %v5642, %v5819
      %v5870 = vadd.f32 %v5643, %v5824
      %v5871 = vadd.f32 %v5644, %v5829
      %v5872 = vadd.f32 %v5645, %v5834
      %v5873 = vadd.f32 %v5646, %v5839
      %v5874 = vadd.f32 %v5647, %v5844
      %v5875 = vadd.f32 %v5648, %v5849
      %v5876 = vadd.f32 %v5649, %v5854
      %v5877 = vadd.f32 %v5650, %v5859
      %v5878 = vld [vmem:[%s5423 + $0x2] sm:$0xff]
      %v5879 = vld [vmem:[%s5423 + $0xa] sm:$0xff]
      %v5880 = vld [vmem:[%s5423 + $0x1a] sm:$0xff]
      %v5881 = vld [vmem:[%s5423 + $0x22] sm:$0xff]
      %v5882 = vld [vmem:[%s5423 + $0x32] sm:$0xff]
      %v5883 = vld [vmem:[%s5423 + $0x3a] sm:$0xff]
      %v5884 = vld [vmem:[%s5423 + $0x4a] sm:$0xff]
      %v5885 = vld [vmem:[%s5423 + $0x52] sm:$0xff]
      %v5886 = vld [vmem:[%s5423 + $0x62] sm:$0xff]
      %v5887 = vld [vmem:[%s5423 + $0x6a] sm:$0xff]
      %v5888 = vld [vmem:[%s5423 + $0x7a] sm:$0xff]
      %v5889 = vld [vmem:[%s5423 + $0x82] sm:$0xff]
      %v5890 = vld [vmem:[%s5423 + $0x92] sm:$0xff]
      %v5891 = vld [vmem:[%s5423 + $0x9a] sm:$0xff]
      %v5892 = vld [vmem:[%s5423 + $0xaa] sm:$0xff]
      %v5893 = vld [vmem:[%s5423 + $0xb2] sm:$0xff]
      %s5894 = scalar_lea.vmem %s3, 64
      %v5895 = vld [vmem:[%s5894] sm:$0xff]
      %v5897 = vsel %vm4067, %v5878, 0
      %v5900 = vsel %vm4067, %v5879, 0
      %v5903 = vsel %vm4067, %v5880, 0
      %v5906 = vsel %vm4067, %v5881, 0
      %v5909 = vsel %vm4067, %v5882, 0
      %v5912 = vsel %vm4067, %v5883, 0
      %v5915 = vsel %vm4067, %v5884, 0
      %v5918 = vsel %vm4067, %v5885, 0
      %v5921 = vsel %vm4067, %v5886, 0
      %v5924 = vsel %vm4067, %v5887, 0
      %v5927 = vsel %vm4067, %v5888, 0
      %v5930 = vsel %vm4067, %v5889, 0
      %v5933 = vsel %vm4067, %v5890, 0
      %v5936 = vsel %vm4067, %v5891, 0
      %v5939 = vsel %vm4067, %v5892, 0
      %v5942 = vsel %vm4067, %v5893, 0
      %5944 = vmatprep.subr.mxu0 0.0
      %5945 = vmatpush1.msra.mxu0 %v5895
      %5946 = vmatprep.subr.mxu0 0.0
      %5947 = vmatpush1.msra.mxu0 0.0
      %5948 = vmatprep.subr.mxu0 0.0
      %5949 = vmatpush1.msra.mxu0 0.0
      %5950 = vmatprep.subr.mxu0 0.0
      %5951 = vmatpush1.msra.mxu0 0.0
      %5952 = vmatprep.subr.mxu0 0.0
      %5953 = vmatpush1.msra.mxu0 0.0
      %5954 = vmatprep.subr.mxu0 0.0
      %5955 = vmatpush1.msra.mxu0 0.0
      %5956 = vmatprep.subr.mxu0 0.0
      %5957 = vmatpush1.msra.mxu0 0.0
      %5958 = vmatprep.subr.mxu0 0.0
      %5959 = vmatpush1.msra.mxu0 0.0
      %5960 = vmatprep.subr.mxu0 0.0
      %5961 = vmatpush1.msra.mxu0 0.0
      %5962 = vmatprep.subr.mxu0 0.0
      %5963 = vmatpush1.msra.mxu0 0.0
      %5964 = vmatprep.subr.mxu0 0.0
      %5965 = vmatpush1.msra.mxu0 0.0
      %5966 = vmatprep.subr.mxu0 0.0
      %5967 = vmatpush1.msra.mxu0 0.0
      %5968 = vmatprep.subr.mxu0 0.0
      %5969 = vmatpush1.msra.mxu0 0.0
      %5970 = vmatprep.subr.mxu0 0.0
      %5971 = vmatpush1.msra.mxu0 0.0
      %5972 = vmatprep.subr.mxu0 0.0
      %5973 = vmatpush1.msra.mxu0 0.0
      %5974 = vmatprep.subr.mxu0 0.0
      %5975 = vmatpush1.msra.mxu0 0.0
      %5976 = vmatprep.subr.mxu0 0.0
      %5977 = vmatpush1.msra.mxu0 0.0
      %5978 = vmatprep.subr.mxu0 0.0
      %5979 = vmatpush1.msra.mxu0 0.0
      %5980 = vmatprep.subr.mxu0 0.0
      %5981 = vmatpush1.msra.mxu0 0.0
      %5982 = vmatprep.subr.mxu0 0.0
      %5983 = vmatpush1.msra.mxu0 0.0
      %5984 = vmatprep.subr.mxu0 0.0
      %5985 = vmatpush1.msra.mxu0 0.0
      %5986 = vmatprep.subr.mxu0 0.0
      %5987 = vmatpush1.msra.mxu0 0.0
      %5988 = vmatprep.subr.mxu0 0.0
      %5989 = vmatpush1.msra.mxu0 0.0
      %5990 = vmatprep.subr.mxu0 0.0
      %5991 = vmatpush1.msra.mxu0 0.0
      %5992 = vmatprep.subr.mxu0 0.0
      %5993 = vmatpush1.msra.mxu0 0.0
      %5994 = vmatprep.subr.mxu0 0.0
      %5995 = vmatpush1.msra.mxu0 0.0
      %5996 = vmatprep.subr.mxu0 0.0
      %5997 = vmatpush1.msra.mxu0 0.0
      %5998 = vmatprep.subr.mxu0 0.0
      %5999 = vmatpush1.msra.mxu0 0.0
      %6000 = vmatprep.subr.mxu0 0.0
      %6001 = vmatpush1.msra.mxu0 0.0
      %6002 = vmatprep.subr.mxu0 0.0
      %6003 = vmatpush1.msra.mxu0 0.0
      %6004 = vmatprep.subr.mxu0 0.0
      %6005 = vmatpush1.msra.mxu0 0.0
      %6006 = vmatprep.subr.mxu0 0.0
      %6007 = vmatpush1.msra.mxu0 0.0
      %6008 = vmatprep.mubr.f32.mxu0 0.0
      %6009 = vmatmul.mubr.f32.gmra.mrb[0].mxu0 %v5897
      %v6010 = vpop.f32.mrb[0].mxu0
      %v6011 = vadd.f32 0.0, %v6010
      %v6012 = vpop.f32.mrb[0].mxu0
      %6013 = vmatprep.mubr.f32.mxu0 0.0
      %6014 = vmatmul.mubr.f32.gmra.mrb[0].mxu0 %v5900
      %v6015 = vpop.f32.mrb[0].mxu0
      %v6016 = vadd.f32 0.0, %v6015
      %v6017 = vpop.f32.mrb[0].mxu0
      %6018 = vmatprep.mubr.f32.mxu0 0.0
      %6019 = vmatmul.mubr.f32.gmra.mrb[0].mxu0 %v5903
      %v6020 = vpop.f32.mrb[0].mxu0
      %v6021 = vadd.f32 0.0, %v6020
      %v6022 = vpop.f32.mrb[0].mxu0
      %6023 = vmatprep.mubr.f32.mxu0 0.0
      %6024 = vmatmul.mubr.f32.gmra.mrb[0].mxu0 %v5906
      %v6025 = vpop.f32.mrb[0].mxu0
      %v6026 = vadd.f32 0.0, %v6025
      %v6027 = vpop.f32.mrb[0].mxu0
      %6028 = vmatprep.mubr.f32.mxu0 0.0
      %6029 = vmatmul.mubr.f32.gmra.mrb[0].mxu0 %v5909
      %v6030 = vpop.f32.mrb[0].mxu0
      %v6031 = vadd.f32 0.0, %v6030
      %v6032 = vpop.f32.mrb[0].mxu0
      %6033 = vmatprep.mubr.f32.mxu0 0.0
      %6034 = vmatmul.mubr.f32.gmra.mrb[0].mxu0 %v5912
      %v6035 = vpop.f32.mrb[0].mxu0
      %v6036 = vadd.f32 0.0, %v6035
      %v6037 = vpop.f32.mrb[0].mxu0
      %6038 = vmatprep.mubr.f32.mxu0 0.0
      %6039 = vmatmul.mubr.f32.gmra.mrb[0].mxu0 %v5915
      %v6040 = vpop.f32.mrb[0].mxu0
      %v6041 = vadd.f32 0.0, %v6040
      %v6042 = vpop.f32.mrb[0].mxu0
      %6043 = vmatprep.mubr.f32.mxu0 0.0
      %6044 = vmatmul.mubr.f32.gmra.mrb[0].mxu0 %v5918
      %v6045 = vpop.f32.mrb[0].mxu0
      %v6046 = vadd.f32 0.0, %v6045
      %v6047 = vpop.f32.mrb[0].mxu0
      %6048 = vmatprep.mubr.f32.mxu0 0.0
      %6049 = vmatmul.mubr.f32.gmra.mrb[0].mxu0 %v5921
      %v6050 = vpop.f32.mrb[0].mxu0
      %v6051 = vadd.f32 0.0, %v6050
      %v6052 = vpop.f32.mrb[0].mxu0
      %6053 = vmatprep.mubr.f32.mxu0 0.0
      %6054 = vmatmul.mubr.f32.gmra.mrb[0].mxu0 %v5924
      %v6055 = vpop.f32.mrb[0].mxu0
      %v6056 = vadd.f32 0.0, %v6055
      %v6057 = vpop.f32.mrb[0].mxu0
      %6058 = vmatprep.mubr.f32.mxu0 0.0
      %6059 = vmatmul.mubr.f32.gmra.mrb[0].mxu0 %v5927
      %v6060 = vpop.f32.mrb[0].mxu0
      %v6061 = vadd.f32 0.0, %v6060
      %v6062 = vpop.f32.mrb[0].mxu0
      %6063 = vmatprep.mubr.f32.mxu0 0.0
      %6064 = vmatmul.mubr.f32.gmra.mrb[0].mxu0 %v5930
      %v6065 = vpop.f32.mrb[0].mxu0
      %v6066 = vadd.f32 0.0, %v6065
      %v6067 = vpop.f32.mrb[0].mxu0
      %6068 = vmatprep.mubr.f32.mxu0 0.0
      %6069 = vmatmul.mubr.f32.gmra.mrb[0].mxu0 %v5933
      %v6070 = vpop.f32.mrb[0].mxu0
      %v6071 = vadd.f32 0.0, %v6070
      %v6072 = vpop.f32.mrb[0].mxu0
      %6073 = vmatprep.mubr.f32.mxu0 0.0
      %6074 = vmatmul.mubr.f32.gmra.mrb[0].mxu0 %v5936
      %v6075 = vpop.f32.mrb[0].mxu0
      %v6076 = vadd.f32 0.0, %v6075
      %v6077 = vpop.f32.mrb[0].mxu0
      %6078 = vmatprep.mubr.f32.mxu0 0.0
      %6079 = vmatmul.mubr.f32.gmra.mrb[0].mxu0 %v5939
      %v6080 = vpop.f32.mrb[0].mxu0
      %v6081 = vadd.f32 0.0, %v6080
      %v6082 = vpop.f32.mrb[0].mxu0
      %6083 = vmatprep.mubr.f32.mxu0 0.0
      %6084 = vmatmul.mubr.f32.gmra.mrb[0].mxu0 %v5942
      %v6085 = vpop.f32.mrb[0].mxu0
      %v6086 = vadd.f32 0.0, %v6085
      %v6087 = vpop.f32.mrb[0].mxu0
      %6088 = vdwg.mxu0
      %v6089 = vadd.f32 %v5862, %v6011
      %v6090 = vadd.f32 %v5863, %v6016
      %v6091 = vadd.f32 %v5864, %v6021
      %v6092 = vadd.f32 %v5865, %v6026
      %v6093 = vadd.f32 %v5866, %v6031
      %v6094 = vadd.f32 %v5867, %v6036
      %v6095 = vadd.f32 %v5868, %v6041
      %v6096 = vadd.f32 %v5869, %v6046
      %v6097 = vadd.f32 %v5870, %v6051
      %v6098 = vadd.f32 %v5871, %v6056
      %v6099 = vadd.f32 %v5872, %v6061
      %v6100 = vadd.f32 %v5873, %v6066
      %v6101 = vadd.f32 %v5874, %v6071
      %v6102 = vadd.f32 %v5875, %v6076
      %v6103 = vadd.f32 %v5876, %v6081
      %v6104 = vadd.f32 %v5877, %v6086
      %s6105 = smul.u32 %s4046, 16
      %s6106 = scalar_lea.vmem %s291, %s6105
      %v6107 = vld [vmem:[%s6106] sm:$0xff]
      %v6108 = vld [vmem:[%s6106 + $0x8] sm:$0xff]
      %v6109 = vld [vmem:[%s6106 + $0x10] sm:$0xff]
      %v6110 = vld [vmem:[%s6106 + $0x18] sm:$0xff]
      %v6111 = vld [vmem:[%s6106 + $0x20] sm:$0xff]
      %v6112 = vld [vmem:[%s6106 + $0x28] sm:$0xff]
      %v6113 = vld [vmem:[%s6106 + $0x30] sm:$0xff]
      %v6114 = vld [vmem:[%s6106 + $0x38] sm:$0xff]
      %v6115 = vld [vmem:[%s6106 + $0x40] sm:$0xff]
      %v6116 = vld [vmem:[%s6106 + $0x48] sm:$0xff]
      %v6117 = vld [vmem:[%s6106 + $0x50] sm:$0xff]
      %v6118 = vld [vmem:[%s6106 + $0x58] sm:$0xff]
      %v6119 = vld [vmem:[%s6106 + $0x60] sm:$0xff]
      %v6120 = vld [vmem:[%s6106 + $0x68] sm:$0xff]
      %v6121 = vld [vmem:[%s6106 + $0x70] sm:$0xff]
      %v6122 = vld [vmem:[%s6106 + $0x78] sm:$0xff]
      %v6123 = vld [vmem:[%s5] sm:$0xf]
      %v6124 = vld [vmem:[%s6] sm:$0x1]
      %v6126 = vlaneseq
      %v6127 = vshrl.u32 %v6126, 7
      %v6128 = vsub.s32 0, %v6127
      %v6129 = vrot.slane %v6124, %v6128
      %vm6131 = vcmask 31744
      %v6133 = vsel %vm6131, %v6107, 0
      %v6136 = vsel %vm6131, %v6108, 0
      %v6139 = vsel %vm6131, %v6109, 0
      %v6142 = vsel %vm6131, %v6110, 0
      %v6145 = vsel %vm6131, %v6111, 0
      %v6148 = vsel %vm6131, %v6112, 0
      %v6151 = vsel %vm6131, %v6113, 0
      %v6154 = vsel %vm6131, %v6114, 0
      %v6157 = vsel %vm6131, %v6115, 0
      %v6160 = vsel %vm6131, %v6116, 0
      %v6163 = vsel %vm6131, %v6117, 0
      %v6166 = vsel %vm6131, %v6118, 0
      %v6169 = vsel %vm6131, %v6119, 0
      %v6172 = vsel %vm6131, %v6120, 0
      %v6175 = vsel %vm6131, %v6121, 0
      %v6178 = vsel %vm6131, %v6122, 0
      %vm6180 = vcmask 1043456
      %v6182 = vsel %vm6180, %v6123, 0
      %6184 = vmatprep.subr.mxu0 0.0
      %6185 = vmatpush1.msra.mxu0 %v6182
      %6186 = vmatprep.subr.mxu0 0.0
      %6187 = vmatpush1.msra.mxu0 0.0
      %6188 = vmatprep.subr.mxu0 0.0
      %6189 = vmatpush1.msra.mxu0 0.0
      %6190 = vmatprep.subr.mxu0 0.0
      %6191 = vmatpush1.msra.mxu0 0.0
      %6192 = vmatprep.subr.mxu0 0.0
      %6193 = vmatpush1.msra.mxu0 0.0
      %6194 = vmatprep.subr.mxu0 0.0
      %6195 = vmatpush1.msra.mxu0 0.0
      %6196 = vmatprep.subr.mxu0 0.0
      %6197 = vmatpush1.msra.mxu0 0.0
      %6198 = vmatprep.subr.mxu0 0.0
      %6199 = vmatpush1.msra.mxu0 0.0
      %6200 = vmatprep.subr.mxu0 0.0
      %6201 = vmatpush1.msra.mxu0 0.0
      %6202 = vmatprep.subr.mxu0 0.0
      %6203 = vmatpush1.msra.mxu0 0.0
      %6204 = vmatprep.subr.mxu0 0.0
      %6205 = vmatpush1.msra.mxu0 0.0
      %6206 = vmatprep.subr.mxu0 0.0
      %6207 = vmatpush1.msra.mxu0 0.0
      %6208 = vmatprep.subr.mxu0 0.0
      %6209 = vmatpush1.msra.mxu0 0.0
      %6210 = vmatprep.subr.mxu0 0.0
      %6211 = vmatpush1.msra.mxu0 0.0
      %6212 = vmatprep.subr.mxu0 0.0
      %6213 = vmatpush1.msra.mxu0 0.0
      %6214 = vmatprep.subr.mxu0 0.0
      %6215 = vmatpush1.msra.mxu0 0.0
      %6216 = vmatprep.subr.mxu0 0.0
      %6217 = vmatpush1.msra.mxu0 0.0
      %6218 = vmatprep.subr.mxu0 0.0
      %6219 = vmatpush1.msra.mxu0 0.0
      %6220 = vmatprep.subr.mxu0 0.0
      %6221 = vmatpush1.msra.mxu0 0.0
      %6222 = vmatprep.subr.mxu0 0.0
      %6223 = vmatpush1.msra.mxu0 0.0
      %6224 = vmatprep.subr.mxu0 0.0
      %6225 = vmatpush1.msra.mxu0 0.0
      %6226 = vmatprep.subr.mxu0 0.0
      %6227 = vmatpush1.msra.mxu0 0.0
      %6228 = vmatprep.subr.mxu0 0.0
      %6229 = vmatpush1.msra.mxu0 0.0
      %6230 = vmatprep.subr.mxu0 0.0
      %6231 = vmatpush1.msra.mxu0 0.0
      %6232 = vmatprep.subr.mxu0 0.0
      %6233 = vmatpush1.msra.mxu0 0.0
      %6234 = vmatprep.subr.mxu0 0.0
      %6235 = vmatpush1.msra.mxu0 0.0
      %6236 = vmatprep.subr.mxu0 0.0
      %6237 = vmatpush1.msra.mxu0 0.0
      %6238 = vmatprep.subr.mxu0 0.0
      %6239 = vmatpush1.msra.mxu0 0.0
      %6240 = vmatprep.subr.mxu0 0.0
      %6241 = vmatpush1.msra.mxu0 0.0
      %6242 = vmatprep.subr.mxu0 0.0
      %6243 = vmatpush1.msra.mxu0 0.0
      %6244 = vmatprep.subr.mxu0 0.0
      %6245 = vmatpush1.msra.mxu0 0.0
      %6246 = vmatprep.subr.mxu0 0.0
      %6247 = vmatpush1.msra.mxu0 0.0
      %6248 = vmatprep.mubr.f32.mxu0 0.0
      %6249 = vmatmul.mubr.f32.gmra.mrb[0].mxu0 %v6133
      %v6250 = vpop.f32.mrb[0].mxu0
      %v6251 = vadd.f32 %v6129, %v6250
      %v6252 = vpop.f32.mrb[0].mxu0
      %6253 = vmatprep.mubr.f32.mxu0 0.0
      %6254 = vmatmul.mubr.f32.gmra.mrb[0].mxu0 %v6136
      %v6255 = vpop.f32.mrb[0].mxu0
      %v6256 = vadd.f32 %v6129, %v6255
      %v6257 = vpop.f32.mrb[0].mxu0
      %6258 = vmatprep.mubr.f32.mxu0 0.0
      %6259 = vmatmul.mubr.f32.gmra.mrb[0].mxu0 %v6139
      %v6260 = vpop.f32.mrb[0].mxu0
      %v6261 = vadd.f32 %v6129, %v6260
      %v6262 = vpop.f32.mrb[0].mxu0
      %6263 = vmatprep.mubr.f32.mxu0 0.0
      %6264 = vmatmul.mubr.f32.gmra.mrb[0].mxu0 %v6142
      %v6265 = vpop.f32.mrb[0].mxu0
      %v6266 = vadd.f32 %v6129, %v6265
      %v6267 = vpop.f32.mrb[0].mxu0
      %6268 = vmatprep.mubr.f32.mxu0 0.0
      %6269 = vmatmul.mubr.f32.gmra.mrb[0].mxu0 %v6145
      %v6270 = vpop.f32.mrb[0].mxu0
      %v6271 = vadd.f32 %v6129, %v6270
      %v6272 = vpop.f32.mrb[0].mxu0
      %6273 = vmatprep.mubr.f32.mxu0 0.0
      %6274 = vmatmul.mubr.f32.gmra.mrb[0].mxu0 %v6148
      %v6275 = vpop.f32.mrb[0].mxu0
      %v6276 = vadd.f32 %v6129, %v6275
      %v6277 = vpop.f32.mrb[0].mxu0
      %6278 = vmatprep.mubr.f32.mxu0 0.0
      %6279 = vmatmul.mubr.f32.gmra.mrb[0].mxu0 %v6151
      %v6280 = vpop.f32.mrb[0].mxu0
      %v6281 = vadd.f32 %v6129, %v6280
      %v6282 = vpop.f32.mrb[0].mxu0
      %6283 = vmatprep.mubr.f32.mxu0 0.0
      %6284 = vmatmul.mubr.f32.gmra.mrb[0].mxu0 %v6154
      %v6285 = vpop.f32.mrb[0].mxu0
      %v6286 = vadd.f32 %v6129, %v6285
      %v6287 = vpop.f32.mrb[0].mxu0
      %6288 = vmatprep.mubr.f32.mxu0 0.0
      %6289 = vmatmul.mubr.f32.gmra.mrb[0].mxu0 %v6157
      %v6290 = vpop.f32.mrb[0].mxu0
      %v6291 = vadd.f32 %v6129, %v6290
      %v6292 = vpop.f32.mrb[0].mxu0
      %6293 = vmatprep.mubr.f32.mxu0 0.0
      %6294 = vmatmul.mubr.f32.gmra.mrb[0].mxu0 %v6160
      %v6295 = vpop.f32.mrb[0].mxu0
      %v6296 = vadd.f32 %v6129, %v6295
      %v6297 = vpop.f32.mrb[0].mxu0
      %6298 = vmatprep.mubr.f32.mxu0 0.0
      %6299 = vmatmul.mubr.f32.gmra.mrb[0].mxu0 %v6163
      %v6300 = vpop.f32.mrb[0].mxu0
      %v6301 = vadd.f32 %v6129, %v6300
      %v6302 = vpop.f32.mrb[0].mxu0
      %6303 = vmatprep.mubr.f32.mxu0 0.0
      %6304 = vmatmul.mubr.f32.gmra.mrb[0].mxu0 %v6166
      %v6305 = vpop.f32.mrb[0].mxu0
      %v6306 = vadd.f32 %v6129, %v6305
      %v6307 = vpop.f32.mrb[0].mxu0
      %6308 = vmatprep.mubr.f32.mxu0 0.0
      %6309 = vmatmul.mubr.f32.gmra.mrb[0].mxu0 %v6169
      %v6310 = vpop.f32.mrb[0].mxu0
      %v6311 = vadd.f32 %v6129, %v6310
      %v6312 = vpop.f32.mrb[0].mxu0
      %6313 = vmatprep.mubr.f32.mxu0 0.0
      %6314 = vmatmul.mubr.f32.gmra.mrb[0].mxu0 %v6172
      %v6315 = vpop.f32.mrb[0].mxu0
      %v6316 = vadd.f32 %v6129, %v6315
      %v6317 = vpop.f32.mrb[0].mxu0
      %6318 = vmatprep.mubr.f32.mxu0 0.0
      %6319 = vmatmul.mubr.f32.gmra.mrb[0].mxu0 %v6175
      %v6320 = vpop.f32.mrb[0].mxu0
      %v6321 = vadd.f32 %v6129, %v6320
      %v6322 = vpop.f32.mrb[0].mxu0
      %6323 = vmatprep.mubr.f32.mxu0 0.0
      %6324 = vmatmul.mubr.f32.gmra.mrb[0].mxu0 %v6178
      %v6325 = vpop.f32.mrb[0].mxu0
      %v6326 = vadd.f32 %v6129, %v6325
      %v6327 = vpop.f32.mrb[0].mxu0
      %6328 = vdwg.mxu0
      %v6329 = vadd.f32 %v6089, %v6251
      %v6330 = vadd.f32 %v6090, %v6256
      %v6331 = vadd.f32 %v6091, %v6261
      %v6332 = vadd.f32 %v6092, %v6266
      %v6333 = vadd.f32 %v6093, %v6271
      %v6334 = vadd.f32 %v6094, %v6276
      %v6335 = vadd.f32 %v6095, %v6281
      %v6336 = vadd.f32 %v6096, %v6286
      %v6337 = vadd.f32 %v6097, %v6291
      %v6338 = vadd.f32 %v6098, %v6296
      %v6339 = vadd.f32 %v6099, %v6301
      %v6340 = vadd.f32 %v6100, %v6306
      %v6341 = vadd.f32 %v6101, %v6311
      %v6342 = vadd.f32 %v6102, %v6316
      %v6343 = vadd.f32 %v6103, %v6321
      %v6344 = vadd.f32 %v6104, %v6326
      %v6345 = vmax.f32 %v6329, 0.0
      %v6346 = vmax.f32 %v6330, 0.0
      %v6347 = vmax.f32 %v6331, 0.0
      %v6348 = vmax.f32 %v6332, 0.0
      %v6349 = vmax.f32 %v6333, 0.0
      %v6350 = vmax.f32 %v6334, 0.0
      %v6351 = vmax.f32 %v6335, 0.0
      %v6352 = vmax.f32 %v6336, 0.0
      %v6353 = vmax.f32 %v6337, 0.0
      %v6354 = vmax.f32 %v6338, 0.0
      %v6355 = vmax.f32 %v6339, 0.0
      %v6356 = vmax.f32 %v6340, 0.0
      %v6357 = vmax.f32 %v6341, 0.0
      %v6358 = vmax.f32 %v6342, 0.0
      %v6359 = vmax.f32 %v6343, 0.0
      %v6360 = vmax.f32 %v6344, 0.0
      %6361 = vst.msk [vmem:[%s300] sm:$0xff] %vm4067, %v6345
      %6362 = vst.msk [vmem:[%s300 + $0x8] sm:$0xff] %vm4067, %v6346
      %6363 = vst.msk [vmem:[%s300 + $0x10] sm:$0xff] %vm4067, %v6347
      %6364 = vst.msk [vmem:[%s300 + $0x18] sm:$0xff] %vm4067, %v6348
      %6365 = vst.msk [vmem:[%s300 + $0x20] sm:$0xff] %vm4067, %v6349
      %6366 = vst.msk [vmem:[%s300 + $0x28] sm:$0xff] %vm4067, %v6350
      %6367 = vst.msk [vmem:[%s300 + $0x30] sm:$0xff] %vm4067, %v6351
      %6368 = vst.msk [vmem:[%s300 + $0x38] sm:$0xff] %vm4067, %v6352
      %6369 = vst.msk [vmem:[%s300 + $0x40] sm:$0xff] %vm4067, %v6353
      %6370 = vst.msk [vmem:[%s300 + $0x48] sm:$0xff] %vm4067, %v6354
      %6371 = vst.msk [vmem:[%s300 + $0x50] sm:$0xff] %vm4067, %v6355
      %6372 = vst.msk [vmem:[%s300 + $0x58] sm:$0xff] %vm4067, %v6356
      %6373 = vst.msk [vmem:[%s300 + $0x60] sm:$0xff] %vm4067, %v6357
      %6374 = vst.msk [vmem:[%s300 + $0x68] sm:$0xff] %vm4067, %v6358
      %6375 = vst.msk [vmem:[%s300 + $0x70] sm:$0xff] %vm4067, %v6359
      %6376 = vst.msk [vmem:[%s300 + $0x78] sm:$0xff] %vm4067, %v6360
      %s6377 = smul.u32 16, %s23
      %p6378 = scmp.lt.s32.totalorder %s22, 1
      %s6379 = scalar_select %p6378, %s22, 1
      %p6380 = scmp.lt.s32.totalorder %s6377, 31
      %s6381 = scalar_select %p6380, %s6377, 31
      %s6382 = smul.addr %s6379, 32
      %s6383 = sadd.s32 %s6381, %s6382
      %s6384 = smul.addr %s6383, 8
      %s6385 = scalar_lea.vmem %s7, %s6384
      // Predicated region
      $region53: #{tpu_custom_call.1} parent=47 // pred_check
        %p6386 = pneg %p202
      $region54: #{tpu_custom_call.1} parent=47 // pred_check_branch
        %6388 = sbr.rel (%p6386) target = $region56
      $region55: #{tpu_custom_call.1} parent=47 // pred_region
        %s6389 = smul.u32 16, %s23
      $region56: #{tpu_custom_call.1} parent=47 // pred_fallthru
        _
    $region48: #{tpu_custom_call.1} parent=5 // pred_fallthru
      _
    %p6390 = scmp.le.s32.totalorder 2, %s13
    // Predicated region
    $region57: #{tpu_custom_call.1} parent=5 // pred_check
      %p6391 = pneg %p6390
    $region58: #{tpu_custom_call.1} parent=5 // pred_check_branch
      %6393 = sbr.rel (%p6391) target = $region60
    $region59: #{tpu_custom_call.1} parent=5 // pred_region
      %s6394 = ssub.s32 %s13, 2
      // Predicated region
      $region61: #{tpu_custom_call.1} parent=59 // pred_check
        %p6395 = pneg %p208
      $region62: #{tpu_custom_call.1} parent=59 // pred_check_branch
        %6397 = sbr.rel (%p6395) target = $region64
      $region63: #{tpu_custom_call.1} parent=59 // pred_region
        %s6398 = smul.u32 16, %s25
        %p6399 = scmp.lt.s32.totalorder %s24, 1
        %s6400 = scalar_select %p6399, %s24, 1
        %p6401 = scmp.lt.s32.totalorder %s6398, 31
        %s6402 = scalar_select %p6401, %s6398, 31
        %s6403 = smul.addr %s6400, 32
        %s6404 = sadd.s32 %s6402, %s6403
        %s6405 = smul.addr %s6404, 8
        %s6406 = scalar_lea.vmem %s7, %s6405
      $region64: #{tpu_custom_call.1} parent=59 // pred_fallthru
        _
    $region60: #{tpu_custom_call.1} parent=5 // pred_fallthru
      _
  $region6: #{tpu_custom_call.1} parent=0 // loop_footer
    %s17 = sadd.s32 1, %s13
  $region7: #{tpu_custom_call.1} parent=0 // loop_footer_branch
    %12 = sbr.rel target = $region3
  $region8: #{tpu_custom_call.1} parent=0 // loop_exit
    _

</llo_original>
